<compile_context>
chip_gen: v7x
topology: tpu7x:2x2x1
jax: 0.10.0
libtpu: 0.0.40
codegen_flags: <defaults>
</compile_context>

<pallas_src>
import jax
import jax.numpy as jnp
from jax.experimental import pallas as pl
from jax.experimental.pallas import tpu as pltpu


# ----------------------------------------------------------------------------
# Pallas kernels: full-K matmul with fused per-channel epilogues
# ----------------------------------------------------------------------------
def _mm_bn_kernel(a_ref, b_ref, s_ref, t_ref, o_ref):
    # out = (a @ b) * scale + bias
    acc = jnp.dot(a_ref[...], b_ref[...], preferred_element_type=jnp.float32)
    o_ref[...] = (acc * s_ref[...] + t_ref[...]).astype(o_ref.dtype)


def _mm_bn_prelu_kernel(a_ref, b_ref, s_ref, t_ref, al_ref, o_ref):
    # out = prelu((a @ b) * scale + bias), per-channel slope alpha
    acc = jnp.dot(a_ref[...], b_ref[...], preferred_element_type=jnp.float32)
    y = acc * s_ref[...] + t_ref[...]
    o_ref[...] = jnp.where(y >= 0.0, y, al_ref[...] * y).astype(o_ref.dtype)


def _mm_bn_add_kernel(a_ref, b_ref, s_ref, t_ref, r_ref, o_ref):
    # out = (a @ b) * scale + bias + residual
    acc = jnp.dot(a_ref[...], b_ref[...], preferred_element_type=jnp.float32)
    o_ref[...] = (acc * s_ref[...] + t_ref[...] + r_ref[...]).astype(o_ref.dtype)


# ----------------------------------------------------------------------------
# Wrapper
# ----------------------------------------------------------------------------
def _pick_row_tile(m, cap=512):
    """Largest divisor of m that is a multiple of 8 and <= cap (avoids padding)."""
    for t in range(min(m, cap), 7, -1):
        if m % t == 0 and t % 8 == 0:
            return t
    return None


def fused_matmul(a, b, *, scale, bias, alpha=None, residual=None,
                 out_dtype=jnp.float32):
    """a: (M, K) activations, b: (K, Nc) weights (cast to bf16 here).
    Epilogue (per output channel, f32):
       alpha    given -> prelu(acc * scale + bias)
       residual given -> acc * scale + bias + residual
       otherwise      -> acc * scale + bias
    """
    M, K = a.shape
    Kb, Nc = b.shape
    assert K == Kb

    tm = _pick_row_tile(M)
    mp = M
    if tm is None:                               # ragged M fallback (rare): pad rows
        tm = min(256, ((M + 7) // 8) * 8)
        mp = ((M + tm - 1) // tm) * tm
        a = jnp.pad(a, ((0, mp - M), (0, 0)))
        if residual is not None:
            residual = jnp.pad(residual, ((0, mp - M), (0, 0)))
    tn = 128 if Nc % 128 == 0 else Nc            # lane-aligned, or full-dim block

    a = a.astype(jnp.bfloat16)                   # feed the MXU bf16, accumulate f32
    b = b.astype(jnp.bfloat16)
    s2 = scale.reshape(1, Nc).astype(jnp.float32)
    t2 = bias.reshape(1, Nc).astype(jnp.float32)

    row_spec = pl.BlockSpec((tm, K), lambda j, i: (i, 0))
    w_spec = pl.BlockSpec((K, tn), lambda j, i: (0, j))    # invariant along inner M loop
    vec_spec = pl.BlockSpec((1, tn), lambda j, i: (0, j))
    res_spec = pl.BlockSpec((tm, tn), lambda j, i: (i, j))
    out_spec = pl.BlockSpec((tm, tn), lambda j, i: (i, j))

    in_specs = [row_spec, w_spec, vec_spec, vec_spec]
    args = [a, b, s2, t2]
    if alpha is not None:
        kernel = _mm_bn_prelu_kernel
        in_specs.append(vec_spec)
        args.append(alpha.reshape(1, Nc).astype(jnp.float32))
    elif residual is not None:
        kernel = _mm_bn_add_kernel
        in_specs.append(res_spec)
        args.append(residual.astype(jnp.float32))
    else:
        kernel = _mm_bn_kernel

    out = pl.pallas_call(
        kernel,
        out_shape=jax.ShapeDtypeStruct((mp, Nc), out_dtype),
        grid_spec=pltpu.PrefetchScalarGridSpec(
            num_scalar_prefetch=0,
            grid=(Nc // tn, mp // tm),   # M is the fast axis -> weights stay VMEM-resident
            in_specs=in_specs,
            out_specs=out_spec,
        ),
        compiler_params=pltpu.CompilerParams(
            dimension_semantics=("parallel", "parallel")),
    )(*args)
    return out[:M] if mp != M else out


# ----------------------------------------------------------------------------
# Conv lowering glue (im2col in bf16; matmul + epilogues are the Pallas kernels)
# ----------------------------------------------------------------------------
def _im2col_3x3(x_pad, stride):
    """x_pad: (N, H+2, W+2, C) spatially padded input.
    Returns ((N*Ho*Wo, 9*C), (N, Ho, Wo)); columns ordered (dy, dx, c)."""
    N, Hp, Wp, C = x_pad.shape
    Ho = (Hp - 3) // stride + 1
    Wo = (Wp - 3) // stride + 1
    cols = []
    for dy in range(3):
        for dx in range(3):
            cols.append(x_pad[:, dy:dy + stride * (Ho - 1) + 1:stride,
                                 dx:dx + stride * (Wo - 1) + 1:stride, :])
    xcol = jnp.concatenate(cols, axis=-1)              # (N, Ho, Wo, 9C)
    return xcol.reshape(N * Ho * Wo, 9 * C), (N, Ho, Wo)


def _w_to_mat(w):
    """(Cout, Cin, 3, 3) PyTorch layout -> (9*Cin, Cout), rows ordered (dy, dx, c)."""
    cout, cin = w.shape[0], w.shape[1]
    return jnp.transpose(w, (2, 3, 1, 0)).reshape(9 * cin, cout)


# ----------------------------------------------------------------------------
# IBasicBlock forward (NCHW in, NCHW out) — eval-mode BN semantics
# ----------------------------------------------------------------------------
def ibasic_block_fwd(x_nchw, p):
    N, cin, H, W = x_nchw.shape
    stride, planes = p['stride'], p['planes']
    x = jnp.transpose(x_nchw, (0, 2, 3, 1)).astype(jnp.float32)      # NHWC

    # --- conv1 (3x3, stride 1) with bn1 folded into the weights.
    # conv1(bn1(x)) == conv(w1*s1, x padded with -b1/s1) + c1  (exact, incl. borders)
    s1, b1 = p['bn1_s'], p['bn1_b']
    pad_val = -(b1 / s1)
    xp = jnp.pad(x - pad_val, ((0, 0), (1, 1), (1, 1), (0, 0))) + pad_val
    a1, _ = _im2col_3x3(xp.astype(jnp.bfloat16), 1)                  # (N*H*W, 9*Cin) bf16
    w1_folded = p['conv1_w'] * s1[None, :, None, None]
    c1 = jnp.einsum('ocij,c->o', p['conv1_w'], b1)                   # per-Cout bn1-bias term
    # bn2 + PReLU fused into the matmul epilogue; intermediate written as bf16
    h = fused_matmul(a1, _w_to_mat(w1_folded),
                     scale=p['bn2_s'], bias=p['bn2_s'] * c1 + p['bn2_b'],
                     alpha=p['prelu_a'], out_dtype=jnp.bfloat16)

    # --- conv2 (3x3, given stride), bn3 + residual add fused into the epilogue
    hp = jnp.pad(h.reshape(N, H, W, planes), ((0, 0), (1, 1), (1, 1), (0, 0)))
    a2, (_, Ho, Wo) = _im2col_3x3(hp, stride)

    if p['has_ds']:
        # downsample: 1x1 strided conv + BN (BN fused as the matmul epilogue)
        xs = x[:, ::stride, ::stride, :].reshape(N * Ho * Wo, cin)
        identity = fused_matmul(xs, p['ds_conv_w'].reshape(planes, cin).T,
                                scale=p['ds_bn_s'], bias=p['ds_bn_b'],
                                out_dtype=jnp.float32)
    else:
        identity = x.reshape(N * H * W, cin)

    out = fused_matmul(a2, _w_to_mat(p['conv2_w']),
                       scale=p['bn3_s'], bias=p['bn3_b'],
                       residual=identity, out_dtype=jnp.float32)
    return jnp.transpose(out.reshape(N, Ho, Wo, planes), (0, 3, 1, 2))


# ----------------------------------------------------------------------------
# Deterministic parameters + pure-JAX reference for validation
# ----------------------------------------------------------------------------
def init_block_params(key, inplanes, planes, stride):
    eps = 1e-5
    kit = iter(jax.random.split(key, 16))

    def bn(c, k):
        k1, k2, k3, k4 = jax.random.split(k, 4)
        gamma = 1.0 + 0.1 * jax.random.normal(k1, (c,), jnp.float32)
        beta = 0.1 * jax.random.normal(k2, (c,), jnp.float32)
        mean = 0.1 * jax.random.normal(k3, (c,), jnp.float32)
        var = 1.0 + 0.1 * jnp.abs(jax.random.normal(k4, (c,), jnp.float32))
        s = gamma / jnp.sqrt(var + eps)
        return s, beta - mean * s

    p = {'inplanes': inplanes, 'planes': planes, 'stride': stride,
         'has_ds': (stride != 1) or (inplanes != planes)}
    p['bn1_s'], p['bn1_b'] = bn(inplanes, next(kit))
    p['conv1_w'] = 0.1 * jax.random.normal(next(kit), (planes, inplanes, 3, 3), jnp.float32)
    p['bn2_s'], p['bn2_b'] = bn(planes, next(kit))
    p['prelu_a'] = jnp.full((planes,), 0.25, jnp.float32)
    p['conv2_w'] = 0.1 * jax.random.normal(next(kit), (planes, planes, 3, 3), jnp.float32)
    p['bn3_s'], p['bn3_b'] = bn(planes, next(kit))
    if p['has_ds']:
        p['ds_conv_w'] = 0.1 * jax.random.normal(next(kit), (planes, inplanes, 1, 1), jnp.float32)
        p['ds_bn_s'], p['ds_bn_b'] = bn(planes, next(kit))
    return p


def ref_block(x, p):
    def bn(t, s, b):
        return t * s[None, :, None, None] + b[None, :, None, None]

    def conv(t, w, stride, pad):
        return jax.lax.conv_general_dilated(
            t, w, (stride, stride), ((pad, pad), (pad, pad)),
            dimension_numbers=('NCHW', 'OIHW', 'NCHW'))

    out = bn(x, p['bn1_s'], p['bn1_b'])
    out = conv(out, p['conv1_w'], 1, 1)
    out = bn(out, p['bn2_s'], p['bn2_b'])
    a = p['prelu_a'][None, :, None, None]
    out = jnp.where(out >= 0, out, a * out)
    out = conv(out, p['conv2_w'], p['stride'], 1)
    out = bn(out, p['bn3_s'], p['bn3_b'])
    if p['has_ds']:
        idn = conv(x, p['ds_conv_w'], p['stride'], 0)
        idn = bn(idn, p['ds_bn_s'], p['ds_bn_b'])
    else:
        idn = x
    return out + idn


# ----------------------------------------------------------------------------
if __name__ == "__main__":
    key = jax.random.PRNGKey(0)
    kA, kB, kx = jax.random.split(key, 3)

    # Block with downsample (64 -> 128, stride 2) and an identity block (64 -> 64).
    pA = init_block_params(kA, 64, 128, 2)
    pB = init_block_params(kB, 64, 64, 1)
    x = jax.random.normal(kx, (2, 64, 16, 16), jnp.float32)

    fwd = jax.jit(lambda inp: (ibasic_block_fwd(inp, pA), ibasic_block_fwd(inp, pB)))
    outA, outB = fwd(x)
    jax.block_until_ready((outA, outB))

    for out, ref in ((outA, ref_block(x, pA)), (outB, ref_block(x, pB))):
        assert out.shape == ref.shape, (out.shape, ref.shape)
        assert bool(jnp.all(jnp.isfinite(out)))
        err = float(jnp.max(jnp.abs(out - ref)))
        scale = float(jnp.max(jnp.abs(ref))) + 1e-6
        assert err <= 3e-2 * scale, (err, scale)   # bf16 MXU tolerance

    print("KERNEL_OK")
</pallas_src>

<mosaic_0001>
module attributes {stable_mosaic.version = 11 : i64} {
  func.func @_mm_bn_prelu_kernel(%arg0: i32, %arg1: i32, %arg2: memref<512x576xbf16, #tpu.memory_space<vmem>>, %arg3: memref<576x128xbf16, #tpu.memory_space<vmem>>, %arg4: memref<1x128xf32, #tpu.memory_space<vmem>>, %arg5: memref<1x128xf32, #tpu.memory_space<vmem>>, %arg6: memref<1x128xf32, #tpu.memory_space<vmem>>, %arg7: memref<512x128xbf16, #tpu.memory_space<vmem>>) attributes {dimension_semantics = [#tpu.dimension_semantics<parallel>, #tpu.dimension_semantics<parallel>], iteration_bounds = array<i64: 1, 1>, scalar_prefetch = 0 : i64, scratch_operands = 0 : i64, tpu.core_type = #tpu.core_type<tc>, window_params = [{transform_indices = @transform_0, window_bounds = array<i64: 512, 576>}, {transform_indices = @transform_1, window_bounds = array<i64: 576, 128>}, {transform_indices = @transform_2, window_bounds = array<i64: 1, 128>}, {transform_indices = @transform_3, window_bounds = array<i64: 1, 128>}, {transform_indices = @transform_4, window_bounds = array<i64: 1, 128>}, {transform_indices = @transform_5, window_bounds = array<i64: 512, 128>}]} {
    %c0 = arith.constant 0 : index
    %c0_0 = arith.constant 0 : index
    %0 = vector.load %arg2[%c0, %c0_0] : memref<512x576xbf16, #tpu.memory_space<vmem>>, vector<512x576xbf16>
    %c0_1 = arith.constant 0 : index
    %c0_2 = arith.constant 0 : index
    %1 = vector.load %arg3[%c0_1, %c0_2] : memref<576x128xbf16, #tpu.memory_space<vmem>>, vector<576x128xbf16>
    %cst = arith.constant dense<0.000000e+00> : vector<512x128xf32>
    %2 = tpu.matmul %0, %1, %cst {dimension_numbers = #tpu.dot_dimension_numbers<[1], [0], [0], [1], [0, 0, 1, 1], [], []>} : vector<512x576xbf16>, vector<576x128xbf16>, vector<512x128xf32> -> vector<512x128xf32>
    %c0_3 = arith.constant 0 : index
    %c0_4 = arith.constant 0 : index
    %3 = vector.load %arg4[%c0_3, %c0_4] : memref<1x128xf32, #tpu.memory_space<vmem>>, vector<1x128xf32>
    %4 = vector.broadcast %3 : vector<1x128xf32> to vector<512x128xf32>
    %5 = arith.mulf %2, %4 : vector<512x128xf32>
    %c0_5 = arith.constant 0 : index
    %c0_6 = arith.constant 0 : index
    %6 = vector.load %arg5[%c0_5, %c0_6] : memref<1x128xf32, #tpu.memory_space<vmem>>, vector<1x128xf32>
    %7 = vector.broadcast %6 : vector<1x128xf32> to vector<512x128xf32>
    %8 = arith.addf %5, %7 : vector<512x128xf32>
    %cst_7 = arith.constant 0.000000e+00 : f32
    %9 = vector.broadcast %cst_7 : f32 to vector<512x128xf32>
    %10 = arith.cmpf oge, %8, %9 : vector<512x128xf32>
    %c0_8 = arith.constant 0 : index
    %c0_9 = arith.constant 0 : index
    %11 = vector.load %arg6[%c0_8, %c0_9] : memref<1x128xf32, #tpu.memory_space<vmem>>, vector<1x128xf32>
    %12 = vector.broadcast %11 : vector<1x128xf32> to vector<512x128xf32>
    %13 = arith.mulf %12, %8 : vector<512x128xf32>
    %14 = arith.select %10, %8, %13 : vector<512x128xi1>, vector<512x128xf32>
    %15 = arith.truncf %14 : vector<512x128xf32> to vector<512x128xbf16>
    %c0_10 = arith.constant 0 : index
    %c0_11 = arith.constant 0 : index
    %16 = vector.load %arg7[%c0_10, %c0_11] : memref<512x128xbf16, #tpu.memory_space<vmem>>, vector<512x128xbf16>
    tpu.vector_store %arg7[%c0_10, %c0_11], %15 {strides = array<i32>} : memref<512x128xbf16, #tpu.memory_space<vmem>>, vector<512x128xbf16>,
    return
  }
  func.func @transform_0(%arg0: i32, %arg1: i32) -> (i32, i32) {
    %c0_i32 = arith.constant 0 : i32
    %c0_i32_0 = arith.constant 0 : i32
    return %arg1, %c0_i32 : i32, i32
  }
  func.func @transform_1(%arg0: i32, %arg1: i32) -> (i32, i32) {
    %c0_i32 = arith.constant 0 : i32
    %c0_i32_0 = arith.constant 0 : i32
    return %c0_i32, %arg0 : i32, i32
  }
  func.func @transform_2(%arg0: i32, %arg1: i32) -> (i32, i32) {
    %c0_i32 = arith.constant 0 : i32
    %c0_i32_0 = arith.constant 0 : i32
    return %c0_i32, %arg0 : i32, i32
  }
  func.func @transform_3(%arg0: i32, %arg1: i32) -> (i32, i32) {
    %c0_i32 = arith.constant 0 : i32
    %c0_i32_0 = arith.constant 0 : i32
    return %c0_i32, %arg0 : i32, i32
  }
  func.func @transform_4(%arg0: i32, %arg1: i32) -> (i32, i32) {
    %c0_i32 = arith.constant 0 : i32
    %c0_i32_0 = arith.constant 0 : i32
    return %c0_i32, %arg0 : i32, i32
  }
  func.func @transform_5(%arg0: i32, %arg1: i32) -> (i32, i32) {
    %c0_i32 = arith.constant 0 : i32
    return %arg1, %arg0 : i32, i32
  }
}

module attributes {stable_mosaic.version = 11 : i64} {
  func.func @_mm_bn_add_kernel(%arg0: i32, %arg1: i32, %arg2: memref<128x1152xbf16, #tpu.memory_space<vmem>>, %arg3: memref<1152x128xbf16, #tpu.memory_space<vmem>>, %arg4: memref<1x128xf32, #tpu.memory_space<vmem>>, %arg5: memref<1x128xf32, #tpu.memory_space<vmem>>, %arg6: memref<128x128xf32, #tpu.memory_space<vmem>>, %arg7: memref<128x128xf32, #tpu.memory_space<vmem>>) attributes {dimension_semantics = [#tpu.dimension_semantics<parallel>, #tpu.dimension_semantics<parallel>], iteration_bounds = array<i64: 1, 1>, scalar_prefetch = 0 : i64, scratch_operands = 0 : i64, tpu.core_type = #tpu.core_type<tc>, window_params = [{transform_indices = @transform_0, window_bounds = array<i64: 128, 1152>}, {transform_indices = @transform_1, window_bounds = array<i64: 1152, 128>}, {transform_indices = @transform_2, window_bounds = array<i64: 1, 128>}, {transform_indices = @transform_3, window_bounds = array<i64: 1, 128>}, {transform_indices = @transform_4, window_bounds = array<i64: 128, 128>}, {transform_indices = @transform_5, window_bounds = array<i64: 128, 128>}]} {
    %c0 = arith.constant 0 : index
    %c0_0 = arith.constant 0 : index
    %0 = vector.load %arg2[%c0, %c0_0] : memref<128x1152xbf16, #tpu.memory_space<vmem>>, vector<128x1152xbf16>
    %c0_1 = arith.constant 0 : index
    %c0_2 = arith.constant 0 : index
    %1 = vector.load %arg3[%c0_1, %c0_2] : memref<1152x128xbf16, #tpu.memory_space<vmem>>, vector<1152x128xbf16>
    %cst = arith.constant dense<0.000000e+00> : vector<128x128xf32>
    %2 = tpu.matmul %0, %1, %cst {dimension_numbers = #tpu.dot_dimension_numbers<[1], [0], [0], [1], [0, 0, 1, 1], [], []>} : vector<128x1152xbf16>, vector<1152x128xbf16>, vector<128x128xf32> -> vector<128x128xf32>
    %c0_3 = arith.constant 0 : index
    %c0_4 = arith.constant 0 : index
    %3 = vector.load %arg4[%c0_3, %c0_4] : memref<1x128xf32, #tpu.memory_space<vmem>>, vector<1x128xf32>
    %4 = vector.broadcast %3 : vector<1x128xf32> to vector<128x128xf32>
    %5 = arith.mulf %2, %4 : vector<128x128xf32>
    %c0_5 = arith.constant 0 : index
    %c0_6 = arith.constant 0 : index
    %6 = vector.load %arg5[%c0_5, %c0_6] : memref<1x128xf32, #tpu.memory_space<vmem>>, vector<1x128xf32>
    %7 = vector.broadcast %6 : vector<1x128xf32> to vector<128x128xf32>
    %8 = arith.addf %5, %7 : vector<128x128xf32>
    %c0_7 = arith.constant 0 : index
    %c0_8 = arith.constant 0 : index
    %9 = vector.load %arg6[%c0_7, %c0_8] : memref<128x128xf32, #tpu.memory_space<vmem>>, vector<128x128xf32>
    %10 = arith.addf %8, %9 : vector<128x128xf32>
    %c0_9 = arith.constant 0 : index
    %c0_10 = arith.constant 0 : index
    %11 = vector.load %arg7[%c0_9, %c0_10] : memref<128x128xf32, #tpu.memory_space<vmem>>, vector<128x128xf32>
    tpu.vector_store %arg7[%c0_9, %c0_10], %10 {strides = array<i32>} : memref<128x128xf32, #tpu.memory_space<vmem>>, vector<128x128xf32>,
    return
  }
  func.func @transform_0(%arg0: i32, %arg1: i32) -> (i32, i32) {
    %c0_i32 = arith.constant 0 : i32
    %c0_i32_0 = arith.constant 0 : i32
    return %arg1, %c0_i32 : i32, i32
  }
  func.func @transform_1(%arg0: i32, %arg1: i32) -> (i32, i32) {
    %c0_i32 = arith.constant 0 : i32
    %c0_i32_0 = arith.constant 0 : i32
    return %c0_i32, %arg0 : i32, i32
  }
  func.func @transform_2(%arg0: i32, %arg1: i32) -> (i32, i32) {
    %c0_i32 = arith.constant 0 : i32
    %c0_i32_0 = arith.constant 0 : i32
    return %c0_i32, %arg0 : i32, i32
  }
  func.func @transform_3(%arg0: i32, %arg1: i32) -> (i32, i32) {
    %c0_i32 = arith.constant 0 : i32
    %c0_i32_0 = arith.constant 0 : i32
    return %c0_i32, %arg0 : i32, i32
  }
  func.func @transform_4(%arg0: i32, %arg1: i32) -> (i32, i32) {
    %c0_i32 = arith.constant 0 : i32
    return %arg1, %arg0 : i32, i32
  }
  func.func @transform_5(%arg0: i32, %arg1: i32) -> (i32, i32) {
    %c0_i32 = arith.constant 0 : i32
    return %arg1, %arg0 : i32, i32
  }
}

module attributes {stable_mosaic.version = 11 : i64} {
  func.func @_mm_bn_prelu_kernel(%arg0: i32, %arg1: i32, %arg2: memref<512x576xbf16, #tpu.memory_space<vmem>>, %arg3: memref<576x64xbf16, #tpu.memory_space<vmem>>, %arg4: memref<1x64xf32, #tpu.memory_space<vmem>>, %arg5: memref<1x64xf32, #tpu.memory_space<vmem>>, %arg6: memref<1x64xf32, #tpu.memory_space<vmem>>, %arg7: memref<512x64xbf16, #tpu.memory_space<vmem>>) attributes {dimension_semantics = [#tpu.dimension_semantics<parallel>, #tpu.dimension_semantics<parallel>], iteration_bounds = array<i64: 1, 1>, scalar_prefetch = 0 : i64, scratch_operands = 0 : i64, tpu.core_type = #tpu.core_type<tc>, window_params = [{transform_indices = @transform_0, window_bounds = array<i64: 512, 576>}, {transform_indices = @transform_1, window_bounds = array<i64: 576, 64>}, {transform_indices = @transform_2, window_bounds = array<i64: 1, 64>}, {transform_indices = @transform_3, window_bounds = array<i64: 1, 64>}, {transform_indices = @transform_4, window_bounds = array<i64: 1, 64>}, {transform_indices = @transform_5, window_bounds = array<i64: 512, 64>}]} {
    %c0 = arith.constant 0 : index
    %c0_0 = arith.constant 0 : index
    %0 = vector.load %arg2[%c0, %c0_0] : memref<512x576xbf16, #tpu.memory_space<vmem>>, vector<512x576xbf16>
    %c0_1 = arith.constant 0 : index
    %c0_2 = arith.constant 0 : index
    %1 = vector.load %arg3[%c0_1, %c0_2] : memref<576x64xbf16, #tpu.memory_space<vmem>>, vector<576x64xbf16>
    %cst = arith.constant dense<0.000000e+00> : vector<512x64xf32>
    %2 = tpu.matmul %0, %1, %cst {dimension_numbers = #tpu.dot_dimension_numbers<[1], [0], [0], [1], [0, 0, 1, 1], [], []>} : vector<512x576xbf16>, vector<576x64xbf16>, vector<512x64xf32> -> vector<512x64xf32>
    %c0_3 = arith.constant 0 : index
    %c0_4 = arith.constant 0 : index
    %3 = vector.load %arg4[%c0_3, %c0_4] : memref<1x64xf32, #tpu.memory_space<vmem>>, vector<1x64xf32>
    %4 = vector.broadcast %3 : vector<1x64xf32> to vector<512x64xf32>
    %5 = arith.mulf %2, %4 : vector<512x64xf32>
    %c0_5 = arith.constant 0 : index
    %c0_6 = arith.constant 0 : index
    %6 = vector.load %arg5[%c0_5, %c0_6] : memref<1x64xf32, #tpu.memory_space<vmem>>, vector<1x64xf32>
    %7 = vector.broadcast %6 : vector<1x64xf32> to vector<512x64xf32>
    %8 = arith.addf %5, %7 : vector<512x64xf32>
    %cst_7 = arith.constant 0.000000e+00 : f32
    %9 = vector.broadcast %cst_7 : f32 to vector<512x64xf32>
    %10 = arith.cmpf oge, %8, %9 : vector<512x64xf32>
    %c0_8 = arith.constant 0 : index
    %c0_9 = arith.constant 0 : index
    %11 = vector.load %arg6[%c0_8, %c0_9] : memref<1x64xf32, #tpu.memory_space<vmem>>, vector<1x64xf32>
    %12 = vector.broadcast %11 : vector<1x64xf32> to vector<512x64xf32>
    %13 = arith.mulf %12, %8 : vector<512x64xf32>
    %14 = arith.select %10, %8, %13 : vector<512x64xi1>, vector<512x64xf32>
    %15 = arith.truncf %14 : vector<512x64xf32> to vector<512x64xbf16>
    %c0_10 = arith.constant 0 : index
    %c0_11 = arith.constant 0 : index
    %16 = vector.load %arg7[%c0_10, %c0_11] : memref<512x64xbf16, #tpu.memory_space<vmem>>, vector<512x64xbf16>
    tpu.vector_store %arg7[%c0_10, %c0_11], %15 {strides = array<i32>} : memref<512x64xbf16, #tpu.memory_space<vmem>>, vector<512x64xbf16>,
    return
  }
  func.func @transform_0(%arg0: i32, %arg1: i32) -> (i32, i32) {
    %c0_i32 = arith.constant 0 : i32
    %c0_i32_0 = arith.constant 0 : i32
    return %arg1, %c0_i32 : i32, i32
  }
  func.func @transform_1(%arg0: i32, %arg1: i32) -> (i32, i32) {
    %c0_i32 = arith.constant 0 : i32
    %c0_i32_0 = arith.constant 0 : i32
    return %c0_i32, %arg0 : i32, i32
  }
  func.func @transform_2(%arg0: i32, %arg1: i32) -> (i32, i32) {
    %c0_i32 = arith.constant 0 : i32
    %c0_i32_0 = arith.constant 0 : i32
    return %c0_i32, %arg0 : i32, i32
  }
  func.func @transform_3(%arg0: i32, %arg1: i32) -> (i32, i32) {
    %c0_i32 = arith.constant 0 : i32
    %c0_i32_0 = arith.constant 0 : i32
    return %c0_i32, %arg0 : i32, i32
  }
  func.func @transform_4(%arg0: i32, %arg1: i32) -> (i32, i32) {
    %c0_i32 = arith.constant 0 : i32
    %c0_i32_0 = arith.constant 0 : i32
    return %c0_i32, %arg0 : i32, i32
  }
  func.func @transform_5(%arg0: i32, %arg1: i32) -> (i32, i32) {
    %c0_i32 = arith.constant 0 : i32
    return %arg1, %arg0 : i32, i32
  }
}

module attributes {stable_mosaic.version = 11 : i64} {
  func.func @_mm_bn_kernel(%arg0: i32, %arg1: i32, %arg2: memref<128x64xbf16, #tpu.memory_space<vmem>>, %arg3: memref<64x128xbf16, #tpu.memory_space<vmem>>, %arg4: memref<1x128xf32, #tpu.memory_space<vmem>>, %arg5: memref<1x128xf32, #tpu.memory_space<vmem>>, %arg6: memref<128x128xf32, #tpu.memory_space<vmem>>) attributes {dimension_semantics = [#tpu.dimension_semantics<parallel>, #tpu.dimension_semantics<parallel>], iteration_bounds = array<i64: 1, 1>, scalar_prefetch = 0 : i64, scratch_operands = 0 : i64, tpu.core_type = #tpu.core_type<tc>, window_params = [{transform_indices = @transform_0, window_bounds = array<i64: 128, 64>}, {transform_indices = @transform_1, window_bounds = array<i64: 64, 128>}, {transform_indices = @transform_2, window_bounds = array<i64: 1, 128>}, {transform_indices = @transform_3, window_bounds = array<i64: 1, 128>}, {transform_indices = @transform_4, window_bounds = array<i64: 128, 128>}]} {
    %c0 = arith.constant 0 : index
    %c0_0 = arith.constant 0 : index
    %0 = vector.load %arg2[%c0, %c0_0] : memref<128x64xbf16, #tpu.memory_space<vmem>>, vector<128x64xbf16>
    %c0_1 = arith.constant 0 : index
    %c0_2 = arith.constant 0 : index
    %1 = vector.load %arg3[%c0_1, %c0_2] : memref<64x128xbf16, #tpu.memory_space<vmem>>, vector<64x128xbf16>
    %cst = arith.constant dense<0.000000e+00> : vector<128x128xf32>
    %2 = tpu.matmul %0, %1, %cst {dimension_numbers = #tpu.dot_dimension_numbers<[1], [0], [0], [1], [0, 0, 1, 1], [], []>} : vector<128x64xbf16>, vector<64x128xbf16>, vector<128x128xf32> -> vector<128x128xf32>
    %c0_3 = arith.constant 0 : index
    %c0_4 = arith.constant 0 : index
    %3 = vector.load %arg4[%c0_3, %c0_4] : memref<1x128xf32, #tpu.memory_space<vmem>>, vector<1x128xf32>
    %4 = vector.broadcast %3 : vector<1x128xf32> to vector<128x128xf32>
    %5 = arith.mulf %2, %4 : vector<128x128xf32>
    %c0_5 = arith.constant 0 : index
    %c0_6 = arith.constant 0 : index
    %6 = vector.load %arg5[%c0_5, %c0_6] : memref<1x128xf32, #tpu.memory_space<vmem>>, vector<1x128xf32>
    %7 = vector.broadcast %6 : vector<1x128xf32> to vector<128x128xf32>
    %8 = arith.addf %5, %7 : vector<128x128xf32>
    %c0_7 = arith.constant 0 : index
    %c0_8 = arith.constant 0 : index
    %9 = vector.load %arg6[%c0_7, %c0_8] : memref<128x128xf32, #tpu.memory_space<vmem>>, vector<128x128xf32>
    tpu.vector_store %arg6[%c0_7, %c0_8], %8 {strides = array<i32>} : memref<128x128xf32, #tpu.memory_space<vmem>>, vector<128x128xf32>,
    return
  }
  func.func @transform_0(%arg0: i32, %arg1: i32) -> (i32, i32) {
    %c0_i32 = arith.constant 0 : i32
    %c0_i32_0 = arith.constant 0 : i32
    return %arg1, %c0_i32 : i32, i32
  }
  func.func @transform_1(%arg0: i32, %arg1: i32) -> (i32, i32) {
    %c0_i32 = arith.constant 0 : i32
    %c0_i32_0 = arith.constant 0 : i32
    return %c0_i32, %arg0 : i32, i32
  }
  func.func @transform_2(%arg0: i32, %arg1: i32) -> (i32, i32) {
    %c0_i32 = arith.constant 0 : i32
    %c0_i32_0 = arith.constant 0 : i32
    return %c0_i32, %arg0 : i32, i32
  }
  func.func @transform_3(%arg0: i32, %arg1: i32) -> (i32, i32) {
    %c0_i32 = arith.constant 0 : i32
    %c0_i32_0 = arith.constant 0 : i32
    return %c0_i32, %arg0 : i32, i32
  }
  func.func @transform_4(%arg0: i32, %arg1: i32) -> (i32, i32) {
    %c0_i32 = arith.constant 0 : i32
    return %arg1, %arg0 : i32, i32
  }
}

module attributes {stable_mosaic.version = 11 : i64} {
  func.func @_mm_bn_add_kernel(%arg0: i32, %arg1: i32, %arg2: memref<512x576xbf16, #tpu.memory_space<vmem>>, %arg3: memref<576x64xbf16, #tpu.memory_space<vmem>>, %arg4: memref<1x64xf32, #tpu.memory_space<vmem>>, %arg5: memref<1x64xf32, #tpu.memory_space<vmem>>, %arg6: memref<512x64xf32, #tpu.memory_space<vmem>>, %arg7: memref<512x64xf32, #tpu.memory_space<vmem>>) attributes {dimension_semantics = [#tpu.dimension_semantics<parallel>, #tpu.dimension_semantics<parallel>], iteration_bounds = array<i64: 1, 1>, scalar_prefetch = 0 : i64, scratch_operands = 0 : i64, tpu.core_type = #tpu.core_type<tc>, window_params = [{transform_indices = @transform_0, window_bounds = array<i64: 512, 576>}, {transform_indices = @transform_1, window_bounds = array<i64: 576, 64>}, {transform_indices = @transform_2, window_bounds = array<i64: 1, 64>}, {transform_indices = @transform_3, window_bounds = array<i64: 1, 64>}, {transform_indices = @transform_4, window_bounds = array<i64: 512, 64>}, {transform_indices = @transform_5, window_bounds = array<i64: 512, 64>}]} {
    %c0 = arith.constant 0 : index
    %c0_0 = arith.constant 0 : index
    %0 = vector.load %arg2[%c0, %c0_0] : memref<512x576xbf16, #tpu.memory_space<vmem>>, vector<512x576xbf16>
    %c0_1 = arith.constant 0 : index
    %c0_2 = arith.constant 0 : index
    %1 = vector.load %arg3[%c0_1, %c0_2] : memref<576x64xbf16, #tpu.memory_space<vmem>>, vector<576x64xbf16>
    %cst = arith.constant dense<0.000000e+00> : vector<512x64xf32>
    %2 = tpu.matmul %0, %1, %cst {dimension_numbers = #tpu.dot_dimension_numbers<[1], [0], [0], [1], [0, 0, 1, 1], [], []>} : vector<512x576xbf16>, vector<576x64xbf16>, vector<512x64xf32> -> vector<512x64xf32>
    %c0_3 = arith.constant 0 : index
    %c0_4 = arith.constant 0 : index
    %3 = vector.load %arg4[%c0_3, %c0_4] : memref<1x64xf32, #tpu.memory_space<vmem>>, vector<1x64xf32>
    %4 = vector.broadcast %3 : vector<1x64xf32> to vector<512x64xf32>
    %5 = arith.mulf %2, %4 : vector<512x64xf32>
    %c0_5 = arith.constant 0 : index
    %c0_6 = arith.constant 0 : index
    %6 = vector.load %arg5[%c0_5, %c0_6] : memref<1x64xf32, #tpu.memory_space<vmem>>, vector<1x64xf32>
    %7 = vector.broadcast %6 : vector<1x64xf32> to vector<512x64xf32>
    %8 = arith.addf %5, %7 : vector<512x64xf32>
    %c0_7 = arith.constant 0 : index
    %c0_8 = arith.constant 0 : index
    %9 = vector.load %arg6[%c0_7, %c0_8] : memref<512x64xf32, #tpu.memory_space<vmem>>, vector<512x64xf32>
    %10 = arith.addf %8, %9 : vector<512x64xf32>
    %c0_9 = arith.constant 0 : index
    %c0_10 = arith.constant 0 : index
    %11 = vector.load %arg7[%c0_9, %c0_10] : memref<512x64xf32, #tpu.memory_space<vmem>>, vector<512x64xf32>
    tpu.vector_store %arg7[%c0_9, %c0_10], %10 {strides = array<i32>} : memref<512x64xf32, #tpu.memory_space<vmem>>, vector<512x64xf32>,
    return
  }
  func.func @transform_0(%arg0: i32, %arg1: i32) -> (i32, i32) {
    %c0_i32 = arith.constant 0 : i32
    %c0_i32_0 = arith.constant 0 : i32
    return %arg1, %c0_i32 : i32, i32
  }
  func.func @transform_1(%arg0: i32, %arg1: i32) -> (i32, i32) {
    %c0_i32 = arith.constant 0 : i32
    %c0_i32_0 = arith.constant 0 : i32
    return %c0_i32, %arg0 : i32, i32
  }
  func.func @transform_2(%arg0: i32, %arg1: i32) -> (i32, i32) {
    %c0_i32 = arith.constant 0 : i32
    %c0_i32_0 = arith.constant 0 : i32
    return %c0_i32, %arg0 : i32, i32
  }
  func.func @transform_3(%arg0: i32, %arg1: i32) -> (i32, i32) {
    %c0_i32 = arith.constant 0 : i32
    %c0_i32_0 = arith.constant 0 : i32
    return %c0_i32, %arg0 : i32, i32
  }
  func.func @transform_4(%arg0: i32, %arg1: i32) -> (i32, i32) {
    %c0_i32 = arith.constant 0 : i32
    return %arg1, %arg0 : i32, i32
  }
  func.func @transform_5(%arg0: i32, %arg1: i32) -> (i32, i32) {
    %c0_i32 = arith.constant 0 : i32
    return %arg1, %arg0 : i32, i32
  }
}

</mosaic_0001>

<llo_original>
// kernel: _lambda_.6
$region0: #{_lambda_.6}
  #allocation0 [shape = 'u32[]', space=smem, size = 0x4, offset = 0x4, fixed_abs, tag = 'smem constant byte address 0x4 - core index']
  #allocation1 [shape = 'u32[144,128]{1,0:T(1,128)}', space=vmem, size = 0x12000, scoped, tag = 'internal scratch']
  %s0 = inlined_call_operand.vmem [shape: bf16[128,64], index: 0, kind: input, shape index: {}]
  %s1 = inlined_call_operand.vmem [shape: bf16[64,128], index: 1, kind: input, shape index: {}]
  %s2 = inlined_call_operand.vmem [shape: f32[1,128], index: 2, kind: input, shape index: {}]
  %s3 = inlined_call_operand.vmem [shape: f32[1,128], index: 3, kind: input, shape index: {}]
  %s4 = inlined_call_operand.vmem [shape: f32[128,128], index: 4, kind: output, shape index: {}]
  %s5 = sld [smem:[#allocation0]]
  $region26: #{_lambda_.6} parent=0
    _
  %s7 = ssub.s32 1, %s5
  %s8 = scalar_select 0, %s7, %s5
  // Predicated region
  $region2: #{_lambda_.6} parent=0 // pred_check
    _
  $region3: #{_lambda_.6} parent=0 // pred_check_branch
    %10 = sbr.rel (0) target = $region5
  $region4: #{_lambda_.6} parent=0 // pred_region
    _
  $region5: #{_lambda_.6} parent=0 // pred_fallthru
    _
  // Predicated region
  $region6: #{_lambda_.6} parent=0 // pred_check
    _
  $region7: #{_lambda_.6} parent=0 // pred_check_branch
    %12 = sbr.rel (0) target = $region9
  $region8: #{_lambda_.6} parent=0 // pred_region
    _
  $region9: #{_lambda_.6} parent=0 // pred_fallthru
    _
  // Predicated region
  $region10: #{_lambda_.6} parent=0 // pred_check
    _
  $region11: #{_lambda_.6} parent=0 // pred_check_branch
    %14 = sbr.rel (0) target = $region13
  $region12: #{_lambda_.6} parent=0 // pred_region
    _
  $region13: #{_lambda_.6} parent=0 // pred_fallthru
    _
  // Predicated region
  $region14: #{_lambda_.6} parent=0 // pred_check
    _
  $region15: #{_lambda_.6} parent=0 // pred_check_branch
    %16 = sbr.rel (0) target = $region17
  $region16: #{_lambda_.6} parent=0 // pred_region
    _
  $region17: #{_lambda_.6} parent=0 // pred_fallthru
    _
  %v18 = vld [vmem:[%s0] sm:$0xf]
  %v19 = vld [vmem:[%s0 + $0x4] sm:$0xf]
  %v20 = vld [vmem:[%s0 + $0x8] sm:$0xf]
  %v21 = vld [vmem:[%s0 + $0xc] sm:$0xf]
  %v22 = vld [vmem:[%s0 + $0x10] sm:$0xf]
  %v23 = vld [vmem:[%s0 + $0x14] sm:$0xf]
  %v24 = vld [vmem:[%s0 + $0x18] sm:$0xf]
  %v25 = vld [vmem:[%s0 + $0x1c] sm:$0xf]
  %v26 = vld [vmem:[%s0 + $0x20] sm:$0xf]
  %v27 = vld [vmem:[%s0 + $0x24] sm:$0xf]
  %v28 = vld [vmem:[%s0 + $0x28] sm:$0xf]
  %v29 = vld [vmem:[%s0 + $0x2c] sm:$0xf]
  %v30 = vld [vmem:[%s0 + $0x30] sm:$0xf]
  %v31 = vld [vmem:[%s0 + $0x34] sm:$0xf]
  %v32 = vld [vmem:[%s0 + $0x38] sm:$0xf]
  %v33 = vld [vmem:[%s0 + $0x3c] sm:$0xf]
  %v34 = vld [vmem:[%s1] sm:$0xf]
  %v35 = vld [vmem:[%s1 + $0x4] sm:$0xf]
  %v36 = vld [vmem:[%s1 + $0x8] sm:$0xf]
  %v37 = vld [vmem:[%s1 + $0xc] sm:$0xf]
  %v38 = vld [vmem:[%s1 + $0x10] sm:$0xf]
  %v39 = vld [vmem:[%s1 + $0x14] sm:$0xf]
  %v40 = vld [vmem:[%s1 + $0x18] sm:$0xf]
  %v41 = vld [vmem:[%s1 + $0x1c] sm:$0xf]
  %v58 = vunpack.c.l.b16 %v18
  %v59 = vunpack.c.l.b16 %v19
  %v60 = vunpack.c.l.b16 %v20
  %v61 = vunpack.c.l.b16 %v21
  %v62 = vunpack.c.l.b16 %v22
  %v63 = vunpack.c.l.b16 %v23
  %v64 = vunpack.c.l.b16 %v24
  %v65 = vunpack.c.l.b16 %v25
  %v66 = vunpack.c.l.b16 %v26
  %v67 = vunpack.c.l.b16 %v27
  %v68 = vunpack.c.l.b16 %v28
  %v69 = vunpack.c.l.b16 %v29
  %v70 = vunpack.c.l.b16 %v30
  %v71 = vunpack.c.l.b16 %v31
  %v72 = vunpack.c.l.b16 %v32
  %v73 = vunpack.c.l.b16 %v33
  %v74 = vpack.c.b16 %v59, %v58
  %v75 = vpack.c.b16 %v61, %v60
  %v76 = vpack.c.b16 %v63, %v62
  %v77 = vpack.c.b16 %v65, %v64
  %v78 = vpack.c.b16 %v67, %v66
  %v79 = vpack.c.b16 %v69, %v68
  %v80 = vpack.c.b16 %v71, %v70
  %v81 = vpack.c.b16 %v73, %v72
  %v90 = vunpack.c.l.b16 %v34
  %v91 = vunpack.c.l.b16 %v35
  %v92 = vunpack.c.l.b16 %v36
  %v93 = vunpack.c.l.b16 %v37
  %v94 = vunpack.c.l.b16 %v38
  %v95 = vunpack.c.l.b16 %v39
  %v96 = vunpack.c.l.b16 %v40
  %v97 = vunpack.c.l.b16 %v41
  %v98 = vpack.c.b16 %v91, %v90
  %v99 = vpack.c.b16 %v93, %v92
  %v100 = vpack.c.b16 %v95, %v94
  %v101 = vpack.c.b16 %v97, %v96
  %vm106 = vcmask 523264
  %v108 = vsel %vm106, %v74, 0
  %v111 = vsel %vm106, %v75, 0
  %v114 = vsel %vm106, %v76, 0
  %v117 = vsel %vm106, %v77, 0
  %v120 = vsel %vm106, %v78, 0
  %v123 = vsel %vm106, %v79, 0
  %v126 = vsel %vm106, %v80, 0
  %v129 = vsel %vm106, %v81, 0
  %131 = vmatprep.subr.bf16.mxu0 0
  %132 = vmatpush1.bf16.msra.mxu0 %v98
  %133 = vmatprep.subr.bf16.mxu0 0
  %134 = vmatpush1.bf16.msra.mxu0 %v99
  %135 = vmatprep.subr.bf16.mxu0 0
  %136 = vmatpush1.bf16.msra.mxu0 %v100
  %137 = vmatprep.subr.bf16.mxu0 0
  %138 = vmatpush1.bf16.msra.mxu0 %v101
  %139 = vmatprep.subr.bf16.mxu0 0
  %140 = vmatpush1.bf16.msra.mxu0 0
  %141 = vmatprep.subr.bf16.mxu0 0
  %142 = vmatpush1.bf16.msra.mxu0 0
  %143 = vmatprep.subr.bf16.mxu0 0
  %144 = vmatpush1.bf16.msra.mxu0 0
  %145 = vmatprep.subr.bf16.mxu0 0
  %146 = vmatpush1.bf16.msra.mxu0 0
  %147 = vmatprep.subr.bf16.mxu0 0
  %148 = vmatpush1.bf16.msra.mxu0 0
  %149 = vmatprep.subr.bf16.mxu0 0
  %150 = vmatpush1.bf16.msra.mxu0 0
  %151 = vmatprep.subr.bf16.mxu0 0
  %152 = vmatpush1.bf16.msra.mxu0 0
  %153 = vmatprep.subr.bf16.mxu0 0
  %154 = vmatpush1.bf16.msra.mxu0 0
  %155 = vmatprep.subr.bf16.mxu0 0
  %156 = vmatpush1.bf16.msra.mxu0 0
  %157 = vmatprep.subr.bf16.mxu0 0
  %158 = vmatpush1.bf16.msra.mxu0 0
  %159 = vmatprep.subr.bf16.mxu0 0
  %160 = vmatpush1.bf16.msra.mxu0 0
  %161 = vmatprep.subr.bf16.mxu0 0
  %162 = vmatpush1.bf16.msra.mxu0 0
  %163 = vmatprep.mubr.bf16.mxu0 0
  %164 = vmatmul.mubr.bf16.gmra.mrb[0].mxu0 %v108
  %v165 = vpop.f32.mrb[0].mxu0
  %v166 = vadd.f32 0.0, %v165
  %v167 = vpop.f32.mrb[0].mxu0
  %v168 = vpop.f32.mrb[0].mxu0
  %v169 = vadd.f32 0.0, %v168
  %v170 = vpop.f32.mrb[0].mxu0
  %171 = vmatprep.mubr.bf16.mxu0 0
  %172 = vmatmul.mubr.bf16.gmra.mrb[0].mxu0 %v111
  %v173 = vpop.f32.mrb[0].mxu0
  %v174 = vadd.f32 0.0, %v173
  %v175 = vpop.f32.mrb[0].mxu0
  %v176 = vpop.f32.mrb[0].mxu0
  %v177 = vadd.f32 0.0, %v176
  %v178 = vpop.f32.mrb[0].mxu0
  %179 = vmatprep.mubr.bf16.mxu0 0
  %180 = vmatmul.mubr.bf16.gmra.mrb[0].mxu0 %v114
  %v181 = vpop.f32.mrb[0].mxu0
  %v182 = vadd.f32 0.0, %v181
  %v183 = vpop.f32.mrb[0].mxu0
  %v184 = vpop.f32.mrb[0].mxu0
  %v185 = vadd.f32 0.0, %v184
  %v186 = vpop.f32.mrb[0].mxu0
  %187 = vmatprep.mubr.bf16.mxu0 0
  %188 = vmatmul.mubr.bf16.gmra.mrb[0].mxu0 %v117
  %v189 = vpop.f32.mrb[0].mxu0
  %v190 = vadd.f32 0.0, %v189
  %v191 = vpop.f32.mrb[0].mxu0
  %v192 = vpop.f32.mrb[0].mxu0
  %v193 = vadd.f32 0.0, %v192
  %v194 = vpop.f32.mrb[0].mxu0
  %195 = vmatprep.mubr.bf16.mxu0 0
  %196 = vmatmul.mubr.bf16.gmra.mrb[0].mxu0 %v120
  %v197 = vpop.f32.mrb[0].mxu0
  %v198 = vadd.f32 0.0, %v197
  %v199 = vpop.f32.mrb[0].mxu0
  %v200 = vpop.f32.mrb[0].mxu0
  %v201 = vadd.f32 0.0, %v200
  %v202 = vpop.f32.mrb[0].mxu0
  %203 = vmatprep.mubr.bf16.mxu0 0
  %204 = vmatmul.mubr.bf16.gmra.mrb[0].mxu0 %v123
  %v205 = vpop.f32.mrb[0].mxu0
  %v206 = vadd.f32 0.0, %v205
  %v207 = vpop.f32.mrb[0].mxu0
  %v208 = vpop.f32.mrb[0].mxu0
  %v209 = vadd.f32 0.0, %v208
  %v210 = vpop.f32.mrb[0].mxu0
  %211 = vmatprep.mubr.bf16.mxu0 0
  %212 = vmatmul.mubr.bf16.gmra.mrb[0].mxu0 %v126
  %v213 = vpop.f32.mrb[0].mxu0
  %v214 = vadd.f32 0.0, %v213
  %v215 = vpop.f32.mrb[0].mxu0
  %v216 = vpop.f32.mrb[0].mxu0
  %v217 = vadd.f32 0.0, %v216
  %v218 = vpop.f32.mrb[0].mxu0
  %219 = vmatprep.mubr.bf16.mxu0 0
  %220 = vmatmul.mubr.bf16.gmra.mrb[0].mxu0 %v129
  %v221 = vpop.f32.mrb[0].mxu0
  %v222 = vadd.f32 0.0, %v221
  %v223 = vpop.f32.mrb[0].mxu0
  %v224 = vpop.f32.mrb[0].mxu0
  %v225 = vadd.f32 0.0, %v224
  %v226 = vpop.f32.mrb[0].mxu0
  %227 = vdwg.mxu0
  %v228 = vld [vmem:[%s2] sm:$0x1]
  %v230 = vlaneseq
  %v231 = vshrl.u32 %v230, 7
  %v232 = vsub.s32 0, %v231
  %v233 = vrot.slane %v228, %v232
  %v235 = vmul.f32 %v166, %v233
  %v236 = vmul.f32 %v169, %v233
  %v237 = vmul.f32 %v174, %v233
  %v238 = vmul.f32 %v177, %v233
  %v239 = vmul.f32 %v182, %v233
  %v240 = vmul.f32 %v185, %v233
  %v241 = vmul.f32 %v190, %v233
  %v242 = vmul.f32 %v193, %v233
  %v243 = vmul.f32 %v198, %v233
  %v244 = vmul.f32 %v201, %v233
  %v245 = vmul.f32 %v206, %v233
  %v246 = vmul.f32 %v209, %v233
  %v247 = vmul.f32 %v214, %v233
  %v248 = vmul.f32 %v217, %v233
  %v249 = vmul.f32 %v222, %v233
  %v250 = vmul.f32 %v225, %v233
  %v251 = vld [vmem:[%s3] sm:$0x1]
  %v253 = vlaneseq
  %v254 = vshrl.u32 %v253, 7
  %v255 = vsub.s32 0, %v254
  %v256 = vrot.slane %v251, %v255
  %v258 = vadd.f32 %v235, %v256
  %v259 = vadd.f32 %v236, %v256
  %v260 = vadd.f32 %v237, %v256
  %v261 = vadd.f32 %v238, %v256
  %v262 = vadd.f32 %v239, %v256
  %v263 = vadd.f32 %v240, %v256
  %v264 = vadd.f32 %v241, %v256
  %v265 = vadd.f32 %v242, %v256
  %v266 = vadd.f32 %v243, %v256
  %v267 = vadd.f32 %v244, %v256
  %v268 = vadd.f32 %v245, %v256
  %v269 = vadd.f32 %v246, %v256
  %v270 = vadd.f32 %v247, %v256
  %v271 = vadd.f32 %v248, %v256
  %v272 = vadd.f32 %v249, %v256
  %v273 = vadd.f32 %v250, %v256
  %274 = vst [vmem:[%s4] sm:$0xff] %v258
  %275 = vst [vmem:[%s4 + $0x8] sm:$0xff] %v259
  %276 = vst [vmem:[%s4 + $0x10] sm:$0xff] %v260
  %277 = vst [vmem:[%s4 + $0x18] sm:$0xff] %v261
  %278 = vst [vmem:[%s4 + $0x20] sm:$0xff] %v262
  %279 = vst [vmem:[%s4 + $0x28] sm:$0xff] %v263
  %280 = vst [vmem:[%s4 + $0x30] sm:$0xff] %v264
  %281 = vst [vmem:[%s4 + $0x38] sm:$0xff] %v265
  %282 = vst [vmem:[%s4 + $0x40] sm:$0xff] %v266
  %283 = vst [vmem:[%s4 + $0x48] sm:$0xff] %v267
  %284 = vst [vmem:[%s4 + $0x50] sm:$0xff] %v268
  %285 = vst [vmem:[%s4 + $0x58] sm:$0xff] %v269
  %286 = vst [vmem:[%s4 + $0x60] sm:$0xff] %v270
  %287 = vst [vmem:[%s4 + $0x68] sm:$0xff] %v271
  %288 = vst [vmem:[%s4 + $0x70] sm:$0xff] %v272
  %289 = vst [vmem:[%s4 + $0x78] sm:$0xff] %v273
  // Predicated region
  $region18: #{_lambda_.6} parent=0 // pred_check
    _
  $region19: #{_lambda_.6} parent=0 // pred_check_branch
    %291 = sbr.rel (0) target = $region21
  $region20: #{_lambda_.6} parent=0 // pred_region
    _
  $region21: #{_lambda_.6} parent=0 // pred_fallthru
    _
  // Predicated region
  $region22: #{_lambda_.6} parent=0 // pred_check
    _
  $region23: #{_lambda_.6} parent=0 // pred_check_branch
    %293 = sbr.rel (0) target = $region25
  $region24: #{_lambda_.6} parent=0 // pred_region
    _
  $region25: #{_lambda_.6} parent=0 // pred_fallthru
    _

// kernel: _lambda_.7
$region0: #{_lambda_.7}
  #allocation0 [shape = 'u32[]', space=smem, size = 0x4, offset = 0x4, fixed_abs, tag = 'smem constant byte address 0x4 - core index']
  #allocation1 [shape = 'u32[144,128]{1,0:T(1,128)}', space=vmem, size = 0x12000, scoped, tag = 'internal scratch']
  %s0 = inlined_call_operand.vmem [shape: bf16[128,1152], index: 0, kind: input, shape index: {}]
  %s1 = inlined_call_operand.vmem [shape: bf16[1152,128], index: 1, kind: input, shape index: {}]
  %s2 = inlined_call_operand.vmem [shape: f32[1,128], index: 2, kind: input, shape index: {}]
  %s3 = inlined_call_operand.vmem [shape: f32[1,128], index: 3, kind: input, shape index: {}]
  %s4 = inlined_call_operand.vmem [shape: f32[128,128], index: 4, kind: input, shape index: {}]
  %s5 = inlined_call_operand.hbm [shape: f32[128,128], index: 5, kind: output, shape index: {}]
  %s6 = sld [smem:[#allocation0]]
  $region30: #{_lambda_.7} parent=0
    _
  %s8 = ssub.s32 1, %s6
  %s9 = scalar_select 0, %s8, %s6
  $region1: #{_lambda_.7} parent=0
    #allocation2 [shape = 'u8[65536]{0}', space=vmem, size = 0x10000, scoped, tag = 'output window, operand 0, single buffered']
    #allocation3 [shape = 's32[1]{0}', space=sflag, size = 0x4, scoped, tag = 'scoped memory for _lambda_.7']
    %10 = vsyncpa [#allocation3], 0
    // Predicated region
    $region2: #{_lambda_.7} parent=1 // pred_check
      _
    $region3: #{_lambda_.7} parent=1 // pred_check_branch
      %12 = sbr.rel (0) target = $region5
    $region4: #{_lambda_.7} parent=1 // pred_region
      _
    $region5: #{_lambda_.7} parent=1 // pred_fallthru
      _
    // Predicated region
    $region6: #{_lambda_.7} parent=1 // pred_check
      _
    $region7: #{_lambda_.7} parent=1 // pred_check_branch
      %14 = sbr.rel (0) target = $region9
    $region8: #{_lambda_.7} parent=1 // pred_region
      _
    $region9: #{_lambda_.7} parent=1 // pred_fallthru
      _
    // Predicated region
    $region10: #{_lambda_.7} parent=1 // pred_check
      _
    $region11: #{_lambda_.7} parent=1 // pred_check_branch
      %16 = sbr.rel (0) target = $region13
    $region12: #{_lambda_.7} parent=1 // pred_region
      _
    $region13: #{_lambda_.7} parent=1 // pred_fallthru
      _
    // Predicated region
    $region14: #{_lambda_.7} parent=1 // pred_check
      _
    $region15: #{_lambda_.7} parent=1 // pred_check_branch
      %18 = sbr.rel (0) target = $region17
    $region16: #{_lambda_.7} parent=1 // pred_region
      _
    $region17: #{_lambda_.7} parent=1 // pred_fallthru
      _
    // Predicated region
    $region18: #{_lambda_.7} parent=1 // pred_check
      _
    $region19: #{_lambda_.7} parent=1 // pred_check_branch
      %20 = sbr.rel (0) target = $region21
    $region20: #{_lambda_.7} parent=1 // pred_region
      _
    $region21: #{_lambda_.7} parent=1 // pred_fallthru
      _
    %v22 = vld [vmem:[%s0] sm:$0xff]
    %v23 = vld [vmem:[%s0 + $0x8] sm:$0xff]
    %v24 = vld [vmem:[%s0 + $0x10] sm:$0xff]
    %v25 = vld [vmem:[%s0 + $0x18] sm:$0xff]
    %v26 = vld [vmem:[%s0 + $0x20] sm:$0xf]
    %v27 = vld [vmem:[%s0 + $0x24] sm:$0xff]
    %v28 = vld [vmem:[%s0 + $0x2c] sm:$0xff]
    %v29 = vld [vmem:[%s0 + $0x34] sm:$0xff]
    %v30 = vld [vmem:[%s0 + $0x3c] sm:$0xff]
    %v31 = vld [vmem:[%s0 + $0x44] sm:$0xf]
    %v32 = vld [vmem:[%s0 + $0x48] sm:$0xff]
    %v33 = vld [vmem:[%s0 + $0x50] sm:$0xff]
    %v34 = vld [vmem:[%s0 + $0x58] sm:$0xff]
    %v35 = vld [vmem:[%s0 + $0x60] sm:$0xff]
    %v36 = vld [vmem:[%s0 + $0x68] sm:$0xf]
    %v37 = vld [vmem:[%s0 + $0x6c] sm:$0xff]
    %v38 = vld [vmem:[%s0 + $0x74] sm:$0xff]
    %v39 = vld [vmem:[%s0 + $0x7c] sm:$0xff]
    %v40 = vld [vmem:[%s0 + $0x84] sm:$0xff]
    %v41 = vld [vmem:[%s0 + $0x8c] sm:$0xf]
    %v42 = vld [vmem:[%s0 + $0x90] sm:$0xff]
    %v43 = vld [vmem:[%s0 + $0x98] sm:$0xff]
    %v44 = vld [vmem:[%s0 + $0xa0] sm:$0xff]
    %v45 = vld [vmem:[%s0 + $0xa8] sm:$0xff]
    %v46 = vld [vmem:[%s0 + $0xb0] sm:$0xf]
    %v47 = vld [vmem:[%s0 + $0xb4] sm:$0xff]
    %v48 = vld [vmem:[%s0 + $0xbc] sm:$0xff]
    %v49 = vld [vmem:[%s0 + $0xc4] sm:$0xff]
    %v50 = vld [vmem:[%s0 + $0xcc] sm:$0xff]
    %v51 = vld [vmem:[%s0 + $0xd4] sm:$0xf]
    %v52 = vld [vmem:[%s0 + $0xd8] sm:$0xff]
    %v53 = vld [vmem:[%s0 + $0xe0] sm:$0xff]
    %v54 = vld [vmem:[%s0 + $0xe8] sm:$0xff]
    %v55 = vld [vmem:[%s0 + $0xf0] sm:$0xff]
    %v56 = vld [vmem:[%s0 + $0xf8] sm:$0xf]
    %v57 = vld [vmem:[%s0 + $0xfc] sm:$0xff]
    %v58 = vld [vmem:[%s0 + $0x104] sm:$0xff]
    %v59 = vld [vmem:[%s0 + $0x10c] sm:$0xff]
    %v60 = vld [vmem:[%s0 + $0x114] sm:$0xff]
    %v61 = vld [vmem:[%s0 + $0x11c] sm:$0xf]
    %v62 = vld [vmem:[%s0 + $0x120] sm:$0xff]
    %v63 = vld [vmem:[%s0 + $0x128] sm:$0xff]
    %v64 = vld [vmem:[%s0 + $0x130] sm:$0xff]
    %v65 = vld [vmem:[%s0 + $0x138] sm:$0xff]
    %v66 = vld [vmem:[%s0 + $0x140] sm:$0xf]
    %v67 = vld [vmem:[%s0 + $0x144] sm:$0xff]
    %v68 = vld [vmem:[%s0 + $0x14c] sm:$0xff]
    %v69 = vld [vmem:[%s0 + $0x154] sm:$0xff]
    %v70 = vld [vmem:[%s0 + $0x15c] sm:$0xff]
    %v71 = vld [vmem:[%s0 + $0x164] sm:$0xf]
    %v72 = vld [vmem:[%s0 + $0x168] sm:$0xff]
    %v73 = vld [vmem:[%s0 + $0x170] sm:$0xff]
    %v74 = vld [vmem:[%s0 + $0x178] sm:$0xff]
    %v75 = vld [vmem:[%s0 + $0x180] sm:$0xff]
    %v76 = vld [vmem:[%s0 + $0x188] sm:$0xf]
    %v77 = vld [vmem:[%s0 + $0x18c] sm:$0xff]
    %v78 = vld [vmem:[%s0 + $0x194] sm:$0xff]
    %v79 = vld [vmem:[%s0 + $0x19c] sm:$0xff]
    %v80 = vld [vmem:[%s0 + $0x1a4] sm:$0xff]
    %v81 = vld [vmem:[%s0 + $0x1ac] sm:$0xf]
    %v82 = vld [vmem:[%s0 + $0x1b0] sm:$0xff]
    %v83 = vld [vmem:[%s0 + $0x1b8] sm:$0xff]
    %v84 = vld [vmem:[%s0 + $0x1c0] sm:$0xff]
    %v85 = vld [vmem:[%s0 + $0x1c8] sm:$0xff]
    %v86 = vld [vmem:[%s0 + $0x1d0] sm:$0xf]
    %v87 = vld [vmem:[%s0 + $0x1d4] sm:$0xff]
    %v88 = vld [vmem:[%s0 + $0x1dc] sm:$0xff]
    %v89 = vld [vmem:[%s0 + $0x1e4] sm:$0xff]
    %v90 = vld [vmem:[%s0 + $0x1ec] sm:$0xff]
    %v91 = vld [vmem:[%s0 + $0x1f4] sm:$0xf]
    %v92 = vld [vmem:[%s0 + $0x1f8] sm:$0xff]
    %v93 = vld [vmem:[%s0 + $0x200] sm:$0xff]
    %v94 = vld [vmem:[%s0 + $0x208] sm:$0xff]
    %v95 = vld [vmem:[%s0 + $0x210] sm:$0xff]
    %v96 = vld [vmem:[%s0 + $0x218] sm:$0xf]
    %v97 = vld [vmem:[%s0 + $0x21c] sm:$0xff]
    %v98 = vld [vmem:[%s0 + $0x224] sm:$0xff]
    %v99 = vld [vmem:[%s0 + $0x22c] sm:$0xff]
    %v100 = vld [vmem:[%s0 + $0x234] sm:$0xff]
    %v101 = vld [vmem:[%s0 + $0x23c] sm:$0xf]
    %v102 = vld [vmem:[%s1] sm:$0xf]
    %v103 = vld [vmem:[%s1 + $0x4] sm:$0xf]
    %v104 = vld [vmem:[%s1 + $0x8] sm:$0xf]
    %v105 = vld [vmem:[%s1 + $0xc] sm:$0xf]
    %v106 = vld [vmem:[%s1 + $0x10] sm:$0xf]
    %v107 = vld [vmem:[%s1 + $0x14] sm:$0xf]
    %v108 = vld [vmem:[%s1 + $0x18] sm:$0xf]
    %v109 = vld [vmem:[%s1 + $0x1c] sm:$0xf]
    %v110 = vld [vmem:[%s1 + $0x20] sm:$0xf]
    %v111 = vld [vmem:[%s1 + $0x24] sm:$0xf]
    %v112 = vld [vmem:[%s1 + $0x28] sm:$0xf]
    %v113 = vld [vmem:[%s1 + $0x2c] sm:$0xf]
    %v114 = vld [vmem:[%s1 + $0x30] sm:$0xf]
    %v115 = vld [vmem:[%s1 + $0x34] sm:$0xf]
    %v116 = vld [vmem:[%s1 + $0x38] sm:$0xf]
    %v117 = vld [vmem:[%s1 + $0x3c] sm:$0xf]
    %v118 = vld [vmem:[%s1 + $0x40] sm:$0xf]
    %v119 = vld [vmem:[%s1 + $0x44] sm:$0xf]
    %v120 = vld [vmem:[%s1 + $0x48] sm:$0xf]
    %v121 = vld [vmem:[%s1 + $0x4c] sm:$0xf]
    %v122 = vld [vmem:[%s1 + $0x50] sm:$0xf]
    %v123 = vld [vmem:[%s1 + $0x54] sm:$0xf]
    %v124 = vld [vmem:[%s1 + $0x58] sm:$0xf]
    %v125 = vld [vmem:[%s1 + $0x5c] sm:$0xf]
    %v126 = vld [vmem:[%s1 + $0x60] sm:$0xf]
    %v127 = vld [vmem:[%s1 + $0x64] sm:$0xf]
    %v128 = vld [vmem:[%s1 + $0x68] sm:$0xf]
    %v129 = vld [vmem:[%s1 + $0x6c] sm:$0xf]
    %v130 = vld [vmem:[%s1 + $0x70] sm:$0xf]
    %v131 = vld [vmem:[%s1 + $0x74] sm:$0xf]
    %v132 = vld [vmem:[%s1 + $0x78] sm:$0xf]
    %v133 = vld [vmem:[%s1 + $0x7c] sm:$0xf]
    %v134 = vld [vmem:[%s1 + $0x80] sm:$0xf]
    %v135 = vld [vmem:[%s1 + $0x84] sm:$0xf]
    %v136 = vld [vmem:[%s1 + $0x88] sm:$0xf]
    %v137 = vld [vmem:[%s1 + $0x8c] sm:$0xf]
    %v138 = vld [vmem:[%s1 + $0x90] sm:$0xf]
    %v139 = vld [vmem:[%s1 + $0x94] sm:$0xf]
    %v140 = vld [vmem:[%s1 + $0x98] sm:$0xf]
    %v141 = vld [vmem:[%s1 + $0x9c] sm:$0xf]
    %v142 = vld [vmem:[%s1 + $0xa0] sm:$0xf]
    %v143 = vld [vmem:[%s1 + $0xa4] sm:$0xf]
    %v144 = vld [vmem:[%s1 + $0xa8] sm:$0xf]
    %v145 = vld [vmem:[%s1 + $0xac] sm:$0xf]
    %v146 = vld [vmem:[%s1 + $0xb0] sm:$0xf]
    %v147 = vld [vmem:[%s1 + $0xb4] sm:$0xf]
    %v148 = vld [vmem:[%s1 + $0xb8] sm:$0xf]
    %v149 = vld [vmem:[%s1 + $0xbc] sm:$0xf]
    %v150 = vld [vmem:[%s1 + $0xc0] sm:$0xf]
    %v151 = vld [vmem:[%s1 + $0xc4] sm:$0xf]
    %v152 = vld [vmem:[%s1 + $0xc8] sm:$0xf]
    %v153 = vld [vmem:[%s1 + $0xcc] sm:$0xf]
    %v154 = vld [vmem:[%s1 + $0xd0] sm:$0xf]
    %v155 = vld [vmem:[%s1 + $0xd4] sm:$0xf]
    %v156 = vld [vmem:[%s1 + $0xd8] sm:$0xf]
    %v157 = vld [vmem:[%s1 + $0xdc] sm:$0xf]
    %v158 = vld [vmem:[%s1 + $0xe0] sm:$0xf]
    %v159 = vld [vmem:[%s1 + $0xe4] sm:$0xf]
    %v160 = vld [vmem:[%s1 + $0xe8] sm:$0xf]
    %v161 = vld [vmem:[%s1 + $0xec] sm:$0xf]
    %v162 = vld [vmem:[%s1 + $0xf0] sm:$0xf]
    %v163 = vld [vmem:[%s1 + $0xf4] sm:$0xf]
    %v164 = vld [vmem:[%s1 + $0xf8] sm:$0xf]
    %v165 = vld [vmem:[%s1 + $0xfc] sm:$0xf]
    %v166 = vld [vmem:[%s1 + $0x100] sm:$0xf]
    %v167 = vld [vmem:[%s1 + $0x104] sm:$0xf]
    %v168 = vld [vmem:[%s1 + $0x108] sm:$0xf]
    %v169 = vld [vmem:[%s1 + $0x10c] sm:$0xf]
    %v170 = vld [vmem:[%s1 + $0x110] sm:$0xf]
    %v171 = vld [vmem:[%s1 + $0x114] sm:$0xf]
    %v172 = vld [vmem:[%s1 + $0x118] sm:$0xf]
    %v173 = vld [vmem:[%s1 + $0x11c] sm:$0xf]
    %v174 = vld [vmem:[%s1 + $0x120] sm:$0xf]
    %v175 = vld [vmem:[%s1 + $0x124] sm:$0xf]
    %v176 = vld [vmem:[%s1 + $0x128] sm:$0xf]
    %v177 = vld [vmem:[%s1 + $0x12c] sm:$0xf]
    %v178 = vld [vmem:[%s1 + $0x130] sm:$0xf]
    %v179 = vld [vmem:[%s1 + $0x134] sm:$0xf]
    %v180 = vld [vmem:[%s1 + $0x138] sm:$0xf]
    %v181 = vld [vmem:[%s1 + $0x13c] sm:$0xf]
    %v182 = vld [vmem:[%s1 + $0x140] sm:$0xf]
    %v183 = vld [vmem:[%s1 + $0x144] sm:$0xf]
    %v184 = vld [vmem:[%s1 + $0x148] sm:$0xf]
    %v185 = vld [vmem:[%s1 + $0x14c] sm:$0xf]
    %v186 = vld [vmem:[%s1 + $0x150] sm:$0xf]
    %v187 = vld [vmem:[%s1 + $0x154] sm:$0xf]
    %v188 = vld [vmem:[%s1 + $0x158] sm:$0xf]
    %v189 = vld [vmem:[%s1 + $0x15c] sm:$0xf]
    %v190 = vld [vmem:[%s1 + $0x160] sm:$0xf]
    %v191 = vld [vmem:[%s1 + $0x164] sm:$0xf]
    %v192 = vld [vmem:[%s1 + $0x168] sm:$0xf]
    %v193 = vld [vmem:[%s1 + $0x16c] sm:$0xf]
    %v194 = vld [vmem:[%s1 + $0x170] sm:$0xf]
    %v195 = vld [vmem:[%s1 + $0x174] sm:$0xf]
    %v196 = vld [vmem:[%s1 + $0x178] sm:$0xf]
    %v197 = vld [vmem:[%s1 + $0x17c] sm:$0xf]
    %v198 = vld [vmem:[%s1 + $0x180] sm:$0xf]
    %v199 = vld [vmem:[%s1 + $0x184] sm:$0xf]
    %v200 = vld [vmem:[%s1 + $0x188] sm:$0xf]
    %v201 = vld [vmem:[%s1 + $0x18c] sm:$0xf]
    %v202 = vld [vmem:[%s1 + $0x190] sm:$0xf]
    %v203 = vld [vmem:[%s1 + $0x194] sm:$0xf]
    %v204 = vld [vmem:[%s1 + $0x198] sm:$0xf]
    %v205 = vld [vmem:[%s1 + $0x19c] sm:$0xf]
    %v206 = vld [vmem:[%s1 + $0x1a0] sm:$0xf]
    %v207 = vld [vmem:[%s1 + $0x1a4] sm:$0xf]
    %v208 = vld [vmem:[%s1 + $0x1a8] sm:$0xf]
    %v209 = vld [vmem:[%s1 + $0x1ac] sm:$0xf]
    %v210 = vld [vmem:[%s1 + $0x1b0] sm:$0xf]
    %v211 = vld [vmem:[%s1 + $0x1b4] sm:$0xf]
    %v212 = vld [vmem:[%s1 + $0x1b8] sm:$0xf]
    %v213 = vld [vmem:[%s1 + $0x1bc] sm:$0xf]
    %v214 = vld [vmem:[%s1 + $0x1c0] sm:$0xf]
    %v215 = vld [vmem:[%s1 + $0x1c4] sm:$0xf]
    %v216 = vld [vmem:[%s1 + $0x1c8] sm:$0xf]
    %v217 = vld [vmem:[%s1 + $0x1cc] sm:$0xf]
    %v218 = vld [vmem:[%s1 + $0x1d0] sm:$0xf]
    %v219 = vld [vmem:[%s1 + $0x1d4] sm:$0xf]
    %v220 = vld [vmem:[%s1 + $0x1d8] sm:$0xf]
    %v221 = vld [vmem:[%s1 + $0x1dc] sm:$0xf]
    %v222 = vld [vmem:[%s1 + $0x1e0] sm:$0xf]
    %v223 = vld [vmem:[%s1 + $0x1e4] sm:$0xf]
    %v224 = vld [vmem:[%s1 + $0x1e8] sm:$0xf]
    %v225 = vld [vmem:[%s1 + $0x1ec] sm:$0xf]
    %v226 = vld [vmem:[%s1 + $0x1f0] sm:$0xf]
    %v227 = vld [vmem:[%s1 + $0x1f4] sm:$0xf]
    %v228 = vld [vmem:[%s1 + $0x1f8] sm:$0xf]
    %v229 = vld [vmem:[%s1 + $0x1fc] sm:$0xf]
    %v230 = vld [vmem:[%s1 + $0x200] sm:$0xf]
    %v231 = vld [vmem:[%s1 + $0x204] sm:$0xf]
    %v232 = vld [vmem:[%s1 + $0x208] sm:$0xf]
    %v233 = vld [vmem:[%s1 + $0x20c] sm:$0xf]
    %v234 = vld [vmem:[%s1 + $0x210] sm:$0xf]
    %v235 = vld [vmem:[%s1 + $0x214] sm:$0xf]
    %v236 = vld [vmem:[%s1 + $0x218] sm:$0xf]
    %v237 = vld [vmem:[%s1 + $0x21c] sm:$0xf]
    %v238 = vld [vmem:[%s1 + $0x220] sm:$0xf]
    %v239 = vld [vmem:[%s1 + $0x224] sm:$0xf]
    %v240 = vld [vmem:[%s1 + $0x228] sm:$0xf]
    %v241 = vld [vmem:[%s1 + $0x22c] sm:$0xf]
    %v242 = vld [vmem:[%s1 + $0x230] sm:$0xf]
    %v243 = vld [vmem:[%s1 + $0x234] sm:$0xf]
    %v244 = vld [vmem:[%s1 + $0x238] sm:$0xf]
    %v245 = vld [vmem:[%s1 + $0x23c] sm:$0xf]
    %v326 = vunpack.c.l.b16 %v22
    %v327 = vunpack.c.h.b16 %v22
    %v328 = vunpack.c.l.b16 %v23
    %v329 = vunpack.c.h.b16 %v23
    %v330 = vunpack.c.l.b16 %v24
    %v331 = vunpack.c.h.b16 %v24
    %v332 = vunpack.c.l.b16 %v25
    %v333 = vunpack.c.h.b16 %v25
    %v334 = vunpack.c.l.b16 %v26
    %v335 = vunpack.c.l.b16 %v27
    %v336 = vunpack.c.h.b16 %v27
    %v337 = vunpack.c.l.b16 %v28
    %v338 = vunpack.c.h.b16 %v28
    %v339 = vunpack.c.l.b16 %v29
    %v340 = vunpack.c.h.b16 %v29
    %v341 = vunpack.c.l.b16 %v30
    %v342 = vunpack.c.h.b16 %v30
    %v343 = vunpack.c.l.b16 %v31
    %v344 = vunpack.c.l.b16 %v32
    %v345 = vunpack.c.h.b16 %v32
    %v346 = vunpack.c.l.b16 %v33
    %v347 = vunpack.c.h.b16 %v33
    %v348 = vunpack.c.l.b16 %v34
    %v349 = vunpack.c.h.b16 %v34
    %v350 = vunpack.c.l.b16 %v35
    %v351 = vunpack.c.h.b16 %v35
    %v352 = vunpack.c.l.b16 %v36
    %v353 = vunpack.c.l.b16 %v37
    %v354 = vunpack.c.h.b16 %v37
    %v355 = vunpack.c.l.b16 %v38
    %v356 = vunpack.c.h.b16 %v38
    %v357 = vunpack.c.l.b16 %v39
    %v358 = vunpack.c.h.b16 %v39
    %v359 = vunpack.c.l.b16 %v40
    %v360 = vunpack.c.h.b16 %v40
    %v361 = vunpack.c.l.b16 %v41
    %v362 = vunpack.c.l.b16 %v42
    %v363 = vunpack.c.h.b16 %v42
    %v364 = vunpack.c.l.b16 %v43
    %v365 = vunpack.c.h.b16 %v43
    %v366 = vunpack.c.l.b16 %v44
    %v367 = vunpack.c.h.b16 %v44
    %v368 = vunpack.c.l.b16 %v45
    %v369 = vunpack.c.h.b16 %v45
    %v370 = vunpack.c.l.b16 %v46
    %v371 = vunpack.c.l.b16 %v47
    %v372 = vunpack.c.h.b16 %v47
    %v373 = vunpack.c.l.b16 %v48
    %v374 = vunpack.c.h.b16 %v48
    %v375 = vunpack.c.l.b16 %v49
    %v376 = vunpack.c.h.b16 %v49
    %v377 = vunpack.c.l.b16 %v50
    %v378 = vunpack.c.h.b16 %v50
    %v379 = vunpack.c.l.b16 %v51
    %v380 = vunpack.c.l.b16 %v52
    %v381 = vunpack.c.h.b16 %v52
    %v382 = vunpack.c.l.b16 %v53
    %v383 = vunpack.c.h.b16 %v53
    %v384 = vunpack.c.l.b16 %v54
    %v385 = vunpack.c.h.b16 %v54
    %v386 = vunpack.c.l.b16 %v55
    %v387 = vunpack.c.h.b16 %v55
    %v388 = vunpack.c.l.b16 %v56
    %v389 = vunpack.c.l.b16 %v57
    %v390 = vunpack.c.h.b16 %v57
    %v391 = vunpack.c.l.b16 %v58
    %v392 = vunpack.c.h.b16 %v58
    %v393 = vunpack.c.l.b16 %v59
    %v394 = vunpack.c.h.b16 %v59
    %v395 = vunpack.c.l.b16 %v60
    %v396 = vunpack.c.h.b16 %v60
    %v397 = vunpack.c.l.b16 %v61
    %v398 = vunpack.c.l.b16 %v62
    %v399 = vunpack.c.h.b16 %v62
    %v400 = vunpack.c.l.b16 %v63
    %v401 = vunpack.c.h.b16 %v63
    %v402 = vunpack.c.l.b16 %v64
    %v403 = vunpack.c.h.b16 %v64
    %v404 = vunpack.c.l.b16 %v65
    %v405 = vunpack.c.h.b16 %v65
    %v406 = vunpack.c.l.b16 %v66
    %v407 = vunpack.c.l.b16 %v67
    %v408 = vunpack.c.h.b16 %v67
    %v409 = vunpack.c.l.b16 %v68
    %v410 = vunpack.c.h.b16 %v68
    %v411 = vunpack.c.l.b16 %v69
    %v412 = vunpack.c.h.b16 %v69
    %v413 = vunpack.c.l.b16 %v70
    %v414 = vunpack.c.h.b16 %v70
    %v415 = vunpack.c.l.b16 %v71
    %v416 = vunpack.c.l.b16 %v72
    %v417 = vunpack.c.h.b16 %v72
    %v418 = vunpack.c.l.b16 %v73
    %v419 = vunpack.c.h.b16 %v73
    %v420 = vunpack.c.l.b16 %v74
    %v421 = vunpack.c.h.b16 %v74
    %v422 = vunpack.c.l.b16 %v75
    %v423 = vunpack.c.h.b16 %v75
    %v424 = vunpack.c.l.b16 %v76
    %v425 = vunpack.c.l.b16 %v77
    %v426 = vunpack.c.h.b16 %v77
    %v427 = vunpack.c.l.b16 %v78
    %v428 = vunpack.c.h.b16 %v78
    %v429 = vunpack.c.l.b16 %v79
    %v430 = vunpack.c.h.b16 %v79
    %v431 = vunpack.c.l.b16 %v80
    %v432 = vunpack.c.h.b16 %v80
    %v433 = vunpack.c.l.b16 %v81
    %v434 = vunpack.c.l.b16 %v82
    %v435 = vunpack.c.h.b16 %v82
    %v436 = vunpack.c.l.b16 %v83
    %v437 = vunpack.c.h.b16 %v83
    %v438 = vunpack.c.l.b16 %v84
    %v439 = vunpack.c.h.b16 %v84
    %v440 = vunpack.c.l.b16 %v85
    %v441 = vunpack.c.h.b16 %v85
    %v442 = vunpack.c.l.b16 %v86
    %v443 = vunpack.c.l.b16 %v87
    %v444 = vunpack.c.h.b16 %v87
    %v445 = vunpack.c.l.b16 %v88
    %v446 = vunpack.c.h.b16 %v88
    %v447 = vunpack.c.l.b16 %v89
    %v448 = vunpack.c.h.b16 %v89
    %v449 = vunpack.c.l.b16 %v90
    %v450 = vunpack.c.h.b16 %v90
    %v451 = vunpack.c.l.b16 %v91
    %v452 = vunpack.c.l.b16 %v92
    %v453 = vunpack.c.h.b16 %v92
    %v454 = vunpack.c.l.b16 %v93
    %v455 = vunpack.c.h.b16 %v93
    %v456 = vunpack.c.l.b16 %v94
    %v457 = vunpack.c.h.b16 %v94
    %v458 = vunpack.c.l.b16 %v95
    %v459 = vunpack.c.h.b16 %v95
    %v460 = vunpack.c.l.b16 %v96
    %v461 = vunpack.c.l.b16 %v97
    %v462 = vunpack.c.h.b16 %v97
    %v463 = vunpack.c.l.b16 %v98
    %v464 = vunpack.c.h.b16 %v98
    %v465 = vunpack.c.l.b16 %v99
    %v466 = vunpack.c.h.b16 %v99
    %v467 = vunpack.c.l.b16 %v100
    %v468 = vunpack.c.h.b16 %v100
    %v469 = vunpack.c.l.b16 %v101
    %v470 = vpack.c.b16 %v335, %v326
    %v471 = vpack.c.b16 %v336, %v327
    %v472 = vpack.c.b16 %v337, %v328
    %v473 = vpack.c.b16 %v338, %v329
    %v474 = vpack.c.b16 %v339, %v330
    %v475 = vpack.c.b16 %v340, %v331
    %v476 = vpack.c.b16 %v341, %v332
    %v477 = vpack.c.b16 %v342, %v333
    %v478 = vpack.c.b16 %v343, %v334
    %v479 = vpack.c.b16 %v353, %v344
    %v480 = vpack.c.b16 %v354, %v345
    %v481 = vpack.c.b16 %v355, %v346
    %v482 = vpack.c.b16 %v356, %v347
    %v483 = vpack.c.b16 %v357, %v348
    %v484 = vpack.c.b16 %v358, %v349
    %v485 = vpack.c.b16 %v359, %v350
    %v486 = vpack.c.b16 %v360, %v351
    %v487 = vpack.c.b16 %v361, %v352
    %v488 = vpack.c.b16 %v371, %v362
    %v489 = vpack.c.b16 %v372, %v363
    %v490 = vpack.c.b16 %v373, %v364
    %v491 = vpack.c.b16 %v374, %v365
    %v492 = vpack.c.b16 %v375, %v366
    %v493 = vpack.c.b16 %v376, %v367
    %v494 = vpack.c.b16 %v377, %v368
    %v495 = vpack.c.b16 %v378, %v369
    %v496 = vpack.c.b16 %v379, %v370
    %v497 = vpack.c.b16 %v389, %v380
    %v498 = vpack.c.b16 %v390, %v381
    %v499 = vpack.c.b16 %v391, %v382
    %v500 = vpack.c.b16 %v392, %v383
    %v501 = vpack.c.b16 %v393, %v384
    %v502 = vpack.c.b16 %v394, %v385
    %v503 = vpack.c.b16 %v395, %v386
    %v504 = vpack.c.b16 %v396, %v387
    %v505 = vpack.c.b16 %v397, %v388
    %v506 = vpack.c.b16 %v407, %v398
    %v507 = vpack.c.b16 %v408, %v399
    %v508 = vpack.c.b16 %v409, %v400
    %v509 = vpack.c.b16 %v410, %v401
    %v510 = vpack.c.b16 %v411, %v402
    %v511 = vpack.c.b16 %v412, %v403
    %v512 = vpack.c.b16 %v413, %v404
    %v513 = vpack.c.b16 %v414, %v405
    %v514 = vpack.c.b16 %v415, %v406
    %v515 = vpack.c.b16 %v425, %v416
    %v516 = vpack.c.b16 %v426, %v417
    %v517 = vpack.c.b16 %v427, %v418
    %v518 = vpack.c.b16 %v428, %v419
    %v519 = vpack.c.b16 %v429, %v420
    %v520 = vpack.c.b16 %v430, %v421
    %v521 = vpack.c.b16 %v431, %v422
    %v522 = vpack.c.b16 %v432, %v423
    %v523 = vpack.c.b16 %v433, %v424
    %v524 = vpack.c.b16 %v443, %v434
    %v525 = vpack.c.b16 %v444, %v435
    %v526 = vpack.c.b16 %v445, %v436
    %v527 = vpack.c.b16 %v446, %v437
    %v528 = vpack.c.b16 %v447, %v438
    %v529 = vpack.c.b16 %v448, %v439
    %v530 = vpack.c.b16 %v449, %v440
    %v531 = vpack.c.b16 %v450, %v441
    %v532 = vpack.c.b16 %v451, %v442
    %v533 = vpack.c.b16 %v461, %v452
    %v534 = vpack.c.b16 %v462, %v453
    %v535 = vpack.c.b16 %v463, %v454
    %v536 = vpack.c.b16 %v464, %v455
    %v537 = vpack.c.b16 %v465, %v456
    %v538 = vpack.c.b16 %v466, %v457
    %v539 = vpack.c.b16 %v467, %v458
    %v540 = vpack.c.b16 %v468, %v459
    %v541 = vpack.c.b16 %v469, %v460
    %v758 = vunpack.c.l.b16 %v102
    %v759 = vunpack.c.l.b16 %v103
    %v760 = vunpack.c.l.b16 %v104
    %v761 = vunpack.c.l.b16 %v105
    %v762 = vunpack.c.l.b16 %v106
    %v763 = vunpack.c.l.b16 %v107
    %v764 = vunpack.c.l.b16 %v108
    %v765 = vunpack.c.l.b16 %v109
    %v766 = vunpack.c.l.b16 %v110
    %v767 = vunpack.c.l.b16 %v111
    %v768 = vunpack.c.l.b16 %v112
    %v769 = vunpack.c.l.b16 %v113
    %v770 = vunpack.c.l.b16 %v114
    %v771 = vunpack.c.l.b16 %v115
    %v772 = vunpack.c.l.b16 %v116
    %v773 = vunpack.c.l.b16 %v117
    %v774 = vunpack.c.l.b16 %v118
    %v775 = vunpack.c.l.b16 %v119
    %v776 = vunpack.c.l.b16 %v120
    %v777 = vunpack.c.l.b16 %v121
    %v778 = vunpack.c.l.b16 %v122
    %v779 = vunpack.c.l.b16 %v123
    %v780 = vunpack.c.l.b16 %v124
    %v781 = vunpack.c.l.b16 %v125
    %v782 = vunpack.c.l.b16 %v126
    %v783 = vunpack.c.l.b16 %v127
    %v784 = vunpack.c.l.b16 %v128
    %v785 = vunpack.c.l.b16 %v129
    %v786 = vunpack.c.l.b16 %v130
    %v787 = vunpack.c.l.b16 %v131
    %v788 = vunpack.c.l.b16 %v132
    %v789 = vunpack.c.l.b16 %v133
    %v790 = vunpack.c.l.b16 %v134
    %v791 = vunpack.c.l.b16 %v135
    %v792 = vunpack.c.l.b16 %v136
    %v793 = vunpack.c.l.b16 %v137
    %v794 = vunpack.c.l.b16 %v138
    %v795 = vunpack.c.l.b16 %v139
    %v796 = vunpack.c.l.b16 %v140
    %v797 = vunpack.c.l.b16 %v141
    %v798 = vunpack.c.l.b16 %v142
    %v799 = vunpack.c.l.b16 %v143
    %v800 = vunpack.c.l.b16 %v144
    %v801 = vunpack.c.l.b16 %v145
    %v802 = vunpack.c.l.b16 %v146
    %v803 = vunpack.c.l.b16 %v147
    %v804 = vunpack.c.l.b16 %v148
    %v805 = vunpack.c.l.b16 %v149
    %v806 = vunpack.c.l.b16 %v150
    %v807 = vunpack.c.l.b16 %v151
    %v808 = vunpack.c.l.b16 %v152
    %v809 = vunpack.c.l.b16 %v153
    %v810 = vunpack.c.l.b16 %v154
    %v811 = vunpack.c.l.b16 %v155
    %v812 = vunpack.c.l.b16 %v156
    %v813 = vunpack.c.l.b16 %v157
    %v814 = vunpack.c.l.b16 %v158
    %v815 = vunpack.c.l.b16 %v159
    %v816 = vunpack.c.l.b16 %v160
    %v817 = vunpack.c.l.b16 %v161
    %v818 = vunpack.c.l.b16 %v162
    %v819 = vunpack.c.l.b16 %v163
    %v820 = vunpack.c.l.b16 %v164
    %v821 = vunpack.c.l.b16 %v165
    %v822 = vunpack.c.l.b16 %v166
    %v823 = vunpack.c.l.b16 %v167
    %v824 = vunpack.c.l.b16 %v168
    %v825 = vunpack.c.l.b16 %v169
    %v826 = vunpack.c.l.b16 %v170
    %v827 = vunpack.c.l.b16 %v171
    %v828 = vunpack.c.l.b16 %v172
    %v829 = vunpack.c.l.b16 %v173
    %v830 = vunpack.c.l.b16 %v174
    %v831 = vunpack.c.l.b16 %v175
    %v832 = vunpack.c.l.b16 %v176
    %v833 = vunpack.c.l.b16 %v177
    %v834 = vunpack.c.l.b16 %v178
    %v835 = vunpack.c.l.b16 %v179
    %v836 = vunpack.c.l.b16 %v180
    %v837 = vunpack.c.l.b16 %v181
    %v838 = vunpack.c.l.b16 %v182
    %v839 = vunpack.c.l.b16 %v183
    %v840 = vunpack.c.l.b16 %v184
    %v841 = vunpack.c.l.b16 %v185
    %v842 = vunpack.c.l.b16 %v186
    %v843 = vunpack.c.l.b16 %v187
    %v844 = vunpack.c.l.b16 %v188
    %v845 = vunpack.c.l.b16 %v189
    %v846 = vunpack.c.l.b16 %v190
    %v847 = vunpack.c.l.b16 %v191
    %v848 = vunpack.c.l.b16 %v192
    %v849 = vunpack.c.l.b16 %v193
    %v850 = vunpack.c.l.b16 %v194
    %v851 = vunpack.c.l.b16 %v195
    %v852 = vunpack.c.l.b16 %v196
    %v853 = vunpack.c.l.b16 %v197
    %v854 = vunpack.c.l.b16 %v198
    %v855 = vunpack.c.l.b16 %v199
    %v856 = vunpack.c.l.b16 %v200
    %v857 = vunpack.c.l.b16 %v201
    %v858 = vunpack.c.l.b16 %v202
    %v859 = vunpack.c.l.b16 %v203
    %v860 = vunpack.c.l.b16 %v204
    %v861 = vunpack.c.l.b16 %v205
    %v862 = vunpack.c.l.b16 %v206
    %v863 = vunpack.c.l.b16 %v207
    %v864 = vunpack.c.l.b16 %v208
    %v865 = vunpack.c.l.b16 %v209
    %v866 = vunpack.c.l.b16 %v210
    %v867 = vunpack.c.l.b16 %v211
    %v868 = vunpack.c.l.b16 %v212
    %v869 = vunpack.c.l.b16 %v213
    %v870 = vunpack.c.l.b16 %v214
    %v871 = vunpack.c.l.b16 %v215
    %v872 = vunpack.c.l.b16 %v216
    %v873 = vunpack.c.l.b16 %v217
    %v874 = vunpack.c.l.b16 %v218
    %v875 = vunpack.c.l.b16 %v219
    %v876 = vunpack.c.l.b16 %v220
    %v877 = vunpack.c.l.b16 %v221
    %v878 = vunpack.c.l.b16 %v222
    %v879 = vunpack.c.l.b16 %v223
    %v880 = vunpack.c.l.b16 %v224
    %v881 = vunpack.c.l.b16 %v225
    %v882 = vunpack.c.l.b16 %v226
    %v883 = vunpack.c.l.b16 %v227
    %v884 = vunpack.c.l.b16 %v228
    %v885 = vunpack.c.l.b16 %v229
    %v886 = vunpack.c.l.b16 %v230
    %v887 = vunpack.c.l.b16 %v231
    %v888 = vunpack.c.l.b16 %v232
    %v889 = vunpack.c.l.b16 %v233
    %v890 = vunpack.c.l.b16 %v234
    %v891 = vunpack.c.l.b16 %v235
    %v892 = vunpack.c.l.b16 %v236
    %v893 = vunpack.c.l.b16 %v237
    %v894 = vunpack.c.l.b16 %v238
    %v895 = vunpack.c.l.b16 %v239
    %v896 = vunpack.c.l.b16 %v240
    %v897 = vunpack.c.l.b16 %v241
    %v898 = vunpack.c.l.b16 %v242
    %v899 = vunpack.c.l.b16 %v243
    %v900 = vunpack.c.l.b16 %v244
    %v901 = vunpack.c.l.b16 %v245
    %v902 = vpack.c.b16 %v759, %v758
    %v903 = vpack.c.b16 %v761, %v760
    %v904 = vpack.c.b16 %v763, %v762
    %v905 = vpack.c.b16 %v765, %v764
    %v906 = vpack.c.b16 %v767, %v766
    %v907 = vpack.c.b16 %v769, %v768
    %v908 = vpack.c.b16 %v771, %v770
    %v909 = vpack.c.b16 %v773, %v772
    %v910 = vpack.c.b16 %v775, %v774
    %v911 = vpack.c.b16 %v777, %v776
    %v912 = vpack.c.b16 %v779, %v778
    %v913 = vpack.c.b16 %v781, %v780
    %v914 = vpack.c.b16 %v783, %v782
    %v915 = vpack.c.b16 %v785, %v784
    %v916 = vpack.c.b16 %v787, %v786
    %v917 = vpack.c.b16 %v789, %v788
    %v918 = vpack.c.b16 %v791, %v790
    %v919 = vpack.c.b16 %v793, %v792
    %v920 = vpack.c.b16 %v795, %v794
    %v921 = vpack.c.b16 %v797, %v796
    %v922 = vpack.c.b16 %v799, %v798
    %v923 = vpack.c.b16 %v801, %v800
    %v924 = vpack.c.b16 %v803, %v802
    %v925 = vpack.c.b16 %v805, %v804
    %v926 = vpack.c.b16 %v807, %v806
    %v927 = vpack.c.b16 %v809, %v808
    %v928 = vpack.c.b16 %v811, %v810
    %v929 = vpack.c.b16 %v813, %v812
    %v930 = vpack.c.b16 %v815, %v814
    %v931 = vpack.c.b16 %v817, %v816
    %v932 = vpack.c.b16 %v819, %v818
    %v933 = vpack.c.b16 %v821, %v820
    %v934 = vpack.c.b16 %v823, %v822
    %v935 = vpack.c.b16 %v825, %v824
    %v936 = vpack.c.b16 %v827, %v826
    %v937 = vpack.c.b16 %v829, %v828
    %v938 = vpack.c.b16 %v831, %v830
    %v939 = vpack.c.b16 %v833, %v832
    %v940 = vpack.c.b16 %v835, %v834
    %v941 = vpack.c.b16 %v837, %v836
    %v942 = vpack.c.b16 %v839, %v838
    %v943 = vpack.c.b16 %v841, %v840
    %v944 = vpack.c.b16 %v843, %v842
    %v945 = vpack.c.b16 %v845, %v844
    %v946 = vpack.c.b16 %v847, %v846
    %v947 = vpack.c.b16 %v849, %v848
    %v948 = vpack.c.b16 %v851, %v850
    %v949 = vpack.c.b16 %v853, %v852
    %v950 = vpack.c.b16 %v855, %v854
    %v951 = vpack.c.b16 %v857, %v856
    %v952 = vpack.c.b16 %v859, %v858
    %v953 = vpack.c.b16 %v861, %v860
    %v954 = vpack.c.b16 %v863, %v862
    %v955 = vpack.c.b16 %v865, %v864
    %v956 = vpack.c.b16 %v867, %v866
    %v957 = vpack.c.b16 %v869, %v868
    %v958 = vpack.c.b16 %v871, %v870
    %v959 = vpack.c.b16 %v873, %v872
    %v960 = vpack.c.b16 %v875, %v874
    %v961 = vpack.c.b16 %v877, %v876
    %v962 = vpack.c.b16 %v879, %v878
    %v963 = vpack.c.b16 %v881, %v880
    %v964 = vpack.c.b16 %v883, %v882
    %v965 = vpack.c.b16 %v885, %v884
    %v966 = vpack.c.b16 %v887, %v886
    %v967 = vpack.c.b16 %v889, %v888
    %v968 = vpack.c.b16 %v891, %v890
    %v969 = vpack.c.b16 %v893, %v892
    %v970 = vpack.c.b16 %v895, %v894
    %v971 = vpack.c.b16 %v897, %v896
    %v972 = vpack.c.b16 %v899, %v898
    %v973 = vpack.c.b16 %v901, %v900
    %1046 = vmatprep.subr.bf16.mxu0 0
    %1047 = vmatpush1.bf16.msra.mxu0 %v902
    %1048 = vmatprep.subr.bf16.mxu0 0
    %1049 = vmatpush1.bf16.msra.mxu0 %v903
    %1050 = vmatprep.subr.bf16.mxu0 0
    %1051 = vmatpush1.bf16.msra.mxu0 %v904
    %1052 = vmatprep.subr.bf16.mxu0 0
    %1053 = vmatpush1.bf16.msra.mxu0 %v905
    %1054 = vmatprep.subr.bf16.mxu0 0
    %1055 = vmatpush1.bf16.msra.mxu0 %v906
    %1056 = vmatprep.subr.bf16.mxu0 0
    %1057 = vmatpush1.bf16.msra.mxu0 %v907
    %1058 = vmatprep.subr.bf16.mxu0 0
    %1059 = vmatpush1.bf16.msra.mxu0 %v908
    %1060 = vmatprep.subr.bf16.mxu0 0
    %1061 = vmatpush1.bf16.msra.mxu0 %v909
    %1062 = vmatprep.subr.bf16.mxu0 0
    %1063 = vmatpush1.bf16.msra.mxu0 %v910
    %1064 = vmatprep.subr.bf16.mxu0 0
    %1065 = vmatpush1.bf16.msra.mxu0 %v911
    %1066 = vmatprep.subr.bf16.mxu0 0
    %1067 = vmatpush1.bf16.msra.mxu0 %v912
    %1068 = vmatprep.subr.bf16.mxu0 0
    %1069 = vmatpush1.bf16.msra.mxu0 %v913
    %1070 = vmatprep.subr.bf16.mxu0 0
    %1071 = vmatpush1.bf16.msra.mxu0 %v914
    %1072 = vmatprep.subr.bf16.mxu0 0
    %1073 = vmatpush1.bf16.msra.mxu0 %v915
    %1074 = vmatprep.subr.bf16.mxu0 0
    %1075 = vmatpush1.bf16.msra.mxu0 %v916
    %1076 = vmatprep.subr.bf16.mxu0 0
    %1077 = vmatpush1.bf16.msra.mxu0 %v917
    %1078 = vmatprep.mubr.bf16.mxu0 %v471
    %1079 = vmatmul.mubr.bf16.gmra.mrb[0].mxu0 %v470
    %v1080 = vpop.f32.mrb[0].mxu0
    %v1081 = vadd.f32 0.0, %v1080
    %v1082 = vpop.f32.mrb[0].mxu0
    %v1083 = vpop.f32.mrb[0].mxu0
    %v1084 = vadd.f32 0.0, %v1083
    %v1085 = vpop.f32.mrb[0].mxu0
    %1086 = vmatprep.mubr.bf16.mxu0 %v480
    %1087 = vmatmul.mubr.bf16.gmra.mrb[0].mxu0 %v479
    %v1088 = vpop.f32.mrb[0].mxu0
    %v1089 = vadd.f32 0.0, %v1088
    %v1090 = vpop.f32.mrb[0].mxu0
    %v1091 = vpop.f32.mrb[0].mxu0
    %v1092 = vadd.f32 0.0, %v1091
    %v1093 = vpop.f32.mrb[0].mxu0
    %1094 = vmatprep.mubr.bf16.mxu0 %v489
    %1095 = vmatmul.mubr.bf16.gmra.mrb[0].mxu0 %v488
    %v1096 = vpop.f32.mrb[0].mxu0
    %v1097 = vadd.f32 0.0, %v1096
    %v1098 = vpop.f32.mrb[0].mxu0
    %v1099 = vpop.f32.mrb[0].mxu0
    %v1100 = vadd.f32 0.0, %v1099
    %v1101 = vpop.f32.mrb[0].mxu0
    %1102 = vmatprep.mubr.bf16.mxu0 %v498
    %1103 = vmatmul.mubr.bf16.gmra.mrb[0].mxu0 %v497
    %v1104 = vpop.f32.mrb[0].mxu0
    %v1105 = vadd.f32 0.0, %v1104
    %v1106 = vpop.f32.mrb[0].mxu0
    %v1107 = vpop.f32.mrb[0].mxu0
    %v1108 = vadd.f32 0.0, %v1107
    %v1109 = vpop.f32.mrb[0].mxu0
    %1110 = vmatprep.mubr.bf16.mxu0 %v507
    %1111 = vmatmul.mubr.bf16.gmra.mrb[0].mxu0 %v506
    %v1112 = vpop.f32.mrb[0].mxu0
    %v1113 = vadd.f32 0.0, %v1112
    %v1114 = vpop.f32.mrb[0].mxu0
    %v1115 = vpop.f32.mrb[0].mxu0
    %v1116 = vadd.f32 0.0, %v1115
    %v1117 = vpop.f32.mrb[0].mxu0
    %1118 = vmatprep.mubr.bf16.mxu0 %v516
    %1119 = vmatmul.mubr.bf16.gmra.mrb[0].mxu0 %v515
    %v1120 = vpop.f32.mrb[0].mxu0
    %v1121 = vadd.f32 0.0, %v1120
    %v1122 = vpop.f32.mrb[0].mxu0
    %v1123 = vpop.f32.mrb[0].mxu0
    %v1124 = vadd.f32 0.0, %v1123
    %v1125 = vpop.f32.mrb[0].mxu0
    %1126 = vmatprep.mubr.bf16.mxu0 %v525
    %1127 = vmatmul.mubr.bf16.gmra.mrb[0].mxu0 %v524
    %v1128 = vpop.f32.mrb[0].mxu0
    %v1129 = vadd.f32 0.0, %v1128
    %v1130 = vpop.f32.mrb[0].mxu0
    %v1131 = vpop.f32.mrb[0].mxu0
    %v1132 = vadd.f32 0.0, %v1131
    %v1133 = vpop.f32.mrb[0].mxu0
    %1134 = vmatprep.mubr.bf16.mxu0 %v534
    %1135 = vmatmul.mubr.bf16.gmra.mrb[0].mxu0 %v533
    %v1136 = vpop.f32.mrb[0].mxu0
    %v1137 = vadd.f32 0.0, %v1136
    %v1138 = vpop.f32.mrb[0].mxu0
    %v1139 = vpop.f32.mrb[0].mxu0
    %v1140 = vadd.f32 0.0, %v1139
    %v1141 = vpop.f32.mrb[0].mxu0
    %1142 = vdwg.mxu0
    %1143 = vmatprep.subr.bf16.mxu0 0
    %1144 = vmatpush1.bf16.msra.mxu0 %v918
    %1145 = vmatprep.subr.bf16.mxu0 0
    %1146 = vmatpush1.bf16.msra.mxu0 %v919
    %1147 = vmatprep.subr.bf16.mxu0 0
    %1148 = vmatpush1.bf16.msra.mxu0 %v920
    %1149 = vmatprep.subr.bf16.mxu0 0
    %1150 = vmatpush1.bf16.msra.mxu0 %v921
    %1151 = vmatprep.subr.bf16.mxu0 0
    %1152 = vmatpush1.bf16.msra.mxu0 %v922
    %1153 = vmatprep.subr.bf16.mxu0 0
    %1154 = vmatpush1.bf16.msra.mxu0 %v923
    %1155 = vmatprep.subr.bf16.mxu0 0
    %1156 = vmatpush1.bf16.msra.mxu0 %v924
    %1157 = vmatprep.subr.bf16.mxu0 0
    %1158 = vmatpush1.bf16.msra.mxu0 %v925
    %1159 = vmatprep.subr.bf16.mxu0 0
    %1160 = vmatpush1.bf16.msra.mxu0 %v926
    %1161 = vmatprep.subr.bf16.mxu0 0
    %1162 = vmatpush1.bf16.msra.mxu0 %v927
    %1163 = vmatprep.subr.bf16.mxu0 0
    %1164 = vmatpush1.bf16.msra.mxu0 %v928
    %1165 = vmatprep.subr.bf16.mxu0 0
    %1166 = vmatpush1.bf16.msra.mxu0 %v929
    %1167 = vmatprep.subr.bf16.mxu0 0
    %1168 = vmatpush1.bf16.msra.mxu0 %v930
    %1169 = vmatprep.subr.bf16.mxu0 0
    %1170 = vmatpush1.bf16.msra.mxu0 %v931
    %1171 = vmatprep.subr.bf16.mxu0 0
    %1172 = vmatpush1.bf16.msra.mxu0 %v932
    %1173 = vmatprep.subr.bf16.mxu0 0
    %1174 = vmatpush1.bf16.msra.mxu0 %v933
    %1175 = vmatprep.mubr.bf16.mxu0 %v473
    %1176 = vmatmul.mubr.bf16.gmra.mrb[0].mxu0 %v472
    %v1177 = vpop.f32.mrb[0].mxu0
    %v1178 = vadd.f32 %v1081, %v1177
    %v1179 = vpop.f32.mrb[0].mxu0
    %v1180 = vpop.f32.mrb[0].mxu0
    %v1181 = vadd.f32 %v1084, %v1180
    %v1182 = vpop.f32.mrb[0].mxu0
    %1183 = vmatprep.mubr.bf16.mxu0 %v482
    %1184 = vmatmul.mubr.bf16.gmra.mrb[0].mxu0 %v481
    %v1185 = vpop.f32.mrb[0].mxu0
    %v1186 = vadd.f32 %v1089, %v1185
    %v1187 = vpop.f32.mrb[0].mxu0
    %v1188 = vpop.f32.mrb[0].mxu0
    %v1189 = vadd.f32 %v1092, %v1188
    %v1190 = vpop.f32.mrb[0].mxu0
    %1191 = vmatprep.mubr.bf16.mxu0 %v491
    %1192 = vmatmul.mubr.bf16.gmra.mrb[0].mxu0 %v490
    %v1193 = vpop.f32.mrb[0].mxu0
    %v1194 = vadd.f32 %v1097, %v1193
    %v1195 = vpop.f32.mrb[0].mxu0
    %v1196 = vpop.f32.mrb[0].mxu0
    %v1197 = vadd.f32 %v1100, %v1196
    %v1198 = vpop.f32.mrb[0].mxu0
    %1199 = vmatprep.mubr.bf16.mxu0 %v500
    %1200 = vmatmul.mubr.bf16.gmra.mrb[0].mxu0 %v499
    %v1201 = vpop.f32.mrb[0].mxu0
    %v1202 = vadd.f32 %v1105, %v1201
    %v1203 = vpop.f32.mrb[0].mxu0
    %v1204 = vpop.f32.mrb[0].mxu0
    %v1205 = vadd.f32 %v1108, %v1204
    %v1206 = vpop.f32.mrb[0].mxu0
    %1207 = vmatprep.mubr.bf16.mxu0 %v509
    %1208 = vmatmul.mubr.bf16.gmra.mrb[0].mxu0 %v508
    %v1209 = vpop.f32.mrb[0].mxu0
    %v1210 = vadd.f32 %v1113, %v1209
    %v1211 = vpop.f32.mrb[0].mxu0
    %v1212 = vpop.f32.mrb[0].mxu0
    %v1213 = vadd.f32 %v1116, %v1212
    %v1214 = vpop.f32.mrb[0].mxu0
    %1215 = vmatprep.mubr.bf16.mxu0 %v518
    %1216 = vmatmul.mubr.bf16.gmra.mrb[0].mxu0 %v517
    %v1217 = vpop.f32.mrb[0].mxu0
    %v1218 = vadd.f32 %v1121, %v1217
    %v1219 = vpop.f32.mrb[0].mxu0
    %v1220 = vpop.f32.mrb[0].mxu0
    %v1221 = vadd.f32 %v1124, %v1220
    %v1222 = vpop.f32.mrb[0].mxu0
    %1223 = vmatprep.mubr.bf16.mxu0 %v527
    %1224 = vmatmul.mubr.bf16.gmra.mrb[0].mxu0 %v526
    %v1225 = vpop.f32.mrb[0].mxu0
    %v1226 = vadd.f32 %v1129, %v1225
    %v1227 = vpop.f32.mrb[0].mxu0
    %v1228 = vpop.f32.mrb[0].mxu0
    %v1229 = vadd.f32 %v1132, %v1228
    %v1230 = vpop.f32.mrb[0].mxu0
    %1231 = vmatprep.mubr.bf16.mxu0 %v536
    %1232 = vmatmul.mubr.bf16.gmra.mrb[0].mxu0 %v535
    %v1233 = vpop.f32.mrb[0].mxu0
    %v1234 = vadd.f32 %v1137, %v1233
    %v1235 = vpop.f32.mrb[0].mxu0
    %v1236 = vpop.f32.mrb[0].mxu0
    %v1237 = vadd.f32 %v1140, %v1236
    %v1238 = vpop.f32.mrb[0].mxu0
    %1239 = vdwg.mxu0
    %1240 = vmatprep.subr.bf16.mxu0 0
    %1241 = vmatpush1.bf16.msra.mxu0 %v934
    %1242 = vmatprep.subr.bf16.mxu0 0
    %1243 = vmatpush1.bf16.msra.mxu0 %v935
    %1244 = vmatprep.subr.bf16.mxu0 0
    %1245 = vmatpush1.bf16.msra.mxu0 %v936
    %1246 = vmatprep.subr.bf16.mxu0 0
    %1247 = vmatpush1.bf16.msra.mxu0 %v937
    %1248 = vmatprep.subr.bf16.mxu0 0
    %1249 = vmatpush1.bf16.msra.mxu0 %v938
    %1250 = vmatprep.subr.bf16.mxu0 0
    %1251 = vmatpush1.bf16.msra.mxu0 %v939
    %1252 = vmatprep.subr.bf16.mxu0 0
    %1253 = vmatpush1.bf16.msra.mxu0 %v940
    %1254 = vmatprep.subr.bf16.mxu0 0
    %1255 = vmatpush1.bf16.msra.mxu0 %v941
    %1256 = vmatprep.subr.bf16.mxu0 0
    %1257 = vmatpush1.bf16.msra.mxu0 %v942
    %1258 = vmatprep.subr.bf16.mxu0 0
    %1259 = vmatpush1.bf16.msra.mxu0 %v943
    %1260 = vmatprep.subr.bf16.mxu0 0
    %1261 = vmatpush1.bf16.msra.mxu0 %v944
    %1262 = vmatprep.subr.bf16.mxu0 0
    %1263 = vmatpush1.bf16.msra.mxu0 %v945
    %1264 = vmatprep.subr.bf16.mxu0 0
    %1265 = vmatpush1.bf16.msra.mxu0 %v946
    %1266 = vmatprep.subr.bf16.mxu0 0
    %1267 = vmatpush1.bf16.msra.mxu0 %v947
    %1268 = vmatprep.subr.bf16.mxu0 0
    %1269 = vmatpush1.bf16.msra.mxu0 %v948
    %1270 = vmatprep.subr.bf16.mxu0 0
    %1271 = vmatpush1.bf16.msra.mxu0 %v949
    %1272 = vmatprep.mubr.bf16.mxu0 %v475
    %1273 = vmatmul.mubr.bf16.gmra.mrb[0].mxu0 %v474
    %v1274 = vpop.f32.mrb[0].mxu0
    %v1275 = vadd.f32 %v1178, %v1274
    %v1276 = vpop.f32.mrb[0].mxu0
    %v1277 = vpop.f32.mrb[0].mxu0
    %v1278 = vadd.f32 %v1181, %v1277
    %v1279 = vpop.f32.mrb[0].mxu0
    %1280 = vmatprep.mubr.bf16.mxu0 %v484
    %1281 = vmatmul.mubr.bf16.gmra.mrb[0].mxu0 %v483
    %v1282 = vpop.f32.mrb[0].mxu0
    %v1283 = vadd.f32 %v1186, %v1282
    %v1284 = vpop.f32.mrb[0].mxu0
    %v1285 = vpop.f32.mrb[0].mxu0
    %v1286 = vadd.f32 %v1189, %v1285
    %v1287 = vpop.f32.mrb[0].mxu0
    %1288 = vmatprep.mubr.bf16.mxu0 %v493
    %1289 = vmatmul.mubr.bf16.gmra.mrb[0].mxu0 %v492
    %v1290 = vpop.f32.mrb[0].mxu0
    %v1291 = vadd.f32 %v1194, %v1290
    %v1292 = vpop.f32.mrb[0].mxu0
    %v1293 = vpop.f32.mrb[0].mxu0
    %v1294 = vadd.f32 %v1197, %v1293
    %v1295 = vpop.f32.mrb[0].mxu0
    %1296 = vmatprep.mubr.bf16.mxu0 %v502
    %1297 = vmatmul.mubr.bf16.gmra.mrb[0].mxu0 %v501
    %v1298 = vpop.f32.mrb[0].mxu0
    %v1299 = vadd.f32 %v1202, %v1298
    %v1300 = vpop.f32.mrb[0].mxu0
    %v1301 = vpop.f32.mrb[0].mxu0
    %v1302 = vadd.f32 %v1205, %v1301
    %v1303 = vpop.f32.mrb[0].mxu0
    %1304 = vmatprep.mubr.bf16.mxu0 %v511
    %1305 = vmatmul.mubr.bf16.gmra.mrb[0].mxu0 %v510
    %v1306 = vpop.f32.mrb[0].mxu0
    %v1307 = vadd.f32 %v1210, %v1306
    %v1308 = vpop.f32.mrb[0].mxu0
    %v1309 = vpop.f32.mrb[0].mxu0
    %v1310 = vadd.f32 %v1213, %v1309
    %v1311 = vpop.f32.mrb[0].mxu0
    %1312 = vmatprep.mubr.bf16.mxu0 %v520
    %1313 = vmatmul.mubr.bf16.gmra.mrb[0].mxu0 %v519
    %v1314 = vpop.f32.mrb[0].mxu0
    %v1315 = vadd.f32 %v1218, %v1314
    %v1316 = vpop.f32.mrb[0].mxu0
    %v1317 = vpop.f32.mrb[0].mxu0
    %v1318 = vadd.f32 %v1221, %v1317
    %v1319 = vpop.f32.mrb[0].mxu0
    %1320 = vmatprep.mubr.bf16.mxu0 %v529
    %1321 = vmatmul.mubr.bf16.gmra.mrb[0].mxu0 %v528
    %v1322 = vpop.f32.mrb[0].mxu0
    %v1323 = vadd.f32 %v1226, %v1322
    %v1324 = vpop.f32.mrb[0].mxu0
    %v1325 = vpop.f32.mrb[0].mxu0
    %v1326 = vadd.f32 %v1229, %v1325
    %v1327 = vpop.f32.mrb[0].mxu0
    %1328 = vmatprep.mubr.bf16.mxu0 %v538
    %1329 = vmatmul.mubr.bf16.gmra.mrb[0].mxu0 %v537
    %v1330 = vpop.f32.mrb[0].mxu0
    %v1331 = vadd.f32 %v1234, %v1330
    %v1332 = vpop.f32.mrb[0].mxu0
    %v1333 = vpop.f32.mrb[0].mxu0
    %v1334 = vadd.f32 %v1237, %v1333
    %v1335 = vpop.f32.mrb[0].mxu0
    %1336 = vdwg.mxu0
    %1337 = vmatprep.subr.bf16.mxu0 0
    %1338 = vmatpush1.bf16.msra.mxu0 %v950
    %1339 = vmatprep.subr.bf16.mxu0 0
    %1340 = vmatpush1.bf16.msra.mxu0 %v951
    %1341 = vmatprep.subr.bf16.mxu0 0
    %1342 = vmatpush1.bf16.msra.mxu0 %v952
    %1343 = vmatprep.subr.bf16.mxu0 0
    %1344 = vmatpush1.bf16.msra.mxu0 %v953
    %1345 = vmatprep.subr.bf16.mxu0 0
    %1346 = vmatpush1.bf16.msra.mxu0 %v954
    %1347 = vmatprep.subr.bf16.mxu0 0
    %1348 = vmatpush1.bf16.msra.mxu0 %v955
    %1349 = vmatprep.subr.bf16.mxu0 0
    %1350 = vmatpush1.bf16.msra.mxu0 %v956
    %1351 = vmatprep.subr.bf16.mxu0 0
    %1352 = vmatpush1.bf16.msra.mxu0 %v957
    %1353 = vmatprep.subr.bf16.mxu0 0
    %1354 = vmatpush1.bf16.msra.mxu0 %v958
    %1355 = vmatprep.subr.bf16.mxu0 0
    %1356 = vmatpush1.bf16.msra.mxu0 %v959
    %1357 = vmatprep.subr.bf16.mxu0 0
    %1358 = vmatpush1.bf16.msra.mxu0 %v960
    %1359 = vmatprep.subr.bf16.mxu0 0
    %1360 = vmatpush1.bf16.msra.mxu0 %v961
    %1361 = vmatprep.subr.bf16.mxu0 0
    %1362 = vmatpush1.bf16.msra.mxu0 %v962
    %1363 = vmatprep.subr.bf16.mxu0 0
    %1364 = vmatpush1.bf16.msra.mxu0 %v963
    %1365 = vmatprep.subr.bf16.mxu0 0
    %1366 = vmatpush1.bf16.msra.mxu0 %v964
    %1367 = vmatprep.subr.bf16.mxu0 0
    %1368 = vmatpush1.bf16.msra.mxu0 %v965
    %1369 = vmatprep.mubr.bf16.mxu0 %v477
    %1370 = vmatmul.mubr.bf16.gmra.mrb[0].mxu0 %v476
    %v1371 = vpop.f32.mrb[0].mxu0
    %v1372 = vadd.f32 %v1275, %v1371
    %v1373 = vpop.f32.mrb[0].mxu0
    %v1374 = vpop.f32.mrb[0].mxu0
    %v1375 = vadd.f32 %v1278, %v1374
    %v1376 = vpop.f32.mrb[0].mxu0
    %1377 = vmatprep.mubr.bf16.mxu0 %v486
    %1378 = vmatmul.mubr.bf16.gmra.mrb[0].mxu0 %v485
    %v1379 = vpop.f32.mrb[0].mxu0
    %v1380 = vadd.f32 %v1283, %v1379
    %v1381 = vpop.f32.mrb[0].mxu0
    %v1382 = vpop.f32.mrb[0].mxu0
    %v1383 = vadd.f32 %v1286, %v1382
    %v1384 = vpop.f32.mrb[0].mxu0
    %1385 = vmatprep.mubr.bf16.mxu0 %v495
    %1386 = vmatmul.mubr.bf16.gmra.mrb[0].mxu0 %v494
    %v1387 = vpop.f32.mrb[0].mxu0
    %v1388 = vadd.f32 %v1291, %v1387
    %v1389 = vpop.f32.mrb[0].mxu0
    %v1390 = vpop.f32.mrb[0].mxu0
    %v1391 = vadd.f32 %v1294, %v1390
    %v1392 = vpop.f32.mrb[0].mxu0
    %1393 = vmatprep.mubr.bf16.mxu0 %v504
    %1394 = vmatmul.mubr.bf16.gmra.mrb[0].mxu0 %v503
    %v1395 = vpop.f32.mrb[0].mxu0
    %v1396 = vadd.f32 %v1299, %v1395
    %v1397 = vpop.f32.mrb[0].mxu0
    %v1398 = vpop.f32.mrb[0].mxu0
    %v1399 = vadd.f32 %v1302, %v1398
    %v1400 = vpop.f32.mrb[0].mxu0
    %1401 = vmatprep.mubr.bf16.mxu0 %v513
    %1402 = vmatmul.mubr.bf16.gmra.mrb[0].mxu0 %v512
    %v1403 = vpop.f32.mrb[0].mxu0
    %v1404 = vadd.f32 %v1307, %v1403
    %v1405 = vpop.f32.mrb[0].mxu0
    %v1406 = vpop.f32.mrb[0].mxu0
    %v1407 = vadd.f32 %v1310, %v1406
    %v1408 = vpop.f32.mrb[0].mxu0
    %1409 = vmatprep.mubr.bf16.mxu0 %v522
    %1410 = vmatmul.mubr.bf16.gmra.mrb[0].mxu0 %v521
    %v1411 = vpop.f32.mrb[0].mxu0
    %v1412 = vadd.f32 %v1315, %v1411
    %v1413 = vpop.f32.mrb[0].mxu0
    %v1414 = vpop.f32.mrb[0].mxu0
    %v1415 = vadd.f32 %v1318, %v1414
    %v1416 = vpop.f32.mrb[0].mxu0
    %1417 = vmatprep.mubr.bf16.mxu0 %v531
    %1418 = vmatmul.mubr.bf16.gmra.mrb[0].mxu0 %v530
    %v1419 = vpop.f32.mrb[0].mxu0
    %v1420 = vadd.f32 %v1323, %v1419
    %v1421 = vpop.f32.mrb[0].mxu0
    %v1422 = vpop.f32.mrb[0].mxu0
    %v1423 = vadd.f32 %v1326, %v1422
    %v1424 = vpop.f32.mrb[0].mxu0
    %1425 = vmatprep.mubr.bf16.mxu0 %v540
    %1426 = vmatmul.mubr.bf16.gmra.mrb[0].mxu0 %v539
    %v1427 = vpop.f32.mrb[0].mxu0
    %v1428 = vadd.f32 %v1331, %v1427
    %v1429 = vpop.f32.mrb[0].mxu0
    %v1430 = vpop.f32.mrb[0].mxu0
    %v1431 = vadd.f32 %v1334, %v1430
    %v1432 = vpop.f32.mrb[0].mxu0
    %1433 = vdwg.mxu0
    %1434 = vmatprep.subr.bf16.mxu0 0
    %1435 = vmatpush1.bf16.msra.mxu0 %v966
    %1436 = vmatprep.subr.bf16.mxu0 0
    %1437 = vmatpush1.bf16.msra.mxu0 %v967
    %1438 = vmatprep.subr.bf16.mxu0 0
    %1439 = vmatpush1.bf16.msra.mxu0 %v968
    %1440 = vmatprep.subr.bf16.mxu0 0
    %1441 = vmatpush1.bf16.msra.mxu0 %v969
    %1442 = vmatprep.subr.bf16.mxu0 0
    %1443 = vmatpush1.bf16.msra.mxu0 %v970
    %1444 = vmatprep.subr.bf16.mxu0 0
    %1445 = vmatpush1.bf16.msra.mxu0 %v971
    %1446 = vmatprep.subr.bf16.mxu0 0
    %1447 = vmatpush1.bf16.msra.mxu0 %v972
    %1448 = vmatprep.subr.bf16.mxu0 0
    %1449 = vmatpush1.bf16.msra.mxu0 %v973
    %1450 = vmatprep.subr.bf16.mxu0 0
    %1451 = vmatpush1.bf16.msra.mxu0 0
    %1452 = vmatprep.subr.bf16.mxu0 0
    %1453 = vmatpush1.bf16.msra.mxu0 0
    %1454 = vmatprep.subr.bf16.mxu0 0
    %1455 = vmatpush1.bf16.msra.mxu0 0
    %1456 = vmatprep.subr.bf16.mxu0 0
    %1457 = vmatpush1.bf16.msra.mxu0 0
    %1458 = vmatprep.subr.bf16.mxu0 0
    %1459 = vmatpush1.bf16.msra.mxu0 0
    %1460 = vmatprep.subr.bf16.mxu0 0
    %1461 = vmatpush1.bf16.msra.mxu0 0
    %1462 = vmatprep.subr.bf16.mxu0 0
    %1463 = vmatpush1.bf16.msra.mxu0 0
    %1464 = vmatprep.subr.bf16.mxu0 0
    %1465 = vmatpush1.bf16.msra.mxu0 0
    %1466 = vmatprep.mubr.bf16.mxu0 0
    %1467 = vmatmul.mubr.bf16.gmra.mrb[0].mxu0 %v478
    %v1468 = vpop.f32.mrb[0].mxu0
    %v1469 = vadd.f32 %v1372, %v1468
    %v1470 = vpop.f32.mrb[0].mxu0
    %v1471 = vpop.f32.mrb[0].mxu0
    %v1472 = vadd.f32 %v1375, %v1471
    %v1473 = vpop.f32.mrb[0].mxu0
    %1474 = vmatprep.mubr.bf16.mxu0 0
    %1475 = vmatmul.mubr.bf16.gmra.mrb[0].mxu0 %v487
    %v1476 = vpop.f32.mrb[0].mxu0
    %v1477 = vadd.f32 %v1380, %v1476
    %v1478 = vpop.f32.mrb[0].mxu0
    %v1479 = vpop.f32.mrb[0].mxu0
    %v1480 = vadd.f32 %v1383, %v1479
    %v1481 = vpop.f32.mrb[0].mxu0
    %1482 = vmatprep.mubr.bf16.mxu0 0
    %1483 = vmatmul.mubr.bf16.gmra.mrb[0].mxu0 %v496
    %v1484 = vpop.f32.mrb[0].mxu0
    %v1485 = vadd.f32 %v1388, %v1484
    %v1486 = vpop.f32.mrb[0].mxu0
    %v1487 = vpop.f32.mrb[0].mxu0
    %v1488 = vadd.f32 %v1391, %v1487
    %v1489 = vpop.f32.mrb[0].mxu0
    %1490 = vmatprep.mubr.bf16.mxu0 0
    %1491 = vmatmul.mubr.bf16.gmra.mrb[0].mxu0 %v505
    %v1492 = vpop.f32.mrb[0].mxu0
    %v1493 = vadd.f32 %v1396, %v1492
    %v1494 = vpop.f32.mrb[0].mxu0
    %v1495 = vpop.f32.mrb[0].mxu0
    %v1496 = vadd.f32 %v1399, %v1495
    %v1497 = vpop.f32.mrb[0].mxu0
    %1498 = vmatprep.mubr.bf16.mxu0 0
    %1499 = vmatmul.mubr.bf16.gmra.mrb[0].mxu0 %v514
    %v1500 = vpop.f32.mrb[0].mxu0
    %v1501 = vadd.f32 %v1404, %v1500
    %v1502 = vpop.f32.mrb[0].mxu0
    %v1503 = vpop.f32.mrb[0].mxu0
    %v1504 = vadd.f32 %v1407, %v1503
    %v1505 = vpop.f32.mrb[0].mxu0
    %1506 = vmatprep.mubr.bf16.mxu0 0
    %1507 = vmatmul.mubr.bf16.gmra.mrb[0].mxu0 %v523
    %v1508 = vpop.f32.mrb[0].mxu0
    %v1509 = vadd.f32 %v1412, %v1508
    %v1510 = vpop.f32.mrb[0].mxu0
    %v1511 = vpop.f32.mrb[0].mxu0
    %v1512 = vadd.f32 %v1415, %v1511
    %v1513 = vpop.f32.mrb[0].mxu0
    %1514 = vmatprep.mubr.bf16.mxu0 0
    %1515 = vmatmul.mubr.bf16.gmra.mrb[0].mxu0 %v532
    %v1516 = vpop.f32.mrb[0].mxu0
    %v1517 = vadd.f32 %v1420, %v1516
    %v1518 = vpop.f32.mrb[0].mxu0
    %v1519 = vpop.f32.mrb[0].mxu0
    %v1520 = vadd.f32 %v1423, %v1519
    %v1521 = vpop.f32.mrb[0].mxu0
    %1522 = vmatprep.mubr.bf16.mxu0 0
    %1523 = vmatmul.mubr.bf16.gmra.mrb[0].mxu0 %v541
    %v1524 = vpop.f32.mrb[0].mxu0
    %v1525 = vadd.f32 %v1428, %v1524
    %v1526 = vpop.f32.mrb[0].mxu0
    %v1527 = vpop.f32.mrb[0].mxu0
    %v1528 = vadd.f32 %v1431, %v1527
    %v1529 = vpop.f32.mrb[0].mxu0
    %1530 = vdwg.mxu0
    %v1531 = vld [vmem:[%s2] sm:$0x1]
    %v1533 = vlaneseq
    %v1534 = vshrl.u32 %v1533, 7
    %v1535 = vsub.s32 0, %v1534
    %v1536 = vrot.slane %v1531, %v1535
    %v1538 = vmul.f32 %v1469, %v1536
    %v1539 = vmul.f32 %v1472, %v1536
    %v1540 = vmul.f32 %v1477, %v1536
    %v1541 = vmul.f32 %v1480, %v1536
    %v1542 = vmul.f32 %v1485, %v1536
    %v1543 = vmul.f32 %v1488, %v1536
    %v1544 = vmul.f32 %v1493, %v1536
    %v1545 = vmul.f32 %v1496, %v1536
    %v1546 = vmul.f32 %v1501, %v1536
    %v1547 = vmul.f32 %v1504, %v1536
    %v1548 = vmul.f32 %v1509, %v1536
    %v1549 = vmul.f32 %v1512, %v1536
    %v1550 = vmul.f32 %v1517, %v1536
    %v1551 = vmul.f32 %v1520, %v1536
    %v1552 = vmul.f32 %v1525, %v1536
    %v1553 = vmul.f32 %v1528, %v1536
    %v1554 = vld [vmem:[%s3] sm:$0x1]
    %v1556 = vlaneseq
    %v1557 = vshrl.u32 %v1556, 7
    %v1558 = vsub.s32 0, %v1557
    %v1559 = vrot.slane %v1554, %v1558
    %v1561 = vadd.f32 %v1538, %v1559
    %v1562 = vadd.f32 %v1539, %v1559
    %v1563 = vadd.f32 %v1540, %v1559
    %v1564 = vadd.f32 %v1541, %v1559
    %v1565 = vadd.f32 %v1542, %v1559
    %v1566 = vadd.f32 %v1543, %v1559
    %v1567 = vadd.f32 %v1544, %v1559
    %v1568 = vadd.f32 %v1545, %v1559
    %v1569 = vadd.f32 %v1546, %v1559
    %v1570 = vadd.f32 %v1547, %v1559
    %v1571 = vadd.f32 %v1548, %v1559
    %v1572 = vadd.f32 %v1549, %v1559
    %v1573 = vadd.f32 %v1550, %v1559
    %v1574 = vadd.f32 %v1551, %v1559
    %v1575 = vadd.f32 %v1552, %v1559
    %v1576 = vadd.f32 %v1553, %v1559
    %v1577 = vld [vmem:[%s4] sm:$0xff]
    %v1578 = vld [vmem:[%s4 + $0x8] sm:$0xff]
    %v1579 = vld [vmem:[%s4 + $0x10] sm:$0xff]
    %v1580 = vld [vmem:[%s4 + $0x18] sm:$0xff]
    %v1581 = vld [vmem:[%s4 + $0x20] sm:$0xff]
    %v1582 = vld [vmem:[%s4 + $0x28] sm:$0xff]
    %v1583 = vld [vmem:[%s4 + $0x30] sm:$0xff]
    %v1584 = vld [vmem:[%s4 + $0x38] sm:$0xff]
    %v1585 = vld [vmem:[%s4 + $0x40] sm:$0xff]
    %v1586 = vld [vmem:[%s4 + $0x48] sm:$0xff]
    %v1587 = vld [vmem:[%s4 + $0x50] sm:$0xff]
    %v1588 = vld [vmem:[%s4 + $0x58] sm:$0xff]
    %v1589 = vld [vmem:[%s4 + $0x60] sm:$0xff]
    %v1590 = vld [vmem:[%s4 + $0x68] sm:$0xff]
    %v1591 = vld [vmem:[%s4 + $0x70] sm:$0xff]
    %v1592 = vld [vmem:[%s4 + $0x78] sm:$0xff]
    %v1593 = vadd.f32 %v1561, %v1577
    %v1594 = vadd.f32 %v1562, %v1578
    %v1595 = vadd.f32 %v1563, %v1579
    %v1596 = vadd.f32 %v1564, %v1580
    %v1597 = vadd.f32 %v1565, %v1581
    %v1598 = vadd.f32 %v1566, %v1582
    %v1599 = vadd.f32 %v1567, %v1583
    %v1600 = vadd.f32 %v1568, %v1584
    %v1601 = vadd.f32 %v1569, %v1585
    %v1602 = vadd.f32 %v1570, %v1586
    %v1603 = vadd.f32 %v1571, %v1587
    %v1604 = vadd.f32 %v1572, %v1588
    %v1605 = vadd.f32 %v1573, %v1589
    %v1606 = vadd.f32 %v1574, %v1590
    %v1607 = vadd.f32 %v1575, %v1591
    %v1608 = vadd.f32 %v1576, %v1592
    %1609 = vst [vmem:[#allocation2] sm:$0xff] %v1593
    %1610 = vst [vmem:[#allocation2 + $0x8] sm:$0xff] %v1594
    %1611 = vst [vmem:[#allocation2 + $0x10] sm:$0xff] %v1595
    %1612 = vst [vmem:[#allocation2 + $0x18] sm:$0xff] %v1596
    %1613 = vst [vmem:[#allocation2 + $0x20] sm:$0xff] %v1597
    %1614 = vst [vmem:[#allocation2 + $0x28] sm:$0xff] %v1598
    %1615 = vst [vmem:[#allocation2 + $0x30] sm:$0xff] %v1599
    %1616 = vst [vmem:[#allocation2 + $0x38] sm:$0xff] %v1600
    %1617 = vst [vmem:[#allocation2 + $0x40] sm:$0xff] %v1601
    %1618 = vst [vmem:[#allocation2 + $0x48] sm:$0xff] %v1602
    %1619 = vst [vmem:[#allocation2 + $0x50] sm:$0xff] %v1603
    %1620 = vst [vmem:[#allocation2 + $0x58] sm:$0xff] %v1604
    %1621 = vst [vmem:[#allocation2 + $0x60] sm:$0xff] %v1605
    %1622 = vst [vmem:[#allocation2 + $0x68] sm:$0xff] %v1606
    %1623 = vst [vmem:[#allocation2 + $0x70] sm:$0xff] %v1607
    %1624 = vst [vmem:[#allocation2 + $0x78] sm:$0xff] %v1608
    // Predicated region
    $region22: #{_lambda_.7} parent=1 // pred_check
      _
    $region23: #{_lambda_.7} parent=1 // pred_check_branch
      %1626 = sbr.rel (0) target = $region25
    $region24: #{_lambda_.7} parent=1 // pred_region
      %s1628 = ssub.s32 2048, 2048
      %1629 = vsyncadd [#allocation3], %s1628
      %s1630 = sshll.u32 [#allocation2], 4
      %s1631 = int_to_ptr.vmem [resolvable:$true] %s1630
      %1636 = dma.vmem_to_hbm [thread:$0]  %s1631, 2048, %s5, [#allocation3], 128, 128, 8
    $region25: #{_lambda_.7} parent=1 // pred_fallthru
      _
    // Predicated region
    $region26: #{_lambda_.7} parent=1 // pred_check
      _
    $region27: #{_lambda_.7} parent=1 // pred_check_branch
      %1638 = sbr.rel (0) target = $region29
    $region28: #{_lambda_.7} parent=1 // pred_region
      %1639 = dma.done [#allocation3], 2048
    $region29: #{_lambda_.7} parent=1 // pred_fallthru
      _
    %1640 = vsyncpa [#allocation3], 1

// kernel: _lambda_.5
$region0: #{_lambda_.5}
  #allocation0 [shape = 'u32[]', space=smem, size = 0x4, offset = 0x4, fixed_abs, tag = 'smem constant byte address 0x4 - core index']
  #allocation1 [shape = 'u32[144,128]{1,0:T(1,128)}', space=vmem, size = 0x12000, scoped, tag = 'internal scratch']
  %s0 = inlined_call_operand.vmem [shape: bf16[512,576], index: 0, kind: input, shape index: {}]
  %s1 = inlined_call_operand.vmem [shape: bf16[576,128], index: 1, kind: input, shape index: {}]
  %s2 = inlined_call_operand.vmem [shape: f32[1,128], index: 2, kind: input, shape index: {}]
  %s3 = inlined_call_operand.vmem [shape: f32[1,128], index: 3, kind: input, shape index: {}]
  %s4 = inlined_call_operand.vmem [shape: f32[1,128], index: 4, kind: input, shape index: {}]
  %s5 = inlined_call_operand.vmem [shape: bf16[512,128], index: 5, kind: output, shape index: {}]
  %s6 = sld [smem:[#allocation0]]
  $region30: #{_lambda_.5} parent=0
    _
  %s8 = ssub.s32 1, %s6
  %s9 = scalar_select 0, %s8, %s6
  // Predicated region
  $region2: #{_lambda_.5} parent=0 // pred_check
    _
  $region3: #{_lambda_.5} parent=0 // pred_check_branch
    %11 = sbr.rel (0) target = $region5
  $region4: #{_lambda_.5} parent=0 // pred_region
    _
  $region5: #{_lambda_.5} parent=0 // pred_fallthru
    _
  // Predicated region
  $region6: #{_lambda_.5} parent=0 // pred_check
    _
  $region7: #{_lambda_.5} parent=0 // pred_check_branch
    %13 = sbr.rel (0) target = $region9
  $region8: #{_lambda_.5} parent=0 // pred_region
    _
  $region9: #{_lambda_.5} parent=0 // pred_fallthru
    _
  // Predicated region
  $region10: #{_lambda_.5} parent=0 // pred_check
    _
  $region11: #{_lambda_.5} parent=0 // pred_check_branch
    %15 = sbr.rel (0) target = $region13
  $region12: #{_lambda_.5} parent=0 // pred_region
    _
  $region13: #{_lambda_.5} parent=0 // pred_fallthru
    _
  // Predicated region
  $region14: #{_lambda_.5} parent=0 // pred_check
    _
  $region15: #{_lambda_.5} parent=0 // pred_check_branch
    %17 = sbr.rel (0) target = $region17
  $region16: #{_lambda_.5} parent=0 // pred_region
    _
  $region17: #{_lambda_.5} parent=0 // pred_fallthru
    _
  // Predicated region
  $region18: #{_lambda_.5} parent=0 // pred_check
    _
  $region19: #{_lambda_.5} parent=0 // pred_check_branch
    %19 = sbr.rel (0) target = $region21
  $region20: #{_lambda_.5} parent=0 // pred_region
    _
  $region21: #{_lambda_.5} parent=0 // pred_fallthru
    _
  %v21 = vld [vmem:[%s0] sm:$0xff]
  %v22 = vld [vmem:[%s0 + $0x8] sm:$0xff]
  %v23 = vld [vmem:[%s0 + $0x10] sm:$0xf]
  %v24 = vld [vmem:[%s0 + $0x14] sm:$0xff]
  %v25 = vld [vmem:[%s0 + $0x1c] sm:$0xff]
  %v26 = vld [vmem:[%s0 + $0x24] sm:$0xf]
  %v27 = vld [vmem:[%s0 + $0x28] sm:$0xff]
  %v28 = vld [vmem:[%s0 + $0x30] sm:$0xff]
  %v29 = vld [vmem:[%s0 + $0x38] sm:$0xf]
  %v30 = vld [vmem:[%s0 + $0x3c] sm:$0xff]
  %v31 = vld [vmem:[%s0 + $0x44] sm:$0xff]
  %v32 = vld [vmem:[%s0 + $0x4c] sm:$0xf]
  %v33 = vld [vmem:[%s0 + $0x50] sm:$0xff]
  %v34 = vld [vmem:[%s0 + $0x58] sm:$0xff]
  %v35 = vld [vmem:[%s0 + $0x60] sm:$0xf]
  %v36 = vld [vmem:[%s0 + $0x64] sm:$0xff]
  %v37 = vld [vmem:[%s0 + $0x6c] sm:$0xff]
  %v38 = vld [vmem:[%s0 + $0x74] sm:$0xf]
  %v39 = vld [vmem:[%s0 + $0x78] sm:$0xff]
  %v40 = vld [vmem:[%s0 + $0x80] sm:$0xff]
  %v41 = vld [vmem:[%s0 + $0x88] sm:$0xf]
  %v42 = vld [vmem:[%s0 + $0x8c] sm:$0xff]
  %v43 = vld [vmem:[%s0 + $0x94] sm:$0xff]
  %v44 = vld [vmem:[%s0 + $0x9c] sm:$0xf]
  %v45 = vld [vmem:[%s0 + $0xa0] sm:$0xff]
  %v46 = vld [vmem:[%s0 + $0xa8] sm:$0xff]
  %v47 = vld [vmem:[%s0 + $0xb0] sm:$0xf]
  %v48 = vld [vmem:[%s0 + $0xb4] sm:$0xff]
  %v49 = vld [vmem:[%s0 + $0xbc] sm:$0xff]
  %v50 = vld [vmem:[%s0 + $0xc4] sm:$0xf]
  %v51 = vld [vmem:[%s0 + $0xc8] sm:$0xff]
  %v52 = vld [vmem:[%s0 + $0xd0] sm:$0xff]
  %v53 = vld [vmem:[%s0 + $0xd8] sm:$0xf]
  %v54 = vld [vmem:[%s0 + $0xdc] sm:$0xff]
  %v55 = vld [vmem:[%s0 + $0xe4] sm:$0xff]
  %v56 = vld [vmem:[%s0 + $0xec] sm:$0xf]
  %v57 = vld [vmem:[%s0 + $0xf0] sm:$0xff]
  %v58 = vld [vmem:[%s0 + $0xf8] sm:$0xff]
  %v59 = vld [vmem:[%s0 + $0x100] sm:$0xf]
  %v60 = vld [vmem:[%s0 + $0x104] sm:$0xff]
  %v61 = vld [vmem:[%s0 + $0x10c] sm:$0xff]
  %v62 = vld [vmem:[%s0 + $0x114] sm:$0xf]
  %v63 = vld [vmem:[%s0 + $0x118] sm:$0xff]
  %v64 = vld [vmem:[%s0 + $0x120] sm:$0xff]
  %v65 = vld [vmem:[%s0 + $0x128] sm:$0xf]
  %v66 = vld [vmem:[%s0 + $0x12c] sm:$0xff]
  %v67 = vld [vmem:[%s0 + $0x134] sm:$0xff]
  %v68 = vld [vmem:[%s0 + $0x13c] sm:$0xf]
  %v69 = vld [vmem:[%s0 + $0x140] sm:$0xff]
  %v70 = vld [vmem:[%s0 + $0x148] sm:$0xff]
  %v71 = vld [vmem:[%s0 + $0x150] sm:$0xf]
  %v72 = vld [vmem:[%s0 + $0x154] sm:$0xff]
  %v73 = vld [vmem:[%s0 + $0x15c] sm:$0xff]
  %v74 = vld [vmem:[%s0 + $0x164] sm:$0xf]
  %v75 = vld [vmem:[%s0 + $0x168] sm:$0xff]
  %v76 = vld [vmem:[%s0 + $0x170] sm:$0xff]
  %v77 = vld [vmem:[%s0 + $0x178] sm:$0xf]
  %v78 = vld [vmem:[%s0 + $0x17c] sm:$0xff]
  %v79 = vld [vmem:[%s0 + $0x184] sm:$0xff]
  %v80 = vld [vmem:[%s0 + $0x18c] sm:$0xf]
  %v81 = vld [vmem:[%s0 + $0x190] sm:$0xff]
  %v82 = vld [vmem:[%s0 + $0x198] sm:$0xff]
  %v83 = vld [vmem:[%s0 + $0x1a0] sm:$0xf]
  %v84 = vld [vmem:[%s0 + $0x1a4] sm:$0xff]
  %v85 = vld [vmem:[%s0 + $0x1ac] sm:$0xff]
  %v86 = vld [vmem:[%s0 + $0x1b4] sm:$0xf]
  %v87 = vld [vmem:[%s0 + $0x1b8] sm:$0xff]
  %v88 = vld [vmem:[%s0 + $0x1c0] sm:$0xff]
  %v89 = vld [vmem:[%s0 + $0x1c8] sm:$0xf]
  %v90 = vld [vmem:[%s0 + $0x1cc] sm:$0xff]
  %v91 = vld [vmem:[%s0 + $0x1d4] sm:$0xff]
  %v92 = vld [vmem:[%s0 + $0x1dc] sm:$0xf]
  %v93 = vld [vmem:[%s0 + $0x1e0] sm:$0xff]
  %v94 = vld [vmem:[%s0 + $0x1e8] sm:$0xff]
  %v95 = vld [vmem:[%s0 + $0x1f0] sm:$0xf]
  %v96 = vld [vmem:[%s0 + $0x1f4] sm:$0xff]
  %v97 = vld [vmem:[%s0 + $0x1fc] sm:$0xff]
  %v98 = vld [vmem:[%s0 + $0x204] sm:$0xf]
  %v99 = vld [vmem:[%s0 + $0x208] sm:$0xff]
  %v100 = vld [vmem:[%s0 + $0x210] sm:$0xff]
  %v101 = vld [vmem:[%s0 + $0x218] sm:$0xf]
  %v102 = vld [vmem:[%s0 + $0x21c] sm:$0xff]
  %v103 = vld [vmem:[%s0 + $0x224] sm:$0xff]
  %v104 = vld [vmem:[%s0 + $0x22c] sm:$0xf]
  %v105 = vld [vmem:[%s0 + $0x230] sm:$0xff]
  %v106 = vld [vmem:[%s0 + $0x238] sm:$0xff]
  %v107 = vld [vmem:[%s0 + $0x240] sm:$0xf]
  %v108 = vld [vmem:[%s0 + $0x244] sm:$0xff]
  %v109 = vld [vmem:[%s0 + $0x24c] sm:$0xff]
  %v110 = vld [vmem:[%s0 + $0x254] sm:$0xf]
  %v111 = vld [vmem:[%s0 + $0x258] sm:$0xff]
  %v112 = vld [vmem:[%s0 + $0x260] sm:$0xff]
  %v113 = vld [vmem:[%s0 + $0x268] sm:$0xf]
  %v114 = vld [vmem:[%s0 + $0x26c] sm:$0xff]
  %v115 = vld [vmem:[%s0 + $0x274] sm:$0xff]
  %v116 = vld [vmem:[%s0 + $0x27c] sm:$0xf]
  %v117 = vld [vmem:[%s0 + $0x280] sm:$0xff]
  %v118 = vld [vmem:[%s0 + $0x288] sm:$0xff]
  %v119 = vld [vmem:[%s0 + $0x290] sm:$0xf]
  %v120 = vld [vmem:[%s0 + $0x294] sm:$0xff]
  %v121 = vld [vmem:[%s0 + $0x29c] sm:$0xff]
  %v122 = vld [vmem:[%s0 + $0x2a4] sm:$0xf]
  %v123 = vld [vmem:[%s0 + $0x2a8] sm:$0xff]
  %v124 = vld [vmem:[%s0 + $0x2b0] sm:$0xff]
  %v125 = vld [vmem:[%s0 + $0x2b8] sm:$0xf]
  %v126 = vld [vmem:[%s0 + $0x2bc] sm:$0xff]
  %v127 = vld [vmem:[%s0 + $0x2c4] sm:$0xff]
  %v128 = vld [vmem:[%s0 + $0x2cc] sm:$0xf]
  %v129 = vld [vmem:[%s0 + $0x2d0] sm:$0xff]
  %v130 = vld [vmem:[%s0 + $0x2d8] sm:$0xff]
  %v131 = vld [vmem:[%s0 + $0x2e0] sm:$0xf]
  %v132 = vld [vmem:[%s0 + $0x2e4] sm:$0xff]
  %v133 = vld [vmem:[%s0 + $0x2ec] sm:$0xff]
  %v134 = vld [vmem:[%s0 + $0x2f4] sm:$0xf]
  %v135 = vld [vmem:[%s0 + $0x2f8] sm:$0xff]
  %v136 = vld [vmem:[%s0 + $0x300] sm:$0xff]
  %v137 = vld [vmem:[%s0 + $0x308] sm:$0xf]
  %v138 = vld [vmem:[%s0 + $0x30c] sm:$0xff]
  %v139 = vld [vmem:[%s0 + $0x314] sm:$0xff]
  %v140 = vld [vmem:[%s0 + $0x31c] sm:$0xf]
  %v141 = vld [vmem:[%s0 + $0x320] sm:$0xff]
  %v142 = vld [vmem:[%s0 + $0x328] sm:$0xff]
  %v143 = vld [vmem:[%s0 + $0x330] sm:$0xf]
  %v144 = vld [vmem:[%s0 + $0x334] sm:$0xff]
  %v145 = vld [vmem:[%s0 + $0x33c] sm:$0xff]
  %v146 = vld [vmem:[%s0 + $0x344] sm:$0xf]
  %v147 = vld [vmem:[%s0 + $0x348] sm:$0xff]
  %v148 = vld [vmem:[%s0 + $0x350] sm:$0xff]
  %v149 = vld [vmem:[%s0 + $0x358] sm:$0xf]
  %v150 = vld [vmem:[%s0 + $0x35c] sm:$0xff]
  %v151 = vld [vmem:[%s0 + $0x364] sm:$0xff]
  %v152 = vld [vmem:[%s0 + $0x36c] sm:$0xf]
  %v153 = vld [vmem:[%s0 + $0x370] sm:$0xff]
  %v154 = vld [vmem:[%s0 + $0x378] sm:$0xff]
  %v155 = vld [vmem:[%s0 + $0x380] sm:$0xf]
  %v156 = vld [vmem:[%s0 + $0x384] sm:$0xff]
  %v157 = vld [vmem:[%s0 + $0x38c] sm:$0xff]
  %v158 = vld [vmem:[%s0 + $0x394] sm:$0xf]
  %v159 = vld [vmem:[%s0 + $0x398] sm:$0xff]
  %v160 = vld [vmem:[%s0 + $0x3a0] sm:$0xff]
  %v161 = vld [vmem:[%s0 + $0x3a8] sm:$0xf]
  %v162 = vld [vmem:[%s0 + $0x3ac] sm:$0xff]
  %v163 = vld [vmem:[%s0 + $0x3b4] sm:$0xff]
  %v164 = vld [vmem:[%s0 + $0x3bc] sm:$0xf]
  %v165 = vld [vmem:[%s0 + $0x3c0] sm:$0xff]
  %v166 = vld [vmem:[%s0 + $0x3c8] sm:$0xff]
  %v167 = vld [vmem:[%s0 + $0x3d0] sm:$0xf]
  %v168 = vld [vmem:[%s0 + $0x3d4] sm:$0xff]
  %v169 = vld [vmem:[%s0 + $0x3dc] sm:$0xff]
  %v170 = vld [vmem:[%s0 + $0x3e4] sm:$0xf]
  %v171 = vld [vmem:[%s0 + $0x3e8] sm:$0xff]
  %v172 = vld [vmem:[%s0 + $0x3f0] sm:$0xff]
  %v173 = vld [vmem:[%s0 + $0x3f8] sm:$0xf]
  %v174 = vld [vmem:[%s0 + $0x3fc] sm:$0xff]
  %v175 = vld [vmem:[%s0 + $0x404] sm:$0xff]
  %v176 = vld [vmem:[%s0 + $0x40c] sm:$0xf]
  %v177 = vld [vmem:[%s0 + $0x410] sm:$0xff]
  %v178 = vld [vmem:[%s0 + $0x418] sm:$0xff]
  %v179 = vld [vmem:[%s0 + $0x420] sm:$0xf]
  %v180 = vld [vmem:[%s0 + $0x424] sm:$0xff]
  %v181 = vld [vmem:[%s0 + $0x42c] sm:$0xff]
  %v182 = vld [vmem:[%s0 + $0x434] sm:$0xf]
  %v183 = vld [vmem:[%s0 + $0x438] sm:$0xff]
  %v184 = vld [vmem:[%s0 + $0x440] sm:$0xff]
  %v185 = vld [vmem:[%s0 + $0x448] sm:$0xf]
  %v186 = vld [vmem:[%s0 + $0x44c] sm:$0xff]
  %v187 = vld [vmem:[%s0 + $0x454] sm:$0xff]
  %v188 = vld [vmem:[%s0 + $0x45c] sm:$0xf]
  %v189 = vld [vmem:[%s0 + $0x460] sm:$0xff]
  %v190 = vld [vmem:[%s0 + $0x468] sm:$0xff]
  %v191 = vld [vmem:[%s0 + $0x470] sm:$0xf]
  %v192 = vld [vmem:[%s0 + $0x474] sm:$0xff]
  %v193 = vld [vmem:[%s0 + $0x47c] sm:$0xff]
  %v194 = vld [vmem:[%s0 + $0x484] sm:$0xf]
  %v195 = vld [vmem:[%s0 + $0x488] sm:$0xff]
  %v196 = vld [vmem:[%s0 + $0x490] sm:$0xff]
  %v197 = vld [vmem:[%s0 + $0x498] sm:$0xf]
  %v198 = vld [vmem:[%s0 + $0x49c] sm:$0xff]
  %v199 = vld [vmem:[%s0 + $0x4a4] sm:$0xff]
  %v200 = vld [vmem:[%s0 + $0x4ac] sm:$0xf]
  %v201 = vld [vmem:[%s0 + $0x4b0] sm:$0xff]
  %v202 = vld [vmem:[%s0 + $0x4b8] sm:$0xff]
  %v203 = vld [vmem:[%s0 + $0x4c0] sm:$0xf]
  %v204 = vld [vmem:[%s0 + $0x4c4] sm:$0xff]
  %v205 = vld [vmem:[%s0 + $0x4cc] sm:$0xff]
  %v206 = vld [vmem:[%s0 + $0x4d4] sm:$0xf]
  %v207 = vld [vmem:[%s0 + $0x4d8] sm:$0xff]
  %v208 = vld [vmem:[%s0 + $0x4e0] sm:$0xff]
  %v209 = vld [vmem:[%s0 + $0x4e8] sm:$0xf]
  %v210 = vld [vmem:[%s0 + $0x4ec] sm:$0xff]
  %v211 = vld [vmem:[%s0 + $0x4f4] sm:$0xff]
  %v212 = vld [vmem:[%s0 + $0x4fc] sm:$0xf]
  %v213 = vld [vmem:[%s1] sm:$0xf]
  %v214 = vld [vmem:[%s1 + $0x4] sm:$0xf]
  %v215 = vld [vmem:[%s1 + $0x8] sm:$0xf]
  %v216 = vld [vmem:[%s1 + $0xc] sm:$0xf]
  %v217 = vld [vmem:[%s1 + $0x10] sm:$0xf]
  %v218 = vld [vmem:[%s1 + $0x14] sm:$0xf]
  %v219 = vld [vmem:[%s1 + $0x18] sm:$0xf]
  %v220 = vld [vmem:[%s1 + $0x1c] sm:$0xf]
  %v221 = vld [vmem:[%s1 + $0x20] sm:$0xf]
  %v222 = vld [vmem:[%s1 + $0x24] sm:$0xf]
  %v223 = vld [vmem:[%s1 + $0x28] sm:$0xf]
  %v224 = vld [vmem:[%s1 + $0x2c] sm:$0xf]
  %v225 = vld [vmem:[%s1 + $0x30] sm:$0xf]
  %v226 = vld [vmem:[%s1 + $0x34] sm:$0xf]
  %v227 = vld [vmem:[%s1 + $0x38] sm:$0xf]
  %v228 = vld [vmem:[%s1 + $0x3c] sm:$0xf]
  %v229 = vld [vmem:[%s1 + $0x40] sm:$0xf]
  %v230 = vld [vmem:[%s1 + $0x44] sm:$0xf]
  %v231 = vld [vmem:[%s1 + $0x48] sm:$0xf]
  %v232 = vld [vmem:[%s1 + $0x4c] sm:$0xf]
  %v233 = vld [vmem:[%s1 + $0x50] sm:$0xf]
  %v234 = vld [vmem:[%s1 + $0x54] sm:$0xf]
  %v235 = vld [vmem:[%s1 + $0x58] sm:$0xf]
  %v236 = vld [vmem:[%s1 + $0x5c] sm:$0xf]
  %v237 = vld [vmem:[%s1 + $0x60] sm:$0xf]
  %v238 = vld [vmem:[%s1 + $0x64] sm:$0xf]
  %v239 = vld [vmem:[%s1 + $0x68] sm:$0xf]
  %v240 = vld [vmem:[%s1 + $0x6c] sm:$0xf]
  %v241 = vld [vmem:[%s1 + $0x70] sm:$0xf]
  %v242 = vld [vmem:[%s1 + $0x74] sm:$0xf]
  %v243 = vld [vmem:[%s1 + $0x78] sm:$0xf]
  %v244 = vld [vmem:[%s1 + $0x7c] sm:$0xf]
  %v245 = vld [vmem:[%s1 + $0x80] sm:$0xf]
  %v246 = vld [vmem:[%s1 + $0x84] sm:$0xf]
  %v247 = vld [vmem:[%s1 + $0x88] sm:$0xf]
  %v248 = vld [vmem:[%s1 + $0x8c] sm:$0xf]
  %v249 = vld [vmem:[%s1 + $0x90] sm:$0xf]
  %v250 = vld [vmem:[%s1 + $0x94] sm:$0xf]
  %v251 = vld [vmem:[%s1 + $0x98] sm:$0xf]
  %v252 = vld [vmem:[%s1 + $0x9c] sm:$0xf]
  %v253 = vld [vmem:[%s1 + $0xa0] sm:$0xf]
  %v254 = vld [vmem:[%s1 + $0xa4] sm:$0xf]
  %v255 = vld [vmem:[%s1 + $0xa8] sm:$0xf]
  %v256 = vld [vmem:[%s1 + $0xac] sm:$0xf]
  %v257 = vld [vmem:[%s1 + $0xb0] sm:$0xf]
  %v258 = vld [vmem:[%s1 + $0xb4] sm:$0xf]
  %v259 = vld [vmem:[%s1 + $0xb8] sm:$0xf]
  %v260 = vld [vmem:[%s1 + $0xbc] sm:$0xf]
  %v261 = vld [vmem:[%s1 + $0xc0] sm:$0xf]
  %v262 = vld [vmem:[%s1 + $0xc4] sm:$0xf]
  %v263 = vld [vmem:[%s1 + $0xc8] sm:$0xf]
  %v264 = vld [vmem:[%s1 + $0xcc] sm:$0xf]
  %v265 = vld [vmem:[%s1 + $0xd0] sm:$0xf]
  %v266 = vld [vmem:[%s1 + $0xd4] sm:$0xf]
  %v267 = vld [vmem:[%s1 + $0xd8] sm:$0xf]
  %v268 = vld [vmem:[%s1 + $0xdc] sm:$0xf]
  %v269 = vld [vmem:[%s1 + $0xe0] sm:$0xf]
  %v270 = vld [vmem:[%s1 + $0xe4] sm:$0xf]
  %v271 = vld [vmem:[%s1 + $0xe8] sm:$0xf]
  %v272 = vld [vmem:[%s1 + $0xec] sm:$0xf]
  %v273 = vld [vmem:[%s1 + $0xf0] sm:$0xf]
  %v274 = vld [vmem:[%s1 + $0xf4] sm:$0xf]
  %v275 = vld [vmem:[%s1 + $0xf8] sm:$0xf]
  %v276 = vld [vmem:[%s1 + $0xfc] sm:$0xf]
  %v277 = vld [vmem:[%s1 + $0x100] sm:$0xf]
  %v278 = vld [vmem:[%s1 + $0x104] sm:$0xf]
  %v279 = vld [vmem:[%s1 + $0x108] sm:$0xf]
  %v280 = vld [vmem:[%s1 + $0x10c] sm:$0xf]
  %v281 = vld [vmem:[%s1 + $0x110] sm:$0xf]
  %v282 = vld [vmem:[%s1 + $0x114] sm:$0xf]
  %v283 = vld [vmem:[%s1 + $0x118] sm:$0xf]
  %v284 = vld [vmem:[%s1 + $0x11c] sm:$0xf]
  %v477 = vunpack.c.l.b16 %v21
  %v478 = vunpack.c.h.b16 %v21
  %v479 = vunpack.c.l.b16 %v22
  %v480 = vunpack.c.h.b16 %v22
  %v481 = vunpack.c.l.b16 %v23
  %v482 = vunpack.c.l.b16 %v24
  %v483 = vunpack.c.h.b16 %v24
  %v484 = vunpack.c.l.b16 %v25
  %v485 = vunpack.c.h.b16 %v25
  %v486 = vunpack.c.l.b16 %v26
  %v487 = vunpack.c.l.b16 %v27
  %v488 = vunpack.c.h.b16 %v27
  %v489 = vunpack.c.l.b16 %v28
  %v490 = vunpack.c.h.b16 %v28
  %v491 = vunpack.c.l.b16 %v29
  %v492 = vunpack.c.l.b16 %v30
  %v493 = vunpack.c.h.b16 %v30
  %v494 = vunpack.c.l.b16 %v31
  %v495 = vunpack.c.h.b16 %v31
  %v496 = vunpack.c.l.b16 %v32
  %v497 = vunpack.c.l.b16 %v33
  %v498 = vunpack.c.h.b16 %v33
  %v499 = vunpack.c.l.b16 %v34
  %v500 = vunpack.c.h.b16 %v34
  %v501 = vunpack.c.l.b16 %v35
  %v502 = vunpack.c.l.b16 %v36
  %v503 = vunpack.c.h.b16 %v36
  %v504 = vunpack.c.l.b16 %v37
  %v505 = vunpack.c.h.b16 %v37
  %v506 = vunpack.c.l.b16 %v38
  %v507 = vunpack.c.l.b16 %v39
  %v508 = vunpack.c.h.b16 %v39
  %v509 = vunpack.c.l.b16 %v40
  %v510 = vunpack.c.h.b16 %v40
  %v511 = vunpack.c.l.b16 %v41
  %v512 = vunpack.c.l.b16 %v42
  %v513 = vunpack.c.h.b16 %v42
  %v514 = vunpack.c.l.b16 %v43
  %v515 = vunpack.c.h.b16 %v43
  %v516 = vunpack.c.l.b16 %v44
  %v517 = vunpack.c.l.b16 %v45
  %v518 = vunpack.c.h.b16 %v45
  %v519 = vunpack.c.l.b16 %v46
  %v520 = vunpack.c.h.b16 %v46
  %v521 = vunpack.c.l.b16 %v47
  %v522 = vunpack.c.l.b16 %v48
  %v523 = vunpack.c.h.b16 %v48
  %v524 = vunpack.c.l.b16 %v49
  %v525 = vunpack.c.h.b16 %v49
  %v526 = vunpack.c.l.b16 %v50
  %v527 = vunpack.c.l.b16 %v51
  %v528 = vunpack.c.h.b16 %v51
  %v529 = vunpack.c.l.b16 %v52
  %v530 = vunpack.c.h.b16 %v52
  %v531 = vunpack.c.l.b16 %v53
  %v532 = vunpack.c.l.b16 %v54
  %v533 = vunpack.c.h.b16 %v54
  %v534 = vunpack.c.l.b16 %v55
  %v535 = vunpack.c.h.b16 %v55
  %v536 = vunpack.c.l.b16 %v56
  %v537 = vunpack.c.l.b16 %v57
  %v538 = vunpack.c.h.b16 %v57
  %v539 = vunpack.c.l.b16 %v58
  %v540 = vunpack.c.h.b16 %v58
  %v541 = vunpack.c.l.b16 %v59
  %v542 = vunpack.c.l.b16 %v60
  %v543 = vunpack.c.h.b16 %v60
  %v544 = vunpack.c.l.b16 %v61
  %v545 = vunpack.c.h.b16 %v61
  %v546 = vunpack.c.l.b16 %v62
  %v547 = vunpack.c.l.b16 %v63
  %v548 = vunpack.c.h.b16 %v63
  %v549 = vunpack.c.l.b16 %v64
  %v550 = vunpack.c.h.b16 %v64
  %v551 = vunpack.c.l.b16 %v65
  %v552 = vunpack.c.l.b16 %v66
  %v553 = vunpack.c.h.b16 %v66
  %v554 = vunpack.c.l.b16 %v67
  %v555 = vunpack.c.h.b16 %v67
  %v556 = vunpack.c.l.b16 %v68
  %v557 = vunpack.c.l.b16 %v69
  %v558 = vunpack.c.h.b16 %v69
  %v559 = vunpack.c.l.b16 %v70
  %v560 = vunpack.c.h.b16 %v70
  %v561 = vunpack.c.l.b16 %v71
  %v562 = vunpack.c.l.b16 %v72
  %v563 = vunpack.c.h.b16 %v72
  %v564 = vunpack.c.l.b16 %v73
  %v565 = vunpack.c.h.b16 %v73
  %v566 = vunpack.c.l.b16 %v74
  %v567 = vunpack.c.l.b16 %v75
  %v568 = vunpack.c.h.b16 %v75
  %v569 = vunpack.c.l.b16 %v76
  %v570 = vunpack.c.h.b16 %v76
  %v571 = vunpack.c.l.b16 %v77
  %v572 = vunpack.c.l.b16 %v78
  %v573 = vunpack.c.h.b16 %v78
  %v574 = vunpack.c.l.b16 %v79
  %v575 = vunpack.c.h.b16 %v79
  %v576 = vunpack.c.l.b16 %v80
  %v577 = vunpack.c.l.b16 %v81
  %v578 = vunpack.c.h.b16 %v81
  %v579 = vunpack.c.l.b16 %v82
  %v580 = vunpack.c.h.b16 %v82
  %v581 = vunpack.c.l.b16 %v83
  %v582 = vunpack.c.l.b16 %v84
  %v583 = vunpack.c.h.b16 %v84
  %v584 = vunpack.c.l.b16 %v85
  %v585 = vunpack.c.h.b16 %v85
  %v586 = vunpack.c.l.b16 %v86
  %v587 = vunpack.c.l.b16 %v87
  %v588 = vunpack.c.h.b16 %v87
  %v589 = vunpack.c.l.b16 %v88
  %v590 = vunpack.c.h.b16 %v88
  %v591 = vunpack.c.l.b16 %v89
  %v592 = vunpack.c.l.b16 %v90
  %v593 = vunpack.c.h.b16 %v90
  %v594 = vunpack.c.l.b16 %v91
  %v595 = vunpack.c.h.b16 %v91
  %v596 = vunpack.c.l.b16 %v92
  %v597 = vunpack.c.l.b16 %v93
  %v598 = vunpack.c.h.b16 %v93
  %v599 = vunpack.c.l.b16 %v94
  %v600 = vunpack.c.h.b16 %v94
  %v601 = vunpack.c.l.b16 %v95
  %v602 = vunpack.c.l.b16 %v96
  %v603 = vunpack.c.h.b16 %v96
  %v604 = vunpack.c.l.b16 %v97
  %v605 = vunpack.c.h.b16 %v97
  %v606 = vunpack.c.l.b16 %v98
  %v607 = vunpack.c.l.b16 %v99
  %v608 = vunpack.c.h.b16 %v99
  %v609 = vunpack.c.l.b16 %v100
  %v610 = vunpack.c.h.b16 %v100
  %v611 = vunpack.c.l.b16 %v101
  %v612 = vunpack.c.l.b16 %v102
  %v613 = vunpack.c.h.b16 %v102
  %v614 = vunpack.c.l.b16 %v103
  %v615 = vunpack.c.h.b16 %v103
  %v616 = vunpack.c.l.b16 %v104
  %v617 = vunpack.c.l.b16 %v105
  %v618 = vunpack.c.h.b16 %v105
  %v619 = vunpack.c.l.b16 %v106
  %v620 = vunpack.c.h.b16 %v106
  %v621 = vunpack.c.l.b16 %v107
  %v622 = vunpack.c.l.b16 %v108
  %v623 = vunpack.c.h.b16 %v108
  %v624 = vunpack.c.l.b16 %v109
  %v625 = vunpack.c.h.b16 %v109
  %v626 = vunpack.c.l.b16 %v110
  %v627 = vunpack.c.l.b16 %v111
  %v628 = vunpack.c.h.b16 %v111
  %v629 = vunpack.c.l.b16 %v112
  %v630 = vunpack.c.h.b16 %v112
  %v631 = vunpack.c.l.b16 %v113
  %v632 = vunpack.c.l.b16 %v114
  %v633 = vunpack.c.h.b16 %v114
  %v634 = vunpack.c.l.b16 %v115
  %v635 = vunpack.c.h.b16 %v115
  %v636 = vunpack.c.l.b16 %v116
  %v637 = vunpack.c.l.b16 %v117
  %v638 = vunpack.c.h.b16 %v117
  %v639 = vunpack.c.l.b16 %v118
  %v640 = vunpack.c.h.b16 %v118
  %v641 = vunpack.c.l.b16 %v119
  %v642 = vunpack.c.l.b16 %v120
  %v643 = vunpack.c.h.b16 %v120
  %v644 = vunpack.c.l.b16 %v121
  %v645 = vunpack.c.h.b16 %v121
  %v646 = vunpack.c.l.b16 %v122
  %v647 = vunpack.c.l.b16 %v123
  %v648 = vunpack.c.h.b16 %v123
  %v649 = vunpack.c.l.b16 %v124
  %v650 = vunpack.c.h.b16 %v124
  %v651 = vunpack.c.l.b16 %v125
  %v652 = vunpack.c.l.b16 %v126
  %v653 = vunpack.c.h.b16 %v126
  %v654 = vunpack.c.l.b16 %v127
  %v655 = vunpack.c.h.b16 %v127
  %v656 = vunpack.c.l.b16 %v128
  %v657 = vunpack.c.l.b16 %v129
  %v658 = vunpack.c.h.b16 %v129
  %v659 = vunpack.c.l.b16 %v130
  %v660 = vunpack.c.h.b16 %v130
  %v661 = vunpack.c.l.b16 %v131
  %v662 = vunpack.c.l.b16 %v132
  %v663 = vunpack.c.h.b16 %v132
  %v664 = vunpack.c.l.b16 %v133
  %v665 = vunpack.c.h.b16 %v133
  %v666 = vunpack.c.l.b16 %v134
  %v667 = vunpack.c.l.b16 %v135
  %v668 = vunpack.c.h.b16 %v135
  %v669 = vunpack.c.l.b16 %v136
  %v670 = vunpack.c.h.b16 %v136
  %v671 = vunpack.c.l.b16 %v137
  %v672 = vunpack.c.l.b16 %v138
  %v673 = vunpack.c.h.b16 %v138
  %v674 = vunpack.c.l.b16 %v139
  %v675 = vunpack.c.h.b16 %v139
  %v676 = vunpack.c.l.b16 %v140
  %v677 = vunpack.c.l.b16 %v141
  %v678 = vunpack.c.h.b16 %v141
  %v679 = vunpack.c.l.b16 %v142
  %v680 = vunpack.c.h.b16 %v142
  %v681 = vunpack.c.l.b16 %v143
  %v682 = vunpack.c.l.b16 %v144
  %v683 = vunpack.c.h.b16 %v144
  %v684 = vunpack.c.l.b16 %v145
  %v685 = vunpack.c.h.b16 %v145
  %v686 = vunpack.c.l.b16 %v146
  %v687 = vunpack.c.l.b16 %v147
  %v688 = vunpack.c.h.b16 %v147
  %v689 = vunpack.c.l.b16 %v148
  %v690 = vunpack.c.h.b16 %v148
  %v691 = vunpack.c.l.b16 %v149
  %v692 = vunpack.c.l.b16 %v150
  %v693 = vunpack.c.h.b16 %v150
  %v694 = vunpack.c.l.b16 %v151
  %v695 = vunpack.c.h.b16 %v151
  %v696 = vunpack.c.l.b16 %v152
  %v697 = vunpack.c.l.b16 %v153
  %v698 = vunpack.c.h.b16 %v153
  %v699 = vunpack.c.l.b16 %v154
  %v700 = vunpack.c.h.b16 %v154
  %v701 = vunpack.c.l.b16 %v155
  %v702 = vunpack.c.l.b16 %v156
  %v703 = vunpack.c.h.b16 %v156
  %v704 = vunpack.c.l.b16 %v157
  %v705 = vunpack.c.h.b16 %v157
  %v706 = vunpack.c.l.b16 %v158
  %v707 = vunpack.c.l.b16 %v159
  %v708 = vunpack.c.h.b16 %v159
  %v709 = vunpack.c.l.b16 %v160
  %v710 = vunpack.c.h.b16 %v160
  %v711 = vunpack.c.l.b16 %v161
  %v712 = vunpack.c.l.b16 %v162
  %v713 = vunpack.c.h.b16 %v162
  %v714 = vunpack.c.l.b16 %v163
  %v715 = vunpack.c.h.b16 %v163
  %v716 = vunpack.c.l.b16 %v164
  %v717 = vunpack.c.l.b16 %v165
  %v718 = vunpack.c.h.b16 %v165
  %v719 = vunpack.c.l.b16 %v166
  %v720 = vunpack.c.h.b16 %v166
  %v721 = vunpack.c.l.b16 %v167
  %v722 = vunpack.c.l.b16 %v168
  %v723 = vunpack.c.h.b16 %v168
  %v724 = vunpack.c.l.b16 %v169
  %v725 = vunpack.c.h.b16 %v169
  %v726 = vunpack.c.l.b16 %v170
  %v727 = vunpack.c.l.b16 %v171
  %v728 = vunpack.c.h.b16 %v171
  %v729 = vunpack.c.l.b16 %v172
  %v730 = vunpack.c.h.b16 %v172
  %v731 = vunpack.c.l.b16 %v173
  %v732 = vunpack.c.l.b16 %v174
  %v733 = vunpack.c.h.b16 %v174
  %v734 = vunpack.c.l.b16 %v175
  %v735 = vunpack.c.h.b16 %v175
  %v736 = vunpack.c.l.b16 %v176
  %v737 = vunpack.c.l.b16 %v177
  %v738 = vunpack.c.h.b16 %v177
  %v739 = vunpack.c.l.b16 %v178
  %v740 = vunpack.c.h.b16 %v178
  %v741 = vunpack.c.l.b16 %v179
  %v742 = vunpack.c.l.b16 %v180
  %v743 = vunpack.c.h.b16 %v180
  %v744 = vunpack.c.l.b16 %v181
  %v745 = vunpack.c.h.b16 %v181
  %v746 = vunpack.c.l.b16 %v182
  %v747 = vunpack.c.l.b16 %v183
  %v748 = vunpack.c.h.b16 %v183
  %v749 = vunpack.c.l.b16 %v184
  %v750 = vunpack.c.h.b16 %v184
  %v751 = vunpack.c.l.b16 %v185
  %v752 = vunpack.c.l.b16 %v186
  %v753 = vunpack.c.h.b16 %v186
  %v754 = vunpack.c.l.b16 %v187
  %v755 = vunpack.c.h.b16 %v187
  %v756 = vunpack.c.l.b16 %v188
  %v757 = vunpack.c.l.b16 %v189
  %v758 = vunpack.c.h.b16 %v189
  %v759 = vunpack.c.l.b16 %v190
  %v760 = vunpack.c.h.b16 %v190
  %v761 = vunpack.c.l.b16 %v191
  %v762 = vunpack.c.l.b16 %v192
  %v763 = vunpack.c.h.b16 %v192
  %v764 = vunpack.c.l.b16 %v193
  %v765 = vunpack.c.h.b16 %v193
  %v766 = vunpack.c.l.b16 %v194
  %v767 = vunpack.c.l.b16 %v195
  %v768 = vunpack.c.h.b16 %v195
  %v769 = vunpack.c.l.b16 %v196
  %v770 = vunpack.c.h.b16 %v196
  %v771 = vunpack.c.l.b16 %v197
  %v772 = vunpack.c.l.b16 %v198
  %v773 = vunpack.c.h.b16 %v198
  %v774 = vunpack.c.l.b16 %v199
  %v775 = vunpack.c.h.b16 %v199
  %v776 = vunpack.c.l.b16 %v200
  %v777 = vunpack.c.l.b16 %v201
  %v778 = vunpack.c.h.b16 %v201
  %v779 = vunpack.c.l.b16 %v202
  %v780 = vunpack.c.h.b16 %v202
  %v781 = vunpack.c.l.b16 %v203
  %v782 = vunpack.c.l.b16 %v204
  %v783 = vunpack.c.h.b16 %v204
  %v784 = vunpack.c.l.b16 %v205
  %v785 = vunpack.c.h.b16 %v205
  %v786 = vunpack.c.l.b16 %v206
  %v787 = vunpack.c.l.b16 %v207
  %v788 = vunpack.c.h.b16 %v207
  %v789 = vunpack.c.l.b16 %v208
  %v790 = vunpack.c.h.b16 %v208
  %v791 = vunpack.c.l.b16 %v209
  %v792 = vunpack.c.l.b16 %v210
  %v793 = vunpack.c.h.b16 %v210
  %v794 = vunpack.c.l.b16 %v211
  %v795 = vunpack.c.h.b16 %v211
  %v796 = vunpack.c.l.b16 %v212
  %v797 = vpack.c.b16 %v482, %v477
  %v798 = vpack.c.b16 %v483, %v478
  %v799 = vpack.c.b16 %v484, %v479
  %v800 = vpack.c.b16 %v485, %v480
  %v801 = vpack.c.b16 %v486, %v481
  %v802 = vpack.c.b16 %v492, %v487
  %v803 = vpack.c.b16 %v493, %v488
  %v804 = vpack.c.b16 %v494, %v489
  %v805 = vpack.c.b16 %v495, %v490
  %v806 = vpack.c.b16 %v496, %v491
  %v807 = vpack.c.b16 %v502, %v497
  %v808 = vpack.c.b16 %v503, %v498
  %v809 = vpack.c.b16 %v504, %v499
  %v810 = vpack.c.b16 %v505, %v500
  %v811 = vpack.c.b16 %v506, %v501
  %v812 = vpack.c.b16 %v512, %v507
  %v813 = vpack.c.b16 %v513, %v508
  %v814 = vpack.c.b16 %v514, %v509
  %v815 = vpack.c.b16 %v515, %v510
  %v816 = vpack.c.b16 %v516, %v511
  %v817 = vpack.c.b16 %v522, %v517
  %v818 = vpack.c.b16 %v523, %v518
  %v819 = vpack.c.b16 %v524, %v519
  %v820 = vpack.c.b16 %v525, %v520
  %v821 = vpack.c.b16 %v526, %v521
  %v822 = vpack.c.b16 %v532, %v527
  %v823 = vpack.c.b16 %v533, %v528
  %v824 = vpack.c.b16 %v534, %v529
  %v825 = vpack.c.b16 %v535, %v530
  %v826 = vpack.c.b16 %v536, %v531
  %v827 = vpack.c.b16 %v542, %v537
  %v828 = vpack.c.b16 %v543, %v538
  %v829 = vpack.c.b16 %v544, %v539
  %v830 = vpack.c.b16 %v545, %v540
  %v831 = vpack.c.b16 %v546, %v541
  %v832 = vpack.c.b16 %v552, %v547
  %v833 = vpack.c.b16 %v553, %v548
  %v834 = vpack.c.b16 %v554, %v549
  %v835 = vpack.c.b16 %v555, %v550
  %v836 = vpack.c.b16 %v556, %v551
  %v837 = vpack.c.b16 %v562, %v557
  %v838 = vpack.c.b16 %v563, %v558
  %v839 = vpack.c.b16 %v564, %v559
  %v840 = vpack.c.b16 %v565, %v560
  %v841 = vpack.c.b16 %v566, %v561
  %v842 = vpack.c.b16 %v572, %v567
  %v843 = vpack.c.b16 %v573, %v568
  %v844 = vpack.c.b16 %v574, %v569
  %v845 = vpack.c.b16 %v575, %v570
  %v846 = vpack.c.b16 %v576, %v571
  %v847 = vpack.c.b16 %v582, %v577
  %v848 = vpack.c.b16 %v583, %v578
  %v849 = vpack.c.b16 %v584, %v579
  %v850 = vpack.c.b16 %v585, %v580
  %v851 = vpack.c.b16 %v586, %v581
  %v852 = vpack.c.b16 %v592, %v587
  %v853 = vpack.c.b16 %v593, %v588
  %v854 = vpack.c.b16 %v594, %v589
  %v855 = vpack.c.b16 %v595, %v590
  %v856 = vpack.c.b16 %v596, %v591
  %v857 = vpack.c.b16 %v602, %v597
  %v858 = vpack.c.b16 %v603, %v598
  %v859 = vpack.c.b16 %v604, %v599
  %v860 = vpack.c.b16 %v605, %v600
  %v861 = vpack.c.b16 %v606, %v601
  %v862 = vpack.c.b16 %v612, %v607
  %v863 = vpack.c.b16 %v613, %v608
  %v864 = vpack.c.b16 %v614, %v609
  %v865 = vpack.c.b16 %v615, %v610
  %v866 = vpack.c.b16 %v616, %v611
  %v867 = vpack.c.b16 %v622, %v617
  %v868 = vpack.c.b16 %v623, %v618
  %v869 = vpack.c.b16 %v624, %v619
  %v870 = vpack.c.b16 %v625, %v620
  %v871 = vpack.c.b16 %v626, %v621
  %v872 = vpack.c.b16 %v632, %v627
  %v873 = vpack.c.b16 %v633, %v628
  %v874 = vpack.c.b16 %v634, %v629
  %v875 = vpack.c.b16 %v635, %v630
  %v876 = vpack.c.b16 %v636, %v631
  %v877 = vpack.c.b16 %v642, %v637
  %v878 = vpack.c.b16 %v643, %v638
  %v879 = vpack.c.b16 %v644, %v639
  %v880 = vpack.c.b16 %v645, %v640
  %v881 = vpack.c.b16 %v646, %v641
  %v882 = vpack.c.b16 %v652, %v647
  %v883 = vpack.c.b16 %v653, %v648
  %v884 = vpack.c.b16 %v654, %v649
  %v885 = vpack.c.b16 %v655, %v650
  %v886 = vpack.c.b16 %v656, %v651
  %v887 = vpack.c.b16 %v662, %v657
  %v888 = vpack.c.b16 %v663, %v658
  %v889 = vpack.c.b16 %v664, %v659
  %v890 = vpack.c.b16 %v665, %v660
  %v891 = vpack.c.b16 %v666, %v661
  %v892 = vpack.c.b16 %v672, %v667
  %v893 = vpack.c.b16 %v673, %v668
  %v894 = vpack.c.b16 %v674, %v669
  %v895 = vpack.c.b16 %v675, %v670
  %v896 = vpack.c.b16 %v676, %v671
  %v897 = vpack.c.b16 %v682, %v677
  %v898 = vpack.c.b16 %v683, %v678
  %v899 = vpack.c.b16 %v684, %v679
  %v900 = vpack.c.b16 %v685, %v680
  %v901 = vpack.c.b16 %v686, %v681
  %v902 = vpack.c.b16 %v692, %v687
  %v903 = vpack.c.b16 %v693, %v688
  %v904 = vpack.c.b16 %v694, %v689
  %v905 = vpack.c.b16 %v695, %v690
  %v906 = vpack.c.b16 %v696, %v691
  %v907 = vpack.c.b16 %v702, %v697
  %v908 = vpack.c.b16 %v703, %v698
  %v909 = vpack.c.b16 %v704, %v699
  %v910 = vpack.c.b16 %v705, %v700
  %v911 = vpack.c.b16 %v706, %v701
  %v912 = vpack.c.b16 %v712, %v707
  %v913 = vpack.c.b16 %v713, %v708
  %v914 = vpack.c.b16 %v714, %v709
  %v915 = vpack.c.b16 %v715, %v710
  %v916 = vpack.c.b16 %v716, %v711
  %v917 = vpack.c.b16 %v722, %v717
  %v918 = vpack.c.b16 %v723, %v718
  %v919 = vpack.c.b16 %v724, %v719
  %v920 = vpack.c.b16 %v725, %v720
  %v921 = vpack.c.b16 %v726, %v721
  %v922 = vpack.c.b16 %v732, %v727
  %v923 = vpack.c.b16 %v733, %v728
  %v924 = vpack.c.b16 %v734, %v729
  %v925 = vpack.c.b16 %v735, %v730
  %v926 = vpack.c.b16 %v736, %v731
  %v927 = vpack.c.b16 %v742, %v737
  %v928 = vpack.c.b16 %v743, %v738
  %v929 = vpack.c.b16 %v744, %v739
  %v930 = vpack.c.b16 %v745, %v740
  %v931 = vpack.c.b16 %v746, %v741
  %v932 = vpack.c.b16 %v752, %v747
  %v933 = vpack.c.b16 %v753, %v748
  %v934 = vpack.c.b16 %v754, %v749
  %v935 = vpack.c.b16 %v755, %v750
  %v936 = vpack.c.b16 %v756, %v751
  %v937 = vpack.c.b16 %v762, %v757
  %v938 = vpack.c.b16 %v763, %v758
  %v939 = vpack.c.b16 %v764, %v759
  %v940 = vpack.c.b16 %v765, %v760
  %v941 = vpack.c.b16 %v766, %v761
  %v942 = vpack.c.b16 %v772, %v767
  %v943 = vpack.c.b16 %v773, %v768
  %v944 = vpack.c.b16 %v774, %v769
  %v945 = vpack.c.b16 %v775, %v770
  %v946 = vpack.c.b16 %v776, %v771
  %v947 = vpack.c.b16 %v782, %v777
  %v948 = vpack.c.b16 %v783, %v778
  %v949 = vpack.c.b16 %v784, %v779
  %v950 = vpack.c.b16 %v785, %v780
  %v951 = vpack.c.b16 %v786, %v781
  %v952 = vpack.c.b16 %v792, %v787
  %v953 = vpack.c.b16 %v793, %v788
  %v954 = vpack.c.b16 %v794, %v789
  %v955 = vpack.c.b16 %v795, %v790
  %v956 = vpack.c.b16 %v796, %v791
  %v1157 = vunpack.c.l.b16 %v213
  %v1158 = vunpack.c.l.b16 %v214
  %v1159 = vunpack.c.l.b16 %v215
  %v1160 = vunpack.c.l.b16 %v216
  %v1161 = vunpack.c.l.b16 %v217
  %v1162 = vunpack.c.l.b16 %v218
  %v1163 = vunpack.c.l.b16 %v219
  %v1164 = vunpack.c.l.b16 %v220
  %v1165 = vunpack.c.l.b16 %v221
  %v1166 = vunpack.c.l.b16 %v222
  %v1167 = vunpack.c.l.b16 %v223
  %v1168 = vunpack.c.l.b16 %v224
  %v1169 = vunpack.c.l.b16 %v225
  %v1170 = vunpack.c.l.b16 %v226
  %v1171 = vunpack.c.l.b16 %v227
  %v1172 = vunpack.c.l.b16 %v228
  %v1173 = vunpack.c.l.b16 %v229
  %v1174 = vunpack.c.l.b16 %v230
  %v1175 = vunpack.c.l.b16 %v231
  %v1176 = vunpack.c.l.b16 %v232
  %v1177 = vunpack.c.l.b16 %v233
  %v1178 = vunpack.c.l.b16 %v234
  %v1179 = vunpack.c.l.b16 %v235
  %v1180 = vunpack.c.l.b16 %v236
  %v1181 = vunpack.c.l.b16 %v237
  %v1182 = vunpack.c.l.b16 %v238
  %v1183 = vunpack.c.l.b16 %v239
  %v1184 = vunpack.c.l.b16 %v240
  %v1185 = vunpack.c.l.b16 %v241
  %v1186 = vunpack.c.l.b16 %v242
  %v1187 = vunpack.c.l.b16 %v243
  %v1188 = vunpack.c.l.b16 %v244
  %v1189 = vunpack.c.l.b16 %v245
  %v1190 = vunpack.c.l.b16 %v246
  %v1191 = vunpack.c.l.b16 %v247
  %v1192 = vunpack.c.l.b16 %v248
  %v1193 = vunpack.c.l.b16 %v249
  %v1194 = vunpack.c.l.b16 %v250
  %v1195 = vunpack.c.l.b16 %v251
  %v1196 = vunpack.c.l.b16 %v252
  %v1197 = vunpack.c.l.b16 %v253
  %v1198 = vunpack.c.l.b16 %v254
  %v1199 = vunpack.c.l.b16 %v255
  %v1200 = vunpack.c.l.b16 %v256
  %v1201 = vunpack.c.l.b16 %v257
  %v1202 = vunpack.c.l.b16 %v258
  %v1203 = vunpack.c.l.b16 %v259
  %v1204 = vunpack.c.l.b16 %v260
  %v1205 = vunpack.c.l.b16 %v261
  %v1206 = vunpack.c.l.b16 %v262
  %v1207 = vunpack.c.l.b16 %v263
  %v1208 = vunpack.c.l.b16 %v264
  %v1209 = vunpack.c.l.b16 %v265
  %v1210 = vunpack.c.l.b16 %v266
  %v1211 = vunpack.c.l.b16 %v267
  %v1212 = vunpack.c.l.b16 %v268
  %v1213 = vunpack.c.l.b16 %v269
  %v1214 = vunpack.c.l.b16 %v270
  %v1215 = vunpack.c.l.b16 %v271
  %v1216 = vunpack.c.l.b16 %v272
  %v1217 = vunpack.c.l.b16 %v273
  %v1218 = vunpack.c.l.b16 %v274
  %v1219 = vunpack.c.l.b16 %v275
  %v1220 = vunpack.c.l.b16 %v276
  %v1221 = vunpack.c.l.b16 %v277
  %v1222 = vunpack.c.l.b16 %v278
  %v1223 = vunpack.c.l.b16 %v279
  %v1224 = vunpack.c.l.b16 %v280
  %v1225 = vunpack.c.l.b16 %v281
  %v1226 = vunpack.c.l.b16 %v282
  %v1227 = vunpack.c.l.b16 %v283
  %v1228 = vunpack.c.l.b16 %v284
  %v1229 = vpack.c.b16 %v1158, %v1157
  %v1230 = vpack.c.b16 %v1160, %v1159
  %v1231 = vpack.c.b16 %v1162, %v1161
  %v1232 = vpack.c.b16 %v1164, %v1163
  %v1233 = vpack.c.b16 %v1166, %v1165
  %v1234 = vpack.c.b16 %v1168, %v1167
  %v1235 = vpack.c.b16 %v1170, %v1169
  %v1236 = vpack.c.b16 %v1172, %v1171
  %v1237 = vpack.c.b16 %v1174, %v1173
  %v1238 = vpack.c.b16 %v1176, %v1175
  %v1239 = vpack.c.b16 %v1178, %v1177
  %v1240 = vpack.c.b16 %v1180, %v1179
  %v1241 = vpack.c.b16 %v1182, %v1181
  %v1242 = vpack.c.b16 %v1184, %v1183
  %v1243 = vpack.c.b16 %v1186, %v1185
  %v1244 = vpack.c.b16 %v1188, %v1187
  %v1245 = vpack.c.b16 %v1190, %v1189
  %v1246 = vpack.c.b16 %v1192, %v1191
  %v1247 = vpack.c.b16 %v1194, %v1193
  %v1248 = vpack.c.b16 %v1196, %v1195
  %v1249 = vpack.c.b16 %v1198, %v1197
  %v1250 = vpack.c.b16 %v1200, %v1199
  %v1251 = vpack.c.b16 %v1202, %v1201
  %v1252 = vpack.c.b16 %v1204, %v1203
  %v1253 = vpack.c.b16 %v1206, %v1205
  %v1254 = vpack.c.b16 %v1208, %v1207
  %v1255 = vpack.c.b16 %v1210, %v1209
  %v1256 = vpack.c.b16 %v1212, %v1211
  %v1257 = vpack.c.b16 %v1214, %v1213
  %v1258 = vpack.c.b16 %v1216, %v1215
  %v1259 = vpack.c.b16 %v1218, %v1217
  %v1260 = vpack.c.b16 %v1220, %v1219
  %v1261 = vpack.c.b16 %v1222, %v1221
  %v1262 = vpack.c.b16 %v1224, %v1223
  %v1263 = vpack.c.b16 %v1226, %v1225
  %v1264 = vpack.c.b16 %v1228, %v1227
  %vm1301 = vcmask 523264
  %v1303 = vsel %vm1301, %v801, 0
  %v1306 = vsel %vm1301, %v806, 0
  %v1309 = vsel %vm1301, %v811, 0
  %v1312 = vsel %vm1301, %v816, 0
  %v1315 = vsel %vm1301, %v821, 0
  %v1318 = vsel %vm1301, %v826, 0
  %v1321 = vsel %vm1301, %v831, 0
  %v1324 = vsel %vm1301, %v836, 0
  %v1327 = vsel %vm1301, %v841, 0
  %v1330 = vsel %vm1301, %v846, 0
  %v1333 = vsel %vm1301, %v851, 0
  %v1336 = vsel %vm1301, %v856, 0
  %v1339 = vsel %vm1301, %v861, 0
  %v1342 = vsel %vm1301, %v866, 0
  %v1345 = vsel %vm1301, %v871, 0
  %v1348 = vsel %vm1301, %v876, 0
  %v1351 = vsel %vm1301, %v881, 0
  %v1354 = vsel %vm1301, %v886, 0
  %v1357 = vsel %vm1301, %v891, 0
  %v1360 = vsel %vm1301, %v896, 0
  %v1363 = vsel %vm1301, %v901, 0
  %v1366 = vsel %vm1301, %v906, 0
  %v1369 = vsel %vm1301, %v911, 0
  %v1372 = vsel %vm1301, %v916, 0
  %v1375 = vsel %vm1301, %v921, 0
  %v1378 = vsel %vm1301, %v926, 0
  %v1381 = vsel %vm1301, %v931, 0
  %v1384 = vsel %vm1301, %v936, 0
  %v1387 = vsel %vm1301, %v941, 0
  %v1390 = vsel %vm1301, %v946, 0
  %v1393 = vsel %vm1301, %v951, 0
  %v1396 = vsel %vm1301, %v956, 0
  %1398 = vmatprep.subr.bf16.mxu0 0
  %1399 = vmatpush1.bf16.msra.mxu0 %v1229
  %1400 = vmatprep.subr.bf16.mxu0 0
  %1401 = vmatpush1.bf16.msra.mxu0 %v1230
  %1402 = vmatprep.subr.bf16.mxu0 0
  %1403 = vmatpush1.bf16.msra.mxu0 %v1231
  %1404 = vmatprep.subr.bf16.mxu0 0
  %1405 = vmatpush1.bf16.msra.mxu0 %v1232
  %1406 = vmatprep.subr.bf16.mxu0 0
  %1407 = vmatpush1.bf16.msra.mxu0 %v1233
  %1408 = vmatprep.subr.bf16.mxu0 0
  %1409 = vmatpush1.bf16.msra.mxu0 %v1234
  %1410 = vmatprep.subr.bf16.mxu0 0
  %1411 = vmatpush1.bf16.msra.mxu0 %v1235
  %1412 = vmatprep.subr.bf16.mxu0 0
  %1413 = vmatpush1.bf16.msra.mxu0 %v1236
  %1414 = vmatprep.subr.bf16.mxu0 0
  %1415 = vmatpush1.bf16.msra.mxu0 %v1237
  %1416 = vmatprep.subr.bf16.mxu0 0
  %1417 = vmatpush1.bf16.msra.mxu0 %v1238
  %1418 = vmatprep.subr.bf16.mxu0 0
  %1419 = vmatpush1.bf16.msra.mxu0 %v1239
  %1420 = vmatprep.subr.bf16.mxu0 0
  %1421 = vmatpush1.bf16.msra.mxu0 %v1240
  %1422 = vmatprep.subr.bf16.mxu0 0
  %1423 = vmatpush1.bf16.msra.mxu0 %v1241
  %1424 = vmatprep.subr.bf16.mxu0 0
  %1425 = vmatpush1.bf16.msra.mxu0 %v1242
  %1426 = vmatprep.subr.bf16.mxu0 0
  %1427 = vmatpush1.bf16.msra.mxu0 %v1243
  %1428 = vmatprep.subr.bf16.mxu0 0
  %1429 = vmatpush1.bf16.msra.mxu0 %v1244
  %1430 = vmatprep.mubr.bf16.mxu0 %v798
  %1431 = vmatmul.mubr.bf16.gmra.mrb[0].mxu0 %v797
  %v1432 = vpop.f32.mrb[0].mxu0
  %v1433 = vadd.f32 0.0, %v1432
  %v1434 = vpop.f32.mrb[0].mxu0
  %v1435 = vpop.f32.mrb[0].mxu0
  %v1436 = vadd.f32 0.0, %v1435
  %v1437 = vpop.f32.mrb[0].mxu0
  %1438 = vmatprep.mubr.bf16.mxu0 %v803
  %1439 = vmatmul.mubr.bf16.gmra.mrb[0].mxu0 %v802
  %v1440 = vpop.f32.mrb[0].mxu0
  %v1441 = vadd.f32 0.0, %v1440
  %v1442 = vpop.f32.mrb[0].mxu0
  %v1443 = vpop.f32.mrb[0].mxu0
  %v1444 = vadd.f32 0.0, %v1443
  %v1445 = vpop.f32.mrb[0].mxu0
  %1446 = vmatprep.mubr.bf16.mxu0 %v808
  %1447 = vmatmul.mubr.bf16.gmra.mrb[0].mxu0 %v807
  %v1448 = vpop.f32.mrb[0].mxu0
  %v1449 = vadd.f32 0.0, %v1448
  %v1450 = vpop.f32.mrb[0].mxu0
  %v1451 = vpop.f32.mrb[0].mxu0
  %v1452 = vadd.f32 0.0, %v1451
  %v1453 = vpop.f32.mrb[0].mxu0
  %1454 = vmatprep.mubr.bf16.mxu0 %v813
  %1455 = vmatmul.mubr.bf16.gmra.mrb[0].mxu0 %v812
  %v1456 = vpop.f32.mrb[0].mxu0
  %v1457 = vadd.f32 0.0, %v1456
  %v1458 = vpop.f32.mrb[0].mxu0
  %v1459 = vpop.f32.mrb[0].mxu0
  %v1460 = vadd.f32 0.0, %v1459
  %v1461 = vpop.f32.mrb[0].mxu0
  %1462 = vmatprep.mubr.bf16.mxu0 %v818
  %1463 = vmatmul.mubr.bf16.gmra.mrb[0].mxu0 %v817
  %v1464 = vpop.f32.mrb[0].mxu0
  %v1465 = vadd.f32 0.0, %v1464
  %v1466 = vpop.f32.mrb[0].mxu0
  %v1467 = vpop.f32.mrb[0].mxu0
  %v1468 = vadd.f32 0.0, %v1467
  %v1469 = vpop.f32.mrb[0].mxu0
  %1470 = vmatprep.mubr.bf16.mxu0 %v823
  %1471 = vmatmul.mubr.bf16.gmra.mrb[0].mxu0 %v822
  %v1472 = vpop.f32.mrb[0].mxu0
  %v1473 = vadd.f32 0.0, %v1472
  %v1474 = vpop.f32.mrb[0].mxu0
  %v1475 = vpop.f32.mrb[0].mxu0
  %v1476 = vadd.f32 0.0, %v1475
  %v1477 = vpop.f32.mrb[0].mxu0
  %1478 = vmatprep.mubr.bf16.mxu0 %v828
  %1479 = vmatmul.mubr.bf16.gmra.mrb[0].mxu0 %v827
  %v1480 = vpop.f32.mrb[0].mxu0
  %v1481 = vadd.f32 0.0, %v1480
  %v1482 = vpop.f32.mrb[0].mxu0
  %v1483 = vpop.f32.mrb[0].mxu0
  %v1484 = vadd.f32 0.0, %v1483
  %v1485 = vpop.f32.mrb[0].mxu0
  %1486 = vmatprep.mubr.bf16.mxu0 %v833
  %1487 = vmatmul.mubr.bf16.gmra.mrb[0].mxu0 %v832
  %v1488 = vpop.f32.mrb[0].mxu0
  %v1489 = vadd.f32 0.0, %v1488
  %v1490 = vpop.f32.mrb[0].mxu0
  %v1491 = vpop.f32.mrb[0].mxu0
  %v1492 = vadd.f32 0.0, %v1491
  %v1493 = vpop.f32.mrb[0].mxu0
  %1494 = vmatprep.mubr.bf16.mxu0 %v838
  %1495 = vmatmul.mubr.bf16.gmra.mrb[0].mxu0 %v837
  %v1496 = vpop.f32.mrb[0].mxu0
  %v1497 = vadd.f32 0.0, %v1496
  %v1498 = vpop.f32.mrb[0].mxu0
  %v1499 = vpop.f32.mrb[0].mxu0
  %v1500 = vadd.f32 0.0, %v1499
  %v1501 = vpop.f32.mrb[0].mxu0
  %1502 = vmatprep.mubr.bf16.mxu0 %v843
  %1503 = vmatmul.mubr.bf16.gmra.mrb[0].mxu0 %v842
  %v1504 = vpop.f32.mrb[0].mxu0
  %v1505 = vadd.f32 0.0, %v1504
  %v1506 = vpop.f32.mrb[0].mxu0
  %v1507 = vpop.f32.mrb[0].mxu0
  %v1508 = vadd.f32 0.0, %v1507
  %v1509 = vpop.f32.mrb[0].mxu0
  %1510 = vmatprep.mubr.bf16.mxu0 %v848
  %1511 = vmatmul.mubr.bf16.gmra.mrb[0].mxu0 %v847
  %v1512 = vpop.f32.mrb[0].mxu0
  %v1513 = vadd.f32 0.0, %v1512
  %v1514 = vpop.f32.mrb[0].mxu0
  %v1515 = vpop.f32.mrb[0].mxu0
  %v1516 = vadd.f32 0.0, %v1515
  %v1517 = vpop.f32.mrb[0].mxu0
  %1518 = vmatprep.mubr.bf16.mxu0 %v853
  %1519 = vmatmul.mubr.bf16.gmra.mrb[0].mxu0 %v852
  %v1520 = vpop.f32.mrb[0].mxu0
  %v1521 = vadd.f32 0.0, %v1520
  %v1522 = vpop.f32.mrb[0].mxu0
  %v1523 = vpop.f32.mrb[0].mxu0
  %v1524 = vadd.f32 0.0, %v1523
  %v1525 = vpop.f32.mrb[0].mxu0
  %1526 = vmatprep.mubr.bf16.mxu0 %v858
  %1527 = vmatmul.mubr.bf16.gmra.mrb[0].mxu0 %v857
  %v1528 = vpop.f32.mrb[0].mxu0
  %v1529 = vadd.f32 0.0, %v1528
  %v1530 = vpop.f32.mrb[0].mxu0
  %v1531 = vpop.f32.mrb[0].mxu0
  %v1532 = vadd.f32 0.0, %v1531
  %v1533 = vpop.f32.mrb[0].mxu0
  %1534 = vmatprep.mubr.bf16.mxu0 %v863
  %1535 = vmatmul.mubr.bf16.gmra.mrb[0].mxu0 %v862
  %v1536 = vpop.f32.mrb[0].mxu0
  %v1537 = vadd.f32 0.0, %v1536
  %v1538 = vpop.f32.mrb[0].mxu0
  %v1539 = vpop.f32.mrb[0].mxu0
  %v1540 = vadd.f32 0.0, %v1539
  %v1541 = vpop.f32.mrb[0].mxu0
  %1542 = vmatprep.mubr.bf16.mxu0 %v868
  %1543 = vmatmul.mubr.bf16.gmra.mrb[0].mxu0 %v867
  %v1544 = vpop.f32.mrb[0].mxu0
  %v1545 = vadd.f32 0.0, %v1544
  %v1546 = vpop.f32.mrb[0].mxu0
  %v1547 = vpop.f32.mrb[0].mxu0
  %v1548 = vadd.f32 0.0, %v1547
  %v1549 = vpop.f32.mrb[0].mxu0
  %1550 = vmatprep.mubr.bf16.mxu0 %v873
  %1551 = vmatmul.mubr.bf16.gmra.mrb[0].mxu0 %v872
  %v1552 = vpop.f32.mrb[0].mxu0
  %v1553 = vadd.f32 0.0, %v1552
  %v1554 = vpop.f32.mrb[0].mxu0
  %v1555 = vpop.f32.mrb[0].mxu0
  %v1556 = vadd.f32 0.0, %v1555
  %v1557 = vpop.f32.mrb[0].mxu0
  %1558 = vmatprep.mubr.bf16.mxu0 %v878
  %1559 = vmatmul.mubr.bf16.gmra.mrb[0].mxu0 %v877
  %v1560 = vpop.f32.mrb[0].mxu0
  %v1561 = vadd.f32 0.0, %v1560
  %v1562 = vpop.f32.mrb[0].mxu0
  %v1563 = vpop.f32.mrb[0].mxu0
  %v1564 = vadd.f32 0.0, %v1563
  %v1565 = vpop.f32.mrb[0].mxu0
  %1566 = vmatprep.mubr.bf16.mxu0 %v883
  %1567 = vmatmul.mubr.bf16.gmra.mrb[0].mxu0 %v882
  %v1568 = vpop.f32.mrb[0].mxu0
  %v1569 = vadd.f32 0.0, %v1568
  %v1570 = vpop.f32.mrb[0].mxu0
  %v1571 = vpop.f32.mrb[0].mxu0
  %v1572 = vadd.f32 0.0, %v1571
  %v1573 = vpop.f32.mrb[0].mxu0
  %1574 = vmatprep.mubr.bf16.mxu0 %v888
  %1575 = vmatmul.mubr.bf16.gmra.mrb[0].mxu0 %v887
  %v1576 = vpop.f32.mrb[0].mxu0
  %v1577 = vadd.f32 0.0, %v1576
  %v1578 = vpop.f32.mrb[0].mxu0
  %v1579 = vpop.f32.mrb[0].mxu0
  %v1580 = vadd.f32 0.0, %v1579
  %v1581 = vpop.f32.mrb[0].mxu0
  %1582 = vmatprep.mubr.bf16.mxu0 %v893
  %1583 = vmatmul.mubr.bf16.gmra.mrb[0].mxu0 %v892
  %v1584 = vpop.f32.mrb[0].mxu0
  %v1585 = vadd.f32 0.0, %v1584
  %v1586 = vpop.f32.mrb[0].mxu0
  %v1587 = vpop.f32.mrb[0].mxu0
  %v1588 = vadd.f32 0.0, %v1587
  %v1589 = vpop.f32.mrb[0].mxu0
  %1590 = vmatprep.mubr.bf16.mxu0 %v898
  %1591 = vmatmul.mubr.bf16.gmra.mrb[0].mxu0 %v897
  %v1592 = vpop.f32.mrb[0].mxu0
  %v1593 = vadd.f32 0.0, %v1592
  %v1594 = vpop.f32.mrb[0].mxu0
  %v1595 = vpop.f32.mrb[0].mxu0
  %v1596 = vadd.f32 0.0, %v1595
  %v1597 = vpop.f32.mrb[0].mxu0
  %1598 = vmatprep.mubr.bf16.mxu0 %v903
  %1599 = vmatmul.mubr.bf16.gmra.mrb[0].mxu0 %v902
  %v1600 = vpop.f32.mrb[0].mxu0
  %v1601 = vadd.f32 0.0, %v1600
  %v1602 = vpop.f32.mrb[0].mxu0
  %v1603 = vpop.f32.mrb[0].mxu0
  %v1604 = vadd.f32 0.0, %v1603
  %v1605 = vpop.f32.mrb[0].mxu0
  %1606 = vmatprep.mubr.bf16.mxu0 %v908
  %1607 = vmatmul.mubr.bf16.gmra.mrb[0].mxu0 %v907
  %v1608 = vpop.f32.mrb[0].mxu0
  %v1609 = vadd.f32 0.0, %v1608
  %v1610 = vpop.f32.mrb[0].mxu0
  %v1611 = vpop.f32.mrb[0].mxu0
  %v1612 = vadd.f32 0.0, %v1611
  %v1613 = vpop.f32.mrb[0].mxu0
  %1614 = vmatprep.mubr.bf16.mxu0 %v913
  %1615 = vmatmul.mubr.bf16.gmra.mrb[0].mxu0 %v912
  %v1616 = vpop.f32.mrb[0].mxu0
  %v1617 = vadd.f32 0.0, %v1616
  %v1618 = vpop.f32.mrb[0].mxu0
  %v1619 = vpop.f32.mrb[0].mxu0
  %v1620 = vadd.f32 0.0, %v1619
  %v1621 = vpop.f32.mrb[0].mxu0
  %1622 = vmatprep.mubr.bf16.mxu0 %v918
  %1623 = vmatmul.mubr.bf16.gmra.mrb[0].mxu0 %v917
  %v1624 = vpop.f32.mrb[0].mxu0
  %v1625 = vadd.f32 0.0, %v1624
  %v1626 = vpop.f32.mrb[0].mxu0
  %v1627 = vpop.f32.mrb[0].mxu0
  %v1628 = vadd.f32 0.0, %v1627
  %v1629 = vpop.f32.mrb[0].mxu0
  %1630 = vmatprep.mubr.bf16.mxu0 %v923
  %1631 = vmatmul.mubr.bf16.gmra.mrb[0].mxu0 %v922
  %v1632 = vpop.f32.mrb[0].mxu0
  %v1633 = vadd.f32 0.0, %v1632
  %v1634 = vpop.f32.mrb[0].mxu0
  %v1635 = vpop.f32.mrb[0].mxu0
  %v1636 = vadd.f32 0.0, %v1635
  %v1637 = vpop.f32.mrb[0].mxu0
  %1638 = vmatprep.mubr.bf16.mxu0 %v928
  %1639 = vmatmul.mubr.bf16.gmra.mrb[0].mxu0 %v927
  %v1640 = vpop.f32.mrb[0].mxu0
  %v1641 = vadd.f32 0.0, %v1640
  %v1642 = vpop.f32.mrb[0].mxu0
  %v1643 = vpop.f32.mrb[0].mxu0
  %v1644 = vadd.f32 0.0, %v1643
  %v1645 = vpop.f32.mrb[0].mxu0
  %1646 = vmatprep.mubr.bf16.mxu0 %v933
  %1647 = vmatmul.mubr.bf16.gmra.mrb[0].mxu0 %v932
  %v1648 = vpop.f32.mrb[0].mxu0
  %v1649 = vadd.f32 0.0, %v1648
  %v1650 = vpop.f32.mrb[0].mxu0
  %v1651 = vpop.f32.mrb[0].mxu0
  %v1652 = vadd.f32 0.0, %v1651
  %v1653 = vpop.f32.mrb[0].mxu0
  %1654 = vmatprep.mubr.bf16.mxu0 %v938
  %1655 = vmatmul.mubr.bf16.gmra.mrb[0].mxu0 %v937
  %v1656 = vpop.f32.mrb[0].mxu0
  %v1657 = vadd.f32 0.0, %v1656
  %v1658 = vpop.f32.mrb[0].mxu0
  %v1659 = vpop.f32.mrb[0].mxu0
  %v1660 = vadd.f32 0.0, %v1659
  %v1661 = vpop.f32.mrb[0].mxu0
  %1662 = vmatprep.mubr.bf16.mxu0 %v943
  %1663 = vmatmul.mubr.bf16.gmra.mrb[0].mxu0 %v942
  %v1664 = vpop.f32.mrb[0].mxu0
  %v1665 = vadd.f32 0.0, %v1664
  %v1666 = vpop.f32.mrb[0].mxu0
  %v1667 = vpop.f32.mrb[0].mxu0
  %v1668 = vadd.f32 0.0, %v1667
  %v1669 = vpop.f32.mrb[0].mxu0
  %1670 = vmatprep.mubr.bf16.mxu0 %v948
  %1671 = vmatmul.mubr.bf16.gmra.mrb[0].mxu0 %v947
  %v1672 = vpop.f32.mrb[0].mxu0
  %v1673 = vadd.f32 0.0, %v1672
  %v1674 = vpop.f32.mrb[0].mxu0
  %v1675 = vpop.f32.mrb[0].mxu0
  %v1676 = vadd.f32 0.0, %v1675
  %v1677 = vpop.f32.mrb[0].mxu0
  %1678 = vmatprep.mubr.bf16.mxu0 %v953
  %1679 = vmatmul.mubr.bf16.gmra.mrb[0].mxu0 %v952
  %v1680 = vpop.f32.mrb[0].mxu0
  %v1681 = vadd.f32 0.0, %v1680
  %v1682 = vpop.f32.mrb[0].mxu0
  %v1683 = vpop.f32.mrb[0].mxu0
  %v1684 = vadd.f32 0.0, %v1683
  %v1685 = vpop.f32.mrb[0].mxu0
  %1686 = vdwg.mxu0
  %1687 = vmatprep.subr.bf16.mxu0 0
  %1688 = vmatpush1.bf16.msra.mxu0 %v1245
  %1689 = vmatprep.subr.bf16.mxu0 0
  %1690 = vmatpush1.bf16.msra.mxu0 %v1246
  %1691 = vmatprep.subr.bf16.mxu0 0
  %1692 = vmatpush1.bf16.msra.mxu0 %v1247
  %1693 = vmatprep.subr.bf16.mxu0 0
  %1694 = vmatpush1.bf16.msra.mxu0 %v1248
  %1695 = vmatprep.subr.bf16.mxu0 0
  %1696 = vmatpush1.bf16.msra.mxu0 %v1249
  %1697 = vmatprep.subr.bf16.mxu0 0
  %1698 = vmatpush1.bf16.msra.mxu0 %v1250
  %1699 = vmatprep.subr.bf16.mxu0 0
  %1700 = vmatpush1.bf16.msra.mxu0 %v1251
  %1701 = vmatprep.subr.bf16.mxu0 0
  %1702 = vmatpush1.bf16.msra.mxu0 %v1252
  %1703 = vmatprep.subr.bf16.mxu0 0
  %1704 = vmatpush1.bf16.msra.mxu0 %v1253
  %1705 = vmatprep.subr.bf16.mxu0 0
  %1706 = vmatpush1.bf16.msra.mxu0 %v1254
  %1707 = vmatprep.subr.bf16.mxu0 0
  %1708 = vmatpush1.bf16.msra.mxu0 %v1255
  %1709 = vmatprep.subr.bf16.mxu0 0
  %1710 = vmatpush1.bf16.msra.mxu0 %v1256
  %1711 = vmatprep.subr.bf16.mxu0 0
  %1712 = vmatpush1.bf16.msra.mxu0 %v1257
  %1713 = vmatprep.subr.bf16.mxu0 0
  %1714 = vmatpush1.bf16.msra.mxu0 %v1258
  %1715 = vmatprep.subr.bf16.mxu0 0
  %1716 = vmatpush1.bf16.msra.mxu0 %v1259
  %1717 = vmatprep.subr.bf16.mxu0 0
  %1718 = vmatpush1.bf16.msra.mxu0 %v1260
  %1719 = vmatprep.mubr.bf16.mxu0 %v800
  %1720 = vmatmul.mubr.bf16.gmra.mrb[0].mxu0 %v799
  %v1721 = vpop.f32.mrb[0].mxu0
  %v1722 = vadd.f32 %v1433, %v1721
  %v1723 = vpop.f32.mrb[0].mxu0
  %v1724 = vpop.f32.mrb[0].mxu0
  %v1725 = vadd.f32 %v1436, %v1724
  %v1726 = vpop.f32.mrb[0].mxu0
  %1727 = vmatprep.mubr.bf16.mxu0 %v805
  %1728 = vmatmul.mubr.bf16.gmra.mrb[0].mxu0 %v804
  %v1729 = vpop.f32.mrb[0].mxu0
  %v1730 = vadd.f32 %v1441, %v1729
  %v1731 = vpop.f32.mrb[0].mxu0
  %v1732 = vpop.f32.mrb[0].mxu0
  %v1733 = vadd.f32 %v1444, %v1732
  %v1734 = vpop.f32.mrb[0].mxu0
  %1735 = vmatprep.mubr.bf16.mxu0 %v810
  %1736 = vmatmul.mubr.bf16.gmra.mrb[0].mxu0 %v809
  %v1737 = vpop.f32.mrb[0].mxu0
  %v1738 = vadd.f32 %v1449, %v1737
  %v1739 = vpop.f32.mrb[0].mxu0
  %v1740 = vpop.f32.mrb[0].mxu0
  %v1741 = vadd.f32 %v1452, %v1740
  %v1742 = vpop.f32.mrb[0].mxu0
  %1743 = vmatprep.mubr.bf16.mxu0 %v815
  %1744 = vmatmul.mubr.bf16.gmra.mrb[0].mxu0 %v814
  %v1745 = vpop.f32.mrb[0].mxu0
  %v1746 = vadd.f32 %v1457, %v1745
  %v1747 = vpop.f32.mrb[0].mxu0
  %v1748 = vpop.f32.mrb[0].mxu0
  %v1749 = vadd.f32 %v1460, %v1748
  %v1750 = vpop.f32.mrb[0].mxu0
  %1751 = vmatprep.mubr.bf16.mxu0 %v820
  %1752 = vmatmul.mubr.bf16.gmra.mrb[0].mxu0 %v819
  %v1753 = vpop.f32.mrb[0].mxu0
  %v1754 = vadd.f32 %v1465, %v1753
  %v1755 = vpop.f32.mrb[0].mxu0
  %v1756 = vpop.f32.mrb[0].mxu0
  %v1757 = vadd.f32 %v1468, %v1756
  %v1758 = vpop.f32.mrb[0].mxu0
  %1759 = vmatprep.mubr.bf16.mxu0 %v825
  %1760 = vmatmul.mubr.bf16.gmra.mrb[0].mxu0 %v824
  %v1761 = vpop.f32.mrb[0].mxu0
  %v1762 = vadd.f32 %v1473, %v1761
  %v1763 = vpop.f32.mrb[0].mxu0
  %v1764 = vpop.f32.mrb[0].mxu0
  %v1765 = vadd.f32 %v1476, %v1764
  %v1766 = vpop.f32.mrb[0].mxu0
  %1767 = vmatprep.mubr.bf16.mxu0 %v830
  %1768 = vmatmul.mubr.bf16.gmra.mrb[0].mxu0 %v829
  %v1769 = vpop.f32.mrb[0].mxu0
  %v1770 = vadd.f32 %v1481, %v1769
  %v1771 = vpop.f32.mrb[0].mxu0
  %v1772 = vpop.f32.mrb[0].mxu0
  %v1773 = vadd.f32 %v1484, %v1772
  %v1774 = vpop.f32.mrb[0].mxu0
  %1775 = vmatprep.mubr.bf16.mxu0 %v835
  %1776 = vmatmul.mubr.bf16.gmra.mrb[0].mxu0 %v834
  %v1777 = vpop.f32.mrb[0].mxu0
  %v1778 = vadd.f32 %v1489, %v1777
  %v1779 = vpop.f32.mrb[0].mxu0
  %v1780 = vpop.f32.mrb[0].mxu0
  %v1781 = vadd.f32 %v1492, %v1780
  %v1782 = vpop.f32.mrb[0].mxu0
  %1783 = vmatprep.mubr.bf16.mxu0 %v840
  %1784 = vmatmul.mubr.bf16.gmra.mrb[0].mxu0 %v839
  %v1785 = vpop.f32.mrb[0].mxu0
  %v1786 = vadd.f32 %v1497, %v1785
  %v1787 = vpop.f32.mrb[0].mxu0
  %v1788 = vpop.f32.mrb[0].mxu0
  %v1789 = vadd.f32 %v1500, %v1788
  %v1790 = vpop.f32.mrb[0].mxu0
  %1791 = vmatprep.mubr.bf16.mxu0 %v845
  %1792 = vmatmul.mubr.bf16.gmra.mrb[0].mxu0 %v844
  %v1793 = vpop.f32.mrb[0].mxu0
  %v1794 = vadd.f32 %v1505, %v1793
  %v1795 = vpop.f32.mrb[0].mxu0
  %v1796 = vpop.f32.mrb[0].mxu0
  %v1797 = vadd.f32 %v1508, %v1796
  %v1798 = vpop.f32.mrb[0].mxu0
  %1799 = vmatprep.mubr.bf16.mxu0 %v850
  %1800 = vmatmul.mubr.bf16.gmra.mrb[0].mxu0 %v849
  %v1801 = vpop.f32.mrb[0].mxu0
  %v1802 = vadd.f32 %v1513, %v1801
  %v1803 = vpop.f32.mrb[0].mxu0
  %v1804 = vpop.f32.mrb[0].mxu0
  %v1805 = vadd.f32 %v1516, %v1804
  %v1806 = vpop.f32.mrb[0].mxu0
  %1807 = vmatprep.mubr.bf16.mxu0 %v855
  %1808 = vmatmul.mubr.bf16.gmra.mrb[0].mxu0 %v854
  %v1809 = vpop.f32.mrb[0].mxu0
  %v1810 = vadd.f32 %v1521, %v1809
  %v1811 = vpop.f32.mrb[0].mxu0
  %v1812 = vpop.f32.mrb[0].mxu0
  %v1813 = vadd.f32 %v1524, %v1812
  %v1814 = vpop.f32.mrb[0].mxu0
  %1815 = vmatprep.mubr.bf16.mxu0 %v860
  %1816 = vmatmul.mubr.bf16.gmra.mrb[0].mxu0 %v859
  %v1817 = vpop.f32.mrb[0].mxu0
  %v1818 = vadd.f32 %v1529, %v1817
  %v1819 = vpop.f32.mrb[0].mxu0
  %v1820 = vpop.f32.mrb[0].mxu0
  %v1821 = vadd.f32 %v1532, %v1820
  %v1822 = vpop.f32.mrb[0].mxu0
  %1823 = vmatprep.mubr.bf16.mxu0 %v865
  %1824 = vmatmul.mubr.bf16.gmra.mrb[0].mxu0 %v864
  %v1825 = vpop.f32.mrb[0].mxu0
  %v1826 = vadd.f32 %v1537, %v1825
  %v1827 = vpop.f32.mrb[0].mxu0
  %v1828 = vpop.f32.mrb[0].mxu0
  %v1829 = vadd.f32 %v1540, %v1828
  %v1830 = vpop.f32.mrb[0].mxu0
  %1831 = vmatprep.mubr.bf16.mxu0 %v870
  %1832 = vmatmul.mubr.bf16.gmra.mrb[0].mxu0 %v869
  %v1833 = vpop.f32.mrb[0].mxu0
  %v1834 = vadd.f32 %v1545, %v1833
  %v1835 = vpop.f32.mrb[0].mxu0
  %v1836 = vpop.f32.mrb[0].mxu0
  %v1837 = vadd.f32 %v1548, %v1836
  %v1838 = vpop.f32.mrb[0].mxu0
  %1839 = vmatprep.mubr.bf16.mxu0 %v875
  %1840 = vmatmul.mubr.bf16.gmra.mrb[0].mxu0 %v874
  %v1841 = vpop.f32.mrb[0].mxu0
  %v1842 = vadd.f32 %v1553, %v1841
  %v1843 = vpop.f32.mrb[0].mxu0
  %v1844 = vpop.f32.mrb[0].mxu0
  %v1845 = vadd.f32 %v1556, %v1844
  %v1846 = vpop.f32.mrb[0].mxu0
  %1847 = vmatprep.mubr.bf16.mxu0 %v880
  %1848 = vmatmul.mubr.bf16.gmra.mrb[0].mxu0 %v879
  %v1849 = vpop.f32.mrb[0].mxu0
  %v1850 = vadd.f32 %v1561, %v1849
  %v1851 = vpop.f32.mrb[0].mxu0
  %v1852 = vpop.f32.mrb[0].mxu0
  %v1853 = vadd.f32 %v1564, %v1852
  %v1854 = vpop.f32.mrb[0].mxu0
  %1855 = vmatprep.mubr.bf16.mxu0 %v885
  %1856 = vmatmul.mubr.bf16.gmra.mrb[0].mxu0 %v884
  %v1857 = vpop.f32.mrb[0].mxu0
  %v1858 = vadd.f32 %v1569, %v1857
  %v1859 = vpop.f32.mrb[0].mxu0
  %v1860 = vpop.f32.mrb[0].mxu0
  %v1861 = vadd.f32 %v1572, %v1860
  %v1862 = vpop.f32.mrb[0].mxu0
  %1863 = vmatprep.mubr.bf16.mxu0 %v890
  %1864 = vmatmul.mubr.bf16.gmra.mrb[0].mxu0 %v889
  %v1865 = vpop.f32.mrb[0].mxu0
  %v1866 = vadd.f32 %v1577, %v1865
  %v1867 = vpop.f32.mrb[0].mxu0
  %v1868 = vpop.f32.mrb[0].mxu0
  %v1869 = vadd.f32 %v1580, %v1868
  %v1870 = vpop.f32.mrb[0].mxu0
  %1871 = vmatprep.mubr.bf16.mxu0 %v895
  %1872 = vmatmul.mubr.bf16.gmra.mrb[0].mxu0 %v894
  %v1873 = vpop.f32.mrb[0].mxu0
  %v1874 = vadd.f32 %v1585, %v1873
  %v1875 = vpop.f32.mrb[0].mxu0
  %v1876 = vpop.f32.mrb[0].mxu0
  %v1877 = vadd.f32 %v1588, %v1876
  %v1878 = vpop.f32.mrb[0].mxu0
  %1879 = vmatprep.mubr.bf16.mxu0 %v900
  %1880 = vmatmul.mubr.bf16.gmra.mrb[0].mxu0 %v899
  %v1881 = vpop.f32.mrb[0].mxu0
  %v1882 = vadd.f32 %v1593, %v1881
  %v1883 = vpop.f32.mrb[0].mxu0
  %v1884 = vpop.f32.mrb[0].mxu0
  %v1885 = vadd.f32 %v1596, %v1884
  %v1886 = vpop.f32.mrb[0].mxu0
  %1887 = vmatprep.mubr.bf16.mxu0 %v905
  %1888 = vmatmul.mubr.bf16.gmra.mrb[0].mxu0 %v904
  %v1889 = vpop.f32.mrb[0].mxu0
  %v1890 = vadd.f32 %v1601, %v1889
  %v1891 = vpop.f32.mrb[0].mxu0
  %v1892 = vpop.f32.mrb[0].mxu0
  %v1893 = vadd.f32 %v1604, %v1892
  %v1894 = vpop.f32.mrb[0].mxu0
  %1895 = vmatprep.mubr.bf16.mxu0 %v910
  %1896 = vmatmul.mubr.bf16.gmra.mrb[0].mxu0 %v909
  %v1897 = vpop.f32.mrb[0].mxu0
  %v1898 = vadd.f32 %v1609, %v1897
  %v1899 = vpop.f32.mrb[0].mxu0
  %v1900 = vpop.f32.mrb[0].mxu0
  %v1901 = vadd.f32 %v1612, %v1900
  %v1902 = vpop.f32.mrb[0].mxu0
  %1903 = vmatprep.mubr.bf16.mxu0 %v915
  %1904 = vmatmul.mubr.bf16.gmra.mrb[0].mxu0 %v914
  %v1905 = vpop.f32.mrb[0].mxu0
  %v1906 = vadd.f32 %v1617, %v1905
  %v1907 = vpop.f32.mrb[0].mxu0
  %v1908 = vpop.f32.mrb[0].mxu0
  %v1909 = vadd.f32 %v1620, %v1908
  %v1910 = vpop.f32.mrb[0].mxu0
  %1911 = vmatprep.mubr.bf16.mxu0 %v920
  %1912 = vmatmul.mubr.bf16.gmra.mrb[0].mxu0 %v919
  %v1913 = vpop.f32.mrb[0].mxu0
  %v1914 = vadd.f32 %v1625, %v1913
  %v1915 = vpop.f32.mrb[0].mxu0
  %v1916 = vpop.f32.mrb[0].mxu0
  %v1917 = vadd.f32 %v1628, %v1916
  %v1918 = vpop.f32.mrb[0].mxu0
  %1919 = vmatprep.mubr.bf16.mxu0 %v925
  %1920 = vmatmul.mubr.bf16.gmra.mrb[0].mxu0 %v924
  %v1921 = vpop.f32.mrb[0].mxu0
  %v1922 = vadd.f32 %v1633, %v1921
  %v1923 = vpop.f32.mrb[0].mxu0
  %v1924 = vpop.f32.mrb[0].mxu0
  %v1925 = vadd.f32 %v1636, %v1924
  %v1926 = vpop.f32.mrb[0].mxu0
  %1927 = vmatprep.mubr.bf16.mxu0 %v930
  %1928 = vmatmul.mubr.bf16.gmra.mrb[0].mxu0 %v929
  %v1929 = vpop.f32.mrb[0].mxu0
  %v1930 = vadd.f32 %v1641, %v1929
  %v1931 = vpop.f32.mrb[0].mxu0
  %v1932 = vpop.f32.mrb[0].mxu0
  %v1933 = vadd.f32 %v1644, %v1932
  %v1934 = vpop.f32.mrb[0].mxu0
  %1935 = vmatprep.mubr.bf16.mxu0 %v935
  %1936 = vmatmul.mubr.bf16.gmra.mrb[0].mxu0 %v934
  %v1937 = vpop.f32.mrb[0].mxu0
  %v1938 = vadd.f32 %v1649, %v1937
  %v1939 = vpop.f32.mrb[0].mxu0
  %v1940 = vpop.f32.mrb[0].mxu0
  %v1941 = vadd.f32 %v1652, %v1940
  %v1942 = vpop.f32.mrb[0].mxu0
  %1943 = vmatprep.mubr.bf16.mxu0 %v940
  %1944 = vmatmul.mubr.bf16.gmra.mrb[0].mxu0 %v939
  %v1945 = vpop.f32.mrb[0].mxu0
  %v1946 = vadd.f32 %v1657, %v1945
  %v1947 = vpop.f32.mrb[0].mxu0
  %v1948 = vpop.f32.mrb[0].mxu0
  %v1949 = vadd.f32 %v1660, %v1948
  %v1950 = vpop.f32.mrb[0].mxu0
  %1951 = vmatprep.mubr.bf16.mxu0 %v945
  %1952 = vmatmul.mubr.bf16.gmra.mrb[0].mxu0 %v944
  %v1953 = vpop.f32.mrb[0].mxu0
  %v1954 = vadd.f32 %v1665, %v1953
  %v1955 = vpop.f32.mrb[0].mxu0
  %v1956 = vpop.f32.mrb[0].mxu0
  %v1957 = vadd.f32 %v1668, %v1956
  %v1958 = vpop.f32.mrb[0].mxu0
  %1959 = vmatprep.mubr.bf16.mxu0 %v950
  %1960 = vmatmul.mubr.bf16.gmra.mrb[0].mxu0 %v949
  %v1961 = vpop.f32.mrb[0].mxu0
  %v1962 = vadd.f32 %v1673, %v1961
  %v1963 = vpop.f32.mrb[0].mxu0
  %v1964 = vpop.f32.mrb[0].mxu0
  %v1965 = vadd.f32 %v1676, %v1964
  %v1966 = vpop.f32.mrb[0].mxu0
  %1967 = vmatprep.mubr.bf16.mxu0 %v955
  %1968 = vmatmul.mubr.bf16.gmra.mrb[0].mxu0 %v954
  %v1969 = vpop.f32.mrb[0].mxu0
  %v1970 = vadd.f32 %v1681, %v1969
  %v1971 = vpop.f32.mrb[0].mxu0
  %v1972 = vpop.f32.mrb[0].mxu0
  %v1973 = vadd.f32 %v1684, %v1972
  %v1974 = vpop.f32.mrb[0].mxu0
  %1975 = vdwg.mxu0
  %1976 = vmatprep.subr.bf16.mxu0 0
  %1977 = vmatpush1.bf16.msra.mxu0 %v1261
  %1978 = vmatprep.subr.bf16.mxu0 0
  %1979 = vmatpush1.bf16.msra.mxu0 %v1262
  %1980 = vmatprep.subr.bf16.mxu0 0
  %1981 = vmatpush1.bf16.msra.mxu0 %v1263
  %1982 = vmatprep.subr.bf16.mxu0 0
  %1983 = vmatpush1.bf16.msra.mxu0 %v1264
  %1984 = vmatprep.subr.bf16.mxu0 0
  %1985 = vmatpush1.bf16.msra.mxu0 0
  %1986 = vmatprep.subr.bf16.mxu0 0
  %1987 = vmatpush1.bf16.msra.mxu0 0
  %1988 = vmatprep.subr.bf16.mxu0 0
  %1989 = vmatpush1.bf16.msra.mxu0 0
  %1990 = vmatprep.subr.bf16.mxu0 0
  %1991 = vmatpush1.bf16.msra.mxu0 0
  %1992 = vmatprep.subr.bf16.mxu0 0
  %1993 = vmatpush1.bf16.msra.mxu0 0
  %1994 = vmatprep.subr.bf16.mxu0 0
  %1995 = vmatpush1.bf16.msra.mxu0 0
  %1996 = vmatprep.subr.bf16.mxu0 0
  %1997 = vmatpush1.bf16.msra.mxu0 0
  %1998 = vmatprep.subr.bf16.mxu0 0
  %1999 = vmatpush1.bf16.msra.mxu0 0
  %2000 = vmatprep.subr.bf16.mxu0 0
  %2001 = vmatpush1.bf16.msra.mxu0 0
  %2002 = vmatprep.subr.bf16.mxu0 0
  %2003 = vmatpush1.bf16.msra.mxu0 0
  %2004 = vmatprep.subr.bf16.mxu0 0
  %2005 = vmatpush1.bf16.msra.mxu0 0
  %2006 = vmatprep.subr.bf16.mxu0 0
  %2007 = vmatpush1.bf16.msra.mxu0 0
  %2008 = vmatprep.mubr.bf16.mxu0 0
  %2009 = vmatmul.mubr.bf16.gmra.mrb[0].mxu0 %v1303
  %v2010 = vpop.f32.mrb[0].mxu0
  %v2011 = vadd.f32 %v1722, %v2010
  %v2012 = vpop.f32.mrb[0].mxu0
  %v2013 = vpop.f32.mrb[0].mxu0
  %v2014 = vadd.f32 %v1725, %v2013
  %v2015 = vpop.f32.mrb[0].mxu0
  %2016 = vmatprep.mubr.bf16.mxu0 0
  %2017 = vmatmul.mubr.bf16.gmra.mrb[0].mxu0 %v1306
  %v2018 = vpop.f32.mrb[0].mxu0
  %v2019 = vadd.f32 %v1730, %v2018
  %v2020 = vpop.f32.mrb[0].mxu0
  %v2021 = vpop.f32.mrb[0].mxu0
  %v2022 = vadd.f32 %v1733, %v2021
  %v2023 = vpop.f32.mrb[0].mxu0
  %2024 = vmatprep.mubr.bf16.mxu0 0
  %2025 = vmatmul.mubr.bf16.gmra.mrb[0].mxu0 %v1309
  %v2026 = vpop.f32.mrb[0].mxu0
  %v2027 = vadd.f32 %v1738, %v2026
  %v2028 = vpop.f32.mrb[0].mxu0
  %v2029 = vpop.f32.mrb[0].mxu0
  %v2030 = vadd.f32 %v1741, %v2029
  %v2031 = vpop.f32.mrb[0].mxu0
  %2032 = vmatprep.mubr.bf16.mxu0 0
  %2033 = vmatmul.mubr.bf16.gmra.mrb[0].mxu0 %v1312
  %v2034 = vpop.f32.mrb[0].mxu0
  %v2035 = vadd.f32 %v1746, %v2034
  %v2036 = vpop.f32.mrb[0].mxu0
  %v2037 = vpop.f32.mrb[0].mxu0
  %v2038 = vadd.f32 %v1749, %v2037
  %v2039 = vpop.f32.mrb[0].mxu0
  %2040 = vmatprep.mubr.bf16.mxu0 0
  %2041 = vmatmul.mubr.bf16.gmra.mrb[0].mxu0 %v1315
  %v2042 = vpop.f32.mrb[0].mxu0
  %v2043 = vadd.f32 %v1754, %v2042
  %v2044 = vpop.f32.mrb[0].mxu0
  %v2045 = vpop.f32.mrb[0].mxu0
  %v2046 = vadd.f32 %v1757, %v2045
  %v2047 = vpop.f32.mrb[0].mxu0
  %2048 = vmatprep.mubr.bf16.mxu0 0
  %2049 = vmatmul.mubr.bf16.gmra.mrb[0].mxu0 %v1318
  %v2050 = vpop.f32.mrb[0].mxu0
  %v2051 = vadd.f32 %v1762, %v2050
  %v2052 = vpop.f32.mrb[0].mxu0
  %v2053 = vpop.f32.mrb[0].mxu0
  %v2054 = vadd.f32 %v1765, %v2053
  %v2055 = vpop.f32.mrb[0].mxu0
  %2056 = vmatprep.mubr.bf16.mxu0 0
  %2057 = vmatmul.mubr.bf16.gmra.mrb[0].mxu0 %v1321
  %v2058 = vpop.f32.mrb[0].mxu0
  %v2059 = vadd.f32 %v1770, %v2058
  %v2060 = vpop.f32.mrb[0].mxu0
  %v2061 = vpop.f32.mrb[0].mxu0
  %v2062 = vadd.f32 %v1773, %v2061
  %v2063 = vpop.f32.mrb[0].mxu0
  %2064 = vmatprep.mubr.bf16.mxu0 0
  %2065 = vmatmul.mubr.bf16.gmra.mrb[0].mxu0 %v1324
  %v2066 = vpop.f32.mrb[0].mxu0
  %v2067 = vadd.f32 %v1778, %v2066
  %v2068 = vpop.f32.mrb[0].mxu0
  %v2069 = vpop.f32.mrb[0].mxu0
  %v2070 = vadd.f32 %v1781, %v2069
  %v2071 = vpop.f32.mrb[0].mxu0
  %2072 = vmatprep.mubr.bf16.mxu0 0
  %2073 = vmatmul.mubr.bf16.gmra.mrb[0].mxu0 %v1327
  %v2074 = vpop.f32.mrb[0].mxu0
  %v2075 = vadd.f32 %v1786, %v2074
  %v2076 = vpop.f32.mrb[0].mxu0
  %v2077 = vpop.f32.mrb[0].mxu0
  %v2078 = vadd.f32 %v1789, %v2077
  %v2079 = vpop.f32.mrb[0].mxu0
  %2080 = vmatprep.mubr.bf16.mxu0 0
  %2081 = vmatmul.mubr.bf16.gmra.mrb[0].mxu0 %v1330
  %v2082 = vpop.f32.mrb[0].mxu0
  %v2083 = vadd.f32 %v1794, %v2082
  %v2084 = vpop.f32.mrb[0].mxu0
  %v2085 = vpop.f32.mrb[0].mxu0
  %v2086 = vadd.f32 %v1797, %v2085
  %v2087 = vpop.f32.mrb[0].mxu0
  %2088 = vmatprep.mubr.bf16.mxu0 0
  %2089 = vmatmul.mubr.bf16.gmra.mrb[0].mxu0 %v1333
  %v2090 = vpop.f32.mrb[0].mxu0
  %v2091 = vadd.f32 %v1802, %v2090
  %v2092 = vpop.f32.mrb[0].mxu0
  %v2093 = vpop.f32.mrb[0].mxu0
  %v2094 = vadd.f32 %v1805, %v2093
  %v2095 = vpop.f32.mrb[0].mxu0
  %2096 = vmatprep.mubr.bf16.mxu0 0
  %2097 = vmatmul.mubr.bf16.gmra.mrb[0].mxu0 %v1336
  %v2098 = vpop.f32.mrb[0].mxu0
  %v2099 = vadd.f32 %v1810, %v2098
  %v2100 = vpop.f32.mrb[0].mxu0
  %v2101 = vpop.f32.mrb[0].mxu0
  %v2102 = vadd.f32 %v1813, %v2101
  %v2103 = vpop.f32.mrb[0].mxu0
  %2104 = vmatprep.mubr.bf16.mxu0 0
  %2105 = vmatmul.mubr.bf16.gmra.mrb[0].mxu0 %v1339
  %v2106 = vpop.f32.mrb[0].mxu0
  %v2107 = vadd.f32 %v1818, %v2106
  %v2108 = vpop.f32.mrb[0].mxu0
  %v2109 = vpop.f32.mrb[0].mxu0
  %v2110 = vadd.f32 %v1821, %v2109
  %v2111 = vpop.f32.mrb[0].mxu0
  %2112 = vmatprep.mubr.bf16.mxu0 0
  %2113 = vmatmul.mubr.bf16.gmra.mrb[0].mxu0 %v1342
  %v2114 = vpop.f32.mrb[0].mxu0
  %v2115 = vadd.f32 %v1826, %v2114
  %v2116 = vpop.f32.mrb[0].mxu0
  %v2117 = vpop.f32.mrb[0].mxu0
  %v2118 = vadd.f32 %v1829, %v2117
  %v2119 = vpop.f32.mrb[0].mxu0
  %2120 = vmatprep.mubr.bf16.mxu0 0
  %2121 = vmatmul.mubr.bf16.gmra.mrb[0].mxu0 %v1345
  %v2122 = vpop.f32.mrb[0].mxu0
  %v2123 = vadd.f32 %v1834, %v2122
  %v2124 = vpop.f32.mrb[0].mxu0
  %v2125 = vpop.f32.mrb[0].mxu0
  %v2126 = vadd.f32 %v1837, %v2125
  %v2127 = vpop.f32.mrb[0].mxu0
  %2128 = vmatprep.mubr.bf16.mxu0 0
  %2129 = vmatmul.mubr.bf16.gmra.mrb[0].mxu0 %v1348
  %v2130 = vpop.f32.mrb[0].mxu0
  %v2131 = vadd.f32 %v1842, %v2130
  %v2132 = vpop.f32.mrb[0].mxu0
  %v2133 = vpop.f32.mrb[0].mxu0
  %v2134 = vadd.f32 %v1845, %v2133
  %v2135 = vpop.f32.mrb[0].mxu0
  %2136 = vmatprep.mubr.bf16.mxu0 0
  %2137 = vmatmul.mubr.bf16.gmra.mrb[0].mxu0 %v1351
  %v2138 = vpop.f32.mrb[0].mxu0
  %v2139 = vadd.f32 %v1850, %v2138
  %v2140 = vpop.f32.mrb[0].mxu0
  %v2141 = vpop.f32.mrb[0].mxu0
  %v2142 = vadd.f32 %v1853, %v2141
  %v2143 = vpop.f32.mrb[0].mxu0
  %2144 = vmatprep.mubr.bf16.mxu0 0
  %2145 = vmatmul.mubr.bf16.gmra.mrb[0].mxu0 %v1354
  %v2146 = vpop.f32.mrb[0].mxu0
  %v2147 = vadd.f32 %v1858, %v2146
  %v2148 = vpop.f32.mrb[0].mxu0
  %v2149 = vpop.f32.mrb[0].mxu0
  %v2150 = vadd.f32 %v1861, %v2149
  %v2151 = vpop.f32.mrb[0].mxu0
  %2152 = vmatprep.mubr.bf16.mxu0 0
  %2153 = vmatmul.mubr.bf16.gmra.mrb[0].mxu0 %v1357
  %v2154 = vpop.f32.mrb[0].mxu0
  %v2155 = vadd.f32 %v1866, %v2154
  %v2156 = vpop.f32.mrb[0].mxu0
  %v2157 = vpop.f32.mrb[0].mxu0
  %v2158 = vadd.f32 %v1869, %v2157
  %v2159 = vpop.f32.mrb[0].mxu0
  %2160 = vmatprep.mubr.bf16.mxu0 0
  %2161 = vmatmul.mubr.bf16.gmra.mrb[0].mxu0 %v1360
  %v2162 = vpop.f32.mrb[0].mxu0
  %v2163 = vadd.f32 %v1874, %v2162
  %v2164 = vpop.f32.mrb[0].mxu0
  %v2165 = vpop.f32.mrb[0].mxu0
  %v2166 = vadd.f32 %v1877, %v2165
  %v2167 = vpop.f32.mrb[0].mxu0
  %2168 = vmatprep.mubr.bf16.mxu0 0
  %2169 = vmatmul.mubr.bf16.gmra.mrb[0].mxu0 %v1363
  %v2170 = vpop.f32.mrb[0].mxu0
  %v2171 = vadd.f32 %v1882, %v2170
  %v2172 = vpop.f32.mrb[0].mxu0
  %v2173 = vpop.f32.mrb[0].mxu0
  %v2174 = vadd.f32 %v1885, %v2173
  %v2175 = vpop.f32.mrb[0].mxu0
  %2176 = vmatprep.mubr.bf16.mxu0 0
  %2177 = vmatmul.mubr.bf16.gmra.mrb[0].mxu0 %v1366
  %v2178 = vpop.f32.mrb[0].mxu0
  %v2179 = vadd.f32 %v1890, %v2178
  %v2180 = vpop.f32.mrb[0].mxu0
  %v2181 = vpop.f32.mrb[0].mxu0
  %v2182 = vadd.f32 %v1893, %v2181
  %v2183 = vpop.f32.mrb[0].mxu0
  %2184 = vmatprep.mubr.bf16.mxu0 0
  %2185 = vmatmul.mubr.bf16.gmra.mrb[0].mxu0 %v1369
  %v2186 = vpop.f32.mrb[0].mxu0
  %v2187 = vadd.f32 %v1898, %v2186
  %v2188 = vpop.f32.mrb[0].mxu0
  %v2189 = vpop.f32.mrb[0].mxu0
  %v2190 = vadd.f32 %v1901, %v2189
  %v2191 = vpop.f32.mrb[0].mxu0
  %2192 = vmatprep.mubr.bf16.mxu0 0
  %2193 = vmatmul.mubr.bf16.gmra.mrb[0].mxu0 %v1372
  %v2194 = vpop.f32.mrb[0].mxu0
  %v2195 = vadd.f32 %v1906, %v2194
  %v2196 = vpop.f32.mrb[0].mxu0
  %v2197 = vpop.f32.mrb[0].mxu0
  %v2198 = vadd.f32 %v1909, %v2197
  %v2199 = vpop.f32.mrb[0].mxu0
  %2200 = vmatprep.mubr.bf16.mxu0 0
  %2201 = vmatmul.mubr.bf16.gmra.mrb[0].mxu0 %v1375
  %v2202 = vpop.f32.mrb[0].mxu0
  %v2203 = vadd.f32 %v1914, %v2202
  %v2204 = vpop.f32.mrb[0].mxu0
  %v2205 = vpop.f32.mrb[0].mxu0
  %v2206 = vadd.f32 %v1917, %v2205
  %v2207 = vpop.f32.mrb[0].mxu0
  %2208 = vmatprep.mubr.bf16.mxu0 0
  %2209 = vmatmul.mubr.bf16.gmra.mrb[0].mxu0 %v1378
  %v2210 = vpop.f32.mrb[0].mxu0
  %v2211 = vadd.f32 %v1922, %v2210
  %v2212 = vpop.f32.mrb[0].mxu0
  %v2213 = vpop.f32.mrb[0].mxu0
  %v2214 = vadd.f32 %v1925, %v2213
  %v2215 = vpop.f32.mrb[0].mxu0
  %2216 = vmatprep.mubr.bf16.mxu0 0
  %2217 = vmatmul.mubr.bf16.gmra.mrb[0].mxu0 %v1381
  %v2218 = vpop.f32.mrb[0].mxu0
  %v2219 = vadd.f32 %v1930, %v2218
  %v2220 = vpop.f32.mrb[0].mxu0
  %v2221 = vpop.f32.mrb[0].mxu0
  %v2222 = vadd.f32 %v1933, %v2221
  %v2223 = vpop.f32.mrb[0].mxu0
  %2224 = vmatprep.mubr.bf16.mxu0 0
  %2225 = vmatmul.mubr.bf16.gmra.mrb[0].mxu0 %v1384
  %v2226 = vpop.f32.mrb[0].mxu0
  %v2227 = vadd.f32 %v1938, %v2226
  %v2228 = vpop.f32.mrb[0].mxu0
  %v2229 = vpop.f32.mrb[0].mxu0
  %v2230 = vadd.f32 %v1941, %v2229
  %v2231 = vpop.f32.mrb[0].mxu0
  %2232 = vmatprep.mubr.bf16.mxu0 0
  %2233 = vmatmul.mubr.bf16.gmra.mrb[0].mxu0 %v1387
  %v2234 = vpop.f32.mrb[0].mxu0
  %v2235 = vadd.f32 %v1946, %v2234
  %v2236 = vpop.f32.mrb[0].mxu0
  %v2237 = vpop.f32.mrb[0].mxu0
  %v2238 = vadd.f32 %v1949, %v2237
  %v2239 = vpop.f32.mrb[0].mxu0
  %2240 = vmatprep.mubr.bf16.mxu0 0
  %2241 = vmatmul.mubr.bf16.gmra.mrb[0].mxu0 %v1390
  %v2242 = vpop.f32.mrb[0].mxu0
  %v2243 = vadd.f32 %v1954, %v2242
  %v2244 = vpop.f32.mrb[0].mxu0
  %v2245 = vpop.f32.mrb[0].mxu0
  %v2246 = vadd.f32 %v1957, %v2245
  %v2247 = vpop.f32.mrb[0].mxu0
  %2248 = vmatprep.mubr.bf16.mxu0 0
  %2249 = vmatmul.mubr.bf16.gmra.mrb[0].mxu0 %v1393
  %v2250 = vpop.f32.mrb[0].mxu0
  %v2251 = vadd.f32 %v1962, %v2250
  %v2252 = vpop.f32.mrb[0].mxu0
  %v2253 = vpop.f32.mrb[0].mxu0
  %v2254 = vadd.f32 %v1965, %v2253
  %v2255 = vpop.f32.mrb[0].mxu0
  %2256 = vmatprep.mubr.bf16.mxu0 0
  %2257 = vmatmul.mubr.bf16.gmra.mrb[0].mxu0 %v1396
  %v2258 = vpop.f32.mrb[0].mxu0
  %v2259 = vadd.f32 %v1970, %v2258
  %v2260 = vpop.f32.mrb[0].mxu0
  %v2261 = vpop.f32.mrb[0].mxu0
  %v2262 = vadd.f32 %v1973, %v2261
  %v2263 = vpop.f32.mrb[0].mxu0
  %2264 = vdwg.mxu0
  %v2265 = vld [vmem:[%s2] sm:$0x1]
  %v2267 = vlaneseq
  %v2268 = vshrl.u32 %v2267, 7
  %v2269 = vsub.s32 0, %v2268
  %v2270 = vrot.slane %v2265, %v2269
  %v2272 = vmul.f32 %v2011, %v2270
  %v2273 = vmul.f32 %v2014, %v2270
  %v2274 = vmul.f32 %v2019, %v2270
  %v2275 = vmul.f32 %v2022, %v2270
  %v2276 = vmul.f32 %v2027, %v2270
  %v2277 = vmul.f32 %v2030, %v2270
  %v2278 = vmul.f32 %v2035, %v2270
  %v2279 = vmul.f32 %v2038, %v2270
  %v2280 = vmul.f32 %v2043, %v2270
  %v2281 = vmul.f32 %v2046, %v2270
  %v2282 = vmul.f32 %v2051, %v2270
  %v2283 = vmul.f32 %v2054, %v2270
  %v2284 = vmul.f32 %v2059, %v2270
  %v2285 = vmul.f32 %v2062, %v2270
  %v2286 = vmul.f32 %v2067, %v2270
  %v2287 = vmul.f32 %v2070, %v2270
  %v2288 = vmul.f32 %v2075, %v2270
  %v2289 = vmul.f32 %v2078, %v2270
  %v2290 = vmul.f32 %v2083, %v2270
  %v2291 = vmul.f32 %v2086, %v2270
  %v2292 = vmul.f32 %v2091, %v2270
  %v2293 = vmul.f32 %v2094, %v2270
  %v2294 = vmul.f32 %v2099, %v2270
  %v2295 = vmul.f32 %v2102, %v2270
  %v2296 = vmul.f32 %v2107, %v2270
  %v2297 = vmul.f32 %v2110, %v2270
  %v2298 = vmul.f32 %v2115, %v2270
  %v2299 = vmul.f32 %v2118, %v2270
  %v2300 = vmul.f32 %v2123, %v2270
  %v2301 = vmul.f32 %v2126, %v2270
  %v2302 = vmul.f32 %v2131, %v2270
  %v2303 = vmul.f32 %v2134, %v2270
  %v2304 = vmul.f32 %v2139, %v2270
  %v2305 = vmul.f32 %v2142, %v2270
  %v2306 = vmul.f32 %v2147, %v2270
  %v2307 = vmul.f32 %v2150, %v2270
  %v2308 = vmul.f32 %v2155, %v2270
  %v2309 = vmul.f32 %v2158, %v2270
  %v2310 = vmul.f32 %v2163, %v2270
  %v2311 = vmul.f32 %v2166, %v2270
  %v2312 = vmul.f32 %v2171, %v2270
  %v2313 = vmul.f32 %v2174, %v2270
  %v2314 = vmul.f32 %v2179, %v2270
  %v2315 = vmul.f32 %v2182, %v2270
  %v2316 = vmul.f32 %v2187, %v2270
  %v2317 = vmul.f32 %v2190, %v2270
  %v2318 = vmul.f32 %v2195, %v2270
  %v2319 = vmul.f32 %v2198, %v2270
  %v2320 = vmul.f32 %v2203, %v2270
  %v2321 = vmul.f32 %v2206, %v2270
  %v2322 = vmul.f32 %v2211, %v2270
  %v2323 = vmul.f32 %v2214, %v2270
  %v2324 = vmul.f32 %v2219, %v2270
  %v2325 = vmul.f32 %v2222, %v2270
  %v2326 = vmul.f32 %v2227, %v2270
  %v2327 = vmul.f32 %v2230, %v2270
  %v2328 = vmul.f32 %v2235, %v2270
  %v2329 = vmul.f32 %v2238, %v2270
  %v2330 = vmul.f32 %v2243, %v2270
  %v2331 = vmul.f32 %v2246, %v2270
  %v2332 = vmul.f32 %v2251, %v2270
  %v2333 = vmul.f32 %v2254, %v2270
  %v2334 = vmul.f32 %v2259, %v2270
  %v2335 = vmul.f32 %v2262, %v2270
  %v2336 = vld [vmem:[%s3] sm:$0x1]
  %v2338 = vlaneseq
  %v2339 = vshrl.u32 %v2338, 7
  %v2340 = vsub.s32 0, %v2339
  %v2341 = vrot.slane %v2336, %v2340
  %v2343 = vadd.f32 %v2272, %v2341
  %v2344 = vadd.f32 %v2273, %v2341
  %v2345 = vadd.f32 %v2274, %v2341
  %v2346 = vadd.f32 %v2275, %v2341
  %v2347 = vadd.f32 %v2276, %v2341
  %v2348 = vadd.f32 %v2277, %v2341
  %v2349 = vadd.f32 %v2278, %v2341
  %v2350 = vadd.f32 %v2279, %v2341
  %v2351 = vadd.f32 %v2280, %v2341
  %v2352 = vadd.f32 %v2281, %v2341
  %v2353 = vadd.f32 %v2282, %v2341
  %v2354 = vadd.f32 %v2283, %v2341
  %v2355 = vadd.f32 %v2284, %v2341
  %v2356 = vadd.f32 %v2285, %v2341
  %v2357 = vadd.f32 %v2286, %v2341
  %v2358 = vadd.f32 %v2287, %v2341
  %v2359 = vadd.f32 %v2288, %v2341
  %v2360 = vadd.f32 %v2289, %v2341
  %v2361 = vadd.f32 %v2290, %v2341
  %v2362 = vadd.f32 %v2291, %v2341
  %v2363 = vadd.f32 %v2292, %v2341
  %v2364 = vadd.f32 %v2293, %v2341
  %v2365 = vadd.f32 %v2294, %v2341
  %v2366 = vadd.f32 %v2295, %v2341
  %v2367 = vadd.f32 %v2296, %v2341
  %v2368 = vadd.f32 %v2297, %v2341
  %v2369 = vadd.f32 %v2298, %v2341
  %v2370 = vadd.f32 %v2299, %v2341
  %v2371 = vadd.f32 %v2300, %v2341
  %v2372 = vadd.f32 %v2301, %v2341
  %v2373 = vadd.f32 %v2302, %v2341
  %v2374 = vadd.f32 %v2303, %v2341
  %v2375 = vadd.f32 %v2304, %v2341
  %v2376 = vadd.f32 %v2305, %v2341
  %v2377 = vadd.f32 %v2306, %v2341
  %v2378 = vadd.f32 %v2307, %v2341
  %v2379 = vadd.f32 %v2308, %v2341
  %v2380 = vadd.f32 %v2309, %v2341
  %v2381 = vadd.f32 %v2310, %v2341
  %v2382 = vadd.f32 %v2311, %v2341
  %v2383 = vadd.f32 %v2312, %v2341
  %v2384 = vadd.f32 %v2313, %v2341
  %v2385 = vadd.f32 %v2314, %v2341
  %v2386 = vadd.f32 %v2315, %v2341
  %v2387 = vadd.f32 %v2316, %v2341
  %v2388 = vadd.f32 %v2317, %v2341
  %v2389 = vadd.f32 %v2318, %v2341
  %v2390 = vadd.f32 %v2319, %v2341
  %v2391 = vadd.f32 %v2320, %v2341
  %v2392 = vadd.f32 %v2321, %v2341
  %v2393 = vadd.f32 %v2322, %v2341
  %v2394 = vadd.f32 %v2323, %v2341
  %v2395 = vadd.f32 %v2324, %v2341
  %v2396 = vadd.f32 %v2325, %v2341
  %v2397 = vadd.f32 %v2326, %v2341
  %v2398 = vadd.f32 %v2327, %v2341
  %v2399 = vadd.f32 %v2328, %v2341
  %v2400 = vadd.f32 %v2329, %v2341
  %v2401 = vadd.f32 %v2330, %v2341
  %v2402 = vadd.f32 %v2331, %v2341
  %v2403 = vadd.f32 %v2332, %v2341
  %v2404 = vadd.f32 %v2333, %v2341
  %v2405 = vadd.f32 %v2334, %v2341
  %v2406 = vadd.f32 %v2335, %v2341
  %vm2407 = vcmp.ge.f32.partialorder %v2343, 0.0
  %vm2408 = vcmp.ge.f32.partialorder %v2344, 0.0
  %vm2409 = vcmp.ge.f32.partialorder %v2345, 0.0
  %vm2410 = vcmp.ge.f32.partialorder %v2346, 0.0
  %vm2411 = vcmp.ge.f32.partialorder %v2347, 0.0
  %vm2412 = vcmp.ge.f32.partialorder %v2348, 0.0
  %vm2413 = vcmp.ge.f32.partialorder %v2349, 0.0
  %vm2414 = vcmp.ge.f32.partialorder %v2350, 0.0
  %vm2415 = vcmp.ge.f32.partialorder %v2351, 0.0
  %vm2416 = vcmp.ge.f32.partialorder %v2352, 0.0
  %vm2417 = vcmp.ge.f32.partialorder %v2353, 0.0
  %vm2418 = vcmp.ge.f32.partialorder %v2354, 0.0
  %vm2419 = vcmp.ge.f32.partialorder %v2355, 0.0
  %vm2420 = vcmp.ge.f32.partialorder %v2356, 0.0
  %vm2421 = vcmp.ge.f32.partialorder %v2357, 0.0
  %vm2422 = vcmp.ge.f32.partialorder %v2358, 0.0
  %vm2423 = vcmp.ge.f32.partialorder %v2359, 0.0
  %vm2424 = vcmp.ge.f32.partialorder %v2360, 0.0
  %vm2425 = vcmp.ge.f32.partialorder %v2361, 0.0
  %vm2426 = vcmp.ge.f32.partialorder %v2362, 0.0
  %vm2427 = vcmp.ge.f32.partialorder %v2363, 0.0
  %vm2428 = vcmp.ge.f32.partialorder %v2364, 0.0
  %vm2429 = vcmp.ge.f32.partialorder %v2365, 0.0
  %vm2430 = vcmp.ge.f32.partialorder %v2366, 0.0
  %vm2431 = vcmp.ge.f32.partialorder %v2367, 0.0
  %vm2432 = vcmp.ge.f32.partialorder %v2368, 0.0
  %vm2433 = vcmp.ge.f32.partialorder %v2369, 0.0
  %vm2434 = vcmp.ge.f32.partialorder %v2370, 0.0
  %vm2435 = vcmp.ge.f32.partialorder %v2371, 0.0
  %vm2436 = vcmp.ge.f32.partialorder %v2372, 0.0
  %vm2437 = vcmp.ge.f32.partialorder %v2373, 0.0
  %vm2438 = vcmp.ge.f32.partialorder %v2374, 0.0
  %vm2439 = vcmp.ge.f32.partialorder %v2375, 0.0
  %vm2440 = vcmp.ge.f32.partialorder %v2376, 0.0
  %vm2441 = vcmp.ge.f32.partialorder %v2377, 0.0
  %vm2442 = vcmp.ge.f32.partialorder %v2378, 0.0
  %vm2443 = vcmp.ge.f32.partialorder %v2379, 0.0
  %vm2444 = vcmp.ge.f32.partialorder %v2380, 0.0
  %vm2445 = vcmp.ge.f32.partialorder %v2381, 0.0
  %vm2446 = vcmp.ge.f32.partialorder %v2382, 0.0
  %vm2447 = vcmp.ge.f32.partialorder %v2383, 0.0
  %vm2448 = vcmp.ge.f32.partialorder %v2384, 0.0
  %vm2449 = vcmp.ge.f32.partialorder %v2385, 0.0
  %vm2450 = vcmp.ge.f32.partialorder %v2386, 0.0
  %vm2451 = vcmp.ge.f32.partialorder %v2387, 0.0
  %vm2452 = vcmp.ge.f32.partialorder %v2388, 0.0
  %vm2453 = vcmp.ge.f32.partialorder %v2389, 0.0
  %vm2454 = vcmp.ge.f32.partialorder %v2390, 0.0
  %vm2455 = vcmp.ge.f32.partialorder %v2391, 0.0
  %vm2456 = vcmp.ge.f32.partialorder %v2392, 0.0
  %vm2457 = vcmp.ge.f32.partialorder %v2393, 0.0
  %vm2458 = vcmp.ge.f32.partialorder %v2394, 0.0
  %vm2459 = vcmp.ge.f32.partialorder %v2395, 0.0
  %vm2460 = vcmp.ge.f32.partialorder %v2396, 0.0
  %vm2461 = vcmp.ge.f32.partialorder %v2397, 0.0
  %vm2462 = vcmp.ge.f32.partialorder %v2398, 0.0
  %vm2463 = vcmp.ge.f32.partialorder %v2399, 0.0
  %vm2464 = vcmp.ge.f32.partialorder %v2400, 0.0
  %vm2465 = vcmp.ge.f32.partialorder %v2401, 0.0
  %vm2466 = vcmp.ge.f32.partialorder %v2402, 0.0
  %vm2467 = vcmp.ge.f32.partialorder %v2403, 0.0
  %vm2468 = vcmp.ge.f32.partialorder %v2404, 0.0
  %vm2469 = vcmp.ge.f32.partialorder %v2405, 0.0
  %vm2470 = vcmp.ge.f32.partialorder %v2406, 0.0
  %v2471 = vld [vmem:[%s4] sm:$0x1]
  %v2473 = vlaneseq
  %v2474 = vshrl.u32 %v2473, 7
  %v2475 = vsub.s32 0, %v2474
  %v2476 = vrot.slane %v2471, %v2475
  %v2478 = vmul.f32 %v2476, %v2343
  %v2479 = vmul.f32 %v2476, %v2344
  %v2480 = vmul.f32 %v2476, %v2345
  %v2481 = vmul.f32 %v2476, %v2346
  %v2482 = vmul.f32 %v2476, %v2347
  %v2483 = vmul.f32 %v2476, %v2348
  %v2484 = vmul.f32 %v2476, %v2349
  %v2485 = vmul.f32 %v2476, %v2350
  %v2486 = vmul.f32 %v2476, %v2351
  %v2487 = vmul.f32 %v2476, %v2352
  %v2488 = vmul.f32 %v2476, %v2353
  %v2489 = vmul.f32 %v2476, %v2354
  %v2490 = vmul.f32 %v2476, %v2355
  %v2491 = vmul.f32 %v2476, %v2356
  %v2492 = vmul.f32 %v2476, %v2357
  %v2493 = vmul.f32 %v2476, %v2358
  %v2494 = vmul.f32 %v2476, %v2359
  %v2495 = vmul.f32 %v2476, %v2360
  %v2496 = vmul.f32 %v2476, %v2361
  %v2497 = vmul.f32 %v2476, %v2362
  %v2498 = vmul.f32 %v2476, %v2363
  %v2499 = vmul.f32 %v2476, %v2364
  %v2500 = vmul.f32 %v2476, %v2365
  %v2501 = vmul.f32 %v2476, %v2366
  %v2502 = vmul.f32 %v2476, %v2367
  %v2503 = vmul.f32 %v2476, %v2368
  %v2504 = vmul.f32 %v2476, %v2369
  %v2505 = vmul.f32 %v2476, %v2370
  %v2506 = vmul.f32 %v2476, %v2371
  %v2507 = vmul.f32 %v2476, %v2372
  %v2508 = vmul.f32 %v2476, %v2373
  %v2509 = vmul.f32 %v2476, %v2374
  %v2510 = vmul.f32 %v2476, %v2375
  %v2511 = vmul.f32 %v2476, %v2376
  %v2512 = vmul.f32 %v2476, %v2377
  %v2513 = vmul.f32 %v2476, %v2378
  %v2514 = vmul.f32 %v2476, %v2379
  %v2515 = vmul.f32 %v2476, %v2380
  %v2516 = vmul.f32 %v2476, %v2381
  %v2517 = vmul.f32 %v2476, %v2382
  %v2518 = vmul.f32 %v2476, %v2383
  %v2519 = vmul.f32 %v2476, %v2384
  %v2520 = vmul.f32 %v2476, %v2385
  %v2521 = vmul.f32 %v2476, %v2386
  %v2522 = vmul.f32 %v2476, %v2387
  %v2523 = vmul.f32 %v2476, %v2388
  %v2524 = vmul.f32 %v2476, %v2389
  %v2525 = vmul.f32 %v2476, %v2390
  %v2526 = vmul.f32 %v2476, %v2391
  %v2527 = vmul.f32 %v2476, %v2392
  %v2528 = vmul.f32 %v2476, %v2393
  %v2529 = vmul.f32 %v2476, %v2394
  %v2530 = vmul.f32 %v2476, %v2395
  %v2531 = vmul.f32 %v2476, %v2396
  %v2532 = vmul.f32 %v2476, %v2397
  %v2533 = vmul.f32 %v2476, %v2398
  %v2534 = vmul.f32 %v2476, %v2399
  %v2535 = vmul.f32 %v2476, %v2400
  %v2536 = vmul.f32 %v2476, %v2401
  %v2537 = vmul.f32 %v2476, %v2402
  %v2538 = vmul.f32 %v2476, %v2403
  %v2539 = vmul.f32 %v2476, %v2404
  %v2540 = vmul.f32 %v2476, %v2405
  %v2541 = vmul.f32 %v2476, %v2406
  %v2542 = vsel %vm2407, %v2343, %v2478
  %v2543 = vsel %vm2408, %v2344, %v2479
  %v2544 = vsel %vm2409, %v2345, %v2480
  %v2545 = vsel %vm2410, %v2346, %v2481
  %v2546 = vsel %vm2411, %v2347, %v2482
  %v2547 = vsel %vm2412, %v2348, %v2483
  %v2548 = vsel %vm2413, %v2349, %v2484
  %v2549 = vsel %vm2414, %v2350, %v2485
  %v2550 = vsel %vm2415, %v2351, %v2486
  %v2551 = vsel %vm2416, %v2352, %v2487
  %v2552 = vsel %vm2417, %v2353, %v2488
  %v2553 = vsel %vm2418, %v2354, %v2489
  %v2554 = vsel %vm2419, %v2355, %v2490
  %v2555 = vsel %vm2420, %v2356, %v2491
  %v2556 = vsel %vm2421, %v2357, %v2492
  %v2557 = vsel %vm2422, %v2358, %v2493
  %v2558 = vsel %vm2423, %v2359, %v2494
  %v2559 = vsel %vm2424, %v2360, %v2495
  %v2560 = vsel %vm2425, %v2361, %v2496
  %v2561 = vsel %vm2426, %v2362, %v2497
  %v2562 = vsel %vm2427, %v2363, %v2498
  %v2563 = vsel %vm2428, %v2364, %v2499
  %v2564 = vsel %vm2429, %v2365, %v2500
  %v2565 = vsel %vm2430, %v2366, %v2501
  %v2566 = vsel %vm2431, %v2367, %v2502
  %v2567 = vsel %vm2432, %v2368, %v2503
  %v2568 = vsel %vm2433, %v2369, %v2504
  %v2569 = vsel %vm2434, %v2370, %v2505
  %v2570 = vsel %vm2435, %v2371, %v2506
  %v2571 = vsel %vm2436, %v2372, %v2507
  %v2572 = vsel %vm2437, %v2373, %v2508
  %v2573 = vsel %vm2438, %v2374, %v2509
  %v2574 = vsel %vm2439, %v2375, %v2510
  %v2575 = vsel %vm2440, %v2376, %v2511
  %v2576 = vsel %vm2441, %v2377, %v2512
  %v2577 = vsel %vm2442, %v2378, %v2513
  %v2578 = vsel %vm2443, %v2379, %v2514
  %v2579 = vsel %vm2444, %v2380, %v2515
  %v2580 = vsel %vm2445, %v2381, %v2516
  %v2581 = vsel %vm2446, %v2382, %v2517
  %v2582 = vsel %vm2447, %v2383, %v2518
  %v2583 = vsel %vm2448, %v2384, %v2519
  %v2584 = vsel %vm2449, %v2385, %v2520
  %v2585 = vsel %vm2450, %v2386, %v2521
  %v2586 = vsel %vm2451, %v2387, %v2522
  %v2587 = vsel %vm2452, %v2388, %v2523
  %v2588 = vsel %vm2453, %v2389, %v2524
  %v2589 = vsel %vm2454, %v2390, %v2525
  %v2590 = vsel %vm2455, %v2391, %v2526
  %v2591 = vsel %vm2456, %v2392, %v2527
  %v2592 = vsel %vm2457, %v2393, %v2528
  %v2593 = vsel %vm2458, %v2394, %v2529
  %v2594 = vsel %vm2459, %v2395, %v2530
  %v2595 = vsel %vm2460, %v2396, %v2531
  %v2596 = vsel %vm2461, %v2397, %v2532
  %v2597 = vsel %vm2462, %v2398, %v2533
  %v2598 = vsel %vm2463, %v2399, %v2534
  %v2599 = vsel %vm2464, %v2400, %v2535
  %v2600 = vsel %vm2465, %v2401, %v2536
  %v2601 = vsel %vm2466, %v2402, %v2537
  %v2602 = vsel %vm2467, %v2403, %v2538
  %v2603 = vsel %vm2468, %v2404, %v2539
  %v2604 = vsel %vm2469, %v2405, %v2540
  %v2605 = vsel %vm2470, %v2406, %v2541
  %v2606 = vpack.c.bf16 %v2543, %v2542
  %v2607 = vpack.c.bf16 %v2545, %v2544
  %v2608 = vpack.c.bf16 %v2547, %v2546
  %v2609 = vpack.c.bf16 %v2549, %v2548
  %v2610 = vpack.c.bf16 %v2551, %v2550
  %v2611 = vpack.c.bf16 %v2553, %v2552
  %v2612 = vpack.c.bf16 %v2555, %v2554
  %v2613 = vpack.c.bf16 %v2557, %v2556
  %v2614 = vpack.c.bf16 %v2559, %v2558
  %v2615 = vpack.c.bf16 %v2561, %v2560
  %v2616 = vpack.c.bf16 %v2563, %v2562
  %v2617 = vpack.c.bf16 %v2565, %v2564
  %v2618 = vpack.c.bf16 %v2567, %v2566
  %v2619 = vpack.c.bf16 %v2569, %v2568
  %v2620 = vpack.c.bf16 %v2571, %v2570
  %v2621 = vpack.c.bf16 %v2573, %v2572
  %v2622 = vpack.c.bf16 %v2575, %v2574
  %v2623 = vpack.c.bf16 %v2577, %v2576
  %v2624 = vpack.c.bf16 %v2579, %v2578
  %v2625 = vpack.c.bf16 %v2581, %v2580
  %v2626 = vpack.c.bf16 %v2583, %v2582
  %v2627 = vpack.c.bf16 %v2585, %v2584
  %v2628 = vpack.c.bf16 %v2587, %v2586
  %v2629 = vpack.c.bf16 %v2589, %v2588
  %v2630 = vpack.c.bf16 %v2591, %v2590
  %v2631 = vpack.c.bf16 %v2593, %v2592
  %v2632 = vpack.c.bf16 %v2595, %v2594
  %v2633 = vpack.c.bf16 %v2597, %v2596
  %v2634 = vpack.c.bf16 %v2599, %v2598
  %v2635 = vpack.c.bf16 %v2601, %v2600
  %v2636 = vpack.c.bf16 %v2603, %v2602
  %v2637 = vpack.c.bf16 %v2605, %v2604
  %v2670 = vunpack.c.l.b16 %v2606
  %v2671 = vunpack.c.h.b16 %v2606
  %v2672 = vunpack.c.l.b16 %v2607
  %v2673 = vunpack.c.h.b16 %v2607
  %v2674 = vunpack.c.l.b16 %v2608
  %v2675 = vunpack.c.h.b16 %v2608
  %v2676 = vunpack.c.l.b16 %v2609
  %v2677 = vunpack.c.h.b16 %v2609
  %v2678 = vunpack.c.l.b16 %v2610
  %v2679 = vunpack.c.h.b16 %v2610
  %v2680 = vunpack.c.l.b16 %v2611
  %v2681 = vunpack.c.h.b16 %v2611
  %v2682 = vunpack.c.l.b16 %v2612
  %v2683 = vunpack.c.h.b16 %v2612
  %v2684 = vunpack.c.l.b16 %v2613
  %v2685 = vunpack.c.h.b16 %v2613
  %v2686 = vunpack.c.l.b16 %v2614
  %v2687 = vunpack.c.h.b16 %v2614
  %v2688 = vunpack.c.l.b16 %v2615
  %v2689 = vunpack.c.h.b16 %v2615
  %v2690 = vunpack.c.l.b16 %v2616
  %v2691 = vunpack.c.h.b16 %v2616
  %v2692 = vunpack.c.l.b16 %v2617
  %v2693 = vunpack.c.h.b16 %v2617
  %v2694 = vunpack.c.l.b16 %v2618
  %v2695 = vunpack.c.h.b16 %v2618
  %v2696 = vunpack.c.l.b16 %v2619
  %v2697 = vunpack.c.h.b16 %v2619
  %v2698 = vunpack.c.l.b16 %v2620
  %v2699 = vunpack.c.h.b16 %v2620
  %v2700 = vunpack.c.l.b16 %v2621
  %v2701 = vunpack.c.h.b16 %v2621
  %v2702 = vunpack.c.l.b16 %v2622
  %v2703 = vunpack.c.h.b16 %v2622
  %v2704 = vunpack.c.l.b16 %v2623
  %v2705 = vunpack.c.h.b16 %v2623
  %v2706 = vunpack.c.l.b16 %v2624
  %v2707 = vunpack.c.h.b16 %v2624
  %v2708 = vunpack.c.l.b16 %v2625
  %v2709 = vunpack.c.h.b16 %v2625
  %v2710 = vunpack.c.l.b16 %v2626
  %v2711 = vunpack.c.h.b16 %v2626
  %v2712 = vunpack.c.l.b16 %v2627
  %v2713 = vunpack.c.h.b16 %v2627
  %v2714 = vunpack.c.l.b16 %v2628
  %v2715 = vunpack.c.h.b16 %v2628
  %v2716 = vunpack.c.l.b16 %v2629
  %v2717 = vunpack.c.h.b16 %v2629
  %v2718 = vunpack.c.l.b16 %v2630
  %v2719 = vunpack.c.h.b16 %v2630
  %v2720 = vunpack.c.l.b16 %v2631
  %v2721 = vunpack.c.h.b16 %v2631
  %v2722 = vunpack.c.l.b16 %v2632
  %v2723 = vunpack.c.h.b16 %v2632
  %v2724 = vunpack.c.l.b16 %v2633
  %v2725 = vunpack.c.h.b16 %v2633
  %v2726 = vunpack.c.l.b16 %v2634
  %v2727 = vunpack.c.h.b16 %v2634
  %v2728 = vunpack.c.l.b16 %v2635
  %v2729 = vunpack.c.h.b16 %v2635
  %v2730 = vunpack.c.l.b16 %v2636
  %v2731 = vunpack.c.h.b16 %v2636
  %v2732 = vunpack.c.l.b16 %v2637
  %v2733 = vunpack.c.h.b16 %v2637
  %v2734 = vpack.c.b16 %v2670, %v2670
  %v2735 = vpack.c.b16 %v2671, %v2671
  %v2736 = vpack.c.b16 %v2672, %v2672
  %v2737 = vpack.c.b16 %v2673, %v2673
  %v2738 = vpack.c.b16 %v2674, %v2674
  %v2739 = vpack.c.b16 %v2675, %v2675
  %v2740 = vpack.c.b16 %v2676, %v2676
  %v2741 = vpack.c.b16 %v2677, %v2677
  %v2742 = vpack.c.b16 %v2678, %v2678
  %v2743 = vpack.c.b16 %v2679, %v2679
  %v2744 = vpack.c.b16 %v2680, %v2680
  %v2745 = vpack.c.b16 %v2681, %v2681
  %v2746 = vpack.c.b16 %v2682, %v2682
  %v2747 = vpack.c.b16 %v2683, %v2683
  %v2748 = vpack.c.b16 %v2684, %v2684
  %v2749 = vpack.c.b16 %v2685, %v2685
  %v2750 = vpack.c.b16 %v2686, %v2686
  %v2751 = vpack.c.b16 %v2687, %v2687
  %v2752 = vpack.c.b16 %v2688, %v2688
  %v2753 = vpack.c.b16 %v2689, %v2689
  %v2754 = vpack.c.b16 %v2690, %v2690
  %v2755 = vpack.c.b16 %v2691, %v2691
  %v2756 = vpack.c.b16 %v2692, %v2692
  %v2757 = vpack.c.b16 %v2693, %v2693
  %v2758 = vpack.c.b16 %v2694, %v2694
  %v2759 = vpack.c.b16 %v2695, %v2695
  %v2760 = vpack.c.b16 %v2696, %v2696
  %v2761 = vpack.c.b16 %v2697, %v2697
  %v2762 = vpack.c.b16 %v2698, %v2698
  %v2763 = vpack.c.b16 %v2699, %v2699
  %v2764 = vpack.c.b16 %v2700, %v2700
  %v2765 = vpack.c.b16 %v2701, %v2701
  %v2766 = vpack.c.b16 %v2702, %v2702
  %v2767 = vpack.c.b16 %v2703, %v2703
  %v2768 = vpack.c.b16 %v2704, %v2704
  %v2769 = vpack.c.b16 %v2705, %v2705
  %v2770 = vpack.c.b16 %v2706, %v2706
  %v2771 = vpack.c.b16 %v2707, %v2707
  %v2772 = vpack.c.b16 %v2708, %v2708
  %v2773 = vpack.c.b16 %v2709, %v2709
  %v2774 = vpack.c.b16 %v2710, %v2710
  %v2775 = vpack.c.b16 %v2711, %v2711
  %v2776 = vpack.c.b16 %v2712, %v2712
  %v2777 = vpack.c.b16 %v2713, %v2713
  %v2778 = vpack.c.b16 %v2714, %v2714
  %v2779 = vpack.c.b16 %v2715, %v2715
  %v2780 = vpack.c.b16 %v2716, %v2716
  %v2781 = vpack.c.b16 %v2717, %v2717
  %v2782 = vpack.c.b16 %v2718, %v2718
  %v2783 = vpack.c.b16 %v2719, %v2719
  %v2784 = vpack.c.b16 %v2720, %v2720
  %v2785 = vpack.c.b16 %v2721, %v2721
  %v2786 = vpack.c.b16 %v2722, %v2722
  %v2787 = vpack.c.b16 %v2723, %v2723
  %v2788 = vpack.c.b16 %v2724, %v2724
  %v2789 = vpack.c.b16 %v2725, %v2725
  %v2790 = vpack.c.b16 %v2726, %v2726
  %v2791 = vpack.c.b16 %v2727, %v2727
  %v2792 = vpack.c.b16 %v2728, %v2728
  %v2793 = vpack.c.b16 %v2729, %v2729
  %v2794 = vpack.c.b16 %v2730, %v2730
  %v2795 = vpack.c.b16 %v2731, %v2731
  %v2796 = vpack.c.b16 %v2732, %v2732
  %v2797 = vpack.c.b16 %v2733, %v2733
  %2862 = vst [vmem:[%s5] sm:$0xf] %v2734
  %2863 = vst [vmem:[%s5 + $0x4] sm:$0xf] %v2735
  %2864 = vst [vmem:[%s5 + $0x8] sm:$0xf] %v2736
  %2865 = vst [vmem:[%s5 + $0xc] sm:$0xf] %v2737
  %2866 = vst [vmem:[%s5 + $0x10] sm:$0xf] %v2738
  %2867 = vst [vmem:[%s5 + $0x14] sm:$0xf] %v2739
  %2868 = vst [vmem:[%s5 + $0x18] sm:$0xf] %v2740
  %2869 = vst [vmem:[%s5 + $0x1c] sm:$0xf] %v2741
  %2870 = vst [vmem:[%s5 + $0x20] sm:$0xf] %v2742
  %2871 = vst [vmem:[%s5 + $0x24] sm:$0xf] %v2743
  %2872 = vst [vmem:[%s5 + $0x28] sm:$0xf] %v2744
  %2873 = vst [vmem:[%s5 + $0x2c] sm:$0xf] %v2745
  %2874 = vst [vmem:[%s5 + $0x30] sm:$0xf] %v2746
  %2875 = vst [vmem:[%s5 + $0x34] sm:$0xf] %v2747
  %2876 = vst [vmem:[%s5 + $0x38] sm:$0xf] %v2748
  %2877 = vst [vmem:[%s5 + $0x3c] sm:$0xf] %v2749
  %2878 = vst [vmem:[%s5 + $0x40] sm:$0xf] %v2750
  %2879 = vst [vmem:[%s5 + $0x44] sm:$0xf] %v2751
  %2880 = vst [vmem:[%s5 + $0x48] sm:$0xf] %v2752
  %2881 = vst [vmem:[%s5 + $0x4c] sm:$0xf] %v2753
  %2882 = vst [vmem:[%s5 + $0x50] sm:$0xf] %v2754
  %2883 = vst [vmem:[%s5 + $0x54] sm:$0xf] %v2755
  %2884 = vst [vmem:[%s5 + $0x58] sm:$0xf] %v2756
  %2885 = vst [vmem:[%s5 + $0x5c] sm:$0xf] %v2757
  %2886 = vst [vmem:[%s5 + $0x60] sm:$0xf] %v2758
  %2887 = vst [vmem:[%s5 + $0x64] sm:$0xf] %v2759
  %2888 = vst [vmem:[%s5 + $0x68] sm:$0xf] %v2760
  %2889 = vst [vmem:[%s5 + $0x6c] sm:$0xf] %v2761
  %2890 = vst [vmem:[%s5 + $0x70] sm:$0xf] %v2762
  %2891 = vst [vmem:[%s5 + $0x74] sm:$0xf] %v2763
  %2892 = vst [vmem:[%s5 + $0x78] sm:$0xf] %v2764
  %2893 = vst [vmem:[%s5 + $0x7c] sm:$0xf] %v2765
  %2894 = vst [vmem:[%s5 + $0x80] sm:$0xf] %v2766
  %2895 = vst [vmem:[%s5 + $0x84] sm:$0xf] %v2767
  %2896 = vst [vmem:[%s5 + $0x88] sm:$0xf] %v2768
  %2897 = vst [vmem:[%s5 + $0x8c] sm:$0xf] %v2769
  %2898 = vst [vmem:[%s5 + $0x90] sm:$0xf] %v2770
  %2899 = vst [vmem:[%s5 + $0x94] sm:$0xf] %v2771
  %2900 = vst [vmem:[%s5 + $0x98] sm:$0xf] %v2772
  %2901 = vst [vmem:[%s5 + $0x9c] sm:$0xf] %v2773
  %2902 = vst [vmem:[%s5 + $0xa0] sm:$0xf] %v2774
  %2903 = vst [vmem:[%s5 + $0xa4] sm:$0xf] %v2775
  %2904 = vst [vmem:[%s5 + $0xa8] sm:$0xf] %v2776
  %2905 = vst [vmem:[%s5 + $0xac] sm:$0xf] %v2777
  %2906 = vst [vmem:[%s5 + $0xb0] sm:$0xf] %v2778
  %2907 = vst [vmem:[%s5 + $0xb4] sm:$0xf] %v2779
  %2908 = vst [vmem:[%s5 + $0xb8] sm:$0xf] %v2780
  %2909 = vst [vmem:[%s5 + $0xbc] sm:$0xf] %v2781
  %2910 = vst [vmem:[%s5 + $0xc0] sm:$0xf] %v2782
  %2911 = vst [vmem:[%s5 + $0xc4] sm:$0xf] %v2783
  %2912 = vst [vmem:[%s5 + $0xc8] sm:$0xf] %v2784
  %2913 = vst [vmem:[%s5 + $0xcc] sm:$0xf] %v2785
  %2914 = vst [vmem:[%s5 + $0xd0] sm:$0xf] %v2786
  %2915 = vst [vmem:[%s5 + $0xd4] sm:$0xf] %v2787
  %2916 = vst [vmem:[%s5 + $0xd8] sm:$0xf] %v2788
  %2917 = vst [vmem:[%s5 + $0xdc] sm:$0xf] %v2789
  %2918 = vst [vmem:[%s5 + $0xe0] sm:$0xf] %v2790
  %2919 = vst [vmem:[%s5 + $0xe4] sm:$0xf] %v2791
  %2920 = vst [vmem:[%s5 + $0xe8] sm:$0xf] %v2792
  %2921 = vst [vmem:[%s5 + $0xec] sm:$0xf] %v2793
  %2922 = vst [vmem:[%s5 + $0xf0] sm:$0xf] %v2794
  %2923 = vst [vmem:[%s5 + $0xf4] sm:$0xf] %v2795
  %2924 = vst [vmem:[%s5 + $0xf8] sm:$0xf] %v2796
  %2925 = vst [vmem:[%s5 + $0xfc] sm:$0xf] %v2797
  // Predicated region
  $region22: #{_lambda_.5} parent=0 // pred_check
    _
  $region23: #{_lambda_.5} parent=0 // pred_check_branch
    %2927 = sbr.rel (0) target = $region25
  $region24: #{_lambda_.5} parent=0 // pred_region
    _
  $region25: #{_lambda_.5} parent=0 // pred_fallthru
    _
  // Predicated region
  $region26: #{_lambda_.5} parent=0 // pred_check
    _
  $region27: #{_lambda_.5} parent=0 // pred_check_branch
    %2929 = sbr.rel (0) target = $region29
  $region28: #{_lambda_.5} parent=0 // pred_region
    _
  $region29: #{_lambda_.5} parent=0 // pred_fallthru
    _

// kernel: _lambda_.8
$region0: #{_lambda_.8}
  #allocation0 [shape = 'u32[]', space=smem, size = 0x4, offset = 0x4, fixed_abs, tag = 'smem constant byte address 0x4 - core index']
  #allocation1 [shape = 'u32[144,128]{1,0:T(1,128)}', space=vmem, size = 0x12000, scoped, tag = 'internal scratch']
  %s0 = inlined_call_operand.vmem [shape: bf16[512,576], index: 0, kind: input, shape index: {}]
  %s1 = inlined_call_operand.vmem [shape: bf16[576,64], index: 1, kind: input, shape index: {}]
  %s2 = inlined_call_operand.vmem [shape: f32[1,64], index: 2, kind: input, shape index: {}]
  %s3 = inlined_call_operand.vmem [shape: f32[1,64], index: 3, kind: input, shape index: {}]
  %s4 = inlined_call_operand.vmem [shape: f32[1,64], index: 4, kind: input, shape index: {}]
  %s5 = inlined_call_operand.vmem [shape: bf16[512,64], index: 5, kind: output, shape index: {}]
  %s6 = sld [smem:[#allocation0]]
  $region30: #{_lambda_.8} parent=0
    _
  %s8 = ssub.s32 1, %s6
  %s9 = scalar_select 0, %s8, %s6
  // Predicated region
  $region2: #{_lambda_.8} parent=0 // pred_check
    _
  $region3: #{_lambda_.8} parent=0 // pred_check_branch
    %11 = sbr.rel (0) target = $region5
  $region4: #{_lambda_.8} parent=0 // pred_region
    _
  $region5: #{_lambda_.8} parent=0 // pred_fallthru
    _
  // Predicated region
  $region6: #{_lambda_.8} parent=0 // pred_check
    _
  $region7: #{_lambda_.8} parent=0 // pred_check_branch
    %13 = sbr.rel (0) target = $region9
  $region8: #{_lambda_.8} parent=0 // pred_region
    _
  $region9: #{_lambda_.8} parent=0 // pred_fallthru
    _
  // Predicated region
  $region10: #{_lambda_.8} parent=0 // pred_check
    _
  $region11: #{_lambda_.8} parent=0 // pred_check_branch
    %15 = sbr.rel (0) target = $region13
  $region12: #{_lambda_.8} parent=0 // pred_region
    _
  $region13: #{_lambda_.8} parent=0 // pred_fallthru
    _
  // Predicated region
  $region14: #{_lambda_.8} parent=0 // pred_check
    _
  $region15: #{_lambda_.8} parent=0 // pred_check_branch
    %17 = sbr.rel (0) target = $region17
  $region16: #{_lambda_.8} parent=0 // pred_region
    _
  $region17: #{_lambda_.8} parent=0 // pred_fallthru
    _
  // Predicated region
  $region18: #{_lambda_.8} parent=0 // pred_check
    _
  $region19: #{_lambda_.8} parent=0 // pred_check_branch
    %19 = sbr.rel (0) target = $region21
  $region20: #{_lambda_.8} parent=0 // pred_region
    _
  $region21: #{_lambda_.8} parent=0 // pred_fallthru
    _
  %v21 = vld [vmem:[%s0] sm:$0xff]
  %v22 = vld [vmem:[%s0 + $0x8] sm:$0xff]
  %v23 = vld [vmem:[%s0 + $0x10] sm:$0xf]
  %v24 = vld [vmem:[%s0 + $0x14] sm:$0xff]
  %v25 = vld [vmem:[%s0 + $0x1c] sm:$0xff]
  %v26 = vld [vmem:[%s0 + $0x24] sm:$0xf]
  %v27 = vld [vmem:[%s0 + $0x28] sm:$0xff]
  %v28 = vld [vmem:[%s0 + $0x30] sm:$0xff]
  %v29 = vld [vmem:[%s0 + $0x38] sm:$0xf]
  %v30 = vld [vmem:[%s0 + $0x3c] sm:$0xff]
  %v31 = vld [vmem:[%s0 + $0x44] sm:$0xff]
  %v32 = vld [vmem:[%s0 + $0x4c] sm:$0xf]
  %v33 = vld [vmem:[%s0 + $0x50] sm:$0xff]
  %v34 = vld [vmem:[%s0 + $0x58] sm:$0xff]
  %v35 = vld [vmem:[%s0 + $0x60] sm:$0xf]
  %v36 = vld [vmem:[%s0 + $0x64] sm:$0xff]
  %v37 = vld [vmem:[%s0 + $0x6c] sm:$0xff]
  %v38 = vld [vmem:[%s0 + $0x74] sm:$0xf]
  %v39 = vld [vmem:[%s0 + $0x78] sm:$0xff]
  %v40 = vld [vmem:[%s0 + $0x80] sm:$0xff]
  %v41 = vld [vmem:[%s0 + $0x88] sm:$0xf]
  %v42 = vld [vmem:[%s0 + $0x8c] sm:$0xff]
  %v43 = vld [vmem:[%s0 + $0x94] sm:$0xff]
  %v44 = vld [vmem:[%s0 + $0x9c] sm:$0xf]
  %v45 = vld [vmem:[%s0 + $0xa0] sm:$0xff]
  %v46 = vld [vmem:[%s0 + $0xa8] sm:$0xff]
  %v47 = vld [vmem:[%s0 + $0xb0] sm:$0xf]
  %v48 = vld [vmem:[%s0 + $0xb4] sm:$0xff]
  %v49 = vld [vmem:[%s0 + $0xbc] sm:$0xff]
  %v50 = vld [vmem:[%s0 + $0xc4] sm:$0xf]
  %v51 = vld [vmem:[%s0 + $0xc8] sm:$0xff]
  %v52 = vld [vmem:[%s0 + $0xd0] sm:$0xff]
  %v53 = vld [vmem:[%s0 + $0xd8] sm:$0xf]
  %v54 = vld [vmem:[%s0 + $0xdc] sm:$0xff]
  %v55 = vld [vmem:[%s0 + $0xe4] sm:$0xff]
  %v56 = vld [vmem:[%s0 + $0xec] sm:$0xf]
  %v57 = vld [vmem:[%s0 + $0xf0] sm:$0xff]
  %v58 = vld [vmem:[%s0 + $0xf8] sm:$0xff]
  %v59 = vld [vmem:[%s0 + $0x100] sm:$0xf]
  %v60 = vld [vmem:[%s0 + $0x104] sm:$0xff]
  %v61 = vld [vmem:[%s0 + $0x10c] sm:$0xff]
  %v62 = vld [vmem:[%s0 + $0x114] sm:$0xf]
  %v63 = vld [vmem:[%s0 + $0x118] sm:$0xff]
  %v64 = vld [vmem:[%s0 + $0x120] sm:$0xff]
  %v65 = vld [vmem:[%s0 + $0x128] sm:$0xf]
  %v66 = vld [vmem:[%s0 + $0x12c] sm:$0xff]
  %v67 = vld [vmem:[%s0 + $0x134] sm:$0xff]
  %v68 = vld [vmem:[%s0 + $0x13c] sm:$0xf]
  %v69 = vld [vmem:[%s0 + $0x140] sm:$0xff]
  %v70 = vld [vmem:[%s0 + $0x148] sm:$0xff]
  %v71 = vld [vmem:[%s0 + $0x150] sm:$0xf]
  %v72 = vld [vmem:[%s0 + $0x154] sm:$0xff]
  %v73 = vld [vmem:[%s0 + $0x15c] sm:$0xff]
  %v74 = vld [vmem:[%s0 + $0x164] sm:$0xf]
  %v75 = vld [vmem:[%s0 + $0x168] sm:$0xff]
  %v76 = vld [vmem:[%s0 + $0x170] sm:$0xff]
  %v77 = vld [vmem:[%s0 + $0x178] sm:$0xf]
  %v78 = vld [vmem:[%s0 + $0x17c] sm:$0xff]
  %v79 = vld [vmem:[%s0 + $0x184] sm:$0xff]
  %v80 = vld [vmem:[%s0 + $0x18c] sm:$0xf]
  %v81 = vld [vmem:[%s0 + $0x190] sm:$0xff]
  %v82 = vld [vmem:[%s0 + $0x198] sm:$0xff]
  %v83 = vld [vmem:[%s0 + $0x1a0] sm:$0xf]
  %v84 = vld [vmem:[%s0 + $0x1a4] sm:$0xff]
  %v85 = vld [vmem:[%s0 + $0x1ac] sm:$0xff]
  %v86 = vld [vmem:[%s0 + $0x1b4] sm:$0xf]
  %v87 = vld [vmem:[%s0 + $0x1b8] sm:$0xff]
  %v88 = vld [vmem:[%s0 + $0x1c0] sm:$0xff]
  %v89 = vld [vmem:[%s0 + $0x1c8] sm:$0xf]
  %v90 = vld [vmem:[%s0 + $0x1cc] sm:$0xff]
  %v91 = vld [vmem:[%s0 + $0x1d4] sm:$0xff]
  %v92 = vld [vmem:[%s0 + $0x1dc] sm:$0xf]
  %v93 = vld [vmem:[%s0 + $0x1e0] sm:$0xff]
  %v94 = vld [vmem:[%s0 + $0x1e8] sm:$0xff]
  %v95 = vld [vmem:[%s0 + $0x1f0] sm:$0xf]
  %v96 = vld [vmem:[%s0 + $0x1f4] sm:$0xff]
  %v97 = vld [vmem:[%s0 + $0x1fc] sm:$0xff]
  %v98 = vld [vmem:[%s0 + $0x204] sm:$0xf]
  %v99 = vld [vmem:[%s0 + $0x208] sm:$0xff]
  %v100 = vld [vmem:[%s0 + $0x210] sm:$0xff]
  %v101 = vld [vmem:[%s0 + $0x218] sm:$0xf]
  %v102 = vld [vmem:[%s0 + $0x21c] sm:$0xff]
  %v103 = vld [vmem:[%s0 + $0x224] sm:$0xff]
  %v104 = vld [vmem:[%s0 + $0x22c] sm:$0xf]
  %v105 = vld [vmem:[%s0 + $0x230] sm:$0xff]
  %v106 = vld [vmem:[%s0 + $0x238] sm:$0xff]
  %v107 = vld [vmem:[%s0 + $0x240] sm:$0xf]
  %v108 = vld [vmem:[%s0 + $0x244] sm:$0xff]
  %v109 = vld [vmem:[%s0 + $0x24c] sm:$0xff]
  %v110 = vld [vmem:[%s0 + $0x254] sm:$0xf]
  %v111 = vld [vmem:[%s0 + $0x258] sm:$0xff]
  %v112 = vld [vmem:[%s0 + $0x260] sm:$0xff]
  %v113 = vld [vmem:[%s0 + $0x268] sm:$0xf]
  %v114 = vld [vmem:[%s0 + $0x26c] sm:$0xff]
  %v115 = vld [vmem:[%s0 + $0x274] sm:$0xff]
  %v116 = vld [vmem:[%s0 + $0x27c] sm:$0xf]
  %v117 = vld [vmem:[%s0 + $0x280] sm:$0xff]
  %v118 = vld [vmem:[%s0 + $0x288] sm:$0xff]
  %v119 = vld [vmem:[%s0 + $0x290] sm:$0xf]
  %v120 = vld [vmem:[%s0 + $0x294] sm:$0xff]
  %v121 = vld [vmem:[%s0 + $0x29c] sm:$0xff]
  %v122 = vld [vmem:[%s0 + $0x2a4] sm:$0xf]
  %v123 = vld [vmem:[%s0 + $0x2a8] sm:$0xff]
  %v124 = vld [vmem:[%s0 + $0x2b0] sm:$0xff]
  %v125 = vld [vmem:[%s0 + $0x2b8] sm:$0xf]
  %v126 = vld [vmem:[%s0 + $0x2bc] sm:$0xff]
  %v127 = vld [vmem:[%s0 + $0x2c4] sm:$0xff]
  %v128 = vld [vmem:[%s0 + $0x2cc] sm:$0xf]
  %v129 = vld [vmem:[%s0 + $0x2d0] sm:$0xff]
  %v130 = vld [vmem:[%s0 + $0x2d8] sm:$0xff]
  %v131 = vld [vmem:[%s0 + $0x2e0] sm:$0xf]
  %v132 = vld [vmem:[%s0 + $0x2e4] sm:$0xff]
  %v133 = vld [vmem:[%s0 + $0x2ec] sm:$0xff]
  %v134 = vld [vmem:[%s0 + $0x2f4] sm:$0xf]
  %v135 = vld [vmem:[%s0 + $0x2f8] sm:$0xff]
  %v136 = vld [vmem:[%s0 + $0x300] sm:$0xff]
  %v137 = vld [vmem:[%s0 + $0x308] sm:$0xf]
  %v138 = vld [vmem:[%s0 + $0x30c] sm:$0xff]
  %v139 = vld [vmem:[%s0 + $0x314] sm:$0xff]
  %v140 = vld [vmem:[%s0 + $0x31c] sm:$0xf]
  %v141 = vld [vmem:[%s0 + $0x320] sm:$0xff]
  %v142 = vld [vmem:[%s0 + $0x328] sm:$0xff]
  %v143 = vld [vmem:[%s0 + $0x330] sm:$0xf]
  %v144 = vld [vmem:[%s0 + $0x334] sm:$0xff]
  %v145 = vld [vmem:[%s0 + $0x33c] sm:$0xff]
  %v146 = vld [vmem:[%s0 + $0x344] sm:$0xf]
  %v147 = vld [vmem:[%s0 + $0x348] sm:$0xff]
  %v148 = vld [vmem:[%s0 + $0x350] sm:$0xff]
  %v149 = vld [vmem:[%s0 + $0x358] sm:$0xf]
  %v150 = vld [vmem:[%s0 + $0x35c] sm:$0xff]
  %v151 = vld [vmem:[%s0 + $0x364] sm:$0xff]
  %v152 = vld [vmem:[%s0 + $0x36c] sm:$0xf]
  %v153 = vld [vmem:[%s0 + $0x370] sm:$0xff]
  %v154 = vld [vmem:[%s0 + $0x378] sm:$0xff]
  %v155 = vld [vmem:[%s0 + $0x380] sm:$0xf]
  %v156 = vld [vmem:[%s0 + $0x384] sm:$0xff]
  %v157 = vld [vmem:[%s0 + $0x38c] sm:$0xff]
  %v158 = vld [vmem:[%s0 + $0x394] sm:$0xf]
  %v159 = vld [vmem:[%s0 + $0x398] sm:$0xff]
  %v160 = vld [vmem:[%s0 + $0x3a0] sm:$0xff]
  %v161 = vld [vmem:[%s0 + $0x3a8] sm:$0xf]
  %v162 = vld [vmem:[%s0 + $0x3ac] sm:$0xff]
  %v163 = vld [vmem:[%s0 + $0x3b4] sm:$0xff]
  %v164 = vld [vmem:[%s0 + $0x3bc] sm:$0xf]
  %v165 = vld [vmem:[%s0 + $0x3c0] sm:$0xff]
  %v166 = vld [vmem:[%s0 + $0x3c8] sm:$0xff]
  %v167 = vld [vmem:[%s0 + $0x3d0] sm:$0xf]
  %v168 = vld [vmem:[%s0 + $0x3d4] sm:$0xff]
  %v169 = vld [vmem:[%s0 + $0x3dc] sm:$0xff]
  %v170 = vld [vmem:[%s0 + $0x3e4] sm:$0xf]
  %v171 = vld [vmem:[%s0 + $0x3e8] sm:$0xff]
  %v172 = vld [vmem:[%s0 + $0x3f0] sm:$0xff]
  %v173 = vld [vmem:[%s0 + $0x3f8] sm:$0xf]
  %v174 = vld [vmem:[%s0 + $0x3fc] sm:$0xff]
  %v175 = vld [vmem:[%s0 + $0x404] sm:$0xff]
  %v176 = vld [vmem:[%s0 + $0x40c] sm:$0xf]
  %v177 = vld [vmem:[%s0 + $0x410] sm:$0xff]
  %v178 = vld [vmem:[%s0 + $0x418] sm:$0xff]
  %v179 = vld [vmem:[%s0 + $0x420] sm:$0xf]
  %v180 = vld [vmem:[%s0 + $0x424] sm:$0xff]
  %v181 = vld [vmem:[%s0 + $0x42c] sm:$0xff]
  %v182 = vld [vmem:[%s0 + $0x434] sm:$0xf]
  %v183 = vld [vmem:[%s0 + $0x438] sm:$0xff]
  %v184 = vld [vmem:[%s0 + $0x440] sm:$0xff]
  %v185 = vld [vmem:[%s0 + $0x448] sm:$0xf]
  %v186 = vld [vmem:[%s0 + $0x44c] sm:$0xff]
  %v187 = vld [vmem:[%s0 + $0x454] sm:$0xff]
  %v188 = vld [vmem:[%s0 + $0x45c] sm:$0xf]
  %v189 = vld [vmem:[%s0 + $0x460] sm:$0xff]
  %v190 = vld [vmem:[%s0 + $0x468] sm:$0xff]
  %v191 = vld [vmem:[%s0 + $0x470] sm:$0xf]
  %v192 = vld [vmem:[%s0 + $0x474] sm:$0xff]
  %v193 = vld [vmem:[%s0 + $0x47c] sm:$0xff]
  %v194 = vld [vmem:[%s0 + $0x484] sm:$0xf]
  %v195 = vld [vmem:[%s0 + $0x488] sm:$0xff]
  %v196 = vld [vmem:[%s0 + $0x490] sm:$0xff]
  %v197 = vld [vmem:[%s0 + $0x498] sm:$0xf]
  %v198 = vld [vmem:[%s0 + $0x49c] sm:$0xff]
  %v199 = vld [vmem:[%s0 + $0x4a4] sm:$0xff]
  %v200 = vld [vmem:[%s0 + $0x4ac] sm:$0xf]
  %v201 = vld [vmem:[%s0 + $0x4b0] sm:$0xff]
  %v202 = vld [vmem:[%s0 + $0x4b8] sm:$0xff]
  %v203 = vld [vmem:[%s0 + $0x4c0] sm:$0xf]
  %v204 = vld [vmem:[%s0 + $0x4c4] sm:$0xff]
  %v205 = vld [vmem:[%s0 + $0x4cc] sm:$0xff]
  %v206 = vld [vmem:[%s0 + $0x4d4] sm:$0xf]
  %v207 = vld [vmem:[%s0 + $0x4d8] sm:$0xff]
  %v208 = vld [vmem:[%s0 + $0x4e0] sm:$0xff]
  %v209 = vld [vmem:[%s0 + $0x4e8] sm:$0xf]
  %v210 = vld [vmem:[%s0 + $0x4ec] sm:$0xff]
  %v211 = vld [vmem:[%s0 + $0x4f4] sm:$0xff]
  %v212 = vld [vmem:[%s0 + $0x4fc] sm:$0xf]
  %v213 = vld [vmem:[%s1] sm:$0xf]
  %v214 = vld [vmem:[%s1 + $0x4] sm:$0xf]
  %v215 = vld [vmem:[%s1 + $0x8] sm:$0xf]
  %v216 = vld [vmem:[%s1 + $0xc] sm:$0xf]
  %v217 = vld [vmem:[%s1 + $0x10] sm:$0xf]
  %v218 = vld [vmem:[%s1 + $0x14] sm:$0xf]
  %v219 = vld [vmem:[%s1 + $0x18] sm:$0xf]
  %v220 = vld [vmem:[%s1 + $0x1c] sm:$0xf]
  %v221 = vld [vmem:[%s1 + $0x20] sm:$0xf]
  %v222 = vld [vmem:[%s1 + $0x24] sm:$0xf]
  %v223 = vld [vmem:[%s1 + $0x28] sm:$0xf]
  %v224 = vld [vmem:[%s1 + $0x2c] sm:$0xf]
  %v225 = vld [vmem:[%s1 + $0x30] sm:$0xf]
  %v226 = vld [vmem:[%s1 + $0x34] sm:$0xf]
  %v227 = vld [vmem:[%s1 + $0x38] sm:$0xf]
  %v228 = vld [vmem:[%s1 + $0x3c] sm:$0xf]
  %v229 = vld [vmem:[%s1 + $0x40] sm:$0xf]
  %v230 = vld [vmem:[%s1 + $0x44] sm:$0xf]
  %v231 = vld [vmem:[%s1 + $0x48] sm:$0xf]
  %v232 = vld [vmem:[%s1 + $0x4c] sm:$0xf]
  %v233 = vld [vmem:[%s1 + $0x50] sm:$0xf]
  %v234 = vld [vmem:[%s1 + $0x54] sm:$0xf]
  %v235 = vld [vmem:[%s1 + $0x58] sm:$0xf]
  %v236 = vld [vmem:[%s1 + $0x5c] sm:$0xf]
  %v237 = vld [vmem:[%s1 + $0x60] sm:$0xf]
  %v238 = vld [vmem:[%s1 + $0x64] sm:$0xf]
  %v239 = vld [vmem:[%s1 + $0x68] sm:$0xf]
  %v240 = vld [vmem:[%s1 + $0x6c] sm:$0xf]
  %v241 = vld [vmem:[%s1 + $0x70] sm:$0xf]
  %v242 = vld [vmem:[%s1 + $0x74] sm:$0xf]
  %v243 = vld [vmem:[%s1 + $0x78] sm:$0xf]
  %v244 = vld [vmem:[%s1 + $0x7c] sm:$0xf]
  %v245 = vld [vmem:[%s1 + $0x80] sm:$0xf]
  %v246 = vld [vmem:[%s1 + $0x84] sm:$0xf]
  %v247 = vld [vmem:[%s1 + $0x88] sm:$0xf]
  %v248 = vld [vmem:[%s1 + $0x8c] sm:$0xf]
  %v249 = vld [vmem:[%s1 + $0x90] sm:$0xf]
  %v250 = vld [vmem:[%s1 + $0x94] sm:$0xf]
  %v251 = vld [vmem:[%s1 + $0x98] sm:$0xf]
  %v252 = vld [vmem:[%s1 + $0x9c] sm:$0xf]
  %v253 = vld [vmem:[%s1 + $0xa0] sm:$0xf]
  %v254 = vld [vmem:[%s1 + $0xa4] sm:$0xf]
  %v255 = vld [vmem:[%s1 + $0xa8] sm:$0xf]
  %v256 = vld [vmem:[%s1 + $0xac] sm:$0xf]
  %v257 = vld [vmem:[%s1 + $0xb0] sm:$0xf]
  %v258 = vld [vmem:[%s1 + $0xb4] sm:$0xf]
  %v259 = vld [vmem:[%s1 + $0xb8] sm:$0xf]
  %v260 = vld [vmem:[%s1 + $0xbc] sm:$0xf]
  %v261 = vld [vmem:[%s1 + $0xc0] sm:$0xf]
  %v262 = vld [vmem:[%s1 + $0xc4] sm:$0xf]
  %v263 = vld [vmem:[%s1 + $0xc8] sm:$0xf]
  %v264 = vld [vmem:[%s1 + $0xcc] sm:$0xf]
  %v265 = vld [vmem:[%s1 + $0xd0] sm:$0xf]
  %v266 = vld [vmem:[%s1 + $0xd4] sm:$0xf]
  %v267 = vld [vmem:[%s1 + $0xd8] sm:$0xf]
  %v268 = vld [vmem:[%s1 + $0xdc] sm:$0xf]
  %v269 = vld [vmem:[%s1 + $0xe0] sm:$0xf]
  %v270 = vld [vmem:[%s1 + $0xe4] sm:$0xf]
  %v271 = vld [vmem:[%s1 + $0xe8] sm:$0xf]
  %v272 = vld [vmem:[%s1 + $0xec] sm:$0xf]
  %v273 = vld [vmem:[%s1 + $0xf0] sm:$0xf]
  %v274 = vld [vmem:[%s1 + $0xf4] sm:$0xf]
  %v275 = vld [vmem:[%s1 + $0xf8] sm:$0xf]
  %v276 = vld [vmem:[%s1 + $0xfc] sm:$0xf]
  %v277 = vld [vmem:[%s1 + $0x100] sm:$0xf]
  %v278 = vld [vmem:[%s1 + $0x104] sm:$0xf]
  %v279 = vld [vmem:[%s1 + $0x108] sm:$0xf]
  %v280 = vld [vmem:[%s1 + $0x10c] sm:$0xf]
  %v281 = vld [vmem:[%s1 + $0x110] sm:$0xf]
  %v282 = vld [vmem:[%s1 + $0x114] sm:$0xf]
  %v283 = vld [vmem:[%s1 + $0x118] sm:$0xf]
  %v284 = vld [vmem:[%s1 + $0x11c] sm:$0xf]
  %v477 = vunpack.c.l.b16 %v21
  %v478 = vunpack.c.h.b16 %v21
  %v479 = vunpack.c.l.b16 %v22
  %v480 = vunpack.c.h.b16 %v22
  %v481 = vunpack.c.l.b16 %v23
  %v482 = vunpack.c.l.b16 %v24
  %v483 = vunpack.c.h.b16 %v24
  %v484 = vunpack.c.l.b16 %v25
  %v485 = vunpack.c.h.b16 %v25
  %v486 = vunpack.c.l.b16 %v26
  %v487 = vunpack.c.l.b16 %v27
  %v488 = vunpack.c.h.b16 %v27
  %v489 = vunpack.c.l.b16 %v28
  %v490 = vunpack.c.h.b16 %v28
  %v491 = vunpack.c.l.b16 %v29
  %v492 = vunpack.c.l.b16 %v30
  %v493 = vunpack.c.h.b16 %v30
  %v494 = vunpack.c.l.b16 %v31
  %v495 = vunpack.c.h.b16 %v31
  %v496 = vunpack.c.l.b16 %v32
  %v497 = vunpack.c.l.b16 %v33
  %v498 = vunpack.c.h.b16 %v33
  %v499 = vunpack.c.l.b16 %v34
  %v500 = vunpack.c.h.b16 %v34
  %v501 = vunpack.c.l.b16 %v35
  %v502 = vunpack.c.l.b16 %v36
  %v503 = vunpack.c.h.b16 %v36
  %v504 = vunpack.c.l.b16 %v37
  %v505 = vunpack.c.h.b16 %v37
  %v506 = vunpack.c.l.b16 %v38
  %v507 = vunpack.c.l.b16 %v39
  %v508 = vunpack.c.h.b16 %v39
  %v509 = vunpack.c.l.b16 %v40
  %v510 = vunpack.c.h.b16 %v40
  %v511 = vunpack.c.l.b16 %v41
  %v512 = vunpack.c.l.b16 %v42
  %v513 = vunpack.c.h.b16 %v42
  %v514 = vunpack.c.l.b16 %v43
  %v515 = vunpack.c.h.b16 %v43
  %v516 = vunpack.c.l.b16 %v44
  %v517 = vunpack.c.l.b16 %v45
  %v518 = vunpack.c.h.b16 %v45
  %v519 = vunpack.c.l.b16 %v46
  %v520 = vunpack.c.h.b16 %v46
  %v521 = vunpack.c.l.b16 %v47
  %v522 = vunpack.c.l.b16 %v48
  %v523 = vunpack.c.h.b16 %v48
  %v524 = vunpack.c.l.b16 %v49
  %v525 = vunpack.c.h.b16 %v49
  %v526 = vunpack.c.l.b16 %v50
  %v527 = vunpack.c.l.b16 %v51
  %v528 = vunpack.c.h.b16 %v51
  %v529 = vunpack.c.l.b16 %v52
  %v530 = vunpack.c.h.b16 %v52
  %v531 = vunpack.c.l.b16 %v53
  %v532 = vunpack.c.l.b16 %v54
  %v533 = vunpack.c.h.b16 %v54
  %v534 = vunpack.c.l.b16 %v55
  %v535 = vunpack.c.h.b16 %v55
  %v536 = vunpack.c.l.b16 %v56
  %v537 = vunpack.c.l.b16 %v57
  %v538 = vunpack.c.h.b16 %v57
  %v539 = vunpack.c.l.b16 %v58
  %v540 = vunpack.c.h.b16 %v58
  %v541 = vunpack.c.l.b16 %v59
  %v542 = vunpack.c.l.b16 %v60
  %v543 = vunpack.c.h.b16 %v60
  %v544 = vunpack.c.l.b16 %v61
  %v545 = vunpack.c.h.b16 %v61
  %v546 = vunpack.c.l.b16 %v62
  %v547 = vunpack.c.l.b16 %v63
  %v548 = vunpack.c.h.b16 %v63
  %v549 = vunpack.c.l.b16 %v64
  %v550 = vunpack.c.h.b16 %v64
  %v551 = vunpack.c.l.b16 %v65
  %v552 = vunpack.c.l.b16 %v66
  %v553 = vunpack.c.h.b16 %v66
  %v554 = vunpack.c.l.b16 %v67
  %v555 = vunpack.c.h.b16 %v67
  %v556 = vunpack.c.l.b16 %v68
  %v557 = vunpack.c.l.b16 %v69
  %v558 = vunpack.c.h.b16 %v69
  %v559 = vunpack.c.l.b16 %v70
  %v560 = vunpack.c.h.b16 %v70
  %v561 = vunpack.c.l.b16 %v71
  %v562 = vunpack.c.l.b16 %v72
  %v563 = vunpack.c.h.b16 %v72
  %v564 = vunpack.c.l.b16 %v73
  %v565 = vunpack.c.h.b16 %v73
  %v566 = vunpack.c.l.b16 %v74
  %v567 = vunpack.c.l.b16 %v75
  %v568 = vunpack.c.h.b16 %v75
  %v569 = vunpack.c.l.b16 %v76
  %v570 = vunpack.c.h.b16 %v76
  %v571 = vunpack.c.l.b16 %v77
  %v572 = vunpack.c.l.b16 %v78
  %v573 = vunpack.c.h.b16 %v78
  %v574 = vunpack.c.l.b16 %v79
  %v575 = vunpack.c.h.b16 %v79
  %v576 = vunpack.c.l.b16 %v80
  %v577 = vunpack.c.l.b16 %v81
  %v578 = vunpack.c.h.b16 %v81
  %v579 = vunpack.c.l.b16 %v82
  %v580 = vunpack.c.h.b16 %v82
  %v581 = vunpack.c.l.b16 %v83
  %v582 = vunpack.c.l.b16 %v84
  %v583 = vunpack.c.h.b16 %v84
  %v584 = vunpack.c.l.b16 %v85
  %v585 = vunpack.c.h.b16 %v85
  %v586 = vunpack.c.l.b16 %v86
  %v587 = vunpack.c.l.b16 %v87
  %v588 = vunpack.c.h.b16 %v87
  %v589 = vunpack.c.l.b16 %v88
  %v590 = vunpack.c.h.b16 %v88
  %v591 = vunpack.c.l.b16 %v89
  %v592 = vunpack.c.l.b16 %v90
  %v593 = vunpack.c.h.b16 %v90
  %v594 = vunpack.c.l.b16 %v91
  %v595 = vunpack.c.h.b16 %v91
  %v596 = vunpack.c.l.b16 %v92
  %v597 = vunpack.c.l.b16 %v93
  %v598 = vunpack.c.h.b16 %v93
  %v599 = vunpack.c.l.b16 %v94
  %v600 = vunpack.c.h.b16 %v94
  %v601 = vunpack.c.l.b16 %v95
  %v602 = vunpack.c.l.b16 %v96
  %v603 = vunpack.c.h.b16 %v96
  %v604 = vunpack.c.l.b16 %v97
  %v605 = vunpack.c.h.b16 %v97
  %v606 = vunpack.c.l.b16 %v98
  %v607 = vunpack.c.l.b16 %v99
  %v608 = vunpack.c.h.b16 %v99
  %v609 = vunpack.c.l.b16 %v100
  %v610 = vunpack.c.h.b16 %v100
  %v611 = vunpack.c.l.b16 %v101
  %v612 = vunpack.c.l.b16 %v102
  %v613 = vunpack.c.h.b16 %v102
  %v614 = vunpack.c.l.b16 %v103
  %v615 = vunpack.c.h.b16 %v103
  %v616 = vunpack.c.l.b16 %v104
  %v617 = vunpack.c.l.b16 %v105
  %v618 = vunpack.c.h.b16 %v105
  %v619 = vunpack.c.l.b16 %v106
  %v620 = vunpack.c.h.b16 %v106
  %v621 = vunpack.c.l.b16 %v107
  %v622 = vunpack.c.l.b16 %v108
  %v623 = vunpack.c.h.b16 %v108
  %v624 = vunpack.c.l.b16 %v109
  %v625 = vunpack.c.h.b16 %v109
  %v626 = vunpack.c.l.b16 %v110
  %v627 = vunpack.c.l.b16 %v111
  %v628 = vunpack.c.h.b16 %v111
  %v629 = vunpack.c.l.b16 %v112
  %v630 = vunpack.c.h.b16 %v112
  %v631 = vunpack.c.l.b16 %v113
  %v632 = vunpack.c.l.b16 %v114
  %v633 = vunpack.c.h.b16 %v114
  %v634 = vunpack.c.l.b16 %v115
  %v635 = vunpack.c.h.b16 %v115
  %v636 = vunpack.c.l.b16 %v116
  %v637 = vunpack.c.l.b16 %v117
  %v638 = vunpack.c.h.b16 %v117
  %v639 = vunpack.c.l.b16 %v118
  %v640 = vunpack.c.h.b16 %v118
  %v641 = vunpack.c.l.b16 %v119
  %v642 = vunpack.c.l.b16 %v120
  %v643 = vunpack.c.h.b16 %v120
  %v644 = vunpack.c.l.b16 %v121
  %v645 = vunpack.c.h.b16 %v121
  %v646 = vunpack.c.l.b16 %v122
  %v647 = vunpack.c.l.b16 %v123
  %v648 = vunpack.c.h.b16 %v123
  %v649 = vunpack.c.l.b16 %v124
  %v650 = vunpack.c.h.b16 %v124
  %v651 = vunpack.c.l.b16 %v125
  %v652 = vunpack.c.l.b16 %v126
  %v653 = vunpack.c.h.b16 %v126
  %v654 = vunpack.c.l.b16 %v127
  %v655 = vunpack.c.h.b16 %v127
  %v656 = vunpack.c.l.b16 %v128
  %v657 = vunpack.c.l.b16 %v129
  %v658 = vunpack.c.h.b16 %v129
  %v659 = vunpack.c.l.b16 %v130
  %v660 = vunpack.c.h.b16 %v130
  %v661 = vunpack.c.l.b16 %v131
  %v662 = vunpack.c.l.b16 %v132
  %v663 = vunpack.c.h.b16 %v132
  %v664 = vunpack.c.l.b16 %v133
  %v665 = vunpack.c.h.b16 %v133
  %v666 = vunpack.c.l.b16 %v134
  %v667 = vunpack.c.l.b16 %v135
  %v668 = vunpack.c.h.b16 %v135
  %v669 = vunpack.c.l.b16 %v136
  %v670 = vunpack.c.h.b16 %v136
  %v671 = vunpack.c.l.b16 %v137
  %v672 = vunpack.c.l.b16 %v138
  %v673 = vunpack.c.h.b16 %v138
  %v674 = vunpack.c.l.b16 %v139
  %v675 = vunpack.c.h.b16 %v139
  %v676 = vunpack.c.l.b16 %v140
  %v677 = vunpack.c.l.b16 %v141
  %v678 = vunpack.c.h.b16 %v141
  %v679 = vunpack.c.l.b16 %v142
  %v680 = vunpack.c.h.b16 %v142
  %v681 = vunpack.c.l.b16 %v143
  %v682 = vunpack.c.l.b16 %v144
  %v683 = vunpack.c.h.b16 %v144
  %v684 = vunpack.c.l.b16 %v145
  %v685 = vunpack.c.h.b16 %v145
  %v686 = vunpack.c.l.b16 %v146
  %v687 = vunpack.c.l.b16 %v147
  %v688 = vunpack.c.h.b16 %v147
  %v689 = vunpack.c.l.b16 %v148
  %v690 = vunpack.c.h.b16 %v148
  %v691 = vunpack.c.l.b16 %v149
  %v692 = vunpack.c.l.b16 %v150
  %v693 = vunpack.c.h.b16 %v150
  %v694 = vunpack.c.l.b16 %v151
  %v695 = vunpack.c.h.b16 %v151
  %v696 = vunpack.c.l.b16 %v152
  %v697 = vunpack.c.l.b16 %v153
  %v698 = vunpack.c.h.b16 %v153
  %v699 = vunpack.c.l.b16 %v154
  %v700 = vunpack.c.h.b16 %v154
  %v701 = vunpack.c.l.b16 %v155
  %v702 = vunpack.c.l.b16 %v156
  %v703 = vunpack.c.h.b16 %v156
  %v704 = vunpack.c.l.b16 %v157
  %v705 = vunpack.c.h.b16 %v157
  %v706 = vunpack.c.l.b16 %v158
  %v707 = vunpack.c.l.b16 %v159
  %v708 = vunpack.c.h.b16 %v159
  %v709 = vunpack.c.l.b16 %v160
  %v710 = vunpack.c.h.b16 %v160
  %v711 = vunpack.c.l.b16 %v161
  %v712 = vunpack.c.l.b16 %v162
  %v713 = vunpack.c.h.b16 %v162
  %v714 = vunpack.c.l.b16 %v163
  %v715 = vunpack.c.h.b16 %v163
  %v716 = vunpack.c.l.b16 %v164
  %v717 = vunpack.c.l.b16 %v165
  %v718 = vunpack.c.h.b16 %v165
  %v719 = vunpack.c.l.b16 %v166
  %v720 = vunpack.c.h.b16 %v166
  %v721 = vunpack.c.l.b16 %v167
  %v722 = vunpack.c.l.b16 %v168
  %v723 = vunpack.c.h.b16 %v168
  %v724 = vunpack.c.l.b16 %v169
  %v725 = vunpack.c.h.b16 %v169
  %v726 = vunpack.c.l.b16 %v170
  %v727 = vunpack.c.l.b16 %v171
  %v728 = vunpack.c.h.b16 %v171
  %v729 = vunpack.c.l.b16 %v172
  %v730 = vunpack.c.h.b16 %v172
  %v731 = vunpack.c.l.b16 %v173
  %v732 = vunpack.c.l.b16 %v174
  %v733 = vunpack.c.h.b16 %v174
  %v734 = vunpack.c.l.b16 %v175
  %v735 = vunpack.c.h.b16 %v175
  %v736 = vunpack.c.l.b16 %v176
  %v737 = vunpack.c.l.b16 %v177
  %v738 = vunpack.c.h.b16 %v177
  %v739 = vunpack.c.l.b16 %v178
  %v740 = vunpack.c.h.b16 %v178
  %v741 = vunpack.c.l.b16 %v179
  %v742 = vunpack.c.l.b16 %v180
  %v743 = vunpack.c.h.b16 %v180
  %v744 = vunpack.c.l.b16 %v181
  %v745 = vunpack.c.h.b16 %v181
  %v746 = vunpack.c.l.b16 %v182
  %v747 = vunpack.c.l.b16 %v183
  %v748 = vunpack.c.h.b16 %v183
  %v749 = vunpack.c.l.b16 %v184
  %v750 = vunpack.c.h.b16 %v184
  %v751 = vunpack.c.l.b16 %v185
  %v752 = vunpack.c.l.b16 %v186
  %v753 = vunpack.c.h.b16 %v186
  %v754 = vunpack.c.l.b16 %v187
  %v755 = vunpack.c.h.b16 %v187
  %v756 = vunpack.c.l.b16 %v188
  %v757 = vunpack.c.l.b16 %v189
  %v758 = vunpack.c.h.b16 %v189
  %v759 = vunpack.c.l.b16 %v190
  %v760 = vunpack.c.h.b16 %v190
  %v761 = vunpack.c.l.b16 %v191
  %v762 = vunpack.c.l.b16 %v192
  %v763 = vunpack.c.h.b16 %v192
  %v764 = vunpack.c.l.b16 %v193
  %v765 = vunpack.c.h.b16 %v193
  %v766 = vunpack.c.l.b16 %v194
  %v767 = vunpack.c.l.b16 %v195
  %v768 = vunpack.c.h.b16 %v195
  %v769 = vunpack.c.l.b16 %v196
  %v770 = vunpack.c.h.b16 %v196
  %v771 = vunpack.c.l.b16 %v197
  %v772 = vunpack.c.l.b16 %v198
  %v773 = vunpack.c.h.b16 %v198
  %v774 = vunpack.c.l.b16 %v199
  %v775 = vunpack.c.h.b16 %v199
  %v776 = vunpack.c.l.b16 %v200
  %v777 = vunpack.c.l.b16 %v201
  %v778 = vunpack.c.h.b16 %v201
  %v779 = vunpack.c.l.b16 %v202
  %v780 = vunpack.c.h.b16 %v202
  %v781 = vunpack.c.l.b16 %v203
  %v782 = vunpack.c.l.b16 %v204
  %v783 = vunpack.c.h.b16 %v204
  %v784 = vunpack.c.l.b16 %v205
  %v785 = vunpack.c.h.b16 %v205
  %v786 = vunpack.c.l.b16 %v206
  %v787 = vunpack.c.l.b16 %v207
  %v788 = vunpack.c.h.b16 %v207
  %v789 = vunpack.c.l.b16 %v208
  %v790 = vunpack.c.h.b16 %v208
  %v791 = vunpack.c.l.b16 %v209
  %v792 = vunpack.c.l.b16 %v210
  %v793 = vunpack.c.h.b16 %v210
  %v794 = vunpack.c.l.b16 %v211
  %v795 = vunpack.c.h.b16 %v211
  %v796 = vunpack.c.l.b16 %v212
  %v797 = vpack.c.b16 %v482, %v477
  %v798 = vpack.c.b16 %v483, %v478
  %v799 = vpack.c.b16 %v484, %v479
  %v800 = vpack.c.b16 %v485, %v480
  %v801 = vpack.c.b16 %v486, %v481
  %v802 = vpack.c.b16 %v492, %v487
  %v803 = vpack.c.b16 %v493, %v488
  %v804 = vpack.c.b16 %v494, %v489
  %v805 = vpack.c.b16 %v495, %v490
  %v806 = vpack.c.b16 %v496, %v491
  %v807 = vpack.c.b16 %v502, %v497
  %v808 = vpack.c.b16 %v503, %v498
  %v809 = vpack.c.b16 %v504, %v499
  %v810 = vpack.c.b16 %v505, %v500
  %v811 = vpack.c.b16 %v506, %v501
  %v812 = vpack.c.b16 %v512, %v507
  %v813 = vpack.c.b16 %v513, %v508
  %v814 = vpack.c.b16 %v514, %v509
  %v815 = vpack.c.b16 %v515, %v510
  %v816 = vpack.c.b16 %v516, %v511
  %v817 = vpack.c.b16 %v522, %v517
  %v818 = vpack.c.b16 %v523, %v518
  %v819 = vpack.c.b16 %v524, %v519
  %v820 = vpack.c.b16 %v525, %v520
  %v821 = vpack.c.b16 %v526, %v521
  %v822 = vpack.c.b16 %v532, %v527
  %v823 = vpack.c.b16 %v533, %v528
  %v824 = vpack.c.b16 %v534, %v529
  %v825 = vpack.c.b16 %v535, %v530
  %v826 = vpack.c.b16 %v536, %v531
  %v827 = vpack.c.b16 %v542, %v537
  %v828 = vpack.c.b16 %v543, %v538
  %v829 = vpack.c.b16 %v544, %v539
  %v830 = vpack.c.b16 %v545, %v540
  %v831 = vpack.c.b16 %v546, %v541
  %v832 = vpack.c.b16 %v552, %v547
  %v833 = vpack.c.b16 %v553, %v548
  %v834 = vpack.c.b16 %v554, %v549
  %v835 = vpack.c.b16 %v555, %v550
  %v836 = vpack.c.b16 %v556, %v551
  %v837 = vpack.c.b16 %v562, %v557
  %v838 = vpack.c.b16 %v563, %v558
  %v839 = vpack.c.b16 %v564, %v559
  %v840 = vpack.c.b16 %v565, %v560
  %v841 = vpack.c.b16 %v566, %v561
  %v842 = vpack.c.b16 %v572, %v567
  %v843 = vpack.c.b16 %v573, %v568
  %v844 = vpack.c.b16 %v574, %v569
  %v845 = vpack.c.b16 %v575, %v570
  %v846 = vpack.c.b16 %v576, %v571
  %v847 = vpack.c.b16 %v582, %v577
  %v848 = vpack.c.b16 %v583, %v578
  %v849 = vpack.c.b16 %v584, %v579
  %v850 = vpack.c.b16 %v585, %v580
  %v851 = vpack.c.b16 %v586, %v581
  %v852 = vpack.c.b16 %v592, %v587
  %v853 = vpack.c.b16 %v593, %v588
  %v854 = vpack.c.b16 %v594, %v589
  %v855 = vpack.c.b16 %v595, %v590
  %v856 = vpack.c.b16 %v596, %v591
  %v857 = vpack.c.b16 %v602, %v597
  %v858 = vpack.c.b16 %v603, %v598
  %v859 = vpack.c.b16 %v604, %v599
  %v860 = vpack.c.b16 %v605, %v600
  %v861 = vpack.c.b16 %v606, %v601
  %v862 = vpack.c.b16 %v612, %v607
  %v863 = vpack.c.b16 %v613, %v608
  %v864 = vpack.c.b16 %v614, %v609
  %v865 = vpack.c.b16 %v615, %v610
  %v866 = vpack.c.b16 %v616, %v611
  %v867 = vpack.c.b16 %v622, %v617
  %v868 = vpack.c.b16 %v623, %v618
  %v869 = vpack.c.b16 %v624, %v619
  %v870 = vpack.c.b16 %v625, %v620
  %v871 = vpack.c.b16 %v626, %v621
  %v872 = vpack.c.b16 %v632, %v627
  %v873 = vpack.c.b16 %v633, %v628
  %v874 = vpack.c.b16 %v634, %v629
  %v875 = vpack.c.b16 %v635, %v630
  %v876 = vpack.c.b16 %v636, %v631
  %v877 = vpack.c.b16 %v642, %v637
  %v878 = vpack.c.b16 %v643, %v638
  %v879 = vpack.c.b16 %v644, %v639
  %v880 = vpack.c.b16 %v645, %v640
  %v881 = vpack.c.b16 %v646, %v641
  %v882 = vpack.c.b16 %v652, %v647
  %v883 = vpack.c.b16 %v653, %v648
  %v884 = vpack.c.b16 %v654, %v649
  %v885 = vpack.c.b16 %v655, %v650
  %v886 = vpack.c.b16 %v656, %v651
  %v887 = vpack.c.b16 %v662, %v657
  %v888 = vpack.c.b16 %v663, %v658
  %v889 = vpack.c.b16 %v664, %v659
  %v890 = vpack.c.b16 %v665, %v660
  %v891 = vpack.c.b16 %v666, %v661
  %v892 = vpack.c.b16 %v672, %v667
  %v893 = vpack.c.b16 %v673, %v668
  %v894 = vpack.c.b16 %v674, %v669
  %v895 = vpack.c.b16 %v675, %v670
  %v896 = vpack.c.b16 %v676, %v671
  %v897 = vpack.c.b16 %v682, %v677
  %v898 = vpack.c.b16 %v683, %v678
  %v899 = vpack.c.b16 %v684, %v679
  %v900 = vpack.c.b16 %v685, %v680
  %v901 = vpack.c.b16 %v686, %v681
  %v902 = vpack.c.b16 %v692, %v687
  %v903 = vpack.c.b16 %v693, %v688
  %v904 = vpack.c.b16 %v694, %v689
  %v905 = vpack.c.b16 %v695, %v690
  %v906 = vpack.c.b16 %v696, %v691
  %v907 = vpack.c.b16 %v702, %v697
  %v908 = vpack.c.b16 %v703, %v698
  %v909 = vpack.c.b16 %v704, %v699
  %v910 = vpack.c.b16 %v705, %v700
  %v911 = vpack.c.b16 %v706, %v701
  %v912 = vpack.c.b16 %v712, %v707
  %v913 = vpack.c.b16 %v713, %v708
  %v914 = vpack.c.b16 %v714, %v709
  %v915 = vpack.c.b16 %v715, %v710
  %v916 = vpack.c.b16 %v716, %v711
  %v917 = vpack.c.b16 %v722, %v717
  %v918 = vpack.c.b16 %v723, %v718
  %v919 = vpack.c.b16 %v724, %v719
  %v920 = vpack.c.b16 %v725, %v720
  %v921 = vpack.c.b16 %v726, %v721
  %v922 = vpack.c.b16 %v732, %v727
  %v923 = vpack.c.b16 %v733, %v728
  %v924 = vpack.c.b16 %v734, %v729
  %v925 = vpack.c.b16 %v735, %v730
  %v926 = vpack.c.b16 %v736, %v731
  %v927 = vpack.c.b16 %v742, %v737
  %v928 = vpack.c.b16 %v743, %v738
  %v929 = vpack.c.b16 %v744, %v739
  %v930 = vpack.c.b16 %v745, %v740
  %v931 = vpack.c.b16 %v746, %v741
  %v932 = vpack.c.b16 %v752, %v747
  %v933 = vpack.c.b16 %v753, %v748
  %v934 = vpack.c.b16 %v754, %v749
  %v935 = vpack.c.b16 %v755, %v750
  %v936 = vpack.c.b16 %v756, %v751
  %v937 = vpack.c.b16 %v762, %v757
  %v938 = vpack.c.b16 %v763, %v758
  %v939 = vpack.c.b16 %v764, %v759
  %v940 = vpack.c.b16 %v765, %v760
  %v941 = vpack.c.b16 %v766, %v761
  %v942 = vpack.c.b16 %v772, %v767
  %v943 = vpack.c.b16 %v773, %v768
  %v944 = vpack.c.b16 %v774, %v769
  %v945 = vpack.c.b16 %v775, %v770
  %v946 = vpack.c.b16 %v776, %v771
  %v947 = vpack.c.b16 %v782, %v777
  %v948 = vpack.c.b16 %v783, %v778
  %v949 = vpack.c.b16 %v784, %v779
  %v950 = vpack.c.b16 %v785, %v780
  %v951 = vpack.c.b16 %v786, %v781
  %v952 = vpack.c.b16 %v792, %v787
  %v953 = vpack.c.b16 %v793, %v788
  %v954 = vpack.c.b16 %v794, %v789
  %v955 = vpack.c.b16 %v795, %v790
  %v956 = vpack.c.b16 %v796, %v791
  %v1157 = vunpack.c.l.b16 %v213
  %v1158 = vunpack.c.l.b16 %v214
  %v1159 = vunpack.c.l.b16 %v215
  %v1160 = vunpack.c.l.b16 %v216
  %v1161 = vunpack.c.l.b16 %v217
  %v1162 = vunpack.c.l.b16 %v218
  %v1163 = vunpack.c.l.b16 %v219
  %v1164 = vunpack.c.l.b16 %v220
  %v1165 = vunpack.c.l.b16 %v221
  %v1166 = vunpack.c.l.b16 %v222
  %v1167 = vunpack.c.l.b16 %v223
  %v1168 = vunpack.c.l.b16 %v224
  %v1169 = vunpack.c.l.b16 %v225
  %v1170 = vunpack.c.l.b16 %v226
  %v1171 = vunpack.c.l.b16 %v227
  %v1172 = vunpack.c.l.b16 %v228
  %v1173 = vunpack.c.l.b16 %v229
  %v1174 = vunpack.c.l.b16 %v230
  %v1175 = vunpack.c.l.b16 %v231
  %v1176 = vunpack.c.l.b16 %v232
  %v1177 = vunpack.c.l.b16 %v233
  %v1178 = vunpack.c.l.b16 %v234
  %v1179 = vunpack.c.l.b16 %v235
  %v1180 = vunpack.c.l.b16 %v236
  %v1181 = vunpack.c.l.b16 %v237
  %v1182 = vunpack.c.l.b16 %v238
  %v1183 = vunpack.c.l.b16 %v239
  %v1184 = vunpack.c.l.b16 %v240
  %v1185 = vunpack.c.l.b16 %v241
  %v1186 = vunpack.c.l.b16 %v242
  %v1187 = vunpack.c.l.b16 %v243
  %v1188 = vunpack.c.l.b16 %v244
  %v1189 = vunpack.c.l.b16 %v245
  %v1190 = vunpack.c.l.b16 %v246
  %v1191 = vunpack.c.l.b16 %v247
  %v1192 = vunpack.c.l.b16 %v248
  %v1193 = vunpack.c.l.b16 %v249
  %v1194 = vunpack.c.l.b16 %v250
  %v1195 = vunpack.c.l.b16 %v251
  %v1196 = vunpack.c.l.b16 %v252
  %v1197 = vunpack.c.l.b16 %v253
  %v1198 = vunpack.c.l.b16 %v254
  %v1199 = vunpack.c.l.b16 %v255
  %v1200 = vunpack.c.l.b16 %v256
  %v1201 = vunpack.c.l.b16 %v257
  %v1202 = vunpack.c.l.b16 %v258
  %v1203 = vunpack.c.l.b16 %v259
  %v1204 = vunpack.c.l.b16 %v260
  %v1205 = vunpack.c.l.b16 %v261
  %v1206 = vunpack.c.l.b16 %v262
  %v1207 = vunpack.c.l.b16 %v263
  %v1208 = vunpack.c.l.b16 %v264
  %v1209 = vunpack.c.l.b16 %v265
  %v1210 = vunpack.c.l.b16 %v266
  %v1211 = vunpack.c.l.b16 %v267
  %v1212 = vunpack.c.l.b16 %v268
  %v1213 = vunpack.c.l.b16 %v269
  %v1214 = vunpack.c.l.b16 %v270
  %v1215 = vunpack.c.l.b16 %v271
  %v1216 = vunpack.c.l.b16 %v272
  %v1217 = vunpack.c.l.b16 %v273
  %v1218 = vunpack.c.l.b16 %v274
  %v1219 = vunpack.c.l.b16 %v275
  %v1220 = vunpack.c.l.b16 %v276
  %v1221 = vunpack.c.l.b16 %v277
  %v1222 = vunpack.c.l.b16 %v278
  %v1223 = vunpack.c.l.b16 %v279
  %v1224 = vunpack.c.l.b16 %v280
  %v1225 = vunpack.c.l.b16 %v281
  %v1226 = vunpack.c.l.b16 %v282
  %v1227 = vunpack.c.l.b16 %v283
  %v1228 = vunpack.c.l.b16 %v284
  %v1229 = vpack.c.b16 %v1158, %v1157
  %v1230 = vpack.c.b16 %v1160, %v1159
  %v1231 = vpack.c.b16 %v1162, %v1161
  %v1232 = vpack.c.b16 %v1164, %v1163
  %v1233 = vpack.c.b16 %v1166, %v1165
  %v1234 = vpack.c.b16 %v1168, %v1167
  %v1235 = vpack.c.b16 %v1170, %v1169
  %v1236 = vpack.c.b16 %v1172, %v1171
  %v1237 = vpack.c.b16 %v1174, %v1173
  %v1238 = vpack.c.b16 %v1176, %v1175
  %v1239 = vpack.c.b16 %v1178, %v1177
  %v1240 = vpack.c.b16 %v1180, %v1179
  %v1241 = vpack.c.b16 %v1182, %v1181
  %v1242 = vpack.c.b16 %v1184, %v1183
  %v1243 = vpack.c.b16 %v1186, %v1185
  %v1244 = vpack.c.b16 %v1188, %v1187
  %v1245 = vpack.c.b16 %v1190, %v1189
  %v1246 = vpack.c.b16 %v1192, %v1191
  %v1247 = vpack.c.b16 %v1194, %v1193
  %v1248 = vpack.c.b16 %v1196, %v1195
  %v1249 = vpack.c.b16 %v1198, %v1197
  %v1250 = vpack.c.b16 %v1200, %v1199
  %v1251 = vpack.c.b16 %v1202, %v1201
  %v1252 = vpack.c.b16 %v1204, %v1203
  %v1253 = vpack.c.b16 %v1206, %v1205
  %v1254 = vpack.c.b16 %v1208, %v1207
  %v1255 = vpack.c.b16 %v1210, %v1209
  %v1256 = vpack.c.b16 %v1212, %v1211
  %v1257 = vpack.c.b16 %v1214, %v1213
  %v1258 = vpack.c.b16 %v1216, %v1215
  %v1259 = vpack.c.b16 %v1218, %v1217
  %v1260 = vpack.c.b16 %v1220, %v1219
  %v1261 = vpack.c.b16 %v1222, %v1221
  %v1262 = vpack.c.b16 %v1224, %v1223
  %v1263 = vpack.c.b16 %v1226, %v1225
  %v1264 = vpack.c.b16 %v1228, %v1227
  %vm1301 = vcmask 523264
  %v1303 = vsel %vm1301, %v801, 0
  %v1306 = vsel %vm1301, %v806, 0
  %v1309 = vsel %vm1301, %v811, 0
  %v1312 = vsel %vm1301, %v816, 0
  %v1315 = vsel %vm1301, %v821, 0
  %v1318 = vsel %vm1301, %v826, 0
  %v1321 = vsel %vm1301, %v831, 0
  %v1324 = vsel %vm1301, %v836, 0
  %v1327 = vsel %vm1301, %v841, 0
  %v1330 = vsel %vm1301, %v846, 0
  %v1333 = vsel %vm1301, %v851, 0
  %v1336 = vsel %vm1301, %v856, 0
  %v1339 = vsel %vm1301, %v861, 0
  %v1342 = vsel %vm1301, %v866, 0
  %v1345 = vsel %vm1301, %v871, 0
  %v1348 = vsel %vm1301, %v876, 0
  %v1351 = vsel %vm1301, %v881, 0
  %v1354 = vsel %vm1301, %v886, 0
  %v1357 = vsel %vm1301, %v891, 0
  %v1360 = vsel %vm1301, %v896, 0
  %v1363 = vsel %vm1301, %v901, 0
  %v1366 = vsel %vm1301, %v906, 0
  %v1369 = vsel %vm1301, %v911, 0
  %v1372 = vsel %vm1301, %v916, 0
  %v1375 = vsel %vm1301, %v921, 0
  %v1378 = vsel %vm1301, %v926, 0
  %v1381 = vsel %vm1301, %v931, 0
  %v1384 = vsel %vm1301, %v936, 0
  %v1387 = vsel %vm1301, %v941, 0
  %v1390 = vsel %vm1301, %v946, 0
  %v1393 = vsel %vm1301, %v951, 0
  %v1396 = vsel %vm1301, %v956, 0
  %1398 = vmatprep.subr.bf16.mxu0 0
  %1399 = vmatpush1.bf16.msra.mxu0 %v1229
  %1400 = vmatprep.subr.bf16.mxu0 0
  %1401 = vmatpush1.bf16.msra.mxu0 %v1230
  %1402 = vmatprep.subr.bf16.mxu0 0
  %1403 = vmatpush1.bf16.msra.mxu0 %v1231
  %1404 = vmatprep.subr.bf16.mxu0 0
  %1405 = vmatpush1.bf16.msra.mxu0 %v1232
  %1406 = vmatprep.subr.bf16.mxu0 0
  %1407 = vmatpush1.bf16.msra.mxu0 %v1233
  %1408 = vmatprep.subr.bf16.mxu0 0
  %1409 = vmatpush1.bf16.msra.mxu0 %v1234
  %1410 = vmatprep.subr.bf16.mxu0 0
  %1411 = vmatpush1.bf16.msra.mxu0 %v1235
  %1412 = vmatprep.subr.bf16.mxu0 0
  %1413 = vmatpush1.bf16.msra.mxu0 %v1236
  %1414 = vmatprep.subr.bf16.mxu0 0
  %1415 = vmatpush1.bf16.msra.mxu0 %v1237
  %1416 = vmatprep.subr.bf16.mxu0 0
  %1417 = vmatpush1.bf16.msra.mxu0 %v1238
  %1418 = vmatprep.subr.bf16.mxu0 0
  %1419 = vmatpush1.bf16.msra.mxu0 %v1239
  %1420 = vmatprep.subr.bf16.mxu0 0
  %1421 = vmatpush1.bf16.msra.mxu0 %v1240
  %1422 = vmatprep.subr.bf16.mxu0 0
  %1423 = vmatpush1.bf16.msra.mxu0 %v1241
  %1424 = vmatprep.subr.bf16.mxu0 0
  %1425 = vmatpush1.bf16.msra.mxu0 %v1242
  %1426 = vmatprep.subr.bf16.mxu0 0
  %1427 = vmatpush1.bf16.msra.mxu0 %v1243
  %1428 = vmatprep.subr.bf16.mxu0 0
  %1429 = vmatpush1.bf16.msra.mxu0 %v1244
  %1430 = vmatprep.mubr.bf16.mxu0 %v798
  %1431 = vmatmul.mubr.bf16.gmra.mrb[0].mxu0 %v797
  %v1432 = vpop.f32.mrb[0].mxu0
  %v1433 = vadd.f32 0.0, %v1432
  %v1434 = vpop.f32.mrb[0].mxu0
  %v1435 = vpop.f32.mrb[0].mxu0
  %v1436 = vadd.f32 0.0, %v1435
  %v1437 = vpop.f32.mrb[0].mxu0
  %1438 = vmatprep.mubr.bf16.mxu0 %v803
  %1439 = vmatmul.mubr.bf16.gmra.mrb[0].mxu0 %v802
  %v1440 = vpop.f32.mrb[0].mxu0
  %v1441 = vadd.f32 0.0, %v1440
  %v1442 = vpop.f32.mrb[0].mxu0
  %v1443 = vpop.f32.mrb[0].mxu0
  %v1444 = vadd.f32 0.0, %v1443
  %v1445 = vpop.f32.mrb[0].mxu0
  %1446 = vmatprep.mubr.bf16.mxu0 %v808
  %1447 = vmatmul.mubr.bf16.gmra.mrb[0].mxu0 %v807
  %v1448 = vpop.f32.mrb[0].mxu0
  %v1449 = vadd.f32 0.0, %v1448
  %v1450 = vpop.f32.mrb[0].mxu0
  %v1451 = vpop.f32.mrb[0].mxu0
  %v1452 = vadd.f32 0.0, %v1451
  %v1453 = vpop.f32.mrb[0].mxu0
  %1454 = vmatprep.mubr.bf16.mxu0 %v813
  %1455 = vmatmul.mubr.bf16.gmra.mrb[0].mxu0 %v812
  %v1456 = vpop.f32.mrb[0].mxu0
  %v1457 = vadd.f32 0.0, %v1456
  %v1458 = vpop.f32.mrb[0].mxu0
  %v1459 = vpop.f32.mrb[0].mxu0
  %v1460 = vadd.f32 0.0, %v1459
  %v1461 = vpop.f32.mrb[0].mxu0
  %1462 = vmatprep.mubr.bf16.mxu0 %v818
  %1463 = vmatmul.mubr.bf16.gmra.mrb[0].mxu0 %v817
  %v1464 = vpop.f32.mrb[0].mxu0
  %v1465 = vadd.f32 0.0, %v1464
  %v1466 = vpop.f32.mrb[0].mxu0
  %v1467 = vpop.f32.mrb[0].mxu0
  %v1468 = vadd.f32 0.0, %v1467
  %v1469 = vpop.f32.mrb[0].mxu0
  %1470 = vmatprep.mubr.bf16.mxu0 %v823
  %1471 = vmatmul.mubr.bf16.gmra.mrb[0].mxu0 %v822
  %v1472 = vpop.f32.mrb[0].mxu0
  %v1473 = vadd.f32 0.0, %v1472
  %v1474 = vpop.f32.mrb[0].mxu0
  %v1475 = vpop.f32.mrb[0].mxu0
  %v1476 = vadd.f32 0.0, %v1475
  %v1477 = vpop.f32.mrb[0].mxu0
  %1478 = vmatprep.mubr.bf16.mxu0 %v828
  %1479 = vmatmul.mubr.bf16.gmra.mrb[0].mxu0 %v827
  %v1480 = vpop.f32.mrb[0].mxu0
  %v1481 = vadd.f32 0.0, %v1480
  %v1482 = vpop.f32.mrb[0].mxu0
  %v1483 = vpop.f32.mrb[0].mxu0
  %v1484 = vadd.f32 0.0, %v1483
  %v1485 = vpop.f32.mrb[0].mxu0
  %1486 = vmatprep.mubr.bf16.mxu0 %v833
  %1487 = vmatmul.mubr.bf16.gmra.mrb[0].mxu0 %v832
  %v1488 = vpop.f32.mrb[0].mxu0
  %v1489 = vadd.f32 0.0, %v1488
  %v1490 = vpop.f32.mrb[0].mxu0
  %v1491 = vpop.f32.mrb[0].mxu0
  %v1492 = vadd.f32 0.0, %v1491
  %v1493 = vpop.f32.mrb[0].mxu0
  %1494 = vmatprep.mubr.bf16.mxu0 %v838
  %1495 = vmatmul.mubr.bf16.gmra.mrb[0].mxu0 %v837
  %v1496 = vpop.f32.mrb[0].mxu0
  %v1497 = vadd.f32 0.0, %v1496
  %v1498 = vpop.f32.mrb[0].mxu0
  %v1499 = vpop.f32.mrb[0].mxu0
  %v1500 = vadd.f32 0.0, %v1499
  %v1501 = vpop.f32.mrb[0].mxu0
  %1502 = vmatprep.mubr.bf16.mxu0 %v843
  %1503 = vmatmul.mubr.bf16.gmra.mrb[0].mxu0 %v842
  %v1504 = vpop.f32.mrb[0].mxu0
  %v1505 = vadd.f32 0.0, %v1504
  %v1506 = vpop.f32.mrb[0].mxu0
  %v1507 = vpop.f32.mrb[0].mxu0
  %v1508 = vadd.f32 0.0, %v1507
  %v1509 = vpop.f32.mrb[0].mxu0
  %1510 = vmatprep.mubr.bf16.mxu0 %v848
  %1511 = vmatmul.mubr.bf16.gmra.mrb[0].mxu0 %v847
  %v1512 = vpop.f32.mrb[0].mxu0
  %v1513 = vadd.f32 0.0, %v1512
  %v1514 = vpop.f32.mrb[0].mxu0
  %v1515 = vpop.f32.mrb[0].mxu0
  %v1516 = vadd.f32 0.0, %v1515
  %v1517 = vpop.f32.mrb[0].mxu0
  %1518 = vmatprep.mubr.bf16.mxu0 %v853
  %1519 = vmatmul.mubr.bf16.gmra.mrb[0].mxu0 %v852
  %v1520 = vpop.f32.mrb[0].mxu0
  %v1521 = vadd.f32 0.0, %v1520
  %v1522 = vpop.f32.mrb[0].mxu0
  %v1523 = vpop.f32.mrb[0].mxu0
  %v1524 = vadd.f32 0.0, %v1523
  %v1525 = vpop.f32.mrb[0].mxu0
  %1526 = vmatprep.mubr.bf16.mxu0 %v858
  %1527 = vmatmul.mubr.bf16.gmra.mrb[0].mxu0 %v857
  %v1528 = vpop.f32.mrb[0].mxu0
  %v1529 = vadd.f32 0.0, %v1528
  %v1530 = vpop.f32.mrb[0].mxu0
  %v1531 = vpop.f32.mrb[0].mxu0
  %v1532 = vadd.f32 0.0, %v1531
  %v1533 = vpop.f32.mrb[0].mxu0
  %1534 = vmatprep.mubr.bf16.mxu0 %v863
  %1535 = vmatmul.mubr.bf16.gmra.mrb[0].mxu0 %v862
  %v1536 = vpop.f32.mrb[0].mxu0
  %v1537 = vadd.f32 0.0, %v1536
  %v1538 = vpop.f32.mrb[0].mxu0
  %v1539 = vpop.f32.mrb[0].mxu0
  %v1540 = vadd.f32 0.0, %v1539
  %v1541 = vpop.f32.mrb[0].mxu0
  %1542 = vmatprep.mubr.bf16.mxu0 %v868
  %1543 = vmatmul.mubr.bf16.gmra.mrb[0].mxu0 %v867
  %v1544 = vpop.f32.mrb[0].mxu0
  %v1545 = vadd.f32 0.0, %v1544
  %v1546 = vpop.f32.mrb[0].mxu0
  %v1547 = vpop.f32.mrb[0].mxu0
  %v1548 = vadd.f32 0.0, %v1547
  %v1549 = vpop.f32.mrb[0].mxu0
  %1550 = vmatprep.mubr.bf16.mxu0 %v873
  %1551 = vmatmul.mubr.bf16.gmra.mrb[0].mxu0 %v872
  %v1552 = vpop.f32.mrb[0].mxu0
  %v1553 = vadd.f32 0.0, %v1552
  %v1554 = vpop.f32.mrb[0].mxu0
  %v1555 = vpop.f32.mrb[0].mxu0
  %v1556 = vadd.f32 0.0, %v1555
  %v1557 = vpop.f32.mrb[0].mxu0
  %1558 = vmatprep.mubr.bf16.mxu0 %v878
  %1559 = vmatmul.mubr.bf16.gmra.mrb[0].mxu0 %v877
  %v1560 = vpop.f32.mrb[0].mxu0
  %v1561 = vadd.f32 0.0, %v1560
  %v1562 = vpop.f32.mrb[0].mxu0
  %v1563 = vpop.f32.mrb[0].mxu0
  %v1564 = vadd.f32 0.0, %v1563
  %v1565 = vpop.f32.mrb[0].mxu0
  %1566 = vmatprep.mubr.bf16.mxu0 %v883
  %1567 = vmatmul.mubr.bf16.gmra.mrb[0].mxu0 %v882
  %v1568 = vpop.f32.mrb[0].mxu0
  %v1569 = vadd.f32 0.0, %v1568
  %v1570 = vpop.f32.mrb[0].mxu0
  %v1571 = vpop.f32.mrb[0].mxu0
  %v1572 = vadd.f32 0.0, %v1571
  %v1573 = vpop.f32.mrb[0].mxu0
  %1574 = vmatprep.mubr.bf16.mxu0 %v888
  %1575 = vmatmul.mubr.bf16.gmra.mrb[0].mxu0 %v887
  %v1576 = vpop.f32.mrb[0].mxu0
  %v1577 = vadd.f32 0.0, %v1576
  %v1578 = vpop.f32.mrb[0].mxu0
  %v1579 = vpop.f32.mrb[0].mxu0
  %v1580 = vadd.f32 0.0, %v1579
  %v1581 = vpop.f32.mrb[0].mxu0
  %1582 = vmatprep.mubr.bf16.mxu0 %v893
  %1583 = vmatmul.mubr.bf16.gmra.mrb[0].mxu0 %v892
  %v1584 = vpop.f32.mrb[0].mxu0
  %v1585 = vadd.f32 0.0, %v1584
  %v1586 = vpop.f32.mrb[0].mxu0
  %v1587 = vpop.f32.mrb[0].mxu0
  %v1588 = vadd.f32 0.0, %v1587
  %v1589 = vpop.f32.mrb[0].mxu0
  %1590 = vmatprep.mubr.bf16.mxu0 %v898
  %1591 = vmatmul.mubr.bf16.gmra.mrb[0].mxu0 %v897
  %v1592 = vpop.f32.mrb[0].mxu0
  %v1593 = vadd.f32 0.0, %v1592
  %v1594 = vpop.f32.mrb[0].mxu0
  %v1595 = vpop.f32.mrb[0].mxu0
  %v1596 = vadd.f32 0.0, %v1595
  %v1597 = vpop.f32.mrb[0].mxu0
  %1598 = vmatprep.mubr.bf16.mxu0 %v903
  %1599 = vmatmul.mubr.bf16.gmra.mrb[0].mxu0 %v902
  %v1600 = vpop.f32.mrb[0].mxu0
  %v1601 = vadd.f32 0.0, %v1600
  %v1602 = vpop.f32.mrb[0].mxu0
  %v1603 = vpop.f32.mrb[0].mxu0
  %v1604 = vadd.f32 0.0, %v1603
  %v1605 = vpop.f32.mrb[0].mxu0
  %1606 = vmatprep.mubr.bf16.mxu0 %v908
  %1607 = vmatmul.mubr.bf16.gmra.mrb[0].mxu0 %v907
  %v1608 = vpop.f32.mrb[0].mxu0
  %v1609 = vadd.f32 0.0, %v1608
  %v1610 = vpop.f32.mrb[0].mxu0
  %v1611 = vpop.f32.mrb[0].mxu0
  %v1612 = vadd.f32 0.0, %v1611
  %v1613 = vpop.f32.mrb[0].mxu0
  %1614 = vmatprep.mubr.bf16.mxu0 %v913
  %1615 = vmatmul.mubr.bf16.gmra.mrb[0].mxu0 %v912
  %v1616 = vpop.f32.mrb[0].mxu0
  %v1617 = vadd.f32 0.0, %v1616
  %v1618 = vpop.f32.mrb[0].mxu0
  %v1619 = vpop.f32.mrb[0].mxu0
  %v1620 = vadd.f32 0.0, %v1619
  %v1621 = vpop.f32.mrb[0].mxu0
  %1622 = vmatprep.mubr.bf16.mxu0 %v918
  %1623 = vmatmul.mubr.bf16.gmra.mrb[0].mxu0 %v917
  %v1624 = vpop.f32.mrb[0].mxu0
  %v1625 = vadd.f32 0.0, %v1624
  %v1626 = vpop.f32.mrb[0].mxu0
  %v1627 = vpop.f32.mrb[0].mxu0
  %v1628 = vadd.f32 0.0, %v1627
  %v1629 = vpop.f32.mrb[0].mxu0
  %1630 = vmatprep.mubr.bf16.mxu0 %v923
  %1631 = vmatmul.mubr.bf16.gmra.mrb[0].mxu0 %v922
  %v1632 = vpop.f32.mrb[0].mxu0
  %v1633 = vadd.f32 0.0, %v1632
  %v1634 = vpop.f32.mrb[0].mxu0
  %v1635 = vpop.f32.mrb[0].mxu0
  %v1636 = vadd.f32 0.0, %v1635
  %v1637 = vpop.f32.mrb[0].mxu0
  %1638 = vmatprep.mubr.bf16.mxu0 %v928
  %1639 = vmatmul.mubr.bf16.gmra.mrb[0].mxu0 %v927
  %v1640 = vpop.f32.mrb[0].mxu0
  %v1641 = vadd.f32 0.0, %v1640
  %v1642 = vpop.f32.mrb[0].mxu0
  %v1643 = vpop.f32.mrb[0].mxu0
  %v1644 = vadd.f32 0.0, %v1643
  %v1645 = vpop.f32.mrb[0].mxu0
  %1646 = vmatprep.mubr.bf16.mxu0 %v933
  %1647 = vmatmul.mubr.bf16.gmra.mrb[0].mxu0 %v932
  %v1648 = vpop.f32.mrb[0].mxu0
  %v1649 = vadd.f32 0.0, %v1648
  %v1650 = vpop.f32.mrb[0].mxu0
  %v1651 = vpop.f32.mrb[0].mxu0
  %v1652 = vadd.f32 0.0, %v1651
  %v1653 = vpop.f32.mrb[0].mxu0
  %1654 = vmatprep.mubr.bf16.mxu0 %v938
  %1655 = vmatmul.mubr.bf16.gmra.mrb[0].mxu0 %v937
  %v1656 = vpop.f32.mrb[0].mxu0
  %v1657 = vadd.f32 0.0, %v1656
  %v1658 = vpop.f32.mrb[0].mxu0
  %v1659 = vpop.f32.mrb[0].mxu0
  %v1660 = vadd.f32 0.0, %v1659
  %v1661 = vpop.f32.mrb[0].mxu0
  %1662 = vmatprep.mubr.bf16.mxu0 %v943
  %1663 = vmatmul.mubr.bf16.gmra.mrb[0].mxu0 %v942
  %v1664 = vpop.f32.mrb[0].mxu0
  %v1665 = vadd.f32 0.0, %v1664
  %v1666 = vpop.f32.mrb[0].mxu0
  %v1667 = vpop.f32.mrb[0].mxu0
  %v1668 = vadd.f32 0.0, %v1667
  %v1669 = vpop.f32.mrb[0].mxu0
  %1670 = vmatprep.mubr.bf16.mxu0 %v948
  %1671 = vmatmul.mubr.bf16.gmra.mrb[0].mxu0 %v947
  %v1672 = vpop.f32.mrb[0].mxu0
  %v1673 = vadd.f32 0.0, %v1672
  %v1674 = vpop.f32.mrb[0].mxu0
  %v1675 = vpop.f32.mrb[0].mxu0
  %v1676 = vadd.f32 0.0, %v1675
  %v1677 = vpop.f32.mrb[0].mxu0
  %1678 = vmatprep.mubr.bf16.mxu0 %v953
  %1679 = vmatmul.mubr.bf16.gmra.mrb[0].mxu0 %v952
  %v1680 = vpop.f32.mrb[0].mxu0
  %v1681 = vadd.f32 0.0, %v1680
  %v1682 = vpop.f32.mrb[0].mxu0
  %v1683 = vpop.f32.mrb[0].mxu0
  %v1684 = vadd.f32 0.0, %v1683
  %v1685 = vpop.f32.mrb[0].mxu0
  %1686 = vdwg.mxu0
  %1687 = vmatprep.subr.bf16.mxu0 0
  %1688 = vmatpush1.bf16.msra.mxu0 %v1245
  %1689 = vmatprep.subr.bf16.mxu0 0
  %1690 = vmatpush1.bf16.msra.mxu0 %v1246
  %1691 = vmatprep.subr.bf16.mxu0 0
  %1692 = vmatpush1.bf16.msra.mxu0 %v1247
  %1693 = vmatprep.subr.bf16.mxu0 0
  %1694 = vmatpush1.bf16.msra.mxu0 %v1248
  %1695 = vmatprep.subr.bf16.mxu0 0
  %1696 = vmatpush1.bf16.msra.mxu0 %v1249
  %1697 = vmatprep.subr.bf16.mxu0 0
  %1698 = vmatpush1.bf16.msra.mxu0 %v1250
  %1699 = vmatprep.subr.bf16.mxu0 0
  %1700 = vmatpush1.bf16.msra.mxu0 %v1251
  %1701 = vmatprep.subr.bf16.mxu0 0
  %1702 = vmatpush1.bf16.msra.mxu0 %v1252
  %1703 = vmatprep.subr.bf16.mxu0 0
  %1704 = vmatpush1.bf16.msra.mxu0 %v1253
  %1705 = vmatprep.subr.bf16.mxu0 0
  %1706 = vmatpush1.bf16.msra.mxu0 %v1254
  %1707 = vmatprep.subr.bf16.mxu0 0
  %1708 = vmatpush1.bf16.msra.mxu0 %v1255
  %1709 = vmatprep.subr.bf16.mxu0 0
  %1710 = vmatpush1.bf16.msra.mxu0 %v1256
  %1711 = vmatprep.subr.bf16.mxu0 0
  %1712 = vmatpush1.bf16.msra.mxu0 %v1257
  %1713 = vmatprep.subr.bf16.mxu0 0
  %1714 = vmatpush1.bf16.msra.mxu0 %v1258
  %1715 = vmatprep.subr.bf16.mxu0 0
  %1716 = vmatpush1.bf16.msra.mxu0 %v1259
  %1717 = vmatprep.subr.bf16.mxu0 0
  %1718 = vmatpush1.bf16.msra.mxu0 %v1260
  %1719 = vmatprep.mubr.bf16.mxu0 %v800
  %1720 = vmatmul.mubr.bf16.gmra.mrb[0].mxu0 %v799
  %v1721 = vpop.f32.mrb[0].mxu0
  %v1722 = vadd.f32 %v1433, %v1721
  %v1723 = vpop.f32.mrb[0].mxu0
  %v1724 = vpop.f32.mrb[0].mxu0
  %v1725 = vadd.f32 %v1436, %v1724
  %v1726 = vpop.f32.mrb[0].mxu0
  %1727 = vmatprep.mubr.bf16.mxu0 %v805
  %1728 = vmatmul.mubr.bf16.gmra.mrb[0].mxu0 %v804
  %v1729 = vpop.f32.mrb[0].mxu0
  %v1730 = vadd.f32 %v1441, %v1729
  %v1731 = vpop.f32.mrb[0].mxu0
  %v1732 = vpop.f32.mrb[0].mxu0
  %v1733 = vadd.f32 %v1444, %v1732
  %v1734 = vpop.f32.mrb[0].mxu0
  %1735 = vmatprep.mubr.bf16.mxu0 %v810
  %1736 = vmatmul.mubr.bf16.gmra.mrb[0].mxu0 %v809
  %v1737 = vpop.f32.mrb[0].mxu0
  %v1738 = vadd.f32 %v1449, %v1737
  %v1739 = vpop.f32.mrb[0].mxu0
  %v1740 = vpop.f32.mrb[0].mxu0
  %v1741 = vadd.f32 %v1452, %v1740
  %v1742 = vpop.f32.mrb[0].mxu0
  %1743 = vmatprep.mubr.bf16.mxu0 %v815
  %1744 = vmatmul.mubr.bf16.gmra.mrb[0].mxu0 %v814
  %v1745 = vpop.f32.mrb[0].mxu0
  %v1746 = vadd.f32 %v1457, %v1745
  %v1747 = vpop.f32.mrb[0].mxu0
  %v1748 = vpop.f32.mrb[0].mxu0
  %v1749 = vadd.f32 %v1460, %v1748
  %v1750 = vpop.f32.mrb[0].mxu0
  %1751 = vmatprep.mubr.bf16.mxu0 %v820
  %1752 = vmatmul.mubr.bf16.gmra.mrb[0].mxu0 %v819
  %v1753 = vpop.f32.mrb[0].mxu0
  %v1754 = vadd.f32 %v1465, %v1753
  %v1755 = vpop.f32.mrb[0].mxu0
  %v1756 = vpop.f32.mrb[0].mxu0
  %v1757 = vadd.f32 %v1468, %v1756
  %v1758 = vpop.f32.mrb[0].mxu0
  %1759 = vmatprep.mubr.bf16.mxu0 %v825
  %1760 = vmatmul.mubr.bf16.gmra.mrb[0].mxu0 %v824
  %v1761 = vpop.f32.mrb[0].mxu0
  %v1762 = vadd.f32 %v1473, %v1761
  %v1763 = vpop.f32.mrb[0].mxu0
  %v1764 = vpop.f32.mrb[0].mxu0
  %v1765 = vadd.f32 %v1476, %v1764
  %v1766 = vpop.f32.mrb[0].mxu0
  %1767 = vmatprep.mubr.bf16.mxu0 %v830
  %1768 = vmatmul.mubr.bf16.gmra.mrb[0].mxu0 %v829
  %v1769 = vpop.f32.mrb[0].mxu0
  %v1770 = vadd.f32 %v1481, %v1769
  %v1771 = vpop.f32.mrb[0].mxu0
  %v1772 = vpop.f32.mrb[0].mxu0
  %v1773 = vadd.f32 %v1484, %v1772
  %v1774 = vpop.f32.mrb[0].mxu0
  %1775 = vmatprep.mubr.bf16.mxu0 %v835
  %1776 = vmatmul.mubr.bf16.gmra.mrb[0].mxu0 %v834
  %v1777 = vpop.f32.mrb[0].mxu0
  %v1778 = vadd.f32 %v1489, %v1777
  %v1779 = vpop.f32.mrb[0].mxu0
  %v1780 = vpop.f32.mrb[0].mxu0
  %v1781 = vadd.f32 %v1492, %v1780
  %v1782 = vpop.f32.mrb[0].mxu0
  %1783 = vmatprep.mubr.bf16.mxu0 %v840
  %1784 = vmatmul.mubr.bf16.gmra.mrb[0].mxu0 %v839
  %v1785 = vpop.f32.mrb[0].mxu0
  %v1786 = vadd.f32 %v1497, %v1785
  %v1787 = vpop.f32.mrb[0].mxu0
  %v1788 = vpop.f32.mrb[0].mxu0
  %v1789 = vadd.f32 %v1500, %v1788
  %v1790 = vpop.f32.mrb[0].mxu0
  %1791 = vmatprep.mubr.bf16.mxu0 %v845
  %1792 = vmatmul.mubr.bf16.gmra.mrb[0].mxu0 %v844
  %v1793 = vpop.f32.mrb[0].mxu0
  %v1794 = vadd.f32 %v1505, %v1793
  %v1795 = vpop.f32.mrb[0].mxu0
  %v1796 = vpop.f32.mrb[0].mxu0
  %v1797 = vadd.f32 %v1508, %v1796
  %v1798 = vpop.f32.mrb[0].mxu0
  %1799 = vmatprep.mubr.bf16.mxu0 %v850
  %1800 = vmatmul.mubr.bf16.gmra.mrb[0].mxu0 %v849
  %v1801 = vpop.f32.mrb[0].mxu0
  %v1802 = vadd.f32 %v1513, %v1801
  %v1803 = vpop.f32.mrb[0].mxu0
  %v1804 = vpop.f32.mrb[0].mxu0
  %v1805 = vadd.f32 %v1516, %v1804
  %v1806 = vpop.f32.mrb[0].mxu0
  %1807 = vmatprep.mubr.bf16.mxu0 %v855
  %1808 = vmatmul.mubr.bf16.gmra.mrb[0].mxu0 %v854
  %v1809 = vpop.f32.mrb[0].mxu0
  %v1810 = vadd.f32 %v1521, %v1809
  %v1811 = vpop.f32.mrb[0].mxu0
  %v1812 = vpop.f32.mrb[0].mxu0
  %v1813 = vadd.f32 %v1524, %v1812
  %v1814 = vpop.f32.mrb[0].mxu0
  %1815 = vmatprep.mubr.bf16.mxu0 %v860
  %1816 = vmatmul.mubr.bf16.gmra.mrb[0].mxu0 %v859
  %v1817 = vpop.f32.mrb[0].mxu0
  %v1818 = vadd.f32 %v1529, %v1817
  %v1819 = vpop.f32.mrb[0].mxu0
  %v1820 = vpop.f32.mrb[0].mxu0
  %v1821 = vadd.f32 %v1532, %v1820
  %v1822 = vpop.f32.mrb[0].mxu0
  %1823 = vmatprep.mubr.bf16.mxu0 %v865
  %1824 = vmatmul.mubr.bf16.gmra.mrb[0].mxu0 %v864
  %v1825 = vpop.f32.mrb[0].mxu0
  %v1826 = vadd.f32 %v1537, %v1825
  %v1827 = vpop.f32.mrb[0].mxu0
  %v1828 = vpop.f32.mrb[0].mxu0
  %v1829 = vadd.f32 %v1540, %v1828
  %v1830 = vpop.f32.mrb[0].mxu0
  %1831 = vmatprep.mubr.bf16.mxu0 %v870
  %1832 = vmatmul.mubr.bf16.gmra.mrb[0].mxu0 %v869
  %v1833 = vpop.f32.mrb[0].mxu0
  %v1834 = vadd.f32 %v1545, %v1833
  %v1835 = vpop.f32.mrb[0].mxu0
  %v1836 = vpop.f32.mrb[0].mxu0
  %v1837 = vadd.f32 %v1548, %v1836
  %v1838 = vpop.f32.mrb[0].mxu0
  %1839 = vmatprep.mubr.bf16.mxu0 %v875
  %1840 = vmatmul.mubr.bf16.gmra.mrb[0].mxu0 %v874
  %v1841 = vpop.f32.mrb[0].mxu0
  %v1842 = vadd.f32 %v1553, %v1841
  %v1843 = vpop.f32.mrb[0].mxu0
  %v1844 = vpop.f32.mrb[0].mxu0
  %v1845 = vadd.f32 %v1556, %v1844
  %v1846 = vpop.f32.mrb[0].mxu0
  %1847 = vmatprep.mubr.bf16.mxu0 %v880
  %1848 = vmatmul.mubr.bf16.gmra.mrb[0].mxu0 %v879
  %v1849 = vpop.f32.mrb[0].mxu0
  %v1850 = vadd.f32 %v1561, %v1849
  %v1851 = vpop.f32.mrb[0].mxu0
  %v1852 = vpop.f32.mrb[0].mxu0
  %v1853 = vadd.f32 %v1564, %v1852
  %v1854 = vpop.f32.mrb[0].mxu0
  %1855 = vmatprep.mubr.bf16.mxu0 %v885
  %1856 = vmatmul.mubr.bf16.gmra.mrb[0].mxu0 %v884
  %v1857 = vpop.f32.mrb[0].mxu0
  %v1858 = vadd.f32 %v1569, %v1857
  %v1859 = vpop.f32.mrb[0].mxu0
  %v1860 = vpop.f32.mrb[0].mxu0
  %v1861 = vadd.f32 %v1572, %v1860
  %v1862 = vpop.f32.mrb[0].mxu0
  %1863 = vmatprep.mubr.bf16.mxu0 %v890
  %1864 = vmatmul.mubr.bf16.gmra.mrb[0].mxu0 %v889
  %v1865 = vpop.f32.mrb[0].mxu0
  %v1866 = vadd.f32 %v1577, %v1865
  %v1867 = vpop.f32.mrb[0].mxu0
  %v1868 = vpop.f32.mrb[0].mxu0
  %v1869 = vadd.f32 %v1580, %v1868
  %v1870 = vpop.f32.mrb[0].mxu0
  %1871 = vmatprep.mubr.bf16.mxu0 %v895
  %1872 = vmatmul.mubr.bf16.gmra.mrb[0].mxu0 %v894
  %v1873 = vpop.f32.mrb[0].mxu0
  %v1874 = vadd.f32 %v1585, %v1873
  %v1875 = vpop.f32.mrb[0].mxu0
  %v1876 = vpop.f32.mrb[0].mxu0
  %v1877 = vadd.f32 %v1588, %v1876
  %v1878 = vpop.f32.mrb[0].mxu0
  %1879 = vmatprep.mubr.bf16.mxu0 %v900
  %1880 = vmatmul.mubr.bf16.gmra.mrb[0].mxu0 %v899
  %v1881 = vpop.f32.mrb[0].mxu0
  %v1882 = vadd.f32 %v1593, %v1881
  %v1883 = vpop.f32.mrb[0].mxu0
  %v1884 = vpop.f32.mrb[0].mxu0
  %v1885 = vadd.f32 %v1596, %v1884
  %v1886 = vpop.f32.mrb[0].mxu0
  %1887 = vmatprep.mubr.bf16.mxu0 %v905
  %1888 = vmatmul.mubr.bf16.gmra.mrb[0].mxu0 %v904
  %v1889 = vpop.f32.mrb[0].mxu0
  %v1890 = vadd.f32 %v1601, %v1889
  %v1891 = vpop.f32.mrb[0].mxu0
  %v1892 = vpop.f32.mrb[0].mxu0
  %v1893 = vadd.f32 %v1604, %v1892
  %v1894 = vpop.f32.mrb[0].mxu0
  %1895 = vmatprep.mubr.bf16.mxu0 %v910
  %1896 = vmatmul.mubr.bf16.gmra.mrb[0].mxu0 %v909
  %v1897 = vpop.f32.mrb[0].mxu0
  %v1898 = vadd.f32 %v1609, %v1897
  %v1899 = vpop.f32.mrb[0].mxu0
  %v1900 = vpop.f32.mrb[0].mxu0
  %v1901 = vadd.f32 %v1612, %v1900
  %v1902 = vpop.f32.mrb[0].mxu0
  %1903 = vmatprep.mubr.bf16.mxu0 %v915
  %1904 = vmatmul.mubr.bf16.gmra.mrb[0].mxu0 %v914
  %v1905 = vpop.f32.mrb[0].mxu0
  %v1906 = vadd.f32 %v1617, %v1905
  %v1907 = vpop.f32.mrb[0].mxu0
  %v1908 = vpop.f32.mrb[0].mxu0
  %v1909 = vadd.f32 %v1620, %v1908
  %v1910 = vpop.f32.mrb[0].mxu0
  %1911 = vmatprep.mubr.bf16.mxu0 %v920
  %1912 = vmatmul.mubr.bf16.gmra.mrb[0].mxu0 %v919
  %v1913 = vpop.f32.mrb[0].mxu0
  %v1914 = vadd.f32 %v1625, %v1913
  %v1915 = vpop.f32.mrb[0].mxu0
  %v1916 = vpop.f32.mrb[0].mxu0
  %v1917 = vadd.f32 %v1628, %v1916
  %v1918 = vpop.f32.mrb[0].mxu0
  %1919 = vmatprep.mubr.bf16.mxu0 %v925
  %1920 = vmatmul.mubr.bf16.gmra.mrb[0].mxu0 %v924
  %v1921 = vpop.f32.mrb[0].mxu0
  %v1922 = vadd.f32 %v1633, %v1921
  %v1923 = vpop.f32.mrb[0].mxu0
  %v1924 = vpop.f32.mrb[0].mxu0
  %v1925 = vadd.f32 %v1636, %v1924
  %v1926 = vpop.f32.mrb[0].mxu0
  %1927 = vmatprep.mubr.bf16.mxu0 %v930
  %1928 = vmatmul.mubr.bf16.gmra.mrb[0].mxu0 %v929
  %v1929 = vpop.f32.mrb[0].mxu0
  %v1930 = vadd.f32 %v1641, %v1929
  %v1931 = vpop.f32.mrb[0].mxu0
  %v1932 = vpop.f32.mrb[0].mxu0
  %v1933 = vadd.f32 %v1644, %v1932
  %v1934 = vpop.f32.mrb[0].mxu0
  %1935 = vmatprep.mubr.bf16.mxu0 %v935
  %1936 = vmatmul.mubr.bf16.gmra.mrb[0].mxu0 %v934
  %v1937 = vpop.f32.mrb[0].mxu0
  %v1938 = vadd.f32 %v1649, %v1937
  %v1939 = vpop.f32.mrb[0].mxu0
  %v1940 = vpop.f32.mrb[0].mxu0
  %v1941 = vadd.f32 %v1652, %v1940
  %v1942 = vpop.f32.mrb[0].mxu0
  %1943 = vmatprep.mubr.bf16.mxu0 %v940
  %1944 = vmatmul.mubr.bf16.gmra.mrb[0].mxu0 %v939
  %v1945 = vpop.f32.mrb[0].mxu0
  %v1946 = vadd.f32 %v1657, %v1945
  %v1947 = vpop.f32.mrb[0].mxu0
  %v1948 = vpop.f32.mrb[0].mxu0
  %v1949 = vadd.f32 %v1660, %v1948
  %v1950 = vpop.f32.mrb[0].mxu0
  %1951 = vmatprep.mubr.bf16.mxu0 %v945
  %1952 = vmatmul.mubr.bf16.gmra.mrb[0].mxu0 %v944
  %v1953 = vpop.f32.mrb[0].mxu0
  %v1954 = vadd.f32 %v1665, %v1953
  %v1955 = vpop.f32.mrb[0].mxu0
  %v1956 = vpop.f32.mrb[0].mxu0
  %v1957 = vadd.f32 %v1668, %v1956
  %v1958 = vpop.f32.mrb[0].mxu0
  %1959 = vmatprep.mubr.bf16.mxu0 %v950
  %1960 = vmatmul.mubr.bf16.gmra.mrb[0].mxu0 %v949
  %v1961 = vpop.f32.mrb[0].mxu0
  %v1962 = vadd.f32 %v1673, %v1961
  %v1963 = vpop.f32.mrb[0].mxu0
  %v1964 = vpop.f32.mrb[0].mxu0
  %v1965 = vadd.f32 %v1676, %v1964
  %v1966 = vpop.f32.mrb[0].mxu0
  %1967 = vmatprep.mubr.bf16.mxu0 %v955
  %1968 = vmatmul.mubr.bf16.gmra.mrb[0].mxu0 %v954
  %v1969 = vpop.f32.mrb[0].mxu0
  %v1970 = vadd.f32 %v1681, %v1969
  %v1971 = vpop.f32.mrb[0].mxu0
  %v1972 = vpop.f32.mrb[0].mxu0
  %v1973 = vadd.f32 %v1684, %v1972
  %v1974 = vpop.f32.mrb[0].mxu0
  %1975 = vdwg.mxu0
  %1976 = vmatprep.subr.bf16.mxu0 0
  %1977 = vmatpush1.bf16.msra.mxu0 %v1261
  %1978 = vmatprep.subr.bf16.mxu0 0
  %1979 = vmatpush1.bf16.msra.mxu0 %v1262
  %1980 = vmatprep.subr.bf16.mxu0 0
  %1981 = vmatpush1.bf16.msra.mxu0 %v1263
  %1982 = vmatprep.subr.bf16.mxu0 0
  %1983 = vmatpush1.bf16.msra.mxu0 %v1264
  %1984 = vmatprep.subr.bf16.mxu0 0
  %1985 = vmatpush1.bf16.msra.mxu0 0
  %1986 = vmatprep.subr.bf16.mxu0 0
  %1987 = vmatpush1.bf16.msra.mxu0 0
  %1988 = vmatprep.subr.bf16.mxu0 0
  %1989 = vmatpush1.bf16.msra.mxu0 0
  %1990 = vmatprep.subr.bf16.mxu0 0
  %1991 = vmatpush1.bf16.msra.mxu0 0
  %1992 = vmatprep.subr.bf16.mxu0 0
  %1993 = vmatpush1.bf16.msra.mxu0 0
  %1994 = vmatprep.subr.bf16.mxu0 0
  %1995 = vmatpush1.bf16.msra.mxu0 0
  %1996 = vmatprep.subr.bf16.mxu0 0
  %1997 = vmatpush1.bf16.msra.mxu0 0
  %1998 = vmatprep.subr.bf16.mxu0 0
  %1999 = vmatpush1.bf16.msra.mxu0 0
  %2000 = vmatprep.subr.bf16.mxu0 0
  %2001 = vmatpush1.bf16.msra.mxu0 0
  %2002 = vmatprep.subr.bf16.mxu0 0
  %2003 = vmatpush1.bf16.msra.mxu0 0
  %2004 = vmatprep.subr.bf16.mxu0 0
  %2005 = vmatpush1.bf16.msra.mxu0 0
  %2006 = vmatprep.subr.bf16.mxu0 0
  %2007 = vmatpush1.bf16.msra.mxu0 0
  %2008 = vmatprep.mubr.bf16.mxu0 0
  %2009 = vmatmul.mubr.bf16.gmra.mrb[0].mxu0 %v1303
  %v2010 = vpop.f32.mrb[0].mxu0
  %v2011 = vadd.f32 %v1722, %v2010
  %v2012 = vpop.f32.mrb[0].mxu0
  %v2013 = vpop.f32.mrb[0].mxu0
  %v2014 = vadd.f32 %v1725, %v2013
  %v2015 = vpop.f32.mrb[0].mxu0
  %2016 = vmatprep.mubr.bf16.mxu0 0
  %2017 = vmatmul.mubr.bf16.gmra.mrb[0].mxu0 %v1306
  %v2018 = vpop.f32.mrb[0].mxu0
  %v2019 = vadd.f32 %v1730, %v2018
  %v2020 = vpop.f32.mrb[0].mxu0
  %v2021 = vpop.f32.mrb[0].mxu0
  %v2022 = vadd.f32 %v1733, %v2021
  %v2023 = vpop.f32.mrb[0].mxu0
  %2024 = vmatprep.mubr.bf16.mxu0 0
  %2025 = vmatmul.mubr.bf16.gmra.mrb[0].mxu0 %v1309
  %v2026 = vpop.f32.mrb[0].mxu0
  %v2027 = vadd.f32 %v1738, %v2026
  %v2028 = vpop.f32.mrb[0].mxu0
  %v2029 = vpop.f32.mrb[0].mxu0
  %v2030 = vadd.f32 %v1741, %v2029
  %v2031 = vpop.f32.mrb[0].mxu0
  %2032 = vmatprep.mubr.bf16.mxu0 0
  %2033 = vmatmul.mubr.bf16.gmra.mrb[0].mxu0 %v1312
  %v2034 = vpop.f32.mrb[0].mxu0
  %v2035 = vadd.f32 %v1746, %v2034
  %v2036 = vpop.f32.mrb[0].mxu0
  %v2037 = vpop.f32.mrb[0].mxu0
  %v2038 = vadd.f32 %v1749, %v2037
  %v2039 = vpop.f32.mrb[0].mxu0
  %2040 = vmatprep.mubr.bf16.mxu0 0
  %2041 = vmatmul.mubr.bf16.gmra.mrb[0].mxu0 %v1315
  %v2042 = vpop.f32.mrb[0].mxu0
  %v2043 = vadd.f32 %v1754, %v2042
  %v2044 = vpop.f32.mrb[0].mxu0
  %v2045 = vpop.f32.mrb[0].mxu0
  %v2046 = vadd.f32 %v1757, %v2045
  %v2047 = vpop.f32.mrb[0].mxu0
  %2048 = vmatprep.mubr.bf16.mxu0 0
  %2049 = vmatmul.mubr.bf16.gmra.mrb[0].mxu0 %v1318
  %v2050 = vpop.f32.mrb[0].mxu0
  %v2051 = vadd.f32 %v1762, %v2050
  %v2052 = vpop.f32.mrb[0].mxu0
  %v2053 = vpop.f32.mrb[0].mxu0
  %v2054 = vadd.f32 %v1765, %v2053
  %v2055 = vpop.f32.mrb[0].mxu0
  %2056 = vmatprep.mubr.bf16.mxu0 0
  %2057 = vmatmul.mubr.bf16.gmra.mrb[0].mxu0 %v1321
  %v2058 = vpop.f32.mrb[0].mxu0
  %v2059 = vadd.f32 %v1770, %v2058
  %v2060 = vpop.f32.mrb[0].mxu0
  %v2061 = vpop.f32.mrb[0].mxu0
  %v2062 = vadd.f32 %v1773, %v2061
  %v2063 = vpop.f32.mrb[0].mxu0
  %2064 = vmatprep.mubr.bf16.mxu0 0
  %2065 = vmatmul.mubr.bf16.gmra.mrb[0].mxu0 %v1324
  %v2066 = vpop.f32.mrb[0].mxu0
  %v2067 = vadd.f32 %v1778, %v2066
  %v2068 = vpop.f32.mrb[0].mxu0
  %v2069 = vpop.f32.mrb[0].mxu0
  %v2070 = vadd.f32 %v1781, %v2069
  %v2071 = vpop.f32.mrb[0].mxu0
  %2072 = vmatprep.mubr.bf16.mxu0 0
  %2073 = vmatmul.mubr.bf16.gmra.mrb[0].mxu0 %v1327
  %v2074 = vpop.f32.mrb[0].mxu0
  %v2075 = vadd.f32 %v1786, %v2074
  %v2076 = vpop.f32.mrb[0].mxu0
  %v2077 = vpop.f32.mrb[0].mxu0
  %v2078 = vadd.f32 %v1789, %v2077
  %v2079 = vpop.f32.mrb[0].mxu0
  %2080 = vmatprep.mubr.bf16.mxu0 0
  %2081 = vmatmul.mubr.bf16.gmra.mrb[0].mxu0 %v1330
  %v2082 = vpop.f32.mrb[0].mxu0
  %v2083 = vadd.f32 %v1794, %v2082
  %v2084 = vpop.f32.mrb[0].mxu0
  %v2085 = vpop.f32.mrb[0].mxu0
  %v2086 = vadd.f32 %v1797, %v2085
  %v2087 = vpop.f32.mrb[0].mxu0
  %2088 = vmatprep.mubr.bf16.mxu0 0
  %2089 = vmatmul.mubr.bf16.gmra.mrb[0].mxu0 %v1333
  %v2090 = vpop.f32.mrb[0].mxu0
  %v2091 = vadd.f32 %v1802, %v2090
  %v2092 = vpop.f32.mrb[0].mxu0
  %v2093 = vpop.f32.mrb[0].mxu0
  %v2094 = vadd.f32 %v1805, %v2093
  %v2095 = vpop.f32.mrb[0].mxu0
  %2096 = vmatprep.mubr.bf16.mxu0 0
  %2097 = vmatmul.mubr.bf16.gmra.mrb[0].mxu0 %v1336
  %v2098 = vpop.f32.mrb[0].mxu0
  %v2099 = vadd.f32 %v1810, %v2098
  %v2100 = vpop.f32.mrb[0].mxu0
  %v2101 = vpop.f32.mrb[0].mxu0
  %v2102 = vadd.f32 %v1813, %v2101
  %v2103 = vpop.f32.mrb[0].mxu0
  %2104 = vmatprep.mubr.bf16.mxu0 0
  %2105 = vmatmul.mubr.bf16.gmra.mrb[0].mxu0 %v1339
  %v2106 = vpop.f32.mrb[0].mxu0
  %v2107 = vadd.f32 %v1818, %v2106
  %v2108 = vpop.f32.mrb[0].mxu0
  %v2109 = vpop.f32.mrb[0].mxu0
  %v2110 = vadd.f32 %v1821, %v2109
  %v2111 = vpop.f32.mrb[0].mxu0
  %2112 = vmatprep.mubr.bf16.mxu0 0
  %2113 = vmatmul.mubr.bf16.gmra.mrb[0].mxu0 %v1342
  %v2114 = vpop.f32.mrb[0].mxu0
  %v2115 = vadd.f32 %v1826, %v2114
  %v2116 = vpop.f32.mrb[0].mxu0
  %v2117 = vpop.f32.mrb[0].mxu0
  %v2118 = vadd.f32 %v1829, %v2117
  %v2119 = vpop.f32.mrb[0].mxu0
  %2120 = vmatprep.mubr.bf16.mxu0 0
  %2121 = vmatmul.mubr.bf16.gmra.mrb[0].mxu0 %v1345
  %v2122 = vpop.f32.mrb[0].mxu0
  %v2123 = vadd.f32 %v1834, %v2122
  %v2124 = vpop.f32.mrb[0].mxu0
  %v2125 = vpop.f32.mrb[0].mxu0
  %v2126 = vadd.f32 %v1837, %v2125
  %v2127 = vpop.f32.mrb[0].mxu0
  %2128 = vmatprep.mubr.bf16.mxu0 0
  %2129 = vmatmul.mubr.bf16.gmra.mrb[0].mxu0 %v1348
  %v2130 = vpop.f32.mrb[0].mxu0
  %v2131 = vadd.f32 %v1842, %v2130
  %v2132 = vpop.f32.mrb[0].mxu0
  %v2133 = vpop.f32.mrb[0].mxu0
  %v2134 = vadd.f32 %v1845, %v2133
  %v2135 = vpop.f32.mrb[0].mxu0
  %2136 = vmatprep.mubr.bf16.mxu0 0
  %2137 = vmatmul.mubr.bf16.gmra.mrb[0].mxu0 %v1351
  %v2138 = vpop.f32.mrb[0].mxu0
  %v2139 = vadd.f32 %v1850, %v2138
  %v2140 = vpop.f32.mrb[0].mxu0
  %v2141 = vpop.f32.mrb[0].mxu0
  %v2142 = vadd.f32 %v1853, %v2141
  %v2143 = vpop.f32.mrb[0].mxu0
  %2144 = vmatprep.mubr.bf16.mxu0 0
  %2145 = vmatmul.mubr.bf16.gmra.mrb[0].mxu0 %v1354
  %v2146 = vpop.f32.mrb[0].mxu0
  %v2147 = vadd.f32 %v1858, %v2146
  %v2148 = vpop.f32.mrb[0].mxu0
  %v2149 = vpop.f32.mrb[0].mxu0
  %v2150 = vadd.f32 %v1861, %v2149
  %v2151 = vpop.f32.mrb[0].mxu0
  %2152 = vmatprep.mubr.bf16.mxu0 0
  %2153 = vmatmul.mubr.bf16.gmra.mrb[0].mxu0 %v1357
  %v2154 = vpop.f32.mrb[0].mxu0
  %v2155 = vadd.f32 %v1866, %v2154
  %v2156 = vpop.f32.mrb[0].mxu0
  %v2157 = vpop.f32.mrb[0].mxu0
  %v2158 = vadd.f32 %v1869, %v2157
  %v2159 = vpop.f32.mrb[0].mxu0
  %2160 = vmatprep.mubr.bf16.mxu0 0
  %2161 = vmatmul.mubr.bf16.gmra.mrb[0].mxu0 %v1360
  %v2162 = vpop.f32.mrb[0].mxu0
  %v2163 = vadd.f32 %v1874, %v2162
  %v2164 = vpop.f32.mrb[0].mxu0
  %v2165 = vpop.f32.mrb[0].mxu0
  %v2166 = vadd.f32 %v1877, %v2165
  %v2167 = vpop.f32.mrb[0].mxu0
  %2168 = vmatprep.mubr.bf16.mxu0 0
  %2169 = vmatmul.mubr.bf16.gmra.mrb[0].mxu0 %v1363
  %v2170 = vpop.f32.mrb[0].mxu0
  %v2171 = vadd.f32 %v1882, %v2170
  %v2172 = vpop.f32.mrb[0].mxu0
  %v2173 = vpop.f32.mrb[0].mxu0
  %v2174 = vadd.f32 %v1885, %v2173
  %v2175 = vpop.f32.mrb[0].mxu0
  %2176 = vmatprep.mubr.bf16.mxu0 0
  %2177 = vmatmul.mubr.bf16.gmra.mrb[0].mxu0 %v1366
  %v2178 = vpop.f32.mrb[0].mxu0
  %v2179 = vadd.f32 %v1890, %v2178
  %v2180 = vpop.f32.mrb[0].mxu0
  %v2181 = vpop.f32.mrb[0].mxu0
  %v2182 = vadd.f32 %v1893, %v2181
  %v2183 = vpop.f32.mrb[0].mxu0
  %2184 = vmatprep.mubr.bf16.mxu0 0
  %2185 = vmatmul.mubr.bf16.gmra.mrb[0].mxu0 %v1369
  %v2186 = vpop.f32.mrb[0].mxu0
  %v2187 = vadd.f32 %v1898, %v2186
  %v2188 = vpop.f32.mrb[0].mxu0
  %v2189 = vpop.f32.mrb[0].mxu0
  %v2190 = vadd.f32 %v1901, %v2189
  %v2191 = vpop.f32.mrb[0].mxu0
  %2192 = vmatprep.mubr.bf16.mxu0 0
  %2193 = vmatmul.mubr.bf16.gmra.mrb[0].mxu0 %v1372
  %v2194 = vpop.f32.mrb[0].mxu0
  %v2195 = vadd.f32 %v1906, %v2194
  %v2196 = vpop.f32.mrb[0].mxu0
  %v2197 = vpop.f32.mrb[0].mxu0
  %v2198 = vadd.f32 %v1909, %v2197
  %v2199 = vpop.f32.mrb[0].mxu0
  %2200 = vmatprep.mubr.bf16.mxu0 0
  %2201 = vmatmul.mubr.bf16.gmra.mrb[0].mxu0 %v1375
  %v2202 = vpop.f32.mrb[0].mxu0
  %v2203 = vadd.f32 %v1914, %v2202
  %v2204 = vpop.f32.mrb[0].mxu0
  %v2205 = vpop.f32.mrb[0].mxu0
  %v2206 = vadd.f32 %v1917, %v2205
  %v2207 = vpop.f32.mrb[0].mxu0
  %2208 = vmatprep.mubr.bf16.mxu0 0
  %2209 = vmatmul.mubr.bf16.gmra.mrb[0].mxu0 %v1378
  %v2210 = vpop.f32.mrb[0].mxu0
  %v2211 = vadd.f32 %v1922, %v2210
  %v2212 = vpop.f32.mrb[0].mxu0
  %v2213 = vpop.f32.mrb[0].mxu0
  %v2214 = vadd.f32 %v1925, %v2213
  %v2215 = vpop.f32.mrb[0].mxu0
  %2216 = vmatprep.mubr.bf16.mxu0 0
  %2217 = vmatmul.mubr.bf16.gmra.mrb[0].mxu0 %v1381
  %v2218 = vpop.f32.mrb[0].mxu0
  %v2219 = vadd.f32 %v1930, %v2218
  %v2220 = vpop.f32.mrb[0].mxu0
  %v2221 = vpop.f32.mrb[0].mxu0
  %v2222 = vadd.f32 %v1933, %v2221
  %v2223 = vpop.f32.mrb[0].mxu0
  %2224 = vmatprep.mubr.bf16.mxu0 0
  %2225 = vmatmul.mubr.bf16.gmra.mrb[0].mxu0 %v1384
  %v2226 = vpop.f32.mrb[0].mxu0
  %v2227 = vadd.f32 %v1938, %v2226
  %v2228 = vpop.f32.mrb[0].mxu0
  %v2229 = vpop.f32.mrb[0].mxu0
  %v2230 = vadd.f32 %v1941, %v2229
  %v2231 = vpop.f32.mrb[0].mxu0
  %2232 = vmatprep.mubr.bf16.mxu0 0
  %2233 = vmatmul.mubr.bf16.gmra.mrb[0].mxu0 %v1387
  %v2234 = vpop.f32.mrb[0].mxu0
  %v2235 = vadd.f32 %v1946, %v2234
  %v2236 = vpop.f32.mrb[0].mxu0
  %v2237 = vpop.f32.mrb[0].mxu0
  %v2238 = vadd.f32 %v1949, %v2237
  %v2239 = vpop.f32.mrb[0].mxu0
  %2240 = vmatprep.mubr.bf16.mxu0 0
  %2241 = vmatmul.mubr.bf16.gmra.mrb[0].mxu0 %v1390
  %v2242 = vpop.f32.mrb[0].mxu0
  %v2243 = vadd.f32 %v1954, %v2242
  %v2244 = vpop.f32.mrb[0].mxu0
  %v2245 = vpop.f32.mrb[0].mxu0
  %v2246 = vadd.f32 %v1957, %v2245
  %v2247 = vpop.f32.mrb[0].mxu0
  %2248 = vmatprep.mubr.bf16.mxu0 0
  %2249 = vmatmul.mubr.bf16.gmra.mrb[0].mxu0 %v1393
  %v2250 = vpop.f32.mrb[0].mxu0
  %v2251 = vadd.f32 %v1962, %v2250
  %v2252 = vpop.f32.mrb[0].mxu0
  %v2253 = vpop.f32.mrb[0].mxu0
  %v2254 = vadd.f32 %v1965, %v2253
  %v2255 = vpop.f32.mrb[0].mxu0
  %2256 = vmatprep.mubr.bf16.mxu0 0
  %2257 = vmatmul.mubr.bf16.gmra.mrb[0].mxu0 %v1396
  %v2258 = vpop.f32.mrb[0].mxu0
  %v2259 = vadd.f32 %v1970, %v2258
  %v2260 = vpop.f32.mrb[0].mxu0
  %v2261 = vpop.f32.mrb[0].mxu0
  %v2262 = vadd.f32 %v1973, %v2261
  %v2263 = vpop.f32.mrb[0].mxu0
  %2264 = vdwg.mxu0
  %v2265 = vld [vmem:[%s2] sm:$0x1]
  %v2267 = vlaneseq
  %v2268 = vshrl.u32 %v2267, 7
  %v2269 = vsub.s32 0, %v2268
  %v2270 = vrot.slane %v2265, %v2269
  %v2272 = vmul.f32 %v2011, %v2270
  %v2273 = vmul.f32 %v2014, %v2270
  %v2274 = vmul.f32 %v2019, %v2270
  %v2275 = vmul.f32 %v2022, %v2270
  %v2276 = vmul.f32 %v2027, %v2270
  %v2277 = vmul.f32 %v2030, %v2270
  %v2278 = vmul.f32 %v2035, %v2270
  %v2279 = vmul.f32 %v2038, %v2270
  %v2280 = vmul.f32 %v2043, %v2270
  %v2281 = vmul.f32 %v2046, %v2270
  %v2282 = vmul.f32 %v2051, %v2270
  %v2283 = vmul.f32 %v2054, %v2270
  %v2284 = vmul.f32 %v2059, %v2270
  %v2285 = vmul.f32 %v2062, %v2270
  %v2286 = vmul.f32 %v2067, %v2270
  %v2287 = vmul.f32 %v2070, %v2270
  %v2288 = vmul.f32 %v2075, %v2270
  %v2289 = vmul.f32 %v2078, %v2270
  %v2290 = vmul.f32 %v2083, %v2270
  %v2291 = vmul.f32 %v2086, %v2270
  %v2292 = vmul.f32 %v2091, %v2270
  %v2293 = vmul.f32 %v2094, %v2270
  %v2294 = vmul.f32 %v2099, %v2270
  %v2295 = vmul.f32 %v2102, %v2270
  %v2296 = vmul.f32 %v2107, %v2270
  %v2297 = vmul.f32 %v2110, %v2270
  %v2298 = vmul.f32 %v2115, %v2270
  %v2299 = vmul.f32 %v2118, %v2270
  %v2300 = vmul.f32 %v2123, %v2270
  %v2301 = vmul.f32 %v2126, %v2270
  %v2302 = vmul.f32 %v2131, %v2270
  %v2303 = vmul.f32 %v2134, %v2270
  %v2304 = vmul.f32 %v2139, %v2270
  %v2305 = vmul.f32 %v2142, %v2270
  %v2306 = vmul.f32 %v2147, %v2270
  %v2307 = vmul.f32 %v2150, %v2270
  %v2308 = vmul.f32 %v2155, %v2270
  %v2309 = vmul.f32 %v2158, %v2270
  %v2310 = vmul.f32 %v2163, %v2270
  %v2311 = vmul.f32 %v2166, %v2270
  %v2312 = vmul.f32 %v2171, %v2270
  %v2313 = vmul.f32 %v2174, %v2270
  %v2314 = vmul.f32 %v2179, %v2270
  %v2315 = vmul.f32 %v2182, %v2270
  %v2316 = vmul.f32 %v2187, %v2270
  %v2317 = vmul.f32 %v2190, %v2270
  %v2318 = vmul.f32 %v2195, %v2270
  %v2319 = vmul.f32 %v2198, %v2270
  %v2320 = vmul.f32 %v2203, %v2270
  %v2321 = vmul.f32 %v2206, %v2270
  %v2322 = vmul.f32 %v2211, %v2270
  %v2323 = vmul.f32 %v2214, %v2270
  %v2324 = vmul.f32 %v2219, %v2270
  %v2325 = vmul.f32 %v2222, %v2270
  %v2326 = vmul.f32 %v2227, %v2270
  %v2327 = vmul.f32 %v2230, %v2270
  %v2328 = vmul.f32 %v2235, %v2270
  %v2329 = vmul.f32 %v2238, %v2270
  %v2330 = vmul.f32 %v2243, %v2270
  %v2331 = vmul.f32 %v2246, %v2270
  %v2332 = vmul.f32 %v2251, %v2270
  %v2333 = vmul.f32 %v2254, %v2270
  %v2334 = vmul.f32 %v2259, %v2270
  %v2335 = vmul.f32 %v2262, %v2270
  %v2336 = vld [vmem:[%s3] sm:$0x1]
  %v2338 = vlaneseq
  %v2339 = vshrl.u32 %v2338, 7
  %v2340 = vsub.s32 0, %v2339
  %v2341 = vrot.slane %v2336, %v2340
  %v2343 = vadd.f32 %v2272, %v2341
  %v2344 = vadd.f32 %v2273, %v2341
  %v2345 = vadd.f32 %v2274, %v2341
  %v2346 = vadd.f32 %v2275, %v2341
  %v2347 = vadd.f32 %v2276, %v2341
  %v2348 = vadd.f32 %v2277, %v2341
  %v2349 = vadd.f32 %v2278, %v2341
  %v2350 = vadd.f32 %v2279, %v2341
  %v2351 = vadd.f32 %v2280, %v2341
  %v2352 = vadd.f32 %v2281, %v2341
  %v2353 = vadd.f32 %v2282, %v2341
  %v2354 = vadd.f32 %v2283, %v2341
  %v2355 = vadd.f32 %v2284, %v2341
  %v2356 = vadd.f32 %v2285, %v2341
  %v2357 = vadd.f32 %v2286, %v2341
  %v2358 = vadd.f32 %v2287, %v2341
  %v2359 = vadd.f32 %v2288, %v2341
  %v2360 = vadd.f32 %v2289, %v2341
  %v2361 = vadd.f32 %v2290, %v2341
  %v2362 = vadd.f32 %v2291, %v2341
  %v2363 = vadd.f32 %v2292, %v2341
  %v2364 = vadd.f32 %v2293, %v2341
  %v2365 = vadd.f32 %v2294, %v2341
  %v2366 = vadd.f32 %v2295, %v2341
  %v2367 = vadd.f32 %v2296, %v2341
  %v2368 = vadd.f32 %v2297, %v2341
  %v2369 = vadd.f32 %v2298, %v2341
  %v2370 = vadd.f32 %v2299, %v2341
  %v2371 = vadd.f32 %v2300, %v2341
  %v2372 = vadd.f32 %v2301, %v2341
  %v2373 = vadd.f32 %v2302, %v2341
  %v2374 = vadd.f32 %v2303, %v2341
  %v2375 = vadd.f32 %v2304, %v2341
  %v2376 = vadd.f32 %v2305, %v2341
  %v2377 = vadd.f32 %v2306, %v2341
  %v2378 = vadd.f32 %v2307, %v2341
  %v2379 = vadd.f32 %v2308, %v2341
  %v2380 = vadd.f32 %v2309, %v2341
  %v2381 = vadd.f32 %v2310, %v2341
  %v2382 = vadd.f32 %v2311, %v2341
  %v2383 = vadd.f32 %v2312, %v2341
  %v2384 = vadd.f32 %v2313, %v2341
  %v2385 = vadd.f32 %v2314, %v2341
  %v2386 = vadd.f32 %v2315, %v2341
  %v2387 = vadd.f32 %v2316, %v2341
  %v2388 = vadd.f32 %v2317, %v2341
  %v2389 = vadd.f32 %v2318, %v2341
  %v2390 = vadd.f32 %v2319, %v2341
  %v2391 = vadd.f32 %v2320, %v2341
  %v2392 = vadd.f32 %v2321, %v2341
  %v2393 = vadd.f32 %v2322, %v2341
  %v2394 = vadd.f32 %v2323, %v2341
  %v2395 = vadd.f32 %v2324, %v2341
  %v2396 = vadd.f32 %v2325, %v2341
  %v2397 = vadd.f32 %v2326, %v2341
  %v2398 = vadd.f32 %v2327, %v2341
  %v2399 = vadd.f32 %v2328, %v2341
  %v2400 = vadd.f32 %v2329, %v2341
  %v2401 = vadd.f32 %v2330, %v2341
  %v2402 = vadd.f32 %v2331, %v2341
  %v2403 = vadd.f32 %v2332, %v2341
  %v2404 = vadd.f32 %v2333, %v2341
  %v2405 = vadd.f32 %v2334, %v2341
  %v2406 = vadd.f32 %v2335, %v2341
  %vm2407 = vcmp.ge.f32.partialorder %v2343, 0.0
  %vm2408 = vcmp.ge.f32.partialorder %v2344, 0.0
  %vm2409 = vcmp.ge.f32.partialorder %v2345, 0.0
  %vm2410 = vcmp.ge.f32.partialorder %v2346, 0.0
  %vm2411 = vcmp.ge.f32.partialorder %v2347, 0.0
  %vm2412 = vcmp.ge.f32.partialorder %v2348, 0.0
  %vm2413 = vcmp.ge.f32.partialorder %v2349, 0.0
  %vm2414 = vcmp.ge.f32.partialorder %v2350, 0.0
  %vm2415 = vcmp.ge.f32.partialorder %v2351, 0.0
  %vm2416 = vcmp.ge.f32.partialorder %v2352, 0.0
  %vm2417 = vcmp.ge.f32.partialorder %v2353, 0.0
  %vm2418 = vcmp.ge.f32.partialorder %v2354, 0.0
  %vm2419 = vcmp.ge.f32.partialorder %v2355, 0.0
  %vm2420 = vcmp.ge.f32.partialorder %v2356, 0.0
  %vm2421 = vcmp.ge.f32.partialorder %v2357, 0.0
  %vm2422 = vcmp.ge.f32.partialorder %v2358, 0.0
  %vm2423 = vcmp.ge.f32.partialorder %v2359, 0.0
  %vm2424 = vcmp.ge.f32.partialorder %v2360, 0.0
  %vm2425 = vcmp.ge.f32.partialorder %v2361, 0.0
  %vm2426 = vcmp.ge.f32.partialorder %v2362, 0.0
  %vm2427 = vcmp.ge.f32.partialorder %v2363, 0.0
  %vm2428 = vcmp.ge.f32.partialorder %v2364, 0.0
  %vm2429 = vcmp.ge.f32.partialorder %v2365, 0.0
  %vm2430 = vcmp.ge.f32.partialorder %v2366, 0.0
  %vm2431 = vcmp.ge.f32.partialorder %v2367, 0.0
  %vm2432 = vcmp.ge.f32.partialorder %v2368, 0.0
  %vm2433 = vcmp.ge.f32.partialorder %v2369, 0.0
  %vm2434 = vcmp.ge.f32.partialorder %v2370, 0.0
  %vm2435 = vcmp.ge.f32.partialorder %v2371, 0.0
  %vm2436 = vcmp.ge.f32.partialorder %v2372, 0.0
  %vm2437 = vcmp.ge.f32.partialorder %v2373, 0.0
  %vm2438 = vcmp.ge.f32.partialorder %v2374, 0.0
  %vm2439 = vcmp.ge.f32.partialorder %v2375, 0.0
  %vm2440 = vcmp.ge.f32.partialorder %v2376, 0.0
  %vm2441 = vcmp.ge.f32.partialorder %v2377, 0.0
  %vm2442 = vcmp.ge.f32.partialorder %v2378, 0.0
  %vm2443 = vcmp.ge.f32.partialorder %v2379, 0.0
  %vm2444 = vcmp.ge.f32.partialorder %v2380, 0.0
  %vm2445 = vcmp.ge.f32.partialorder %v2381, 0.0
  %vm2446 = vcmp.ge.f32.partialorder %v2382, 0.0
  %vm2447 = vcmp.ge.f32.partialorder %v2383, 0.0
  %vm2448 = vcmp.ge.f32.partialorder %v2384, 0.0
  %vm2449 = vcmp.ge.f32.partialorder %v2385, 0.0
  %vm2450 = vcmp.ge.f32.partialorder %v2386, 0.0
  %vm2451 = vcmp.ge.f32.partialorder %v2387, 0.0
  %vm2452 = vcmp.ge.f32.partialorder %v2388, 0.0
  %vm2453 = vcmp.ge.f32.partialorder %v2389, 0.0
  %vm2454 = vcmp.ge.f32.partialorder %v2390, 0.0
  %vm2455 = vcmp.ge.f32.partialorder %v2391, 0.0
  %vm2456 = vcmp.ge.f32.partialorder %v2392, 0.0
  %vm2457 = vcmp.ge.f32.partialorder %v2393, 0.0
  %vm2458 = vcmp.ge.f32.partialorder %v2394, 0.0
  %vm2459 = vcmp.ge.f32.partialorder %v2395, 0.0
  %vm2460 = vcmp.ge.f32.partialorder %v2396, 0.0
  %vm2461 = vcmp.ge.f32.partialorder %v2397, 0.0
  %vm2462 = vcmp.ge.f32.partialorder %v2398, 0.0
  %vm2463 = vcmp.ge.f32.partialorder %v2399, 0.0
  %vm2464 = vcmp.ge.f32.partialorder %v2400, 0.0
  %vm2465 = vcmp.ge.f32.partialorder %v2401, 0.0
  %vm2466 = vcmp.ge.f32.partialorder %v2402, 0.0
  %vm2467 = vcmp.ge.f32.partialorder %v2403, 0.0
  %vm2468 = vcmp.ge.f32.partialorder %v2404, 0.0
  %vm2469 = vcmp.ge.f32.partialorder %v2405, 0.0
  %vm2470 = vcmp.ge.f32.partialorder %v2406, 0.0
  %v2471 = vld [vmem:[%s4] sm:$0x1]
  %v2473 = vlaneseq
  %v2474 = vshrl.u32 %v2473, 7
  %v2475 = vsub.s32 0, %v2474
  %v2476 = vrot.slane %v2471, %v2475
  %v2478 = vmul.f32 %v2476, %v2343
  %v2479 = vmul.f32 %v2476, %v2344
  %v2480 = vmul.f32 %v2476, %v2345
  %v2481 = vmul.f32 %v2476, %v2346
  %v2482 = vmul.f32 %v2476, %v2347
  %v2483 = vmul.f32 %v2476, %v2348
  %v2484 = vmul.f32 %v2476, %v2349
  %v2485 = vmul.f32 %v2476, %v2350
  %v2486 = vmul.f32 %v2476, %v2351
  %v2487 = vmul.f32 %v2476, %v2352
  %v2488 = vmul.f32 %v2476, %v2353
  %v2489 = vmul.f32 %v2476, %v2354
  %v2490 = vmul.f32 %v2476, %v2355
  %v2491 = vmul.f32 %v2476, %v2356
  %v2492 = vmul.f32 %v2476, %v2357
  %v2493 = vmul.f32 %v2476, %v2358
  %v2494 = vmul.f32 %v2476, %v2359
  %v2495 = vmul.f32 %v2476, %v2360
  %v2496 = vmul.f32 %v2476, %v2361
  %v2497 = vmul.f32 %v2476, %v2362
  %v2498 = vmul.f32 %v2476, %v2363
  %v2499 = vmul.f32 %v2476, %v2364
  %v2500 = vmul.f32 %v2476, %v2365
  %v2501 = vmul.f32 %v2476, %v2366
  %v2502 = vmul.f32 %v2476, %v2367
  %v2503 = vmul.f32 %v2476, %v2368
  %v2504 = vmul.f32 %v2476, %v2369
  %v2505 = vmul.f32 %v2476, %v2370
  %v2506 = vmul.f32 %v2476, %v2371
  %v2507 = vmul.f32 %v2476, %v2372
  %v2508 = vmul.f32 %v2476, %v2373
  %v2509 = vmul.f32 %v2476, %v2374
  %v2510 = vmul.f32 %v2476, %v2375
  %v2511 = vmul.f32 %v2476, %v2376
  %v2512 = vmul.f32 %v2476, %v2377
  %v2513 = vmul.f32 %v2476, %v2378
  %v2514 = vmul.f32 %v2476, %v2379
  %v2515 = vmul.f32 %v2476, %v2380
  %v2516 = vmul.f32 %v2476, %v2381
  %v2517 = vmul.f32 %v2476, %v2382
  %v2518 = vmul.f32 %v2476, %v2383
  %v2519 = vmul.f32 %v2476, %v2384
  %v2520 = vmul.f32 %v2476, %v2385
  %v2521 = vmul.f32 %v2476, %v2386
  %v2522 = vmul.f32 %v2476, %v2387
  %v2523 = vmul.f32 %v2476, %v2388
  %v2524 = vmul.f32 %v2476, %v2389
  %v2525 = vmul.f32 %v2476, %v2390
  %v2526 = vmul.f32 %v2476, %v2391
  %v2527 = vmul.f32 %v2476, %v2392
  %v2528 = vmul.f32 %v2476, %v2393
  %v2529 = vmul.f32 %v2476, %v2394
  %v2530 = vmul.f32 %v2476, %v2395
  %v2531 = vmul.f32 %v2476, %v2396
  %v2532 = vmul.f32 %v2476, %v2397
  %v2533 = vmul.f32 %v2476, %v2398
  %v2534 = vmul.f32 %v2476, %v2399
  %v2535 = vmul.f32 %v2476, %v2400
  %v2536 = vmul.f32 %v2476, %v2401
  %v2537 = vmul.f32 %v2476, %v2402
  %v2538 = vmul.f32 %v2476, %v2403
  %v2539 = vmul.f32 %v2476, %v2404
  %v2540 = vmul.f32 %v2476, %v2405
  %v2541 = vmul.f32 %v2476, %v2406
  %v2542 = vsel %vm2407, %v2343, %v2478
  %v2543 = vsel %vm2408, %v2344, %v2479
  %v2544 = vsel %vm2409, %v2345, %v2480
  %v2545 = vsel %vm2410, %v2346, %v2481
  %v2546 = vsel %vm2411, %v2347, %v2482
  %v2547 = vsel %vm2412, %v2348, %v2483
  %v2548 = vsel %vm2413, %v2349, %v2484
  %v2549 = vsel %vm2414, %v2350, %v2485
  %v2550 = vsel %vm2415, %v2351, %v2486
  %v2551 = vsel %vm2416, %v2352, %v2487
  %v2552 = vsel %vm2417, %v2353, %v2488
  %v2553 = vsel %vm2418, %v2354, %v2489
  %v2554 = vsel %vm2419, %v2355, %v2490
  %v2555 = vsel %vm2420, %v2356, %v2491
  %v2556 = vsel %vm2421, %v2357, %v2492
  %v2557 = vsel %vm2422, %v2358, %v2493
  %v2558 = vsel %vm2423, %v2359, %v2494
  %v2559 = vsel %vm2424, %v2360, %v2495
  %v2560 = vsel %vm2425, %v2361, %v2496
  %v2561 = vsel %vm2426, %v2362, %v2497
  %v2562 = vsel %vm2427, %v2363, %v2498
  %v2563 = vsel %vm2428, %v2364, %v2499
  %v2564 = vsel %vm2429, %v2365, %v2500
  %v2565 = vsel %vm2430, %v2366, %v2501
  %v2566 = vsel %vm2431, %v2367, %v2502
  %v2567 = vsel %vm2432, %v2368, %v2503
  %v2568 = vsel %vm2433, %v2369, %v2504
  %v2569 = vsel %vm2434, %v2370, %v2505
  %v2570 = vsel %vm2435, %v2371, %v2506
  %v2571 = vsel %vm2436, %v2372, %v2507
  %v2572 = vsel %vm2437, %v2373, %v2508
  %v2573 = vsel %vm2438, %v2374, %v2509
  %v2574 = vsel %vm2439, %v2375, %v2510
  %v2575 = vsel %vm2440, %v2376, %v2511
  %v2576 = vsel %vm2441, %v2377, %v2512
  %v2577 = vsel %vm2442, %v2378, %v2513
  %v2578 = vsel %vm2443, %v2379, %v2514
  %v2579 = vsel %vm2444, %v2380, %v2515
  %v2580 = vsel %vm2445, %v2381, %v2516
  %v2581 = vsel %vm2446, %v2382, %v2517
  %v2582 = vsel %vm2447, %v2383, %v2518
  %v2583 = vsel %vm2448, %v2384, %v2519
  %v2584 = vsel %vm2449, %v2385, %v2520
  %v2585 = vsel %vm2450, %v2386, %v2521
  %v2586 = vsel %vm2451, %v2387, %v2522
  %v2587 = vsel %vm2452, %v2388, %v2523
  %v2588 = vsel %vm2453, %v2389, %v2524
  %v2589 = vsel %vm2454, %v2390, %v2525
  %v2590 = vsel %vm2455, %v2391, %v2526
  %v2591 = vsel %vm2456, %v2392, %v2527
  %v2592 = vsel %vm2457, %v2393, %v2528
  %v2593 = vsel %vm2458, %v2394, %v2529
  %v2594 = vsel %vm2459, %v2395, %v2530
  %v2595 = vsel %vm2460, %v2396, %v2531
  %v2596 = vsel %vm2461, %v2397, %v2532
  %v2597 = vsel %vm2462, %v2398, %v2533
  %v2598 = vsel %vm2463, %v2399, %v2534
  %v2599 = vsel %vm2464, %v2400, %v2535
  %v2600 = vsel %vm2465, %v2401, %v2536
  %v2601 = vsel %vm2466, %v2402, %v2537
  %v2602 = vsel %vm2467, %v2403, %v2538
  %v2603 = vsel %vm2468, %v2404, %v2539
  %v2604 = vsel %vm2469, %v2405, %v2540
  %v2605 = vsel %vm2470, %v2406, %v2541
  %v2606 = vpack.c.bf16 %v2543, %v2542
  %v2607 = vpack.c.bf16 %v2545, %v2544
  %v2608 = vpack.c.bf16 %v2547, %v2546
  %v2609 = vpack.c.bf16 %v2549, %v2548
  %v2610 = vpack.c.bf16 %v2551, %v2550
  %v2611 = vpack.c.bf16 %v2553, %v2552
  %v2612 = vpack.c.bf16 %v2555, %v2554
  %v2613 = vpack.c.bf16 %v2557, %v2556
  %v2614 = vpack.c.bf16 %v2559, %v2558
  %v2615 = vpack.c.bf16 %v2561, %v2560
  %v2616 = vpack.c.bf16 %v2563, %v2562
  %v2617 = vpack.c.bf16 %v2565, %v2564
  %v2618 = vpack.c.bf16 %v2567, %v2566
  %v2619 = vpack.c.bf16 %v2569, %v2568
  %v2620 = vpack.c.bf16 %v2571, %v2570
  %v2621 = vpack.c.bf16 %v2573, %v2572
  %v2622 = vpack.c.bf16 %v2575, %v2574
  %v2623 = vpack.c.bf16 %v2577, %v2576
  %v2624 = vpack.c.bf16 %v2579, %v2578
  %v2625 = vpack.c.bf16 %v2581, %v2580
  %v2626 = vpack.c.bf16 %v2583, %v2582
  %v2627 = vpack.c.bf16 %v2585, %v2584
  %v2628 = vpack.c.bf16 %v2587, %v2586
  %v2629 = vpack.c.bf16 %v2589, %v2588
  %v2630 = vpack.c.bf16 %v2591, %v2590
  %v2631 = vpack.c.bf16 %v2593, %v2592
  %v2632 = vpack.c.bf16 %v2595, %v2594
  %v2633 = vpack.c.bf16 %v2597, %v2596
  %v2634 = vpack.c.bf16 %v2599, %v2598
  %v2635 = vpack.c.bf16 %v2601, %v2600
  %v2636 = vpack.c.bf16 %v2603, %v2602
  %v2637 = vpack.c.bf16 %v2605, %v2604
  %v2670 = vunpack.c.l.b16 %v2606
  %v2671 = vunpack.c.h.b16 %v2606
  %v2672 = vunpack.c.l.b16 %v2607
  %v2673 = vunpack.c.h.b16 %v2607
  %v2674 = vunpack.c.l.b16 %v2608
  %v2675 = vunpack.c.h.b16 %v2608
  %v2676 = vunpack.c.l.b16 %v2609
  %v2677 = vunpack.c.h.b16 %v2609
  %v2678 = vunpack.c.l.b16 %v2610
  %v2679 = vunpack.c.h.b16 %v2610
  %v2680 = vunpack.c.l.b16 %v2611
  %v2681 = vunpack.c.h.b16 %v2611
  %v2682 = vunpack.c.l.b16 %v2612
  %v2683 = vunpack.c.h.b16 %v2612
  %v2684 = vunpack.c.l.b16 %v2613
  %v2685 = vunpack.c.h.b16 %v2613
  %v2686 = vunpack.c.l.b16 %v2614
  %v2687 = vunpack.c.h.b16 %v2614
  %v2688 = vunpack.c.l.b16 %v2615
  %v2689 = vunpack.c.h.b16 %v2615
  %v2690 = vunpack.c.l.b16 %v2616
  %v2691 = vunpack.c.h.b16 %v2616
  %v2692 = vunpack.c.l.b16 %v2617
  %v2693 = vunpack.c.h.b16 %v2617
  %v2694 = vunpack.c.l.b16 %v2618
  %v2695 = vunpack.c.h.b16 %v2618
  %v2696 = vunpack.c.l.b16 %v2619
  %v2697 = vunpack.c.h.b16 %v2619
  %v2698 = vunpack.c.l.b16 %v2620
  %v2699 = vunpack.c.h.b16 %v2620
  %v2700 = vunpack.c.l.b16 %v2621
  %v2701 = vunpack.c.h.b16 %v2621
  %v2702 = vunpack.c.l.b16 %v2622
  %v2703 = vunpack.c.h.b16 %v2622
  %v2704 = vunpack.c.l.b16 %v2623
  %v2705 = vunpack.c.h.b16 %v2623
  %v2706 = vunpack.c.l.b16 %v2624
  %v2707 = vunpack.c.h.b16 %v2624
  %v2708 = vunpack.c.l.b16 %v2625
  %v2709 = vunpack.c.h.b16 %v2625
  %v2710 = vunpack.c.l.b16 %v2626
  %v2711 = vunpack.c.h.b16 %v2626
  %v2712 = vunpack.c.l.b16 %v2627
  %v2713 = vunpack.c.h.b16 %v2627
  %v2714 = vunpack.c.l.b16 %v2628
  %v2715 = vunpack.c.h.b16 %v2628
  %v2716 = vunpack.c.l.b16 %v2629
  %v2717 = vunpack.c.h.b16 %v2629
  %v2718 = vunpack.c.l.b16 %v2630
  %v2719 = vunpack.c.h.b16 %v2630
  %v2720 = vunpack.c.l.b16 %v2631
  %v2721 = vunpack.c.h.b16 %v2631
  %v2722 = vunpack.c.l.b16 %v2632
  %v2723 = vunpack.c.h.b16 %v2632
  %v2724 = vunpack.c.l.b16 %v2633
  %v2725 = vunpack.c.h.b16 %v2633
  %v2726 = vunpack.c.l.b16 %v2634
  %v2727 = vunpack.c.h.b16 %v2634
  %v2728 = vunpack.c.l.b16 %v2635
  %v2729 = vunpack.c.h.b16 %v2635
  %v2730 = vunpack.c.l.b16 %v2636
  %v2731 = vunpack.c.h.b16 %v2636
  %v2732 = vunpack.c.l.b16 %v2637
  %v2733 = vunpack.c.h.b16 %v2637
  %v2734 = vpack.c.b16 %v2670, %v2670
  %v2735 = vpack.c.b16 %v2671, %v2671
  %v2736 = vpack.c.b16 %v2672, %v2672
  %v2737 = vpack.c.b16 %v2673, %v2673
  %v2738 = vpack.c.b16 %v2674, %v2674
  %v2739 = vpack.c.b16 %v2675, %v2675
  %v2740 = vpack.c.b16 %v2676, %v2676
  %v2741 = vpack.c.b16 %v2677, %v2677
  %v2742 = vpack.c.b16 %v2678, %v2678
  %v2743 = vpack.c.b16 %v2679, %v2679
  %v2744 = vpack.c.b16 %v2680, %v2680
  %v2745 = vpack.c.b16 %v2681, %v2681
  %v2746 = vpack.c.b16 %v2682, %v2682
  %v2747 = vpack.c.b16 %v2683, %v2683
  %v2748 = vpack.c.b16 %v2684, %v2684
  %v2749 = vpack.c.b16 %v2685, %v2685
  %v2750 = vpack.c.b16 %v2686, %v2686
  %v2751 = vpack.c.b16 %v2687, %v2687
  %v2752 = vpack.c.b16 %v2688, %v2688
  %v2753 = vpack.c.b16 %v2689, %v2689
  %v2754 = vpack.c.b16 %v2690, %v2690
  %v2755 = vpack.c.b16 %v2691, %v2691
  %v2756 = vpack.c.b16 %v2692, %v2692
  %v2757 = vpack.c.b16 %v2693, %v2693
  %v2758 = vpack.c.b16 %v2694, %v2694
  %v2759 = vpack.c.b16 %v2695, %v2695
  %v2760 = vpack.c.b16 %v2696, %v2696
  %v2761 = vpack.c.b16 %v2697, %v2697
  %v2762 = vpack.c.b16 %v2698, %v2698
  %v2763 = vpack.c.b16 %v2699, %v2699
  %v2764 = vpack.c.b16 %v2700, %v2700
  %v2765 = vpack.c.b16 %v2701, %v2701
  %v2766 = vpack.c.b16 %v2702, %v2702
  %v2767 = vpack.c.b16 %v2703, %v2703
  %v2768 = vpack.c.b16 %v2704, %v2704
  %v2769 = vpack.c.b16 %v2705, %v2705
  %v2770 = vpack.c.b16 %v2706, %v2706
  %v2771 = vpack.c.b16 %v2707, %v2707
  %v2772 = vpack.c.b16 %v2708, %v2708
  %v2773 = vpack.c.b16 %v2709, %v2709
  %v2774 = vpack.c.b16 %v2710, %v2710
  %v2775 = vpack.c.b16 %v2711, %v2711
  %v2776 = vpack.c.b16 %v2712, %v2712
  %v2777 = vpack.c.b16 %v2713, %v2713
  %v2778 = vpack.c.b16 %v2714, %v2714
  %v2779 = vpack.c.b16 %v2715, %v2715
  %v2780 = vpack.c.b16 %v2716, %v2716
  %v2781 = vpack.c.b16 %v2717, %v2717
  %v2782 = vpack.c.b16 %v2718, %v2718
  %v2783 = vpack.c.b16 %v2719, %v2719
  %v2784 = vpack.c.b16 %v2720, %v2720
  %v2785 = vpack.c.b16 %v2721, %v2721
  %v2786 = vpack.c.b16 %v2722, %v2722
  %v2787 = vpack.c.b16 %v2723, %v2723
  %v2788 = vpack.c.b16 %v2724, %v2724
  %v2789 = vpack.c.b16 %v2725, %v2725
  %v2790 = vpack.c.b16 %v2726, %v2726
  %v2791 = vpack.c.b16 %v2727, %v2727
  %v2792 = vpack.c.b16 %v2728, %v2728
  %v2793 = vpack.c.b16 %v2729, %v2729
  %v2794 = vpack.c.b16 %v2730, %v2730
  %v2795 = vpack.c.b16 %v2731, %v2731
  %v2796 = vpack.c.b16 %v2732, %v2732
  %v2797 = vpack.c.b16 %v2733, %v2733
  %vm2862 = vcmask 519168
  %2863 = vst.msk [vmem:[%s5] sm:$0xf] %vm2862, %v2734
  %2864 = vst.msk [vmem:[%s5 + $0x4] sm:$0xf] %vm2862, %v2735
  %2865 = vst.msk [vmem:[%s5 + $0x8] sm:$0xf] %vm2862, %v2736
  %2866 = vst.msk [vmem:[%s5 + $0xc] sm:$0xf] %vm2862, %v2737
  %2867 = vst.msk [vmem:[%s5 + $0x10] sm:$0xf] %vm2862, %v2738
  %2868 = vst.msk [vmem:[%s5 + $0x14] sm:$0xf] %vm2862, %v2739
  %2869 = vst.msk [vmem:[%s5 + $0x18] sm:$0xf] %vm2862, %v2740
  %2870 = vst.msk [vmem:[%s5 + $0x1c] sm:$0xf] %vm2862, %v2741
  %2871 = vst.msk [vmem:[%s5 + $0x20] sm:$0xf] %vm2862, %v2742
  %2872 = vst.msk [vmem:[%s5 + $0x24] sm:$0xf] %vm2862, %v2743
  %2873 = vst.msk [vmem:[%s5 + $0x28] sm:$0xf] %vm2862, %v2744
  %2874 = vst.msk [vmem:[%s5 + $0x2c] sm:$0xf] %vm2862, %v2745
  %2875 = vst.msk [vmem:[%s5 + $0x30] sm:$0xf] %vm2862, %v2746
  %2876 = vst.msk [vmem:[%s5 + $0x34] sm:$0xf] %vm2862, %v2747
  %2877 = vst.msk [vmem:[%s5 + $0x38] sm:$0xf] %vm2862, %v2748
  %2878 = vst.msk [vmem:[%s5 + $0x3c] sm:$0xf] %vm2862, %v2749
  %2879 = vst.msk [vmem:[%s5 + $0x40] sm:$0xf] %vm2862, %v2750
  %2880 = vst.msk [vmem:[%s5 + $0x44] sm:$0xf] %vm2862, %v2751
  %2881 = vst.msk [vmem:[%s5 + $0x48] sm:$0xf] %vm2862, %v2752
  %2882 = vst.msk [vmem:[%s5 + $0x4c] sm:$0xf] %vm2862, %v2753
  %2883 = vst.msk [vmem:[%s5 + $0x50] sm:$0xf] %vm2862, %v2754
  %2884 = vst.msk [vmem:[%s5 + $0x54] sm:$0xf] %vm2862, %v2755
  %2885 = vst.msk [vmem:[%s5 + $0x58] sm:$0xf] %vm2862, %v2756
  %2886 = vst.msk [vmem:[%s5 + $0x5c] sm:$0xf] %vm2862, %v2757
  %2887 = vst.msk [vmem:[%s5 + $0x60] sm:$0xf] %vm2862, %v2758
  %2888 = vst.msk [vmem:[%s5 + $0x64] sm:$0xf] %vm2862, %v2759
  %2889 = vst.msk [vmem:[%s5 + $0x68] sm:$0xf] %vm2862, %v2760
  %2890 = vst.msk [vmem:[%s5 + $0x6c] sm:$0xf] %vm2862, %v2761
  %2891 = vst.msk [vmem:[%s5 + $0x70] sm:$0xf] %vm2862, %v2762
  %2892 = vst.msk [vmem:[%s5 + $0x74] sm:$0xf] %vm2862, %v2763
  %2893 = vst.msk [vmem:[%s5 + $0x78] sm:$0xf] %vm2862, %v2764
  %2894 = vst.msk [vmem:[%s5 + $0x7c] sm:$0xf] %vm2862, %v2765
  %2895 = vst.msk [vmem:[%s5 + $0x80] sm:$0xf] %vm2862, %v2766
  %2896 = vst.msk [vmem:[%s5 + $0x84] sm:$0xf] %vm2862, %v2767
  %2897 = vst.msk [vmem:[%s5 + $0x88] sm:$0xf] %vm2862, %v2768
  %2898 = vst.msk [vmem:[%s5 + $0x8c] sm:$0xf] %vm2862, %v2769
  %2899 = vst.msk [vmem:[%s5 + $0x90] sm:$0xf] %vm2862, %v2770
  %2900 = vst.msk [vmem:[%s5 + $0x94] sm:$0xf] %vm2862, %v2771
  %2901 = vst.msk [vmem:[%s5 + $0x98] sm:$0xf] %vm2862, %v2772
  %2902 = vst.msk [vmem:[%s5 + $0x9c] sm:$0xf] %vm2862, %v2773
  %2903 = vst.msk [vmem:[%s5 + $0xa0] sm:$0xf] %vm2862, %v2774
  %2904 = vst.msk [vmem:[%s5 + $0xa4] sm:$0xf] %vm2862, %v2775
  %2905 = vst.msk [vmem:[%s5 + $0xa8] sm:$0xf] %vm2862, %v2776
  %2906 = vst.msk [vmem:[%s5 + $0xac] sm:$0xf] %vm2862, %v2777
  %2907 = vst.msk [vmem:[%s5 + $0xb0] sm:$0xf] %vm2862, %v2778
  %2908 = vst.msk [vmem:[%s5 + $0xb4] sm:$0xf] %vm2862, %v2779
  %2909 = vst.msk [vmem:[%s5 + $0xb8] sm:$0xf] %vm2862, %v2780
  %2910 = vst.msk [vmem:[%s5 + $0xbc] sm:$0xf] %vm2862, %v2781
  %2911 = vst.msk [vmem:[%s5 + $0xc0] sm:$0xf] %vm2862, %v2782
  %2912 = vst.msk [vmem:[%s5 + $0xc4] sm:$0xf] %vm2862, %v2783
  %2913 = vst.msk [vmem:[%s5 + $0xc8] sm:$0xf] %vm2862, %v2784
  %2914 = vst.msk [vmem:[%s5 + $0xcc] sm:$0xf] %vm2862, %v2785
  %2915 = vst.msk [vmem:[%s5 + $0xd0] sm:$0xf] %vm2862, %v2786
  %2916 = vst.msk [vmem:[%s5 + $0xd4] sm:$0xf] %vm2862, %v2787
  %2917 = vst.msk [vmem:[%s5 + $0xd8] sm:$0xf] %vm2862, %v2788
  %2918 = vst.msk [vmem:[%s5 + $0xdc] sm:$0xf] %vm2862, %v2789
  %2919 = vst.msk [vmem:[%s5 + $0xe0] sm:$0xf] %vm2862, %v2790
  %2920 = vst.msk [vmem:[%s5 + $0xe4] sm:$0xf] %vm2862, %v2791
  %2921 = vst.msk [vmem:[%s5 + $0xe8] sm:$0xf] %vm2862, %v2792
  %2922 = vst.msk [vmem:[%s5 + $0xec] sm:$0xf] %vm2862, %v2793
  %2923 = vst.msk [vmem:[%s5 + $0xf0] sm:$0xf] %vm2862, %v2794
  %2924 = vst.msk [vmem:[%s5 + $0xf4] sm:$0xf] %vm2862, %v2795
  %2925 = vst.msk [vmem:[%s5 + $0xf8] sm:$0xf] %vm2862, %v2796
  %2926 = vst.msk [vmem:[%s5 + $0xfc] sm:$0xf] %vm2862, %v2797
  // Predicated region
  $region22: #{_lambda_.8} parent=0 // pred_check
    _
  $region23: #{_lambda_.8} parent=0 // pred_check_branch
    %2928 = sbr.rel (0) target = $region25
  $region24: #{_lambda_.8} parent=0 // pred_region
    _
  $region25: #{_lambda_.8} parent=0 // pred_fallthru
    _
  // Predicated region
  $region26: #{_lambda_.8} parent=0 // pred_check
    _
  $region27: #{_lambda_.8} parent=0 // pred_check_branch
    %2930 = sbr.rel (0) target = $region29
  $region28: #{_lambda_.8} parent=0 // pred_region
    _
  $region29: #{_lambda_.8} parent=0 // pred_fallthru
    _

// kernel: _lambda_.9
$region0: #{_lambda_.9}
  #allocation0 [shape = 'u32[]', space=smem, size = 0x4, offset = 0x4, fixed_abs, tag = 'smem constant byte address 0x4 - core index']
  #allocation1 [shape = 'u32[144,128]{1,0:T(1,128)}', space=vmem, size = 0x12000, scoped, tag = 'internal scratch']
  %s0 = inlined_call_operand.vmem [shape: bf16[512,576], index: 0, kind: input, shape index: {}]
  %s1 = inlined_call_operand.vmem [shape: bf16[576,64], index: 1, kind: input, shape index: {}]
  %s2 = inlined_call_operand.vmem [shape: f32[1,64], index: 2, kind: input, shape index: {}]
  %s3 = inlined_call_operand.vmem [shape: f32[1,64], index: 3, kind: input, shape index: {}]
  %s4 = inlined_call_operand.vmem [shape: f32[512,64], index: 4, kind: input, shape index: {}]
  %s5 = inlined_call_operand.hbm [shape: f32[512,64], index: 5, kind: output, shape index: {}]
  %s6 = sld [smem:[#allocation0]]
  $region30: #{_lambda_.9} parent=0
    _
  %s8 = ssub.s32 1, %s6
  %s9 = scalar_select 0, %s8, %s6
  $region1: #{_lambda_.9} parent=0
    #allocation2 [shape = 'u8[262144]{0}', space=vmem, size = 0x40000, scoped, tag = 'output window, operand 0, single buffered']
    #allocation3 [shape = 's32[1]{0}', space=sflag, size = 0x4, scoped, tag = 'scoped memory for _lambda_.9']
    %10 = vsyncpa [#allocation3], 0
    // Predicated region
    $region2: #{_lambda_.9} parent=1 // pred_check
      _
    $region3: #{_lambda_.9} parent=1 // pred_check_branch
      %12 = sbr.rel (0) target = $region5
    $region4: #{_lambda_.9} parent=1 // pred_region
      _
    $region5: #{_lambda_.9} parent=1 // pred_fallthru
      _
    // Predicated region
    $region6: #{_lambda_.9} parent=1 // pred_check
      _
    $region7: #{_lambda_.9} parent=1 // pred_check_branch
      %14 = sbr.rel (0) target = $region9
    $region8: #{_lambda_.9} parent=1 // pred_region
      _
    $region9: #{_lambda_.9} parent=1 // pred_fallthru
      _
    // Predicated region
    $region10: #{_lambda_.9} parent=1 // pred_check
      _
    $region11: #{_lambda_.9} parent=1 // pred_check_branch
      %16 = sbr.rel (0) target = $region13
    $region12: #{_lambda_.9} parent=1 // pred_region
      _
    $region13: #{_lambda_.9} parent=1 // pred_fallthru
      _
    // Predicated region
    $region14: #{_lambda_.9} parent=1 // pred_check
      _
    $region15: #{_lambda_.9} parent=1 // pred_check_branch
      %18 = sbr.rel (0) target = $region17
    $region16: #{_lambda_.9} parent=1 // pred_region
      _
    $region17: #{_lambda_.9} parent=1 // pred_fallthru
      _
    // Predicated region
    $region18: #{_lambda_.9} parent=1 // pred_check
      _
    $region19: #{_lambda_.9} parent=1 // pred_check_branch
      %20 = sbr.rel (0) target = $region21
    $region20: #{_lambda_.9} parent=1 // pred_region
      _
    $region21: #{_lambda_.9} parent=1 // pred_fallthru
      _
    %v22 = vld [vmem:[%s0] sm:$0xff]
    %v23 = vld [vmem:[%s0 + $0x8] sm:$0xff]
    %v24 = vld [vmem:[%s0 + $0x10] sm:$0xf]
    %v25 = vld [vmem:[%s0 + $0x14] sm:$0xff]
    %v26 = vld [vmem:[%s0 + $0x1c] sm:$0xff]
    %v27 = vld [vmem:[%s0 + $0x24] sm:$0xf]
    %v28 = vld [vmem:[%s0 + $0x28] sm:$0xff]
    %v29 = vld [vmem:[%s0 + $0x30] sm:$0xff]
    %v30 = vld [vmem:[%s0 + $0x38] sm:$0xf]
    %v31 = vld [vmem:[%s0 + $0x3c] sm:$0xff]
    %v32 = vld [vmem:[%s0 + $0x44] sm:$0xff]
    %v33 = vld [vmem:[%s0 + $0x4c] sm:$0xf]
    %v34 = vld [vmem:[%s0 + $0x50] sm:$0xff]
    %v35 = vld [vmem:[%s0 + $0x58] sm:$0xff]
    %v36 = vld [vmem:[%s0 + $0x60] sm:$0xf]
    %v37 = vld [vmem:[%s0 + $0x64] sm:$0xff]
    %v38 = vld [vmem:[%s0 + $0x6c] sm:$0xff]
    %v39 = vld [vmem:[%s0 + $0x74] sm:$0xf]
    %v40 = vld [vmem:[%s0 + $0x78] sm:$0xff]
    %v41 = vld [vmem:[%s0 + $0x80] sm:$0xff]
    %v42 = vld [vmem:[%s0 + $0x88] sm:$0xf]
    %v43 = vld [vmem:[%s0 + $0x8c] sm:$0xff]
    %v44 = vld [vmem:[%s0 + $0x94] sm:$0xff]
    %v45 = vld [vmem:[%s0 + $0x9c] sm:$0xf]
    %v46 = vld [vmem:[%s0 + $0xa0] sm:$0xff]
    %v47 = vld [vmem:[%s0 + $0xa8] sm:$0xff]
    %v48 = vld [vmem:[%s0 + $0xb0] sm:$0xf]
    %v49 = vld [vmem:[%s0 + $0xb4] sm:$0xff]
    %v50 = vld [vmem:[%s0 + $0xbc] sm:$0xff]
    %v51 = vld [vmem:[%s0 + $0xc4] sm:$0xf]
    %v52 = vld [vmem:[%s0 + $0xc8] sm:$0xff]
    %v53 = vld [vmem:[%s0 + $0xd0] sm:$0xff]
    %v54 = vld [vmem:[%s0 + $0xd8] sm:$0xf]
    %v55 = vld [vmem:[%s0 + $0xdc] sm:$0xff]
    %v56 = vld [vmem:[%s0 + $0xe4] sm:$0xff]
    %v57 = vld [vmem:[%s0 + $0xec] sm:$0xf]
    %v58 = vld [vmem:[%s0 + $0xf0] sm:$0xff]
    %v59 = vld [vmem:[%s0 + $0xf8] sm:$0xff]
    %v60 = vld [vmem:[%s0 + $0x100] sm:$0xf]
    %v61 = vld [vmem:[%s0 + $0x104] sm:$0xff]
    %v62 = vld [vmem:[%s0 + $0x10c] sm:$0xff]
    %v63 = vld [vmem:[%s0 + $0x114] sm:$0xf]
    %v64 = vld [vmem:[%s0 + $0x118] sm:$0xff]
    %v65 = vld [vmem:[%s0 + $0x120] sm:$0xff]
    %v66 = vld [vmem:[%s0 + $0x128] sm:$0xf]
    %v67 = vld [vmem:[%s0 + $0x12c] sm:$0xff]
    %v68 = vld [vmem:[%s0 + $0x134] sm:$0xff]
    %v69 = vld [vmem:[%s0 + $0x13c] sm:$0xf]
    %v70 = vld [vmem:[%s0 + $0x140] sm:$0xff]
    %v71 = vld [vmem:[%s0 + $0x148] sm:$0xff]
    %v72 = vld [vmem:[%s0 + $0x150] sm:$0xf]
    %v73 = vld [vmem:[%s0 + $0x154] sm:$0xff]
    %v74 = vld [vmem:[%s0 + $0x15c] sm:$0xff]
    %v75 = vld [vmem:[%s0 + $0x164] sm:$0xf]
    %v76 = vld [vmem:[%s0 + $0x168] sm:$0xff]
    %v77 = vld [vmem:[%s0 + $0x170] sm:$0xff]
    %v78 = vld [vmem:[%s0 + $0x178] sm:$0xf]
    %v79 = vld [vmem:[%s0 + $0x17c] sm:$0xff]
    %v80 = vld [vmem:[%s0 + $0x184] sm:$0xff]
    %v81 = vld [vmem:[%s0 + $0x18c] sm:$0xf]
    %v82 = vld [vmem:[%s0 + $0x190] sm:$0xff]
    %v83 = vld [vmem:[%s0 + $0x198] sm:$0xff]
    %v84 = vld [vmem:[%s0 + $0x1a0] sm:$0xf]
    %v85 = vld [vmem:[%s0 + $0x1a4] sm:$0xff]
    %v86 = vld [vmem:[%s0 + $0x1ac] sm:$0xff]
    %v87 = vld [vmem:[%s0 + $0x1b4] sm:$0xf]
    %v88 = vld [vmem:[%s0 + $0x1b8] sm:$0xff]
    %v89 = vld [vmem:[%s0 + $0x1c0] sm:$0xff]
    %v90 = vld [vmem:[%s0 + $0x1c8] sm:$0xf]
    %v91 = vld [vmem:[%s0 + $0x1cc] sm:$0xff]
    %v92 = vld [vmem:[%s0 + $0x1d4] sm:$0xff]
    %v93 = vld [vmem:[%s0 + $0x1dc] sm:$0xf]
    %v94 = vld [vmem:[%s0 + $0x1e0] sm:$0xff]
    %v95 = vld [vmem:[%s0 + $0x1e8] sm:$0xff]
    %v96 = vld [vmem:[%s0 + $0x1f0] sm:$0xf]
    %v97 = vld [vmem:[%s0 + $0x1f4] sm:$0xff]
    %v98 = vld [vmem:[%s0 + $0x1fc] sm:$0xff]
    %v99 = vld [vmem:[%s0 + $0x204] sm:$0xf]
    %v100 = vld [vmem:[%s0 + $0x208] sm:$0xff]
    %v101 = vld [vmem:[%s0 + $0x210] sm:$0xff]
    %v102 = vld [vmem:[%s0 + $0x218] sm:$0xf]
    %v103 = vld [vmem:[%s0 + $0x21c] sm:$0xff]
    %v104 = vld [vmem:[%s0 + $0x224] sm:$0xff]
    %v105 = vld [vmem:[%s0 + $0x22c] sm:$0xf]
    %v106 = vld [vmem:[%s0 + $0x230] sm:$0xff]
    %v107 = vld [vmem:[%s0 + $0x238] sm:$0xff]
    %v108 = vld [vmem:[%s0 + $0x240] sm:$0xf]
    %v109 = vld [vmem:[%s0 + $0x244] sm:$0xff]
    %v110 = vld [vmem:[%s0 + $0x24c] sm:$0xff]
    %v111 = vld [vmem:[%s0 + $0x254] sm:$0xf]
    %v112 = vld [vmem:[%s0 + $0x258] sm:$0xff]
    %v113 = vld [vmem:[%s0 + $0x260] sm:$0xff]
    %v114 = vld [vmem:[%s0 + $0x268] sm:$0xf]
    %v115 = vld [vmem:[%s0 + $0x26c] sm:$0xff]
    %v116 = vld [vmem:[%s0 + $0x274] sm:$0xff]
    %v117 = vld [vmem:[%s0 + $0x27c] sm:$0xf]
    %v118 = vld [vmem:[%s0 + $0x280] sm:$0xff]
    %v119 = vld [vmem:[%s0 + $0x288] sm:$0xff]
    %v120 = vld [vmem:[%s0 + $0x290] sm:$0xf]
    %v121 = vld [vmem:[%s0 + $0x294] sm:$0xff]
    %v122 = vld [vmem:[%s0 + $0x29c] sm:$0xff]
    %v123 = vld [vmem:[%s0 + $0x2a4] sm:$0xf]
    %v124 = vld [vmem:[%s0 + $0x2a8] sm:$0xff]
    %v125 = vld [vmem:[%s0 + $0x2b0] sm:$0xff]
    %v126 = vld [vmem:[%s0 + $0x2b8] sm:$0xf]
    %v127 = vld [vmem:[%s0 + $0x2bc] sm:$0xff]
    %v128 = vld [vmem:[%s0 + $0x2c4] sm:$0xff]
    %v129 = vld [vmem:[%s0 + $0x2cc] sm:$0xf]
    %v130 = vld [vmem:[%s0 + $0x2d0] sm:$0xff]
    %v131 = vld [vmem:[%s0 + $0x2d8] sm:$0xff]
    %v132 = vld [vmem:[%s0 + $0x2e0] sm:$0xf]
    %v133 = vld [vmem:[%s0 + $0x2e4] sm:$0xff]
    %v134 = vld [vmem:[%s0 + $0x2ec] sm:$0xff]
    %v135 = vld [vmem:[%s0 + $0x2f4] sm:$0xf]
    %v136 = vld [vmem:[%s0 + $0x2f8] sm:$0xff]
    %v137 = vld [vmem:[%s0 + $0x300] sm:$0xff]
    %v138 = vld [vmem:[%s0 + $0x308] sm:$0xf]
    %v139 = vld [vmem:[%s0 + $0x30c] sm:$0xff]
    %v140 = vld [vmem:[%s0 + $0x314] sm:$0xff]
    %v141 = vld [vmem:[%s0 + $0x31c] sm:$0xf]
    %v142 = vld [vmem:[%s0 + $0x320] sm:$0xff]
    %v143 = vld [vmem:[%s0 + $0x328] sm:$0xff]
    %v144 = vld [vmem:[%s0 + $0x330] sm:$0xf]
    %v145 = vld [vmem:[%s0 + $0x334] sm:$0xff]
    %v146 = vld [vmem:[%s0 + $0x33c] sm:$0xff]
    %v147 = vld [vmem:[%s0 + $0x344] sm:$0xf]
    %v148 = vld [vmem:[%s0 + $0x348] sm:$0xff]
    %v149 = vld [vmem:[%s0 + $0x350] sm:$0xff]
    %v150 = vld [vmem:[%s0 + $0x358] sm:$0xf]
    %v151 = vld [vmem:[%s0 + $0x35c] sm:$0xff]
    %v152 = vld [vmem:[%s0 + $0x364] sm:$0xff]
    %v153 = vld [vmem:[%s0 + $0x36c] sm:$0xf]
    %v154 = vld [vmem:[%s0 + $0x370] sm:$0xff]
    %v155 = vld [vmem:[%s0 + $0x378] sm:$0xff]
    %v156 = vld [vmem:[%s0 + $0x380] sm:$0xf]
    %v157 = vld [vmem:[%s0 + $0x384] sm:$0xff]
    %v158 = vld [vmem:[%s0 + $0x38c] sm:$0xff]
    %v159 = vld [vmem:[%s0 + $0x394] sm:$0xf]
    %v160 = vld [vmem:[%s0 + $0x398] sm:$0xff]
    %v161 = vld [vmem:[%s0 + $0x3a0] sm:$0xff]
    %v162 = vld [vmem:[%s0 + $0x3a8] sm:$0xf]
    %v163 = vld [vmem:[%s0 + $0x3ac] sm:$0xff]
    %v164 = vld [vmem:[%s0 + $0x3b4] sm:$0xff]
    %v165 = vld [vmem:[%s0 + $0x3bc] sm:$0xf]
    %v166 = vld [vmem:[%s0 + $0x3c0] sm:$0xff]
    %v167 = vld [vmem:[%s0 + $0x3c8] sm:$0xff]
    %v168 = vld [vmem:[%s0 + $0x3d0] sm:$0xf]
    %v169 = vld [vmem:[%s0 + $0x3d4] sm:$0xff]
    %v170 = vld [vmem:[%s0 + $0x3dc] sm:$0xff]
    %v171 = vld [vmem:[%s0 + $0x3e4] sm:$0xf]
    %v172 = vld [vmem:[%s0 + $0x3e8] sm:$0xff]
    %v173 = vld [vmem:[%s0 + $0x3f0] sm:$0xff]
    %v174 = vld [vmem:[%s0 + $0x3f8] sm:$0xf]
    %v175 = vld [vmem:[%s0 + $0x3fc] sm:$0xff]
    %v176 = vld [vmem:[%s0 + $0x404] sm:$0xff]
    %v177 = vld [vmem:[%s0 + $0x40c] sm:$0xf]
    %v178 = vld [vmem:[%s0 + $0x410] sm:$0xff]
    %v179 = vld [vmem:[%s0 + $0x418] sm:$0xff]
    %v180 = vld [vmem:[%s0 + $0x420] sm:$0xf]
    %v181 = vld [vmem:[%s0 + $0x424] sm:$0xff]
    %v182 = vld [vmem:[%s0 + $0x42c] sm:$0xff]
    %v183 = vld [vmem:[%s0 + $0x434] sm:$0xf]
    %v184 = vld [vmem:[%s0 + $0x438] sm:$0xff]
    %v185 = vld [vmem:[%s0 + $0x440] sm:$0xff]
    %v186 = vld [vmem:[%s0 + $0x448] sm:$0xf]
    %v187 = vld [vmem:[%s0 + $0x44c] sm:$0xff]
    %v188 = vld [vmem:[%s0 + $0x454] sm:$0xff]
    %v189 = vld [vmem:[%s0 + $0x45c] sm:$0xf]
    %v190 = vld [vmem:[%s0 + $0x460] sm:$0xff]
    %v191 = vld [vmem:[%s0 + $0x468] sm:$0xff]
    %v192 = vld [vmem:[%s0 + $0x470] sm:$0xf]
    %v193 = vld [vmem:[%s0 + $0x474] sm:$0xff]
    %v194 = vld [vmem:[%s0 + $0x47c] sm:$0xff]
    %v195 = vld [vmem:[%s0 + $0x484] sm:$0xf]
    %v196 = vld [vmem:[%s0 + $0x488] sm:$0xff]
    %v197 = vld [vmem:[%s0 + $0x490] sm:$0xff]
    %v198 = vld [vmem:[%s0 + $0x498] sm:$0xf]
    %v199 = vld [vmem:[%s0 + $0x49c] sm:$0xff]
    %v200 = vld [vmem:[%s0 + $0x4a4] sm:$0xff]
    %v201 = vld [vmem:[%s0 + $0x4ac] sm:$0xf]
    %v202 = vld [vmem:[%s0 + $0x4b0] sm:$0xff]
    %v203 = vld [vmem:[%s0 + $0x4b8] sm:$0xff]
    %v204 = vld [vmem:[%s0 + $0x4c0] sm:$0xf]
    %v205 = vld [vmem:[%s0 + $0x4c4] sm:$0xff]
    %v206 = vld [vmem:[%s0 + $0x4cc] sm:$0xff]
    %v207 = vld [vmem:[%s0 + $0x4d4] sm:$0xf]
    %v208 = vld [vmem:[%s0 + $0x4d8] sm:$0xff]
    %v209 = vld [vmem:[%s0 + $0x4e0] sm:$0xff]
    %v210 = vld [vmem:[%s0 + $0x4e8] sm:$0xf]
    %v211 = vld [vmem:[%s0 + $0x4ec] sm:$0xff]
    %v212 = vld [vmem:[%s0 + $0x4f4] sm:$0xff]
    %v213 = vld [vmem:[%s0 + $0x4fc] sm:$0xf]
    %v214 = vld [vmem:[%s1] sm:$0xf]
    %v215 = vld [vmem:[%s1 + $0x4] sm:$0xf]
    %v216 = vld [vmem:[%s1 + $0x8] sm:$0xf]
    %v217 = vld [vmem:[%s1 + $0xc] sm:$0xf]
    %v218 = vld [vmem:[%s1 + $0x10] sm:$0xf]
    %v219 = vld [vmem:[%s1 + $0x14] sm:$0xf]
    %v220 = vld [vmem:[%s1 + $0x18] sm:$0xf]
    %v221 = vld [vmem:[%s1 + $0x1c] sm:$0xf]
    %v222 = vld [vmem:[%s1 + $0x20] sm:$0xf]
    %v223 = vld [vmem:[%s1 + $0x24] sm:$0xf]
    %v224 = vld [vmem:[%s1 + $0x28] sm:$0xf]
    %v225 = vld [vmem:[%s1 + $0x2c] sm:$0xf]
    %v226 = vld [vmem:[%s1 + $0x30] sm:$0xf]
    %v227 = vld [vmem:[%s1 + $0x34] sm:$0xf]
    %v228 = vld [vmem:[%s1 + $0x38] sm:$0xf]
    %v229 = vld [vmem:[%s1 + $0x3c] sm:$0xf]
    %v230 = vld [vmem:[%s1 + $0x40] sm:$0xf]
    %v231 = vld [vmem:[%s1 + $0x44] sm:$0xf]
    %v232 = vld [vmem:[%s1 + $0x48] sm:$0xf]
    %v233 = vld [vmem:[%s1 + $0x4c] sm:$0xf]
    %v234 = vld [vmem:[%s1 + $0x50] sm:$0xf]
    %v235 = vld [vmem:[%s1 + $0x54] sm:$0xf]
    %v236 = vld [vmem:[%s1 + $0x58] sm:$0xf]
    %v237 = vld [vmem:[%s1 + $0x5c] sm:$0xf]
    %v238 = vld [vmem:[%s1 + $0x60] sm:$0xf]
    %v239 = vld [vmem:[%s1 + $0x64] sm:$0xf]
    %v240 = vld [vmem:[%s1 + $0x68] sm:$0xf]
    %v241 = vld [vmem:[%s1 + $0x6c] sm:$0xf]
    %v242 = vld [vmem:[%s1 + $0x70] sm:$0xf]
    %v243 = vld [vmem:[%s1 + $0x74] sm:$0xf]
    %v244 = vld [vmem:[%s1 + $0x78] sm:$0xf]
    %v245 = vld [vmem:[%s1 + $0x7c] sm:$0xf]
    %v246 = vld [vmem:[%s1 + $0x80] sm:$0xf]
    %v247 = vld [vmem:[%s1 + $0x84] sm:$0xf]
    %v248 = vld [vmem:[%s1 + $0x88] sm:$0xf]
    %v249 = vld [vmem:[%s1 + $0x8c] sm:$0xf]
    %v250 = vld [vmem:[%s1 + $0x90] sm:$0xf]
    %v251 = vld [vmem:[%s1 + $0x94] sm:$0xf]
    %v252 = vld [vmem:[%s1 + $0x98] sm:$0xf]
    %v253 = vld [vmem:[%s1 + $0x9c] sm:$0xf]
    %v254 = vld [vmem:[%s1 + $0xa0] sm:$0xf]
    %v255 = vld [vmem:[%s1 + $0xa4] sm:$0xf]
    %v256 = vld [vmem:[%s1 + $0xa8] sm:$0xf]
    %v257 = vld [vmem:[%s1 + $0xac] sm:$0xf]
    %v258 = vld [vmem:[%s1 + $0xb0] sm:$0xf]
    %v259 = vld [vmem:[%s1 + $0xb4] sm:$0xf]
    %v260 = vld [vmem:[%s1 + $0xb8] sm:$0xf]
    %v261 = vld [vmem:[%s1 + $0xbc] sm:$0xf]
    %v262 = vld [vmem:[%s1 + $0xc0] sm:$0xf]
    %v263 = vld [vmem:[%s1 + $0xc4] sm:$0xf]
    %v264 = vld [vmem:[%s1 + $0xc8] sm:$0xf]
    %v265 = vld [vmem:[%s1 + $0xcc] sm:$0xf]
    %v266 = vld [vmem:[%s1 + $0xd0] sm:$0xf]
    %v267 = vld [vmem:[%s1 + $0xd4] sm:$0xf]
    %v268 = vld [vmem:[%s1 + $0xd8] sm:$0xf]
    %v269 = vld [vmem:[%s1 + $0xdc] sm:$0xf]
    %v270 = vld [vmem:[%s1 + $0xe0] sm:$0xf]
    %v271 = vld [vmem:[%s1 + $0xe4] sm:$0xf]
    %v272 = vld [vmem:[%s1 + $0xe8] sm:$0xf]
    %v273 = vld [vmem:[%s1 + $0xec] sm:$0xf]
    %v274 = vld [vmem:[%s1 + $0xf0] sm:$0xf]
    %v275 = vld [vmem:[%s1 + $0xf4] sm:$0xf]
    %v276 = vld [vmem:[%s1 + $0xf8] sm:$0xf]
    %v277 = vld [vmem:[%s1 + $0xfc] sm:$0xf]
    %v278 = vld [vmem:[%s1 + $0x100] sm:$0xf]
    %v279 = vld [vmem:[%s1 + $0x104] sm:$0xf]
    %v280 = vld [vmem:[%s1 + $0x108] sm:$0xf]
    %v281 = vld [vmem:[%s1 + $0x10c] sm:$0xf]
    %v282 = vld [vmem:[%s1 + $0x110] sm:$0xf]
    %v283 = vld [vmem:[%s1 + $0x114] sm:$0xf]
    %v284 = vld [vmem:[%s1 + $0x118] sm:$0xf]
    %v285 = vld [vmem:[%s1 + $0x11c] sm:$0xf]
    %v478 = vunpack.c.l.b16 %v22
    %v479 = vunpack.c.h.b16 %v22
    %v480 = vunpack.c.l.b16 %v23
    %v481 = vunpack.c.h.b16 %v23
    %v482 = vunpack.c.l.b16 %v24
    %v483 = vunpack.c.l.b16 %v25
    %v484 = vunpack.c.h.b16 %v25
    %v485 = vunpack.c.l.b16 %v26
    %v486 = vunpack.c.h.b16 %v26
    %v487 = vunpack.c.l.b16 %v27
    %v488 = vunpack.c.l.b16 %v28
    %v489 = vunpack.c.h.b16 %v28
    %v490 = vunpack.c.l.b16 %v29
    %v491 = vunpack.c.h.b16 %v29
    %v492 = vunpack.c.l.b16 %v30
    %v493 = vunpack.c.l.b16 %v31
    %v494 = vunpack.c.h.b16 %v31
    %v495 = vunpack.c.l.b16 %v32
    %v496 = vunpack.c.h.b16 %v32
    %v497 = vunpack.c.l.b16 %v33
    %v498 = vunpack.c.l.b16 %v34
    %v499 = vunpack.c.h.b16 %v34
    %v500 = vunpack.c.l.b16 %v35
    %v501 = vunpack.c.h.b16 %v35
    %v502 = vunpack.c.l.b16 %v36
    %v503 = vunpack.c.l.b16 %v37
    %v504 = vunpack.c.h.b16 %v37
    %v505 = vunpack.c.l.b16 %v38
    %v506 = vunpack.c.h.b16 %v38
    %v507 = vunpack.c.l.b16 %v39
    %v508 = vunpack.c.l.b16 %v40
    %v509 = vunpack.c.h.b16 %v40
    %v510 = vunpack.c.l.b16 %v41
    %v511 = vunpack.c.h.b16 %v41
    %v512 = vunpack.c.l.b16 %v42
    %v513 = vunpack.c.l.b16 %v43
    %v514 = vunpack.c.h.b16 %v43
    %v515 = vunpack.c.l.b16 %v44
    %v516 = vunpack.c.h.b16 %v44
    %v517 = vunpack.c.l.b16 %v45
    %v518 = vunpack.c.l.b16 %v46
    %v519 = vunpack.c.h.b16 %v46
    %v520 = vunpack.c.l.b16 %v47
    %v521 = vunpack.c.h.b16 %v47
    %v522 = vunpack.c.l.b16 %v48
    %v523 = vunpack.c.l.b16 %v49
    %v524 = vunpack.c.h.b16 %v49
    %v525 = vunpack.c.l.b16 %v50
    %v526 = vunpack.c.h.b16 %v50
    %v527 = vunpack.c.l.b16 %v51
    %v528 = vunpack.c.l.b16 %v52
    %v529 = vunpack.c.h.b16 %v52
    %v530 = vunpack.c.l.b16 %v53
    %v531 = vunpack.c.h.b16 %v53
    %v532 = vunpack.c.l.b16 %v54
    %v533 = vunpack.c.l.b16 %v55
    %v534 = vunpack.c.h.b16 %v55
    %v535 = vunpack.c.l.b16 %v56
    %v536 = vunpack.c.h.b16 %v56
    %v537 = vunpack.c.l.b16 %v57
    %v538 = vunpack.c.l.b16 %v58
    %v539 = vunpack.c.h.b16 %v58
    %v540 = vunpack.c.l.b16 %v59
    %v541 = vunpack.c.h.b16 %v59
    %v542 = vunpack.c.l.b16 %v60
    %v543 = vunpack.c.l.b16 %v61
    %v544 = vunpack.c.h.b16 %v61
    %v545 = vunpack.c.l.b16 %v62
    %v546 = vunpack.c.h.b16 %v62
    %v547 = vunpack.c.l.b16 %v63
    %v548 = vunpack.c.l.b16 %v64
    %v549 = vunpack.c.h.b16 %v64
    %v550 = vunpack.c.l.b16 %v65
    %v551 = vunpack.c.h.b16 %v65
    %v552 = vunpack.c.l.b16 %v66
    %v553 = vunpack.c.l.b16 %v67
    %v554 = vunpack.c.h.b16 %v67
    %v555 = vunpack.c.l.b16 %v68
    %v556 = vunpack.c.h.b16 %v68
    %v557 = vunpack.c.l.b16 %v69
    %v558 = vunpack.c.l.b16 %v70
    %v559 = vunpack.c.h.b16 %v70
    %v560 = vunpack.c.l.b16 %v71
    %v561 = vunpack.c.h.b16 %v71
    %v562 = vunpack.c.l.b16 %v72
    %v563 = vunpack.c.l.b16 %v73
    %v564 = vunpack.c.h.b16 %v73
    %v565 = vunpack.c.l.b16 %v74
    %v566 = vunpack.c.h.b16 %v74
    %v567 = vunpack.c.l.b16 %v75
    %v568 = vunpack.c.l.b16 %v76
    %v569 = vunpack.c.h.b16 %v76
    %v570 = vunpack.c.l.b16 %v77
    %v571 = vunpack.c.h.b16 %v77
    %v572 = vunpack.c.l.b16 %v78
    %v573 = vunpack.c.l.b16 %v79
    %v574 = vunpack.c.h.b16 %v79
    %v575 = vunpack.c.l.b16 %v80
    %v576 = vunpack.c.h.b16 %v80
    %v577 = vunpack.c.l.b16 %v81
    %v578 = vunpack.c.l.b16 %v82
    %v579 = vunpack.c.h.b16 %v82
    %v580 = vunpack.c.l.b16 %v83
    %v581 = vunpack.c.h.b16 %v83
    %v582 = vunpack.c.l.b16 %v84
    %v583 = vunpack.c.l.b16 %v85
    %v584 = vunpack.c.h.b16 %v85
    %v585 = vunpack.c.l.b16 %v86
    %v586 = vunpack.c.h.b16 %v86
    %v587 = vunpack.c.l.b16 %v87
    %v588 = vunpack.c.l.b16 %v88
    %v589 = vunpack.c.h.b16 %v88
    %v590 = vunpack.c.l.b16 %v89
    %v591 = vunpack.c.h.b16 %v89
    %v592 = vunpack.c.l.b16 %v90
    %v593 = vunpack.c.l.b16 %v91
    %v594 = vunpack.c.h.b16 %v91
    %v595 = vunpack.c.l.b16 %v92
    %v596 = vunpack.c.h.b16 %v92
    %v597 = vunpack.c.l.b16 %v93
    %v598 = vunpack.c.l.b16 %v94
    %v599 = vunpack.c.h.b16 %v94
    %v600 = vunpack.c.l.b16 %v95
    %v601 = vunpack.c.h.b16 %v95
    %v602 = vunpack.c.l.b16 %v96
    %v603 = vunpack.c.l.b16 %v97
    %v604 = vunpack.c.h.b16 %v97
    %v605 = vunpack.c.l.b16 %v98
    %v606 = vunpack.c.h.b16 %v98
    %v607 = vunpack.c.l.b16 %v99
    %v608 = vunpack.c.l.b16 %v100
    %v609 = vunpack.c.h.b16 %v100
    %v610 = vunpack.c.l.b16 %v101
    %v611 = vunpack.c.h.b16 %v101
    %v612 = vunpack.c.l.b16 %v102
    %v613 = vunpack.c.l.b16 %v103
    %v614 = vunpack.c.h.b16 %v103
    %v615 = vunpack.c.l.b16 %v104
    %v616 = vunpack.c.h.b16 %v104
    %v617 = vunpack.c.l.b16 %v105
    %v618 = vunpack.c.l.b16 %v106
    %v619 = vunpack.c.h.b16 %v106
    %v620 = vunpack.c.l.b16 %v107
    %v621 = vunpack.c.h.b16 %v107
    %v622 = vunpack.c.l.b16 %v108
    %v623 = vunpack.c.l.b16 %v109
    %v624 = vunpack.c.h.b16 %v109
    %v625 = vunpack.c.l.b16 %v110
    %v626 = vunpack.c.h.b16 %v110
    %v627 = vunpack.c.l.b16 %v111
    %v628 = vunpack.c.l.b16 %v112
    %v629 = vunpack.c.h.b16 %v112
    %v630 = vunpack.c.l.b16 %v113
    %v631 = vunpack.c.h.b16 %v113
    %v632 = vunpack.c.l.b16 %v114
    %v633 = vunpack.c.l.b16 %v115
    %v634 = vunpack.c.h.b16 %v115
    %v635 = vunpack.c.l.b16 %v116
    %v636 = vunpack.c.h.b16 %v116
    %v637 = vunpack.c.l.b16 %v117
    %v638 = vunpack.c.l.b16 %v118
    %v639 = vunpack.c.h.b16 %v118
    %v640 = vunpack.c.l.b16 %v119
    %v641 = vunpack.c.h.b16 %v119
    %v642 = vunpack.c.l.b16 %v120
    %v643 = vunpack.c.l.b16 %v121
    %v644 = vunpack.c.h.b16 %v121
    %v645 = vunpack.c.l.b16 %v122
    %v646 = vunpack.c.h.b16 %v122
    %v647 = vunpack.c.l.b16 %v123
    %v648 = vunpack.c.l.b16 %v124
    %v649 = vunpack.c.h.b16 %v124
    %v650 = vunpack.c.l.b16 %v125
    %v651 = vunpack.c.h.b16 %v125
    %v652 = vunpack.c.l.b16 %v126
    %v653 = vunpack.c.l.b16 %v127
    %v654 = vunpack.c.h.b16 %v127
    %v655 = vunpack.c.l.b16 %v128
    %v656 = vunpack.c.h.b16 %v128
    %v657 = vunpack.c.l.b16 %v129
    %v658 = vunpack.c.l.b16 %v130
    %v659 = vunpack.c.h.b16 %v130
    %v660 = vunpack.c.l.b16 %v131
    %v661 = vunpack.c.h.b16 %v131
    %v662 = vunpack.c.l.b16 %v132
    %v663 = vunpack.c.l.b16 %v133
    %v664 = vunpack.c.h.b16 %v133
    %v665 = vunpack.c.l.b16 %v134
    %v666 = vunpack.c.h.b16 %v134
    %v667 = vunpack.c.l.b16 %v135
    %v668 = vunpack.c.l.b16 %v136
    %v669 = vunpack.c.h.b16 %v136
    %v670 = vunpack.c.l.b16 %v137
    %v671 = vunpack.c.h.b16 %v137
    %v672 = vunpack.c.l.b16 %v138
    %v673 = vunpack.c.l.b16 %v139
    %v674 = vunpack.c.h.b16 %v139
    %v675 = vunpack.c.l.b16 %v140
    %v676 = vunpack.c.h.b16 %v140
    %v677 = vunpack.c.l.b16 %v141
    %v678 = vunpack.c.l.b16 %v142
    %v679 = vunpack.c.h.b16 %v142
    %v680 = vunpack.c.l.b16 %v143
    %v681 = vunpack.c.h.b16 %v143
    %v682 = vunpack.c.l.b16 %v144
    %v683 = vunpack.c.l.b16 %v145
    %v684 = vunpack.c.h.b16 %v145
    %v685 = vunpack.c.l.b16 %v146
    %v686 = vunpack.c.h.b16 %v146
    %v687 = vunpack.c.l.b16 %v147
    %v688 = vunpack.c.l.b16 %v148
    %v689 = vunpack.c.h.b16 %v148
    %v690 = vunpack.c.l.b16 %v149
    %v691 = vunpack.c.h.b16 %v149
    %v692 = vunpack.c.l.b16 %v150
    %v693 = vunpack.c.l.b16 %v151
    %v694 = vunpack.c.h.b16 %v151
    %v695 = vunpack.c.l.b16 %v152
    %v696 = vunpack.c.h.b16 %v152
    %v697 = vunpack.c.l.b16 %v153
    %v698 = vunpack.c.l.b16 %v154
    %v699 = vunpack.c.h.b16 %v154
    %v700 = vunpack.c.l.b16 %v155
    %v701 = vunpack.c.h.b16 %v155
    %v702 = vunpack.c.l.b16 %v156
    %v703 = vunpack.c.l.b16 %v157
    %v704 = vunpack.c.h.b16 %v157
    %v705 = vunpack.c.l.b16 %v158
    %v706 = vunpack.c.h.b16 %v158
    %v707 = vunpack.c.l.b16 %v159
    %v708 = vunpack.c.l.b16 %v160
    %v709 = vunpack.c.h.b16 %v160
    %v710 = vunpack.c.l.b16 %v161
    %v711 = vunpack.c.h.b16 %v161
    %v712 = vunpack.c.l.b16 %v162
    %v713 = vunpack.c.l.b16 %v163
    %v714 = vunpack.c.h.b16 %v163
    %v715 = vunpack.c.l.b16 %v164
    %v716 = vunpack.c.h.b16 %v164
    %v717 = vunpack.c.l.b16 %v165
    %v718 = vunpack.c.l.b16 %v166
    %v719 = vunpack.c.h.b16 %v166
    %v720 = vunpack.c.l.b16 %v167
    %v721 = vunpack.c.h.b16 %v167
    %v722 = vunpack.c.l.b16 %v168
    %v723 = vunpack.c.l.b16 %v169
    %v724 = vunpack.c.h.b16 %v169
    %v725 = vunpack.c.l.b16 %v170
    %v726 = vunpack.c.h.b16 %v170
    %v727 = vunpack.c.l.b16 %v171
    %v728 = vunpack.c.l.b16 %v172
    %v729 = vunpack.c.h.b16 %v172
    %v730 = vunpack.c.l.b16 %v173
    %v731 = vunpack.c.h.b16 %v173
    %v732 = vunpack.c.l.b16 %v174
    %v733 = vunpack.c.l.b16 %v175
    %v734 = vunpack.c.h.b16 %v175
    %v735 = vunpack.c.l.b16 %v176
    %v736 = vunpack.c.h.b16 %v176
    %v737 = vunpack.c.l.b16 %v177
    %v738 = vunpack.c.l.b16 %v178
    %v739 = vunpack.c.h.b16 %v178
    %v740 = vunpack.c.l.b16 %v179
    %v741 = vunpack.c.h.b16 %v179
    %v742 = vunpack.c.l.b16 %v180
    %v743 = vunpack.c.l.b16 %v181
    %v744 = vunpack.c.h.b16 %v181
    %v745 = vunpack.c.l.b16 %v182
    %v746 = vunpack.c.h.b16 %v182
    %v747 = vunpack.c.l.b16 %v183
    %v748 = vunpack.c.l.b16 %v184
    %v749 = vunpack.c.h.b16 %v184
    %v750 = vunpack.c.l.b16 %v185
    %v751 = vunpack.c.h.b16 %v185
    %v752 = vunpack.c.l.b16 %v186
    %v753 = vunpack.c.l.b16 %v187
    %v754 = vunpack.c.h.b16 %v187
    %v755 = vunpack.c.l.b16 %v188
    %v756 = vunpack.c.h.b16 %v188
    %v757 = vunpack.c.l.b16 %v189
    %v758 = vunpack.c.l.b16 %v190
    %v759 = vunpack.c.h.b16 %v190
    %v760 = vunpack.c.l.b16 %v191
    %v761 = vunpack.c.h.b16 %v191
    %v762 = vunpack.c.l.b16 %v192
    %v763 = vunpack.c.l.b16 %v193
    %v764 = vunpack.c.h.b16 %v193
    %v765 = vunpack.c.l.b16 %v194
    %v766 = vunpack.c.h.b16 %v194
    %v767 = vunpack.c.l.b16 %v195
    %v768 = vunpack.c.l.b16 %v196
    %v769 = vunpack.c.h.b16 %v196
    %v770 = vunpack.c.l.b16 %v197
    %v771 = vunpack.c.h.b16 %v197
    %v772 = vunpack.c.l.b16 %v198
    %v773 = vunpack.c.l.b16 %v199
    %v774 = vunpack.c.h.b16 %v199
    %v775 = vunpack.c.l.b16 %v200
    %v776 = vunpack.c.h.b16 %v200
    %v777 = vunpack.c.l.b16 %v201
    %v778 = vunpack.c.l.b16 %v202
    %v779 = vunpack.c.h.b16 %v202
    %v780 = vunpack.c.l.b16 %v203
    %v781 = vunpack.c.h.b16 %v203
    %v782 = vunpack.c.l.b16 %v204
    %v783 = vunpack.c.l.b16 %v205
    %v784 = vunpack.c.h.b16 %v205
    %v785 = vunpack.c.l.b16 %v206
    %v786 = vunpack.c.h.b16 %v206
    %v787 = vunpack.c.l.b16 %v207
    %v788 = vunpack.c.l.b16 %v208
    %v789 = vunpack.c.h.b16 %v208
    %v790 = vunpack.c.l.b16 %v209
    %v791 = vunpack.c.h.b16 %v209
    %v792 = vunpack.c.l.b16 %v210
    %v793 = vunpack.c.l.b16 %v211
    %v794 = vunpack.c.h.b16 %v211
    %v795 = vunpack.c.l.b16 %v212
    %v796 = vunpack.c.h.b16 %v212
    %v797 = vunpack.c.l.b16 %v213
    %v798 = vpack.c.b16 %v483, %v478
    %v799 = vpack.c.b16 %v484, %v479
    %v800 = vpack.c.b16 %v485, %v480
    %v801 = vpack.c.b16 %v486, %v481
    %v802 = vpack.c.b16 %v487, %v482
    %v803 = vpack.c.b16 %v493, %v488
    %v804 = vpack.c.b16 %v494, %v489
    %v805 = vpack.c.b16 %v495, %v490
    %v806 = vpack.c.b16 %v496, %v491
    %v807 = vpack.c.b16 %v497, %v492
    %v808 = vpack.c.b16 %v503, %v498
    %v809 = vpack.c.b16 %v504, %v499
    %v810 = vpack.c.b16 %v505, %v500
    %v811 = vpack.c.b16 %v506, %v501
    %v812 = vpack.c.b16 %v507, %v502
    %v813 = vpack.c.b16 %v513, %v508
    %v814 = vpack.c.b16 %v514, %v509
    %v815 = vpack.c.b16 %v515, %v510
    %v816 = vpack.c.b16 %v516, %v511
    %v817 = vpack.c.b16 %v517, %v512
    %v818 = vpack.c.b16 %v523, %v518
    %v819 = vpack.c.b16 %v524, %v519
    %v820 = vpack.c.b16 %v525, %v520
    %v821 = vpack.c.b16 %v526, %v521
    %v822 = vpack.c.b16 %v527, %v522
    %v823 = vpack.c.b16 %v533, %v528
    %v824 = vpack.c.b16 %v534, %v529
    %v825 = vpack.c.b16 %v535, %v530
    %v826 = vpack.c.b16 %v536, %v531
    %v827 = vpack.c.b16 %v537, %v532
    %v828 = vpack.c.b16 %v543, %v538
    %v829 = vpack.c.b16 %v544, %v539
    %v830 = vpack.c.b16 %v545, %v540
    %v831 = vpack.c.b16 %v546, %v541
    %v832 = vpack.c.b16 %v547, %v542
    %v833 = vpack.c.b16 %v553, %v548
    %v834 = vpack.c.b16 %v554, %v549
    %v835 = vpack.c.b16 %v555, %v550
    %v836 = vpack.c.b16 %v556, %v551
    %v837 = vpack.c.b16 %v557, %v552
    %v838 = vpack.c.b16 %v563, %v558
    %v839 = vpack.c.b16 %v564, %v559
    %v840 = vpack.c.b16 %v565, %v560
    %v841 = vpack.c.b16 %v566, %v561
    %v842 = vpack.c.b16 %v567, %v562
    %v843 = vpack.c.b16 %v573, %v568
    %v844 = vpack.c.b16 %v574, %v569
    %v845 = vpack.c.b16 %v575, %v570
    %v846 = vpack.c.b16 %v576, %v571
    %v847 = vpack.c.b16 %v577, %v572
    %v848 = vpack.c.b16 %v583, %v578
    %v849 = vpack.c.b16 %v584, %v579
    %v850 = vpack.c.b16 %v585, %v580
    %v851 = vpack.c.b16 %v586, %v581
    %v852 = vpack.c.b16 %v587, %v582
    %v853 = vpack.c.b16 %v593, %v588
    %v854 = vpack.c.b16 %v594, %v589
    %v855 = vpack.c.b16 %v595, %v590
    %v856 = vpack.c.b16 %v596, %v591
    %v857 = vpack.c.b16 %v597, %v592
    %v858 = vpack.c.b16 %v603, %v598
    %v859 = vpack.c.b16 %v604, %v599
    %v860 = vpack.c.b16 %v605, %v600
    %v861 = vpack.c.b16 %v606, %v601
    %v862 = vpack.c.b16 %v607, %v602
    %v863 = vpack.c.b16 %v613, %v608
    %v864 = vpack.c.b16 %v614, %v609
    %v865 = vpack.c.b16 %v615, %v610
    %v866 = vpack.c.b16 %v616, %v611
    %v867 = vpack.c.b16 %v617, %v612
    %v868 = vpack.c.b16 %v623, %v618
    %v869 = vpack.c.b16 %v624, %v619
    %v870 = vpack.c.b16 %v625, %v620
    %v871 = vpack.c.b16 %v626, %v621
    %v872 = vpack.c.b16 %v627, %v622
    %v873 = vpack.c.b16 %v633, %v628
    %v874 = vpack.c.b16 %v634, %v629
    %v875 = vpack.c.b16 %v635, %v630
    %v876 = vpack.c.b16 %v636, %v631
    %v877 = vpack.c.b16 %v637, %v632
    %v878 = vpack.c.b16 %v643, %v638
    %v879 = vpack.c.b16 %v644, %v639
    %v880 = vpack.c.b16 %v645, %v640
    %v881 = vpack.c.b16 %v646, %v641
    %v882 = vpack.c.b16 %v647, %v642
    %v883 = vpack.c.b16 %v653, %v648
    %v884 = vpack.c.b16 %v654, %v649
    %v885 = vpack.c.b16 %v655, %v650
    %v886 = vpack.c.b16 %v656, %v651
    %v887 = vpack.c.b16 %v657, %v652
    %v888 = vpack.c.b16 %v663, %v658
    %v889 = vpack.c.b16 %v664, %v659
    %v890 = vpack.c.b16 %v665, %v660
    %v891 = vpack.c.b16 %v666, %v661
    %v892 = vpack.c.b16 %v667, %v662
    %v893 = vpack.c.b16 %v673, %v668
    %v894 = vpack.c.b16 %v674, %v669
    %v895 = vpack.c.b16 %v675, %v670
    %v896 = vpack.c.b16 %v676, %v671
    %v897 = vpack.c.b16 %v677, %v672
    %v898 = vpack.c.b16 %v683, %v678
    %v899 = vpack.c.b16 %v684, %v679
    %v900 = vpack.c.b16 %v685, %v680
    %v901 = vpack.c.b16 %v686, %v681
    %v902 = vpack.c.b16 %v687, %v682
    %v903 = vpack.c.b16 %v693, %v688
    %v904 = vpack.c.b16 %v694, %v689
    %v905 = vpack.c.b16 %v695, %v690
    %v906 = vpack.c.b16 %v696, %v691
    %v907 = vpack.c.b16 %v697, %v692
    %v908 = vpack.c.b16 %v703, %v698
    %v909 = vpack.c.b16 %v704, %v699
    %v910 = vpack.c.b16 %v705, %v700
    %v911 = vpack.c.b16 %v706, %v701
    %v912 = vpack.c.b16 %v707, %v702
    %v913 = vpack.c.b16 %v713, %v708
    %v914 = vpack.c.b16 %v714, %v709
    %v915 = vpack.c.b16 %v715, %v710
    %v916 = vpack.c.b16 %v716, %v711
    %v917 = vpack.c.b16 %v717, %v712
    %v918 = vpack.c.b16 %v723, %v718
    %v919 = vpack.c.b16 %v724, %v719
    %v920 = vpack.c.b16 %v725, %v720
    %v921 = vpack.c.b16 %v726, %v721
    %v922 = vpack.c.b16 %v727, %v722
    %v923 = vpack.c.b16 %v733, %v728
    %v924 = vpack.c.b16 %v734, %v729
    %v925 = vpack.c.b16 %v735, %v730
    %v926 = vpack.c.b16 %v736, %v731
    %v927 = vpack.c.b16 %v737, %v732
    %v928 = vpack.c.b16 %v743, %v738
    %v929 = vpack.c.b16 %v744, %v739
    %v930 = vpack.c.b16 %v745, %v740
    %v931 = vpack.c.b16 %v746, %v741
    %v932 = vpack.c.b16 %v747, %v742
    %v933 = vpack.c.b16 %v753, %v748
    %v934 = vpack.c.b16 %v754, %v749
    %v935 = vpack.c.b16 %v755, %v750
    %v936 = vpack.c.b16 %v756, %v751
    %v937 = vpack.c.b16 %v757, %v752
    %v938 = vpack.c.b16 %v763, %v758
    %v939 = vpack.c.b16 %v764, %v759
    %v940 = vpack.c.b16 %v765, %v760
    %v941 = vpack.c.b16 %v766, %v761
    %v942 = vpack.c.b16 %v767, %v762
    %v943 = vpack.c.b16 %v773, %v768
    %v944 = vpack.c.b16 %v774, %v769
    %v945 = vpack.c.b16 %v775, %v770
    %v946 = vpack.c.b16 %v776, %v771
    %v947 = vpack.c.b16 %v777, %v772
    %v948 = vpack.c.b16 %v783, %v778
    %v949 = vpack.c.b16 %v784, %v779
    %v950 = vpack.c.b16 %v785, %v780
    %v951 = vpack.c.b16 %v786, %v781
    %v952 = vpack.c.b16 %v787, %v782
    %v953 = vpack.c.b16 %v793, %v788
    %v954 = vpack.c.b16 %v794, %v789
    %v955 = vpack.c.b16 %v795, %v790
    %v956 = vpack.c.b16 %v796, %v791
    %v957 = vpack.c.b16 %v797, %v792
    %v1158 = vunpack.c.l.b16 %v214
    %v1159 = vunpack.c.l.b16 %v215
    %v1160 = vunpack.c.l.b16 %v216
    %v1161 = vunpack.c.l.b16 %v217
    %v1162 = vunpack.c.l.b16 %v218
    %v1163 = vunpack.c.l.b16 %v219
    %v1164 = vunpack.c.l.b16 %v220
    %v1165 = vunpack.c.l.b16 %v221
    %v1166 = vunpack.c.l.b16 %v222
    %v1167 = vunpack.c.l.b16 %v223
    %v1168 = vunpack.c.l.b16 %v224
    %v1169 = vunpack.c.l.b16 %v225
    %v1170 = vunpack.c.l.b16 %v226
    %v1171 = vunpack.c.l.b16 %v227
    %v1172 = vunpack.c.l.b16 %v228
    %v1173 = vunpack.c.l.b16 %v229
    %v1174 = vunpack.c.l.b16 %v230
    %v1175 = vunpack.c.l.b16 %v231
    %v1176 = vunpack.c.l.b16 %v232
    %v1177 = vunpack.c.l.b16 %v233
    %v1178 = vunpack.c.l.b16 %v234
    %v1179 = vunpack.c.l.b16 %v235
    %v1180 = vunpack.c.l.b16 %v236
    %v1181 = vunpack.c.l.b16 %v237
    %v1182 = vunpack.c.l.b16 %v238
    %v1183 = vunpack.c.l.b16 %v239
    %v1184 = vunpack.c.l.b16 %v240
    %v1185 = vunpack.c.l.b16 %v241
    %v1186 = vunpack.c.l.b16 %v242
    %v1187 = vunpack.c.l.b16 %v243
    %v1188 = vunpack.c.l.b16 %v244
    %v1189 = vunpack.c.l.b16 %v245
    %v1190 = vunpack.c.l.b16 %v246
    %v1191 = vunpack.c.l.b16 %v247
    %v1192 = vunpack.c.l.b16 %v248
    %v1193 = vunpack.c.l.b16 %v249
    %v1194 = vunpack.c.l.b16 %v250
    %v1195 = vunpack.c.l.b16 %v251
    %v1196 = vunpack.c.l.b16 %v252
    %v1197 = vunpack.c.l.b16 %v253
    %v1198 = vunpack.c.l.b16 %v254
    %v1199 = vunpack.c.l.b16 %v255
    %v1200 = vunpack.c.l.b16 %v256
    %v1201 = vunpack.c.l.b16 %v257
    %v1202 = vunpack.c.l.b16 %v258
    %v1203 = vunpack.c.l.b16 %v259
    %v1204 = vunpack.c.l.b16 %v260
    %v1205 = vunpack.c.l.b16 %v261
    %v1206 = vunpack.c.l.b16 %v262
    %v1207 = vunpack.c.l.b16 %v263
    %v1208 = vunpack.c.l.b16 %v264
    %v1209 = vunpack.c.l.b16 %v265
    %v1210 = vunpack.c.l.b16 %v266
    %v1211 = vunpack.c.l.b16 %v267
    %v1212 = vunpack.c.l.b16 %v268
    %v1213 = vunpack.c.l.b16 %v269
    %v1214 = vunpack.c.l.b16 %v270
    %v1215 = vunpack.c.l.b16 %v271
    %v1216 = vunpack.c.l.b16 %v272
    %v1217 = vunpack.c.l.b16 %v273
    %v1218 = vunpack.c.l.b16 %v274
    %v1219 = vunpack.c.l.b16 %v275
    %v1220 = vunpack.c.l.b16 %v276
    %v1221 = vunpack.c.l.b16 %v277
    %v1222 = vunpack.c.l.b16 %v278
    %v1223 = vunpack.c.l.b16 %v279
    %v1224 = vunpack.c.l.b16 %v280
    %v1225 = vunpack.c.l.b16 %v281
    %v1226 = vunpack.c.l.b16 %v282
    %v1227 = vunpack.c.l.b16 %v283
    %v1228 = vunpack.c.l.b16 %v284
    %v1229 = vunpack.c.l.b16 %v285
    %v1230 = vpack.c.b16 %v1159, %v1158
    %v1231 = vpack.c.b16 %v1161, %v1160
    %v1232 = vpack.c.b16 %v1163, %v1162
    %v1233 = vpack.c.b16 %v1165, %v1164
    %v1234 = vpack.c.b16 %v1167, %v1166
    %v1235 = vpack.c.b16 %v1169, %v1168
    %v1236 = vpack.c.b16 %v1171, %v1170
    %v1237 = vpack.c.b16 %v1173, %v1172
    %v1238 = vpack.c.b16 %v1175, %v1174
    %v1239 = vpack.c.b16 %v1177, %v1176
    %v1240 = vpack.c.b16 %v1179, %v1178
    %v1241 = vpack.c.b16 %v1181, %v1180
    %v1242 = vpack.c.b16 %v1183, %v1182
    %v1243 = vpack.c.b16 %v1185, %v1184
    %v1244 = vpack.c.b16 %v1187, %v1186
    %v1245 = vpack.c.b16 %v1189, %v1188
    %v1246 = vpack.c.b16 %v1191, %v1190
    %v1247 = vpack.c.b16 %v1193, %v1192
    %v1248 = vpack.c.b16 %v1195, %v1194
    %v1249 = vpack.c.b16 %v1197, %v1196
    %v1250 = vpack.c.b16 %v1199, %v1198
    %v1251 = vpack.c.b16 %v1201, %v1200
    %v1252 = vpack.c.b16 %v1203, %v1202
    %v1253 = vpack.c.b16 %v1205, %v1204
    %v1254 = vpack.c.b16 %v1207, %v1206
    %v1255 = vpack.c.b16 %v1209, %v1208
    %v1256 = vpack.c.b16 %v1211, %v1210
    %v1257 = vpack.c.b16 %v1213, %v1212
    %v1258 = vpack.c.b16 %v1215, %v1214
    %v1259 = vpack.c.b16 %v1217, %v1216
    %v1260 = vpack.c.b16 %v1219, %v1218
    %v1261 = vpack.c.b16 %v1221, %v1220
    %v1262 = vpack.c.b16 %v1223, %v1222
    %v1263 = vpack.c.b16 %v1225, %v1224
    %v1264 = vpack.c.b16 %v1227, %v1226
    %v1265 = vpack.c.b16 %v1229, %v1228
    %vm1302 = vcmask 523264
    %v1304 = vsel %vm1302, %v802, 0
    %v1307 = vsel %vm1302, %v807, 0
    %v1310 = vsel %vm1302, %v812, 0
    %v1313 = vsel %vm1302, %v817, 0
    %v1316 = vsel %vm1302, %v822, 0
    %v1319 = vsel %vm1302, %v827, 0
    %v1322 = vsel %vm1302, %v832, 0
    %v1325 = vsel %vm1302, %v837, 0
    %v1328 = vsel %vm1302, %v842, 0
    %v1331 = vsel %vm1302, %v847, 0
    %v1334 = vsel %vm1302, %v852, 0
    %v1337 = vsel %vm1302, %v857, 0
    %v1340 = vsel %vm1302, %v862, 0
    %v1343 = vsel %vm1302, %v867, 0
    %v1346 = vsel %vm1302, %v872, 0
    %v1349 = vsel %vm1302, %v877, 0
    %v1352 = vsel %vm1302, %v882, 0
    %v1355 = vsel %vm1302, %v887, 0
    %v1358 = vsel %vm1302, %v892, 0
    %v1361 = vsel %vm1302, %v897, 0
    %v1364 = vsel %vm1302, %v902, 0
    %v1367 = vsel %vm1302, %v907, 0
    %v1370 = vsel %vm1302, %v912, 0
    %v1373 = vsel %vm1302, %v917, 0
    %v1376 = vsel %vm1302, %v922, 0
    %v1379 = vsel %vm1302, %v927, 0
    %v1382 = vsel %vm1302, %v932, 0
    %v1385 = vsel %vm1302, %v937, 0
    %v1388 = vsel %vm1302, %v942, 0
    %v1391 = vsel %vm1302, %v947, 0
    %v1394 = vsel %vm1302, %v952, 0
    %v1397 = vsel %vm1302, %v957, 0
    %1399 = vmatprep.subr.bf16.mxu0 0
    %1400 = vmatpush1.bf16.msra.mxu0 %v1230
    %1401 = vmatprep.subr.bf16.mxu0 0
    %1402 = vmatpush1.bf16.msra.mxu0 %v1231
    %1403 = vmatprep.subr.bf16.mxu0 0
    %1404 = vmatpush1.bf16.msra.mxu0 %v1232
    %1405 = vmatprep.subr.bf16.mxu0 0
    %1406 = vmatpush1.bf16.msra.mxu0 %v1233
    %1407 = vmatprep.subr.bf16.mxu0 0
    %1408 = vmatpush1.bf16.msra.mxu0 %v1234
    %1409 = vmatprep.subr.bf16.mxu0 0
    %1410 = vmatpush1.bf16.msra.mxu0 %v1235
    %1411 = vmatprep.subr.bf16.mxu0 0
    %1412 = vmatpush1.bf16.msra.mxu0 %v1236
    %1413 = vmatprep.subr.bf16.mxu0 0
    %1414 = vmatpush1.bf16.msra.mxu0 %v1237
    %1415 = vmatprep.subr.bf16.mxu0 0
    %1416 = vmatpush1.bf16.msra.mxu0 %v1238
    %1417 = vmatprep.subr.bf16.mxu0 0
    %1418 = vmatpush1.bf16.msra.mxu0 %v1239
    %1419 = vmatprep.subr.bf16.mxu0 0
    %1420 = vmatpush1.bf16.msra.mxu0 %v1240
    %1421 = vmatprep.subr.bf16.mxu0 0
    %1422 = vmatpush1.bf16.msra.mxu0 %v1241
    %1423 = vmatprep.subr.bf16.mxu0 0
    %1424 = vmatpush1.bf16.msra.mxu0 %v1242
    %1425 = vmatprep.subr.bf16.mxu0 0
    %1426 = vmatpush1.bf16.msra.mxu0 %v1243
    %1427 = vmatprep.subr.bf16.mxu0 0
    %1428 = vmatpush1.bf16.msra.mxu0 %v1244
    %1429 = vmatprep.subr.bf16.mxu0 0
    %1430 = vmatpush1.bf16.msra.mxu0 %v1245
    %1431 = vmatprep.mubr.bf16.mxu0 %v799
    %1432 = vmatmul.mubr.bf16.gmra.mrb[0].mxu0 %v798
    %v1433 = vpop.f32.mrb[0].mxu0
    %v1434 = vadd.f32 0.0, %v1433
    %v1435 = vpop.f32.mrb[0].mxu0
    %v1436 = vpop.f32.mrb[0].mxu0
    %v1437 = vadd.f32 0.0, %v1436
    %v1438 = vpop.f32.mrb[0].mxu0
    %1439 = vmatprep.mubr.bf16.mxu0 %v804
    %1440 = vmatmul.mubr.bf16.gmra.mrb[0].mxu0 %v803
    %v1441 = vpop.f32.mrb[0].mxu0
    %v1442 = vadd.f32 0.0, %v1441
    %v1443 = vpop.f32.mrb[0].mxu0
    %v1444 = vpop.f32.mrb[0].mxu0
    %v1445 = vadd.f32 0.0, %v1444
    %v1446 = vpop.f32.mrb[0].mxu0
    %1447 = vmatprep.mubr.bf16.mxu0 %v809
    %1448 = vmatmul.mubr.bf16.gmra.mrb[0].mxu0 %v808
    %v1449 = vpop.f32.mrb[0].mxu0
    %v1450 = vadd.f32 0.0, %v1449
    %v1451 = vpop.f32.mrb[0].mxu0
    %v1452 = vpop.f32.mrb[0].mxu0
    %v1453 = vadd.f32 0.0, %v1452
    %v1454 = vpop.f32.mrb[0].mxu0
    %1455 = vmatprep.mubr.bf16.mxu0 %v814
    %1456 = vmatmul.mubr.bf16.gmra.mrb[0].mxu0 %v813
    %v1457 = vpop.f32.mrb[0].mxu0
    %v1458 = vadd.f32 0.0, %v1457
    %v1459 = vpop.f32.mrb[0].mxu0
    %v1460 = vpop.f32.mrb[0].mxu0
    %v1461 = vadd.f32 0.0, %v1460
    %v1462 = vpop.f32.mrb[0].mxu0
    %1463 = vmatprep.mubr.bf16.mxu0 %v819
    %1464 = vmatmul.mubr.bf16.gmra.mrb[0].mxu0 %v818
    %v1465 = vpop.f32.mrb[0].mxu0
    %v1466 = vadd.f32 0.0, %v1465
    %v1467 = vpop.f32.mrb[0].mxu0
    %v1468 = vpop.f32.mrb[0].mxu0
    %v1469 = vadd.f32 0.0, %v1468
    %v1470 = vpop.f32.mrb[0].mxu0
    %1471 = vmatprep.mubr.bf16.mxu0 %v824
    %1472 = vmatmul.mubr.bf16.gmra.mrb[0].mxu0 %v823
    %v1473 = vpop.f32.mrb[0].mxu0
    %v1474 = vadd.f32 0.0, %v1473
    %v1475 = vpop.f32.mrb[0].mxu0
    %v1476 = vpop.f32.mrb[0].mxu0
    %v1477 = vadd.f32 0.0, %v1476
    %v1478 = vpop.f32.mrb[0].mxu0
    %1479 = vmatprep.mubr.bf16.mxu0 %v829
    %1480 = vmatmul.mubr.bf16.gmra.mrb[0].mxu0 %v828
    %v1481 = vpop.f32.mrb[0].mxu0
    %v1482 = vadd.f32 0.0, %v1481
    %v1483 = vpop.f32.mrb[0].mxu0
    %v1484 = vpop.f32.mrb[0].mxu0
    %v1485 = vadd.f32 0.0, %v1484
    %v1486 = vpop.f32.mrb[0].mxu0
    %1487 = vmatprep.mubr.bf16.mxu0 %v834
    %1488 = vmatmul.mubr.bf16.gmra.mrb[0].mxu0 %v833
    %v1489 = vpop.f32.mrb[0].mxu0
    %v1490 = vadd.f32 0.0, %v1489
    %v1491 = vpop.f32.mrb[0].mxu0
    %v1492 = vpop.f32.mrb[0].mxu0
    %v1493 = vadd.f32 0.0, %v1492
    %v1494 = vpop.f32.mrb[0].mxu0
    %1495 = vmatprep.mubr.bf16.mxu0 %v839
    %1496 = vmatmul.mubr.bf16.gmra.mrb[0].mxu0 %v838
    %v1497 = vpop.f32.mrb[0].mxu0
    %v1498 = vadd.f32 0.0, %v1497
    %v1499 = vpop.f32.mrb[0].mxu0
    %v1500 = vpop.f32.mrb[0].mxu0
    %v1501 = vadd.f32 0.0, %v1500
    %v1502 = vpop.f32.mrb[0].mxu0
    %1503 = vmatprep.mubr.bf16.mxu0 %v844
    %1504 = vmatmul.mubr.bf16.gmra.mrb[0].mxu0 %v843
    %v1505 = vpop.f32.mrb[0].mxu0
    %v1506 = vadd.f32 0.0, %v1505
    %v1507 = vpop.f32.mrb[0].mxu0
    %v1508 = vpop.f32.mrb[0].mxu0
    %v1509 = vadd.f32 0.0, %v1508
    %v1510 = vpop.f32.mrb[0].mxu0
    %1511 = vmatprep.mubr.bf16.mxu0 %v849
    %1512 = vmatmul.mubr.bf16.gmra.mrb[0].mxu0 %v848
    %v1513 = vpop.f32.mrb[0].mxu0
    %v1514 = vadd.f32 0.0, %v1513
    %v1515 = vpop.f32.mrb[0].mxu0
    %v1516 = vpop.f32.mrb[0].mxu0
    %v1517 = vadd.f32 0.0, %v1516
    %v1518 = vpop.f32.mrb[0].mxu0
    %1519 = vmatprep.mubr.bf16.mxu0 %v854
    %1520 = vmatmul.mubr.bf16.gmra.mrb[0].mxu0 %v853
    %v1521 = vpop.f32.mrb[0].mxu0
    %v1522 = vadd.f32 0.0, %v1521
    %v1523 = vpop.f32.mrb[0].mxu0
    %v1524 = vpop.f32.mrb[0].mxu0
    %v1525 = vadd.f32 0.0, %v1524
    %v1526 = vpop.f32.mrb[0].mxu0
    %1527 = vmatprep.mubr.bf16.mxu0 %v859
    %1528 = vmatmul.mubr.bf16.gmra.mrb[0].mxu0 %v858
    %v1529 = vpop.f32.mrb[0].mxu0
    %v1530 = vadd.f32 0.0, %v1529
    %v1531 = vpop.f32.mrb[0].mxu0
    %v1532 = vpop.f32.mrb[0].mxu0
    %v1533 = vadd.f32 0.0, %v1532
    %v1534 = vpop.f32.mrb[0].mxu0
    %1535 = vmatprep.mubr.bf16.mxu0 %v864
    %1536 = vmatmul.mubr.bf16.gmra.mrb[0].mxu0 %v863
    %v1537 = vpop.f32.mrb[0].mxu0
    %v1538 = vadd.f32 0.0, %v1537
    %v1539 = vpop.f32.mrb[0].mxu0
    %v1540 = vpop.f32.mrb[0].mxu0
    %v1541 = vadd.f32 0.0, %v1540
    %v1542 = vpop.f32.mrb[0].mxu0
    %1543 = vmatprep.mubr.bf16.mxu0 %v869
    %1544 = vmatmul.mubr.bf16.gmra.mrb[0].mxu0 %v868
    %v1545 = vpop.f32.mrb[0].mxu0
    %v1546 = vadd.f32 0.0, %v1545
    %v1547 = vpop.f32.mrb[0].mxu0
    %v1548 = vpop.f32.mrb[0].mxu0
    %v1549 = vadd.f32 0.0, %v1548
    %v1550 = vpop.f32.mrb[0].mxu0
    %1551 = vmatprep.mubr.bf16.mxu0 %v874
    %1552 = vmatmul.mubr.bf16.gmra.mrb[0].mxu0 %v873
    %v1553 = vpop.f32.mrb[0].mxu0
    %v1554 = vadd.f32 0.0, %v1553
    %v1555 = vpop.f32.mrb[0].mxu0
    %v1556 = vpop.f32.mrb[0].mxu0
    %v1557 = vadd.f32 0.0, %v1556
    %v1558 = vpop.f32.mrb[0].mxu0
    %1559 = vmatprep.mubr.bf16.mxu0 %v879
    %1560 = vmatmul.mubr.bf16.gmra.mrb[0].mxu0 %v878
    %v1561 = vpop.f32.mrb[0].mxu0
    %v1562 = vadd.f32 0.0, %v1561
    %v1563 = vpop.f32.mrb[0].mxu0
    %v1564 = vpop.f32.mrb[0].mxu0
    %v1565 = vadd.f32 0.0, %v1564
    %v1566 = vpop.f32.mrb[0].mxu0
    %1567 = vmatprep.mubr.bf16.mxu0 %v884
    %1568 = vmatmul.mubr.bf16.gmra.mrb[0].mxu0 %v883
    %v1569 = vpop.f32.mrb[0].mxu0
    %v1570 = vadd.f32 0.0, %v1569
    %v1571 = vpop.f32.mrb[0].mxu0
    %v1572 = vpop.f32.mrb[0].mxu0
    %v1573 = vadd.f32 0.0, %v1572
    %v1574 = vpop.f32.mrb[0].mxu0
    %1575 = vmatprep.mubr.bf16.mxu0 %v889
    %1576 = vmatmul.mubr.bf16.gmra.mrb[0].mxu0 %v888
    %v1577 = vpop.f32.mrb[0].mxu0
    %v1578 = vadd.f32 0.0, %v1577
    %v1579 = vpop.f32.mrb[0].mxu0
    %v1580 = vpop.f32.mrb[0].mxu0
    %v1581 = vadd.f32 0.0, %v1580
    %v1582 = vpop.f32.mrb[0].mxu0
    %1583 = vmatprep.mubr.bf16.mxu0 %v894
    %1584 = vmatmul.mubr.bf16.gmra.mrb[0].mxu0 %v893
    %v1585 = vpop.f32.mrb[0].mxu0
    %v1586 = vadd.f32 0.0, %v1585
    %v1587 = vpop.f32.mrb[0].mxu0
    %v1588 = vpop.f32.mrb[0].mxu0
    %v1589 = vadd.f32 0.0, %v1588
    %v1590 = vpop.f32.mrb[0].mxu0
    %1591 = vmatprep.mubr.bf16.mxu0 %v899
    %1592 = vmatmul.mubr.bf16.gmra.mrb[0].mxu0 %v898
    %v1593 = vpop.f32.mrb[0].mxu0
    %v1594 = vadd.f32 0.0, %v1593
    %v1595 = vpop.f32.mrb[0].mxu0
    %v1596 = vpop.f32.mrb[0].mxu0
    %v1597 = vadd.f32 0.0, %v1596
    %v1598 = vpop.f32.mrb[0].mxu0
    %1599 = vmatprep.mubr.bf16.mxu0 %v904
    %1600 = vmatmul.mubr.bf16.gmra.mrb[0].mxu0 %v903
    %v1601 = vpop.f32.mrb[0].mxu0
    %v1602 = vadd.f32 0.0, %v1601
    %v1603 = vpop.f32.mrb[0].mxu0
    %v1604 = vpop.f32.mrb[0].mxu0
    %v1605 = vadd.f32 0.0, %v1604
    %v1606 = vpop.f32.mrb[0].mxu0
    %1607 = vmatprep.mubr.bf16.mxu0 %v909
    %1608 = vmatmul.mubr.bf16.gmra.mrb[0].mxu0 %v908
    %v1609 = vpop.f32.mrb[0].mxu0
    %v1610 = vadd.f32 0.0, %v1609
    %v1611 = vpop.f32.mrb[0].mxu0
    %v1612 = vpop.f32.mrb[0].mxu0
    %v1613 = vadd.f32 0.0, %v1612
    %v1614 = vpop.f32.mrb[0].mxu0
    %1615 = vmatprep.mubr.bf16.mxu0 %v914
    %1616 = vmatmul.mubr.bf16.gmra.mrb[0].mxu0 %v913
    %v1617 = vpop.f32.mrb[0].mxu0
    %v1618 = vadd.f32 0.0, %v1617
    %v1619 = vpop.f32.mrb[0].mxu0
    %v1620 = vpop.f32.mrb[0].mxu0
    %v1621 = vadd.f32 0.0, %v1620
    %v1622 = vpop.f32.mrb[0].mxu0
    %1623 = vmatprep.mubr.bf16.mxu0 %v919
    %1624 = vmatmul.mubr.bf16.gmra.mrb[0].mxu0 %v918
    %v1625 = vpop.f32.mrb[0].mxu0
    %v1626 = vadd.f32 0.0, %v1625
    %v1627 = vpop.f32.mrb[0].mxu0
    %v1628 = vpop.f32.mrb[0].mxu0
    %v1629 = vadd.f32 0.0, %v1628
    %v1630 = vpop.f32.mrb[0].mxu0
    %1631 = vmatprep.mubr.bf16.mxu0 %v924
    %1632 = vmatmul.mubr.bf16.gmra.mrb[0].mxu0 %v923
    %v1633 = vpop.f32.mrb[0].mxu0
    %v1634 = vadd.f32 0.0, %v1633
    %v1635 = vpop.f32.mrb[0].mxu0
    %v1636 = vpop.f32.mrb[0].mxu0
    %v1637 = vadd.f32 0.0, %v1636
    %v1638 = vpop.f32.mrb[0].mxu0
    %1639 = vmatprep.mubr.bf16.mxu0 %v929
    %1640 = vmatmul.mubr.bf16.gmra.mrb[0].mxu0 %v928
    %v1641 = vpop.f32.mrb[0].mxu0
    %v1642 = vadd.f32 0.0, %v1641
    %v1643 = vpop.f32.mrb[0].mxu0
    %v1644 = vpop.f32.mrb[0].mxu0
    %v1645 = vadd.f32 0.0, %v1644
    %v1646 = vpop.f32.mrb[0].mxu0
    %1647 = vmatprep.mubr.bf16.mxu0 %v934
    %1648 = vmatmul.mubr.bf16.gmra.mrb[0].mxu0 %v933
    %v1649 = vpop.f32.mrb[0].mxu0
    %v1650 = vadd.f32 0.0, %v1649
    %v1651 = vpop.f32.mrb[0].mxu0
    %v1652 = vpop.f32.mrb[0].mxu0
    %v1653 = vadd.f32 0.0, %v1652
    %v1654 = vpop.f32.mrb[0].mxu0
    %1655 = vmatprep.mubr.bf16.mxu0 %v939
    %1656 = vmatmul.mubr.bf16.gmra.mrb[0].mxu0 %v938
    %v1657 = vpop.f32.mrb[0].mxu0
    %v1658 = vadd.f32 0.0, %v1657
    %v1659 = vpop.f32.mrb[0].mxu0
    %v1660 = vpop.f32.mrb[0].mxu0
    %v1661 = vadd.f32 0.0, %v1660
    %v1662 = vpop.f32.mrb[0].mxu0
    %1663 = vmatprep.mubr.bf16.mxu0 %v944
    %1664 = vmatmul.mubr.bf16.gmra.mrb[0].mxu0 %v943
    %v1665 = vpop.f32.mrb[0].mxu0
    %v1666 = vadd.f32 0.0, %v1665
    %v1667 = vpop.f32.mrb[0].mxu0
    %v1668 = vpop.f32.mrb[0].mxu0
    %v1669 = vadd.f32 0.0, %v1668
    %v1670 = vpop.f32.mrb[0].mxu0
    %1671 = vmatprep.mubr.bf16.mxu0 %v949
    %1672 = vmatmul.mubr.bf16.gmra.mrb[0].mxu0 %v948
    %v1673 = vpop.f32.mrb[0].mxu0
    %v1674 = vadd.f32 0.0, %v1673
    %v1675 = vpop.f32.mrb[0].mxu0
    %v1676 = vpop.f32.mrb[0].mxu0
    %v1677 = vadd.f32 0.0, %v1676
    %v1678 = vpop.f32.mrb[0].mxu0
    %1679 = vmatprep.mubr.bf16.mxu0 %v954
    %1680 = vmatmul.mubr.bf16.gmra.mrb[0].mxu0 %v953
    %v1681 = vpop.f32.mrb[0].mxu0
    %v1682 = vadd.f32 0.0, %v1681
    %v1683 = vpop.f32.mrb[0].mxu0
    %v1684 = vpop.f32.mrb[0].mxu0
    %v1685 = vadd.f32 0.0, %v1684
    %v1686 = vpop.f32.mrb[0].mxu0
    %1687 = vdwg.mxu0
    %1688 = vmatprep.subr.bf16.mxu0 0
    %1689 = vmatpush1.bf16.msra.mxu0 %v1246
    %1690 = vmatprep.subr.bf16.mxu0 0
    %1691 = vmatpush1.bf16.msra.mxu0 %v1247
    %1692 = vmatprep.subr.bf16.mxu0 0
    %1693 = vmatpush1.bf16.msra.mxu0 %v1248
    %1694 = vmatprep.subr.bf16.mxu0 0
    %1695 = vmatpush1.bf16.msra.mxu0 %v1249
    %1696 = vmatprep.subr.bf16.mxu0 0
    %1697 = vmatpush1.bf16.msra.mxu0 %v1250
    %1698 = vmatprep.subr.bf16.mxu0 0
    %1699 = vmatpush1.bf16.msra.mxu0 %v1251
    %1700 = vmatprep.subr.bf16.mxu0 0
    %1701 = vmatpush1.bf16.msra.mxu0 %v1252
    %1702 = vmatprep.subr.bf16.mxu0 0
    %1703 = vmatpush1.bf16.msra.mxu0 %v1253
    %1704 = vmatprep.subr.bf16.mxu0 0
    %1705 = vmatpush1.bf16.msra.mxu0 %v1254
    %1706 = vmatprep.subr.bf16.mxu0 0
    %1707 = vmatpush1.bf16.msra.mxu0 %v1255
    %1708 = vmatprep.subr.bf16.mxu0 0
    %1709 = vmatpush1.bf16.msra.mxu0 %v1256
    %1710 = vmatprep.subr.bf16.mxu0 0
    %1711 = vmatpush1.bf16.msra.mxu0 %v1257
    %1712 = vmatprep.subr.bf16.mxu0 0
    %1713 = vmatpush1.bf16.msra.mxu0 %v1258
    %1714 = vmatprep.subr.bf16.mxu0 0
    %1715 = vmatpush1.bf16.msra.mxu0 %v1259
    %1716 = vmatprep.subr.bf16.mxu0 0
    %1717 = vmatpush1.bf16.msra.mxu0 %v1260
    %1718 = vmatprep.subr.bf16.mxu0 0
    %1719 = vmatpush1.bf16.msra.mxu0 %v1261
    %1720 = vmatprep.mubr.bf16.mxu0 %v801
    %1721 = vmatmul.mubr.bf16.gmra.mrb[0].mxu0 %v800
    %v1722 = vpop.f32.mrb[0].mxu0
    %v1723 = vadd.f32 %v1434, %v1722
    %v1724 = vpop.f32.mrb[0].mxu0
    %v1725 = vpop.f32.mrb[0].mxu0
    %v1726 = vadd.f32 %v1437, %v1725
    %v1727 = vpop.f32.mrb[0].mxu0
    %1728 = vmatprep.mubr.bf16.mxu0 %v806
    %1729 = vmatmul.mubr.bf16.gmra.mrb[0].mxu0 %v805
    %v1730 = vpop.f32.mrb[0].mxu0
    %v1731 = vadd.f32 %v1442, %v1730
    %v1732 = vpop.f32.mrb[0].mxu0
    %v1733 = vpop.f32.mrb[0].mxu0
    %v1734 = vadd.f32 %v1445, %v1733
    %v1735 = vpop.f32.mrb[0].mxu0
    %1736 = vmatprep.mubr.bf16.mxu0 %v811
    %1737 = vmatmul.mubr.bf16.gmra.mrb[0].mxu0 %v810
    %v1738 = vpop.f32.mrb[0].mxu0
    %v1739 = vadd.f32 %v1450, %v1738
    %v1740 = vpop.f32.mrb[0].mxu0
    %v1741 = vpop.f32.mrb[0].mxu0
    %v1742 = vadd.f32 %v1453, %v1741
    %v1743 = vpop.f32.mrb[0].mxu0
    %1744 = vmatprep.mubr.bf16.mxu0 %v816
    %1745 = vmatmul.mubr.bf16.gmra.mrb[0].mxu0 %v815
    %v1746 = vpop.f32.mrb[0].mxu0
    %v1747 = vadd.f32 %v1458, %v1746
    %v1748 = vpop.f32.mrb[0].mxu0
    %v1749 = vpop.f32.mrb[0].mxu0
    %v1750 = vadd.f32 %v1461, %v1749
    %v1751 = vpop.f32.mrb[0].mxu0
    %1752 = vmatprep.mubr.bf16.mxu0 %v821
    %1753 = vmatmul.mubr.bf16.gmra.mrb[0].mxu0 %v820
    %v1754 = vpop.f32.mrb[0].mxu0
    %v1755 = vadd.f32 %v1466, %v1754
    %v1756 = vpop.f32.mrb[0].mxu0
    %v1757 = vpop.f32.mrb[0].mxu0
    %v1758 = vadd.f32 %v1469, %v1757
    %v1759 = vpop.f32.mrb[0].mxu0
    %1760 = vmatprep.mubr.bf16.mxu0 %v826
    %1761 = vmatmul.mubr.bf16.gmra.mrb[0].mxu0 %v825
    %v1762 = vpop.f32.mrb[0].mxu0
    %v1763 = vadd.f32 %v1474, %v1762
    %v1764 = vpop.f32.mrb[0].mxu0
    %v1765 = vpop.f32.mrb[0].mxu0
    %v1766 = vadd.f32 %v1477, %v1765
    %v1767 = vpop.f32.mrb[0].mxu0
    %1768 = vmatprep.mubr.bf16.mxu0 %v831
    %1769 = vmatmul.mubr.bf16.gmra.mrb[0].mxu0 %v830
    %v1770 = vpop.f32.mrb[0].mxu0
    %v1771 = vadd.f32 %v1482, %v1770
    %v1772 = vpop.f32.mrb[0].mxu0
    %v1773 = vpop.f32.mrb[0].mxu0
    %v1774 = vadd.f32 %v1485, %v1773
    %v1775 = vpop.f32.mrb[0].mxu0
    %1776 = vmatprep.mubr.bf16.mxu0 %v836
    %1777 = vmatmul.mubr.bf16.gmra.mrb[0].mxu0 %v835
    %v1778 = vpop.f32.mrb[0].mxu0
    %v1779 = vadd.f32 %v1490, %v1778
    %v1780 = vpop.f32.mrb[0].mxu0
    %v1781 = vpop.f32.mrb[0].mxu0
    %v1782 = vadd.f32 %v1493, %v1781
    %v1783 = vpop.f32.mrb[0].mxu0
    %1784 = vmatprep.mubr.bf16.mxu0 %v841
    %1785 = vmatmul.mubr.bf16.gmra.mrb[0].mxu0 %v840
    %v1786 = vpop.f32.mrb[0].mxu0
    %v1787 = vadd.f32 %v1498, %v1786
    %v1788 = vpop.f32.mrb[0].mxu0
    %v1789 = vpop.f32.mrb[0].mxu0
    %v1790 = vadd.f32 %v1501, %v1789
    %v1791 = vpop.f32.mrb[0].mxu0
    %1792 = vmatprep.mubr.bf16.mxu0 %v846
    %1793 = vmatmul.mubr.bf16.gmra.mrb[0].mxu0 %v845
    %v1794 = vpop.f32.mrb[0].mxu0
    %v1795 = vadd.f32 %v1506, %v1794
    %v1796 = vpop.f32.mrb[0].mxu0
    %v1797 = vpop.f32.mrb[0].mxu0
    %v1798 = vadd.f32 %v1509, %v1797
    %v1799 = vpop.f32.mrb[0].mxu0
    %1800 = vmatprep.mubr.bf16.mxu0 %v851
    %1801 = vmatmul.mubr.bf16.gmra.mrb[0].mxu0 %v850
    %v1802 = vpop.f32.mrb[0].mxu0
    %v1803 = vadd.f32 %v1514, %v1802
    %v1804 = vpop.f32.mrb[0].mxu0
    %v1805 = vpop.f32.mrb[0].mxu0
    %v1806 = vadd.f32 %v1517, %v1805
    %v1807 = vpop.f32.mrb[0].mxu0
    %1808 = vmatprep.mubr.bf16.mxu0 %v856
    %1809 = vmatmul.mubr.bf16.gmra.mrb[0].mxu0 %v855
    %v1810 = vpop.f32.mrb[0].mxu0
    %v1811 = vadd.f32 %v1522, %v1810
    %v1812 = vpop.f32.mrb[0].mxu0
    %v1813 = vpop.f32.mrb[0].mxu0
    %v1814 = vadd.f32 %v1525, %v1813
    %v1815 = vpop.f32.mrb[0].mxu0
    %1816 = vmatprep.mubr.bf16.mxu0 %v861
    %1817 = vmatmul.mubr.bf16.gmra.mrb[0].mxu0 %v860
    %v1818 = vpop.f32.mrb[0].mxu0
    %v1819 = vadd.f32 %v1530, %v1818
    %v1820 = vpop.f32.mrb[0].mxu0
    %v1821 = vpop.f32.mrb[0].mxu0
    %v1822 = vadd.f32 %v1533, %v1821
    %v1823 = vpop.f32.mrb[0].mxu0
    %1824 = vmatprep.mubr.bf16.mxu0 %v866
    %1825 = vmatmul.mubr.bf16.gmra.mrb[0].mxu0 %v865
    %v1826 = vpop.f32.mrb[0].mxu0
    %v1827 = vadd.f32 %v1538, %v1826
    %v1828 = vpop.f32.mrb[0].mxu0
    %v1829 = vpop.f32.mrb[0].mxu0
    %v1830 = vadd.f32 %v1541, %v1829
    %v1831 = vpop.f32.mrb[0].mxu0
    %1832 = vmatprep.mubr.bf16.mxu0 %v871
    %1833 = vmatmul.mubr.bf16.gmra.mrb[0].mxu0 %v870
    %v1834 = vpop.f32.mrb[0].mxu0
    %v1835 = vadd.f32 %v1546, %v1834
    %v1836 = vpop.f32.mrb[0].mxu0
    %v1837 = vpop.f32.mrb[0].mxu0
    %v1838 = vadd.f32 %v1549, %v1837
    %v1839 = vpop.f32.mrb[0].mxu0
    %1840 = vmatprep.mubr.bf16.mxu0 %v876
    %1841 = vmatmul.mubr.bf16.gmra.mrb[0].mxu0 %v875
    %v1842 = vpop.f32.mrb[0].mxu0
    %v1843 = vadd.f32 %v1554, %v1842
    %v1844 = vpop.f32.mrb[0].mxu0
    %v1845 = vpop.f32.mrb[0].mxu0
    %v1846 = vadd.f32 %v1557, %v1845
    %v1847 = vpop.f32.mrb[0].mxu0
    %1848 = vmatprep.mubr.bf16.mxu0 %v881
    %1849 = vmatmul.mubr.bf16.gmra.mrb[0].mxu0 %v880
    %v1850 = vpop.f32.mrb[0].mxu0
    %v1851 = vadd.f32 %v1562, %v1850
    %v1852 = vpop.f32.mrb[0].mxu0
    %v1853 = vpop.f32.mrb[0].mxu0
    %v1854 = vadd.f32 %v1565, %v1853
    %v1855 = vpop.f32.mrb[0].mxu0
    %1856 = vmatprep.mubr.bf16.mxu0 %v886
    %1857 = vmatmul.mubr.bf16.gmra.mrb[0].mxu0 %v885
    %v1858 = vpop.f32.mrb[0].mxu0
    %v1859 = vadd.f32 %v1570, %v1858
    %v1860 = vpop.f32.mrb[0].mxu0
    %v1861 = vpop.f32.mrb[0].mxu0
    %v1862 = vadd.f32 %v1573, %v1861
    %v1863 = vpop.f32.mrb[0].mxu0
    %1864 = vmatprep.mubr.bf16.mxu0 %v891
    %1865 = vmatmul.mubr.bf16.gmra.mrb[0].mxu0 %v890
    %v1866 = vpop.f32.mrb[0].mxu0
    %v1867 = vadd.f32 %v1578, %v1866
    %v1868 = vpop.f32.mrb[0].mxu0
    %v1869 = vpop.f32.mrb[0].mxu0
    %v1870 = vadd.f32 %v1581, %v1869
    %v1871 = vpop.f32.mrb[0].mxu0
    %1872 = vmatprep.mubr.bf16.mxu0 %v896
    %1873 = vmatmul.mubr.bf16.gmra.mrb[0].mxu0 %v895
    %v1874 = vpop.f32.mrb[0].mxu0
    %v1875 = vadd.f32 %v1586, %v1874
    %v1876 = vpop.f32.mrb[0].mxu0
    %v1877 = vpop.f32.mrb[0].mxu0
    %v1878 = vadd.f32 %v1589, %v1877
    %v1879 = vpop.f32.mrb[0].mxu0
    %1880 = vmatprep.mubr.bf16.mxu0 %v901
    %1881 = vmatmul.mubr.bf16.gmra.mrb[0].mxu0 %v900
    %v1882 = vpop.f32.mrb[0].mxu0
    %v1883 = vadd.f32 %v1594, %v1882
    %v1884 = vpop.f32.mrb[0].mxu0
    %v1885 = vpop.f32.mrb[0].mxu0
    %v1886 = vadd.f32 %v1597, %v1885
    %v1887 = vpop.f32.mrb[0].mxu0
    %1888 = vmatprep.mubr.bf16.mxu0 %v906
    %1889 = vmatmul.mubr.bf16.gmra.mrb[0].mxu0 %v905
    %v1890 = vpop.f32.mrb[0].mxu0
    %v1891 = vadd.f32 %v1602, %v1890
    %v1892 = vpop.f32.mrb[0].mxu0
    %v1893 = vpop.f32.mrb[0].mxu0
    %v1894 = vadd.f32 %v1605, %v1893
    %v1895 = vpop.f32.mrb[0].mxu0
    %1896 = vmatprep.mubr.bf16.mxu0 %v911
    %1897 = vmatmul.mubr.bf16.gmra.mrb[0].mxu0 %v910
    %v1898 = vpop.f32.mrb[0].mxu0
    %v1899 = vadd.f32 %v1610, %v1898
    %v1900 = vpop.f32.mrb[0].mxu0
    %v1901 = vpop.f32.mrb[0].mxu0
    %v1902 = vadd.f32 %v1613, %v1901
    %v1903 = vpop.f32.mrb[0].mxu0
    %1904 = vmatprep.mubr.bf16.mxu0 %v916
    %1905 = vmatmul.mubr.bf16.gmra.mrb[0].mxu0 %v915
    %v1906 = vpop.f32.mrb[0].mxu0
    %v1907 = vadd.f32 %v1618, %v1906
    %v1908 = vpop.f32.mrb[0].mxu0
    %v1909 = vpop.f32.mrb[0].mxu0
    %v1910 = vadd.f32 %v1621, %v1909
    %v1911 = vpop.f32.mrb[0].mxu0
    %1912 = vmatprep.mubr.bf16.mxu0 %v921
    %1913 = vmatmul.mubr.bf16.gmra.mrb[0].mxu0 %v920
    %v1914 = vpop.f32.mrb[0].mxu0
    %v1915 = vadd.f32 %v1626, %v1914
    %v1916 = vpop.f32.mrb[0].mxu0
    %v1917 = vpop.f32.mrb[0].mxu0
    %v1918 = vadd.f32 %v1629, %v1917
    %v1919 = vpop.f32.mrb[0].mxu0
    %1920 = vmatprep.mubr.bf16.mxu0 %v926
    %1921 = vmatmul.mubr.bf16.gmra.mrb[0].mxu0 %v925
    %v1922 = vpop.f32.mrb[0].mxu0
    %v1923 = vadd.f32 %v1634, %v1922
    %v1924 = vpop.f32.mrb[0].mxu0
    %v1925 = vpop.f32.mrb[0].mxu0
    %v1926 = vadd.f32 %v1637, %v1925
    %v1927 = vpop.f32.mrb[0].mxu0
    %1928 = vmatprep.mubr.bf16.mxu0 %v931
    %1929 = vmatmul.mubr.bf16.gmra.mrb[0].mxu0 %v930
    %v1930 = vpop.f32.mrb[0].mxu0
    %v1931 = vadd.f32 %v1642, %v1930
    %v1932 = vpop.f32.mrb[0].mxu0
    %v1933 = vpop.f32.mrb[0].mxu0
    %v1934 = vadd.f32 %v1645, %v1933
    %v1935 = vpop.f32.mrb[0].mxu0
    %1936 = vmatprep.mubr.bf16.mxu0 %v936
    %1937 = vmatmul.mubr.bf16.gmra.mrb[0].mxu0 %v935
    %v1938 = vpop.f32.mrb[0].mxu0
    %v1939 = vadd.f32 %v1650, %v1938
    %v1940 = vpop.f32.mrb[0].mxu0
    %v1941 = vpop.f32.mrb[0].mxu0
    %v1942 = vadd.f32 %v1653, %v1941
    %v1943 = vpop.f32.mrb[0].mxu0
    %1944 = vmatprep.mubr.bf16.mxu0 %v941
    %1945 = vmatmul.mubr.bf16.gmra.mrb[0].mxu0 %v940
    %v1946 = vpop.f32.mrb[0].mxu0
    %v1947 = vadd.f32 %v1658, %v1946
    %v1948 = vpop.f32.mrb[0].mxu0
    %v1949 = vpop.f32.mrb[0].mxu0
    %v1950 = vadd.f32 %v1661, %v1949
    %v1951 = vpop.f32.mrb[0].mxu0
    %1952 = vmatprep.mubr.bf16.mxu0 %v946
    %1953 = vmatmul.mubr.bf16.gmra.mrb[0].mxu0 %v945
    %v1954 = vpop.f32.mrb[0].mxu0
    %v1955 = vadd.f32 %v1666, %v1954
    %v1956 = vpop.f32.mrb[0].mxu0
    %v1957 = vpop.f32.mrb[0].mxu0
    %v1958 = vadd.f32 %v1669, %v1957
    %v1959 = vpop.f32.mrb[0].mxu0
    %1960 = vmatprep.mubr.bf16.mxu0 %v951
    %1961 = vmatmul.mubr.bf16.gmra.mrb[0].mxu0 %v950
    %v1962 = vpop.f32.mrb[0].mxu0
    %v1963 = vadd.f32 %v1674, %v1962
    %v1964 = vpop.f32.mrb[0].mxu0
    %v1965 = vpop.f32.mrb[0].mxu0
    %v1966 = vadd.f32 %v1677, %v1965
    %v1967 = vpop.f32.mrb[0].mxu0
    %1968 = vmatprep.mubr.bf16.mxu0 %v956
    %1969 = vmatmul.mubr.bf16.gmra.mrb[0].mxu0 %v955
    %v1970 = vpop.f32.mrb[0].mxu0
    %v1971 = vadd.f32 %v1682, %v1970
    %v1972 = vpop.f32.mrb[0].mxu0
    %v1973 = vpop.f32.mrb[0].mxu0
    %v1974 = vadd.f32 %v1685, %v1973
    %v1975 = vpop.f32.mrb[0].mxu0
    %1976 = vdwg.mxu0
    %1977 = vmatprep.subr.bf16.mxu0 0
    %1978 = vmatpush1.bf16.msra.mxu0 %v1262
    %1979 = vmatprep.subr.bf16.mxu0 0
    %1980 = vmatpush1.bf16.msra.mxu0 %v1263
    %1981 = vmatprep.subr.bf16.mxu0 0
    %1982 = vmatpush1.bf16.msra.mxu0 %v1264
    %1983 = vmatprep.subr.bf16.mxu0 0
    %1984 = vmatpush1.bf16.msra.mxu0 %v1265
    %1985 = vmatprep.subr.bf16.mxu0 0
    %1986 = vmatpush1.bf16.msra.mxu0 0
    %1987 = vmatprep.subr.bf16.mxu0 0
    %1988 = vmatpush1.bf16.msra.mxu0 0
    %1989 = vmatprep.subr.bf16.mxu0 0
    %1990 = vmatpush1.bf16.msra.mxu0 0
    %1991 = vmatprep.subr.bf16.mxu0 0
    %1992 = vmatpush1.bf16.msra.mxu0 0
    %1993 = vmatprep.subr.bf16.mxu0 0
    %1994 = vmatpush1.bf16.msra.mxu0 0
    %1995 = vmatprep.subr.bf16.mxu0 0
    %1996 = vmatpush1.bf16.msra.mxu0 0
    %1997 = vmatprep.subr.bf16.mxu0 0
    %1998 = vmatpush1.bf16.msra.mxu0 0
    %1999 = vmatprep.subr.bf16.mxu0 0
    %2000 = vmatpush1.bf16.msra.mxu0 0
    %2001 = vmatprep.subr.bf16.mxu0 0
    %2002 = vmatpush1.bf16.msra.mxu0 0
    %2003 = vmatprep.subr.bf16.mxu0 0
    %2004 = vmatpush1.bf16.msra.mxu0 0
    %2005 = vmatprep.subr.bf16.mxu0 0
    %2006 = vmatpush1.bf16.msra.mxu0 0
    %2007 = vmatprep.subr.bf16.mxu0 0
    %2008 = vmatpush1.bf16.msra.mxu0 0
    %2009 = vmatprep.mubr.bf16.mxu0 0
    %2010 = vmatmul.mubr.bf16.gmra.mrb[0].mxu0 %v1304
    %v2011 = vpop.f32.mrb[0].mxu0
    %v2012 = vadd.f32 %v1723, %v2011
    %v2013 = vpop.f32.mrb[0].mxu0
    %v2014 = vpop.f32.mrb[0].mxu0
    %v2015 = vadd.f32 %v1726, %v2014
    %v2016 = vpop.f32.mrb[0].mxu0
    %2017 = vmatprep.mubr.bf16.mxu0 0
    %2018 = vmatmul.mubr.bf16.gmra.mrb[0].mxu0 %v1307
    %v2019 = vpop.f32.mrb[0].mxu0
    %v2020 = vadd.f32 %v1731, %v2019
    %v2021 = vpop.f32.mrb[0].mxu0
    %v2022 = vpop.f32.mrb[0].mxu0
    %v2023 = vadd.f32 %v1734, %v2022
    %v2024 = vpop.f32.mrb[0].mxu0
    %2025 = vmatprep.mubr.bf16.mxu0 0
    %2026 = vmatmul.mubr.bf16.gmra.mrb[0].mxu0 %v1310
    %v2027 = vpop.f32.mrb[0].mxu0
    %v2028 = vadd.f32 %v1739, %v2027
    %v2029 = vpop.f32.mrb[0].mxu0
    %v2030 = vpop.f32.mrb[0].mxu0
    %v2031 = vadd.f32 %v1742, %v2030
    %v2032 = vpop.f32.mrb[0].mxu0
    %2033 = vmatprep.mubr.bf16.mxu0 0
    %2034 = vmatmul.mubr.bf16.gmra.mrb[0].mxu0 %v1313
    %v2035 = vpop.f32.mrb[0].mxu0
    %v2036 = vadd.f32 %v1747, %v2035
    %v2037 = vpop.f32.mrb[0].mxu0
    %v2038 = vpop.f32.mrb[0].mxu0
    %v2039 = vadd.f32 %v1750, %v2038
    %v2040 = vpop.f32.mrb[0].mxu0
    %2041 = vmatprep.mubr.bf16.mxu0 0
    %2042 = vmatmul.mubr.bf16.gmra.mrb[0].mxu0 %v1316
    %v2043 = vpop.f32.mrb[0].mxu0
    %v2044 = vadd.f32 %v1755, %v2043
    %v2045 = vpop.f32.mrb[0].mxu0
    %v2046 = vpop.f32.mrb[0].mxu0
    %v2047 = vadd.f32 %v1758, %v2046
    %v2048 = vpop.f32.mrb[0].mxu0
    %2049 = vmatprep.mubr.bf16.mxu0 0
    %2050 = vmatmul.mubr.bf16.gmra.mrb[0].mxu0 %v1319
    %v2051 = vpop.f32.mrb[0].mxu0
    %v2052 = vadd.f32 %v1763, %v2051
    %v2053 = vpop.f32.mrb[0].mxu0
    %v2054 = vpop.f32.mrb[0].mxu0
    %v2055 = vadd.f32 %v1766, %v2054
    %v2056 = vpop.f32.mrb[0].mxu0
    %2057 = vmatprep.mubr.bf16.mxu0 0
    %2058 = vmatmul.mubr.bf16.gmra.mrb[0].mxu0 %v1322
    %v2059 = vpop.f32.mrb[0].mxu0
    %v2060 = vadd.f32 %v1771, %v2059
    %v2061 = vpop.f32.mrb[0].mxu0
    %v2062 = vpop.f32.mrb[0].mxu0
    %v2063 = vadd.f32 %v1774, %v2062
    %v2064 = vpop.f32.mrb[0].mxu0
    %2065 = vmatprep.mubr.bf16.mxu0 0
    %2066 = vmatmul.mubr.bf16.gmra.mrb[0].mxu0 %v1325
    %v2067 = vpop.f32.mrb[0].mxu0
    %v2068 = vadd.f32 %v1779, %v2067
    %v2069 = vpop.f32.mrb[0].mxu0
    %v2070 = vpop.f32.mrb[0].mxu0
    %v2071 = vadd.f32 %v1782, %v2070
    %v2072 = vpop.f32.mrb[0].mxu0
    %2073 = vmatprep.mubr.bf16.mxu0 0
    %2074 = vmatmul.mubr.bf16.gmra.mrb[0].mxu0 %v1328
    %v2075 = vpop.f32.mrb[0].mxu0
    %v2076 = vadd.f32 %v1787, %v2075
    %v2077 = vpop.f32.mrb[0].mxu0
    %v2078 = vpop.f32.mrb[0].mxu0
    %v2079 = vadd.f32 %v1790, %v2078
    %v2080 = vpop.f32.mrb[0].mxu0
    %2081 = vmatprep.mubr.bf16.mxu0 0
    %2082 = vmatmul.mubr.bf16.gmra.mrb[0].mxu0 %v1331
    %v2083 = vpop.f32.mrb[0].mxu0
    %v2084 = vadd.f32 %v1795, %v2083
    %v2085 = vpop.f32.mrb[0].mxu0
    %v2086 = vpop.f32.mrb[0].mxu0
    %v2087 = vadd.f32 %v1798, %v2086
    %v2088 = vpop.f32.mrb[0].mxu0
    %2089 = vmatprep.mubr.bf16.mxu0 0
    %2090 = vmatmul.mubr.bf16.gmra.mrb[0].mxu0 %v1334
    %v2091 = vpop.f32.mrb[0].mxu0
    %v2092 = vadd.f32 %v1803, %v2091
    %v2093 = vpop.f32.mrb[0].mxu0
    %v2094 = vpop.f32.mrb[0].mxu0
    %v2095 = vadd.f32 %v1806, %v2094
    %v2096 = vpop.f32.mrb[0].mxu0
    %2097 = vmatprep.mubr.bf16.mxu0 0
    %2098 = vmatmul.mubr.bf16.gmra.mrb[0].mxu0 %v1337
    %v2099 = vpop.f32.mrb[0].mxu0
    %v2100 = vadd.f32 %v1811, %v2099
    %v2101 = vpop.f32.mrb[0].mxu0
    %v2102 = vpop.f32.mrb[0].mxu0
    %v2103 = vadd.f32 %v1814, %v2102
    %v2104 = vpop.f32.mrb[0].mxu0
    %2105 = vmatprep.mubr.bf16.mxu0 0
    %2106 = vmatmul.mubr.bf16.gmra.mrb[0].mxu0 %v1340
    %v2107 = vpop.f32.mrb[0].mxu0
    %v2108 = vadd.f32 %v1819, %v2107
    %v2109 = vpop.f32.mrb[0].mxu0
    %v2110 = vpop.f32.mrb[0].mxu0
    %v2111 = vadd.f32 %v1822, %v2110
    %v2112 = vpop.f32.mrb[0].mxu0
    %2113 = vmatprep.mubr.bf16.mxu0 0
    %2114 = vmatmul.mubr.bf16.gmra.mrb[0].mxu0 %v1343
    %v2115 = vpop.f32.mrb[0].mxu0
    %v2116 = vadd.f32 %v1827, %v2115
    %v2117 = vpop.f32.mrb[0].mxu0
    %v2118 = vpop.f32.mrb[0].mxu0
    %v2119 = vadd.f32 %v1830, %v2118
    %v2120 = vpop.f32.mrb[0].mxu0
    %2121 = vmatprep.mubr.bf16.mxu0 0
    %2122 = vmatmul.mubr.bf16.gmra.mrb[0].mxu0 %v1346
    %v2123 = vpop.f32.mrb[0].mxu0
    %v2124 = vadd.f32 %v1835, %v2123
    %v2125 = vpop.f32.mrb[0].mxu0
    %v2126 = vpop.f32.mrb[0].mxu0
    %v2127 = vadd.f32 %v1838, %v2126
    %v2128 = vpop.f32.mrb[0].mxu0
    %2129 = vmatprep.mubr.bf16.mxu0 0
    %2130 = vmatmul.mubr.bf16.gmra.mrb[0].mxu0 %v1349
    %v2131 = vpop.f32.mrb[0].mxu0
    %v2132 = vadd.f32 %v1843, %v2131
    %v2133 = vpop.f32.mrb[0].mxu0
    %v2134 = vpop.f32.mrb[0].mxu0
    %v2135 = vadd.f32 %v1846, %v2134
    %v2136 = vpop.f32.mrb[0].mxu0
    %2137 = vmatprep.mubr.bf16.mxu0 0
    %2138 = vmatmul.mubr.bf16.gmra.mrb[0].mxu0 %v1352
    %v2139 = vpop.f32.mrb[0].mxu0
    %v2140 = vadd.f32 %v1851, %v2139
    %v2141 = vpop.f32.mrb[0].mxu0
    %v2142 = vpop.f32.mrb[0].mxu0
    %v2143 = vadd.f32 %v1854, %v2142
    %v2144 = vpop.f32.mrb[0].mxu0
    %2145 = vmatprep.mubr.bf16.mxu0 0
    %2146 = vmatmul.mubr.bf16.gmra.mrb[0].mxu0 %v1355
    %v2147 = vpop.f32.mrb[0].mxu0
    %v2148 = vadd.f32 %v1859, %v2147
    %v2149 = vpop.f32.mrb[0].mxu0
    %v2150 = vpop.f32.mrb[0].mxu0
    %v2151 = vadd.f32 %v1862, %v2150
    %v2152 = vpop.f32.mrb[0].mxu0
    %2153 = vmatprep.mubr.bf16.mxu0 0
    %2154 = vmatmul.mubr.bf16.gmra.mrb[0].mxu0 %v1358
    %v2155 = vpop.f32.mrb[0].mxu0
    %v2156 = vadd.f32 %v1867, %v2155
    %v2157 = vpop.f32.mrb[0].mxu0
    %v2158 = vpop.f32.mrb[0].mxu0
    %v2159 = vadd.f32 %v1870, %v2158
    %v2160 = vpop.f32.mrb[0].mxu0
    %2161 = vmatprep.mubr.bf16.mxu0 0
    %2162 = vmatmul.mubr.bf16.gmra.mrb[0].mxu0 %v1361
    %v2163 = vpop.f32.mrb[0].mxu0
    %v2164 = vadd.f32 %v1875, %v2163
    %v2165 = vpop.f32.mrb[0].mxu0
    %v2166 = vpop.f32.mrb[0].mxu0
    %v2167 = vadd.f32 %v1878, %v2166
    %v2168 = vpop.f32.mrb[0].mxu0
    %2169 = vmatprep.mubr.bf16.mxu0 0
    %2170 = vmatmul.mubr.bf16.gmra.mrb[0].mxu0 %v1364
    %v2171 = vpop.f32.mrb[0].mxu0
    %v2172 = vadd.f32 %v1883, %v2171
    %v2173 = vpop.f32.mrb[0].mxu0
    %v2174 = vpop.f32.mrb[0].mxu0
    %v2175 = vadd.f32 %v1886, %v2174
    %v2176 = vpop.f32.mrb[0].mxu0
    %2177 = vmatprep.mubr.bf16.mxu0 0
    %2178 = vmatmul.mubr.bf16.gmra.mrb[0].mxu0 %v1367
    %v2179 = vpop.f32.mrb[0].mxu0
    %v2180 = vadd.f32 %v1891, %v2179
    %v2181 = vpop.f32.mrb[0].mxu0
    %v2182 = vpop.f32.mrb[0].mxu0
    %v2183 = vadd.f32 %v1894, %v2182
    %v2184 = vpop.f32.mrb[0].mxu0
    %2185 = vmatprep.mubr.bf16.mxu0 0
    %2186 = vmatmul.mubr.bf16.gmra.mrb[0].mxu0 %v1370
    %v2187 = vpop.f32.mrb[0].mxu0
    %v2188 = vadd.f32 %v1899, %v2187
    %v2189 = vpop.f32.mrb[0].mxu0
    %v2190 = vpop.f32.mrb[0].mxu0
    %v2191 = vadd.f32 %v1902, %v2190
    %v2192 = vpop.f32.mrb[0].mxu0
    %2193 = vmatprep.mubr.bf16.mxu0 0
    %2194 = vmatmul.mubr.bf16.gmra.mrb[0].mxu0 %v1373
    %v2195 = vpop.f32.mrb[0].mxu0
    %v2196 = vadd.f32 %v1907, %v2195
    %v2197 = vpop.f32.mrb[0].mxu0
    %v2198 = vpop.f32.mrb[0].mxu0
    %v2199 = vadd.f32 %v1910, %v2198
    %v2200 = vpop.f32.mrb[0].mxu0
    %2201 = vmatprep.mubr.bf16.mxu0 0
    %2202 = vmatmul.mubr.bf16.gmra.mrb[0].mxu0 %v1376
    %v2203 = vpop.f32.mrb[0].mxu0
    %v2204 = vadd.f32 %v1915, %v2203
    %v2205 = vpop.f32.mrb[0].mxu0
    %v2206 = vpop.f32.mrb[0].mxu0
    %v2207 = vadd.f32 %v1918, %v2206
    %v2208 = vpop.f32.mrb[0].mxu0
    %2209 = vmatprep.mubr.bf16.mxu0 0
    %2210 = vmatmul.mubr.bf16.gmra.mrb[0].mxu0 %v1379
    %v2211 = vpop.f32.mrb[0].mxu0
    %v2212 = vadd.f32 %v1923, %v2211
    %v2213 = vpop.f32.mrb[0].mxu0
    %v2214 = vpop.f32.mrb[0].mxu0
    %v2215 = vadd.f32 %v1926, %v2214
    %v2216 = vpop.f32.mrb[0].mxu0
    %2217 = vmatprep.mubr.bf16.mxu0 0
    %2218 = vmatmul.mubr.bf16.gmra.mrb[0].mxu0 %v1382
    %v2219 = vpop.f32.mrb[0].mxu0
    %v2220 = vadd.f32 %v1931, %v2219
    %v2221 = vpop.f32.mrb[0].mxu0
    %v2222 = vpop.f32.mrb[0].mxu0
    %v2223 = vadd.f32 %v1934, %v2222
    %v2224 = vpop.f32.mrb[0].mxu0
    %2225 = vmatprep.mubr.bf16.mxu0 0
    %2226 = vmatmul.mubr.bf16.gmra.mrb[0].mxu0 %v1385
    %v2227 = vpop.f32.mrb[0].mxu0
    %v2228 = vadd.f32 %v1939, %v2227
    %v2229 = vpop.f32.mrb[0].mxu0
    %v2230 = vpop.f32.mrb[0].mxu0
    %v2231 = vadd.f32 %v1942, %v2230
    %v2232 = vpop.f32.mrb[0].mxu0
    %2233 = vmatprep.mubr.bf16.mxu0 0
    %2234 = vmatmul.mubr.bf16.gmra.mrb[0].mxu0 %v1388
    %v2235 = vpop.f32.mrb[0].mxu0
    %v2236 = vadd.f32 %v1947, %v2235
    %v2237 = vpop.f32.mrb[0].mxu0
    %v2238 = vpop.f32.mrb[0].mxu0
    %v2239 = vadd.f32 %v1950, %v2238
    %v2240 = vpop.f32.mrb[0].mxu0
    %2241 = vmatprep.mubr.bf16.mxu0 0
    %2242 = vmatmul.mubr.bf16.gmra.mrb[0].mxu0 %v1391
    %v2243 = vpop.f32.mrb[0].mxu0
    %v2244 = vadd.f32 %v1955, %v2243
    %v2245 = vpop.f32.mrb[0].mxu0
    %v2246 = vpop.f32.mrb[0].mxu0
    %v2247 = vadd.f32 %v1958, %v2246
    %v2248 = vpop.f32.mrb[0].mxu0
    %2249 = vmatprep.mubr.bf16.mxu0 0
    %2250 = vmatmul.mubr.bf16.gmra.mrb[0].mxu0 %v1394
    %v2251 = vpop.f32.mrb[0].mxu0
    %v2252 = vadd.f32 %v1963, %v2251
    %v2253 = vpop.f32.mrb[0].mxu0
    %v2254 = vpop.f32.mrb[0].mxu0
    %v2255 = vadd.f32 %v1966, %v2254
    %v2256 = vpop.f32.mrb[0].mxu0
    %2257 = vmatprep.mubr.bf16.mxu0 0
    %2258 = vmatmul.mubr.bf16.gmra.mrb[0].mxu0 %v1397
    %v2259 = vpop.f32.mrb[0].mxu0
    %v2260 = vadd.f32 %v1971, %v2259
    %v2261 = vpop.f32.mrb[0].mxu0
    %v2262 = vpop.f32.mrb[0].mxu0
    %v2263 = vadd.f32 %v1974, %v2262
    %v2264 = vpop.f32.mrb[0].mxu0
    %2265 = vdwg.mxu0
    %v2266 = vld [vmem:[%s2] sm:$0x1]
    %v2268 = vlaneseq
    %v2269 = vshrl.u32 %v2268, 7
    %v2270 = vsub.s32 0, %v2269
    %v2271 = vrot.slane %v2266, %v2270
    %v2273 = vmul.f32 %v2012, %v2271
    %v2274 = vmul.f32 %v2015, %v2271
    %v2275 = vmul.f32 %v2020, %v2271
    %v2276 = vmul.f32 %v2023, %v2271
    %v2277 = vmul.f32 %v2028, %v2271
    %v2278 = vmul.f32 %v2031, %v2271
    %v2279 = vmul.f32 %v2036, %v2271
    %v2280 = vmul.f32 %v2039, %v2271
    %v2281 = vmul.f32 %v2044, %v2271
    %v2282 = vmul.f32 %v2047, %v2271
    %v2283 = vmul.f32 %v2052, %v2271
    %v2284 = vmul.f32 %v2055, %v2271
    %v2285 = vmul.f32 %v2060, %v2271
    %v2286 = vmul.f32 %v2063, %v2271
    %v2287 = vmul.f32 %v2068, %v2271
    %v2288 = vmul.f32 %v2071, %v2271
    %v2289 = vmul.f32 %v2076, %v2271
    %v2290 = vmul.f32 %v2079, %v2271
    %v2291 = vmul.f32 %v2084, %v2271
    %v2292 = vmul.f32 %v2087, %v2271
    %v2293 = vmul.f32 %v2092, %v2271
    %v2294 = vmul.f32 %v2095, %v2271
    %v2295 = vmul.f32 %v2100, %v2271
    %v2296 = vmul.f32 %v2103, %v2271
    %v2297 = vmul.f32 %v2108, %v2271
    %v2298 = vmul.f32 %v2111, %v2271
    %v2299 = vmul.f32 %v2116, %v2271
    %v2300 = vmul.f32 %v2119, %v2271
    %v2301 = vmul.f32 %v2124, %v2271
    %v2302 = vmul.f32 %v2127, %v2271
    %v2303 = vmul.f32 %v2132, %v2271
    %v2304 = vmul.f32 %v2135, %v2271
    %v2305 = vmul.f32 %v2140, %v2271
    %v2306 = vmul.f32 %v2143, %v2271
    %v2307 = vmul.f32 %v2148, %v2271
    %v2308 = vmul.f32 %v2151, %v2271
    %v2309 = vmul.f32 %v2156, %v2271
    %v2310 = vmul.f32 %v2159, %v2271
    %v2311 = vmul.f32 %v2164, %v2271
    %v2312 = vmul.f32 %v2167, %v2271
    %v2313 = vmul.f32 %v2172, %v2271
    %v2314 = vmul.f32 %v2175, %v2271
    %v2315 = vmul.f32 %v2180, %v2271
    %v2316 = vmul.f32 %v2183, %v2271
    %v2317 = vmul.f32 %v2188, %v2271
    %v2318 = vmul.f32 %v2191, %v2271
    %v2319 = vmul.f32 %v2196, %v2271
    %v2320 = vmul.f32 %v2199, %v2271
    %v2321 = vmul.f32 %v2204, %v2271
    %v2322 = vmul.f32 %v2207, %v2271
    %v2323 = vmul.f32 %v2212, %v2271
    %v2324 = vmul.f32 %v2215, %v2271
    %v2325 = vmul.f32 %v2220, %v2271
    %v2326 = vmul.f32 %v2223, %v2271
    %v2327 = vmul.f32 %v2228, %v2271
    %v2328 = vmul.f32 %v2231, %v2271
    %v2329 = vmul.f32 %v2236, %v2271
    %v2330 = vmul.f32 %v2239, %v2271
    %v2331 = vmul.f32 %v2244, %v2271
    %v2332 = vmul.f32 %v2247, %v2271
    %v2333 = vmul.f32 %v2252, %v2271
    %v2334 = vmul.f32 %v2255, %v2271
    %v2335 = vmul.f32 %v2260, %v2271
    %v2336 = vmul.f32 %v2263, %v2271
    %v2337 = vld [vmem:[%s3] sm:$0x1]
    %v2339 = vlaneseq
    %v2340 = vshrl.u32 %v2339, 7
    %v2341 = vsub.s32 0, %v2340
    %v2342 = vrot.slane %v2337, %v2341
    %v2344 = vadd.f32 %v2273, %v2342
    %v2345 = vadd.f32 %v2274, %v2342
    %v2346 = vadd.f32 %v2275, %v2342
    %v2347 = vadd.f32 %v2276, %v2342
    %v2348 = vadd.f32 %v2277, %v2342
    %v2349 = vadd.f32 %v2278, %v2342
    %v2350 = vadd.f32 %v2279, %v2342
    %v2351 = vadd.f32 %v2280, %v2342
    %v2352 = vadd.f32 %v2281, %v2342
    %v2353 = vadd.f32 %v2282, %v2342
    %v2354 = vadd.f32 %v2283, %v2342
    %v2355 = vadd.f32 %v2284, %v2342
    %v2356 = vadd.f32 %v2285, %v2342
    %v2357 = vadd.f32 %v2286, %v2342
    %v2358 = vadd.f32 %v2287, %v2342
    %v2359 = vadd.f32 %v2288, %v2342
    %v2360 = vadd.f32 %v2289, %v2342
    %v2361 = vadd.f32 %v2290, %v2342
    %v2362 = vadd.f32 %v2291, %v2342
    %v2363 = vadd.f32 %v2292, %v2342
    %v2364 = vadd.f32 %v2293, %v2342
    %v2365 = vadd.f32 %v2294, %v2342
    %v2366 = vadd.f32 %v2295, %v2342
    %v2367 = vadd.f32 %v2296, %v2342
    %v2368 = vadd.f32 %v2297, %v2342
    %v2369 = vadd.f32 %v2298, %v2342
    %v2370 = vadd.f32 %v2299, %v2342
    %v2371 = vadd.f32 %v2300, %v2342
    %v2372 = vadd.f32 %v2301, %v2342
    %v2373 = vadd.f32 %v2302, %v2342
    %v2374 = vadd.f32 %v2303, %v2342
    %v2375 = vadd.f32 %v2304, %v2342
    %v2376 = vadd.f32 %v2305, %v2342
    %v2377 = vadd.f32 %v2306, %v2342
    %v2378 = vadd.f32 %v2307, %v2342
    %v2379 = vadd.f32 %v2308, %v2342
    %v2380 = vadd.f32 %v2309, %v2342
    %v2381 = vadd.f32 %v2310, %v2342
    %v2382 = vadd.f32 %v2311, %v2342
    %v2383 = vadd.f32 %v2312, %v2342
    %v2384 = vadd.f32 %v2313, %v2342
    %v2385 = vadd.f32 %v2314, %v2342
    %v2386 = vadd.f32 %v2315, %v2342
    %v2387 = vadd.f32 %v2316, %v2342
    %v2388 = vadd.f32 %v2317, %v2342
    %v2389 = vadd.f32 %v2318, %v2342
    %v2390 = vadd.f32 %v2319, %v2342
    %v2391 = vadd.f32 %v2320, %v2342
    %v2392 = vadd.f32 %v2321, %v2342
    %v2393 = vadd.f32 %v2322, %v2342
    %v2394 = vadd.f32 %v2323, %v2342
    %v2395 = vadd.f32 %v2324, %v2342
    %v2396 = vadd.f32 %v2325, %v2342
    %v2397 = vadd.f32 %v2326, %v2342
    %v2398 = vadd.f32 %v2327, %v2342
    %v2399 = vadd.f32 %v2328, %v2342
    %v2400 = vadd.f32 %v2329, %v2342
    %v2401 = vadd.f32 %v2330, %v2342
    %v2402 = vadd.f32 %v2331, %v2342
    %v2403 = vadd.f32 %v2332, %v2342
    %v2404 = vadd.f32 %v2333, %v2342
    %v2405 = vadd.f32 %v2334, %v2342
    %v2406 = vadd.f32 %v2335, %v2342
    %v2407 = vadd.f32 %v2336, %v2342
    %v2408 = vld [vmem:[%s4] sm:$0xff]
    %v2409 = vld [vmem:[%s4 + $0x8] sm:$0xff]
    %v2410 = vld [vmem:[%s4 + $0x10] sm:$0xff]
    %v2411 = vld [vmem:[%s4 + $0x18] sm:$0xff]
    %v2412 = vld [vmem:[%s4 + $0x20] sm:$0xff]
    %v2413 = vld [vmem:[%s4 + $0x28] sm:$0xff]
    %v2414 = vld [vmem:[%s4 + $0x30] sm:$0xff]
    %v2415 = vld [vmem:[%s4 + $0x38] sm:$0xff]
    %v2416 = vld [vmem:[%s4 + $0x40] sm:$0xff]
    %v2417 = vld [vmem:[%s4 + $0x48] sm:$0xff]
    %v2418 = vld [vmem:[%s4 + $0x50] sm:$0xff]
    %v2419 = vld [vmem:[%s4 + $0x58] sm:$0xff]
    %v2420 = vld [vmem:[%s4 + $0x60] sm:$0xff]
    %v2421 = vld [vmem:[%s4 + $0x68] sm:$0xff]
    %v2422 = vld [vmem:[%s4 + $0x70] sm:$0xff]
    %v2423 = vld [vmem:[%s4 + $0x78] sm:$0xff]
    %v2424 = vld [vmem:[%s4 + $0x80] sm:$0xff]
    %v2425 = vld [vmem:[%s4 + $0x88] sm:$0xff]
    %v2426 = vld [vmem:[%s4 + $0x90] sm:$0xff]
    %v2427 = vld [vmem:[%s4 + $0x98] sm:$0xff]
    %v2428 = vld [vmem:[%s4 + $0xa0] sm:$0xff]
    %v2429 = vld [vmem:[%s4 + $0xa8] sm:$0xff]
    %v2430 = vld [vmem:[%s4 + $0xb0] sm:$0xff]
    %v2431 = vld [vmem:[%s4 + $0xb8] sm:$0xff]
    %v2432 = vld [vmem:[%s4 + $0xc0] sm:$0xff]
    %v2433 = vld [vmem:[%s4 + $0xc8] sm:$0xff]
    %v2434 = vld [vmem:[%s4 + $0xd0] sm:$0xff]
    %v2435 = vld [vmem:[%s4 + $0xd8] sm:$0xff]
    %v2436 = vld [vmem:[%s4 + $0xe0] sm:$0xff]
    %v2437 = vld [vmem:[%s4 + $0xe8] sm:$0xff]
    %v2438 = vld [vmem:[%s4 + $0xf0] sm:$0xff]
    %v2439 = vld [vmem:[%s4 + $0xf8] sm:$0xff]
    %v2440 = vld [vmem:[%s4 + $0x100] sm:$0xff]
    %v2441 = vld [vmem:[%s4 + $0x108] sm:$0xff]
    %v2442 = vld [vmem:[%s4 + $0x110] sm:$0xff]
    %v2443 = vld [vmem:[%s4 + $0x118] sm:$0xff]
    %v2444 = vld [vmem:[%s4 + $0x120] sm:$0xff]
    %v2445 = vld [vmem:[%s4 + $0x128] sm:$0xff]
    %v2446 = vld [vmem:[%s4 + $0x130] sm:$0xff]
    %v2447 = vld [vmem:[%s4 + $0x138] sm:$0xff]
    %v2448 = vld [vmem:[%s4 + $0x140] sm:$0xff]
    %v2449 = vld [vmem:[%s4 + $0x148] sm:$0xff]
    %v2450 = vld [vmem:[%s4 + $0x150] sm:$0xff]
    %v2451 = vld [vmem:[%s4 + $0x158] sm:$0xff]
    %v2452 = vld [vmem:[%s4 + $0x160] sm:$0xff]
    %v2453 = vld [vmem:[%s4 + $0x168] sm:$0xff]
    %v2454 = vld [vmem:[%s4 + $0x170] sm:$0xff]
    %v2455 = vld [vmem:[%s4 + $0x178] sm:$0xff]
    %v2456 = vld [vmem:[%s4 + $0x180] sm:$0xff]
    %v2457 = vld [vmem:[%s4 + $0x188] sm:$0xff]
    %v2458 = vld [vmem:[%s4 + $0x190] sm:$0xff]
    %v2459 = vld [vmem:[%s4 + $0x198] sm:$0xff]
    %v2460 = vld [vmem:[%s4 + $0x1a0] sm:$0xff]
    %v2461 = vld [vmem:[%s4 + $0x1a8] sm:$0xff]
    %v2462 = vld [vmem:[%s4 + $0x1b0] sm:$0xff]
    %v2463 = vld [vmem:[%s4 + $0x1b8] sm:$0xff]
    %v2464 = vld [vmem:[%s4 + $0x1c0] sm:$0xff]
    %v2465 = vld [vmem:[%s4 + $0x1c8] sm:$0xff]
    %v2466 = vld [vmem:[%s4 + $0x1d0] sm:$0xff]
    %v2467 = vld [vmem:[%s4 + $0x1d8] sm:$0xff]
    %v2468 = vld [vmem:[%s4 + $0x1e0] sm:$0xff]
    %v2469 = vld [vmem:[%s4 + $0x1e8] sm:$0xff]
    %v2470 = vld [vmem:[%s4 + $0x1f0] sm:$0xff]
    %v2471 = vld [vmem:[%s4 + $0x1f8] sm:$0xff]
    %v2472 = vadd.f32 %v2344, %v2408
    %v2473 = vadd.f32 %v2345, %v2409
    %v2474 = vadd.f32 %v2346, %v2410
    %v2475 = vadd.f32 %v2347, %v2411
    %v2476 = vadd.f32 %v2348, %v2412
    %v2477 = vadd.f32 %v2349, %v2413
    %v2478 = vadd.f32 %v2350, %v2414
    %v2479 = vadd.f32 %v2351, %v2415
    %v2480 = vadd.f32 %v2352, %v2416
    %v2481 = vadd.f32 %v2353, %v2417
    %v2482 = vadd.f32 %v2354, %v2418
    %v2483 = vadd.f32 %v2355, %v2419
    %v2484 = vadd.f32 %v2356, %v2420
    %v2485 = vadd.f32 %v2357, %v2421
    %v2486 = vadd.f32 %v2358, %v2422
    %v2487 = vadd.f32 %v2359, %v2423
    %v2488 = vadd.f32 %v2360, %v2424
    %v2489 = vadd.f32 %v2361, %v2425
    %v2490 = vadd.f32 %v2362, %v2426
    %v2491 = vadd.f32 %v2363, %v2427
    %v2492 = vadd.f32 %v2364, %v2428
    %v2493 = vadd.f32 %v2365, %v2429
    %v2494 = vadd.f32 %v2366, %v2430
    %v2495 = vadd.f32 %v2367, %v2431
    %v2496 = vadd.f32 %v2368, %v2432
    %v2497 = vadd.f32 %v2369, %v2433
    %v2498 = vadd.f32 %v2370, %v2434
    %v2499 = vadd.f32 %v2371, %v2435
    %v2500 = vadd.f32 %v2372, %v2436
    %v2501 = vadd.f32 %v2373, %v2437
    %v2502 = vadd.f32 %v2374, %v2438
    %v2503 = vadd.f32 %v2375, %v2439
    %v2504 = vadd.f32 %v2376, %v2440
    %v2505 = vadd.f32 %v2377, %v2441
    %v2506 = vadd.f32 %v2378, %v2442
    %v2507 = vadd.f32 %v2379, %v2443
    %v2508 = vadd.f32 %v2380, %v2444
    %v2509 = vadd.f32 %v2381, %v2445
    %v2510 = vadd.f32 %v2382, %v2446
    %v2511 = vadd.f32 %v2383, %v2447
    %v2512 = vadd.f32 %v2384, %v2448
    %v2513 = vadd.f32 %v2385, %v2449
    %v2514 = vadd.f32 %v2386, %v2450
    %v2515 = vadd.f32 %v2387, %v2451
    %v2516 = vadd.f32 %v2388, %v2452
    %v2517 = vadd.f32 %v2389, %v2453
    %v2518 = vadd.f32 %v2390, %v2454
    %v2519 = vadd.f32 %v2391, %v2455
    %v2520 = vadd.f32 %v2392, %v2456
    %v2521 = vadd.f32 %v2393, %v2457
    %v2522 = vadd.f32 %v2394, %v2458
    %v2523 = vadd.f32 %v2395, %v2459
    %v2524 = vadd.f32 %v2396, %v2460
    %v2525 = vadd.f32 %v2397, %v2461
    %v2526 = vadd.f32 %v2398, %v2462
    %v2527 = vadd.f32 %v2399, %v2463
    %v2528 = vadd.f32 %v2400, %v2464
    %v2529 = vadd.f32 %v2401, %v2465
    %v2530 = vadd.f32 %v2402, %v2466
    %v2531 = vadd.f32 %v2403, %v2467
    %v2532 = vadd.f32 %v2404, %v2468
    %v2533 = vadd.f32 %v2405, %v2469
    %v2534 = vadd.f32 %v2406, %v2470
    %v2535 = vadd.f32 %v2407, %v2471
    %2536 = vst.msk [vmem:[#allocation2] sm:$0xff] %vm1302, %v2472
    %2537 = vst.msk [vmem:[#allocation2 + $0x8] sm:$0xff] %vm1302, %v2473
    %2538 = vst.msk [vmem:[#allocation2 + $0x10] sm:$0xff] %vm1302, %v2474
    %2539 = vst.msk [vmem:[#allocation2 + $0x18] sm:$0xff] %vm1302, %v2475
    %2540 = vst.msk [vmem:[#allocation2 + $0x20] sm:$0xff] %vm1302, %v2476
    %2541 = vst.msk [vmem:[#allocation2 + $0x28] sm:$0xff] %vm1302, %v2477
    %2542 = vst.msk [vmem:[#allocation2 + $0x30] sm:$0xff] %vm1302, %v2478
    %2543 = vst.msk [vmem:[#allocation2 + $0x38] sm:$0xff] %vm1302, %v2479
    %2544 = vst.msk [vmem:[#allocation2 + $0x40] sm:$0xff] %vm1302, %v2480
    %2545 = vst.msk [vmem:[#allocation2 + $0x48] sm:$0xff] %vm1302, %v2481
    %2546 = vst.msk [vmem:[#allocation2 + $0x50] sm:$0xff] %vm1302, %v2482
    %2547 = vst.msk [vmem:[#allocation2 + $0x58] sm:$0xff] %vm1302, %v2483
    %2548 = vst.msk [vmem:[#allocation2 + $0x60] sm:$0xff] %vm1302, %v2484
    %2549 = vst.msk [vmem:[#allocation2 + $0x68] sm:$0xff] %vm1302, %v2485
    %2550 = vst.msk [vmem:[#allocation2 + $0x70] sm:$0xff] %vm1302, %v2486
    %2551 = vst.msk [vmem:[#allocation2 + $0x78] sm:$0xff] %vm1302, %v2487
    %2552 = vst.msk [vmem:[#allocation2 + $0x80] sm:$0xff] %vm1302, %v2488
    %2553 = vst.msk [vmem:[#allocation2 + $0x88] sm:$0xff] %vm1302, %v2489
    %2554 = vst.msk [vmem:[#allocation2 + $0x90] sm:$0xff] %vm1302, %v2490
    %2555 = vst.msk [vmem:[#allocation2 + $0x98] sm:$0xff] %vm1302, %v2491
    %2556 = vst.msk [vmem:[#allocation2 + $0xa0] sm:$0xff] %vm1302, %v2492
    %2557 = vst.msk [vmem:[#allocation2 + $0xa8] sm:$0xff] %vm1302, %v2493
    %2558 = vst.msk [vmem:[#allocation2 + $0xb0] sm:$0xff] %vm1302, %v2494
    %2559 = vst.msk [vmem:[#allocation2 + $0xb8] sm:$0xff] %vm1302, %v2495
    %2560 = vst.msk [vmem:[#allocation2 + $0xc0] sm:$0xff] %vm1302, %v2496
    %2561 = vst.msk [vmem:[#allocation2 + $0xc8] sm:$0xff] %vm1302, %v2497
    %2562 = vst.msk [vmem:[#allocation2 + $0xd0] sm:$0xff] %vm1302, %v2498
    %2563 = vst.msk [vmem:[#allocation2 + $0xd8] sm:$0xff] %vm1302, %v2499
    %2564 = vst.msk [vmem:[#allocation2 + $0xe0] sm:$0xff] %vm1302, %v2500
    %2565 = vst.msk [vmem:[#allocation2 + $0xe8] sm:$0xff] %vm1302, %v2501
    %2566 = vst.msk [vmem:[#allocation2 + $0xf0] sm:$0xff] %vm1302, %v2502
    %2567 = vst.msk [vmem:[#allocation2 + $0xf8] sm:$0xff] %vm1302, %v2503
    %2568 = vst.msk [vmem:[#allocation2 + $0x100] sm:$0xff] %vm1302, %v2504
    %2569 = vst.msk [vmem:[#allocation2 + $0x108] sm:$0xff] %vm1302, %v2505
    %2570 = vst.msk [vmem:[#allocation2 + $0x110] sm:$0xff] %vm1302, %v2506
    %2571 = vst.msk [vmem:[#allocation2 + $0x118] sm:$0xff] %vm1302, %v2507
    %2572 = vst.msk [vmem:[#allocation2 + $0x120] sm:$0xff] %vm1302, %v2508
    %2573 = vst.msk [vmem:[#allocation2 + $0x128] sm:$0xff] %vm1302, %v2509
    %2574 = vst.msk [vmem:[#allocation2 + $0x130] sm:$0xff] %vm1302, %v2510
    %2575 = vst.msk [vmem:[#allocation2 + $0x138] sm:$0xff] %vm1302, %v2511
    %2576 = vst.msk [vmem:[#allocation2 + $0x140] sm:$0xff] %vm1302, %v2512
    %2577 = vst.msk [vmem:[#allocation2 + $0x148] sm:$0xff] %vm1302, %v2513
    %2578 = vst.msk [vmem:[#allocation2 + $0x150] sm:$0xff] %vm1302, %v2514
    %2579 = vst.msk [vmem:[#allocation2 + $0x158] sm:$0xff] %vm1302, %v2515
    %2580 = vst.msk [vmem:[#allocation2 + $0x160] sm:$0xff] %vm1302, %v2516
    %2581 = vst.msk [vmem:[#allocation2 + $0x168] sm:$0xff] %vm1302, %v2517
    %2582 = vst.msk [vmem:[#allocation2 + $0x170] sm:$0xff] %vm1302, %v2518
    %2583 = vst.msk [vmem:[#allocation2 + $0x178] sm:$0xff] %vm1302, %v2519
    %2584 = vst.msk [vmem:[#allocation2 + $0x180] sm:$0xff] %vm1302, %v2520
    %2585 = vst.msk [vmem:[#allocation2 + $0x188] sm:$0xff] %vm1302, %v2521
    %2586 = vst.msk [vmem:[#allocation2 + $0x190] sm:$0xff] %vm1302, %v2522
    %2587 = vst.msk [vmem:[#allocation2 + $0x198] sm:$0xff] %vm1302, %v2523
    %2588 = vst.msk [vmem:[#allocation2 + $0x1a0] sm:$0xff] %vm1302, %v2524
    %2589 = vst.msk [vmem:[#allocation2 + $0x1a8] sm:$0xff] %vm1302, %v2525
    %2590 = vst.msk [vmem:[#allocation2 + $0x1b0] sm:$0xff] %vm1302, %v2526
    %2591 = vst.msk [vmem:[#allocation2 + $0x1b8] sm:$0xff] %vm1302, %v2527
    %2592 = vst.msk [vmem:[#allocation2 + $0x1c0] sm:$0xff] %vm1302, %v2528
    %2593 = vst.msk [vmem:[#allocation2 + $0x1c8] sm:$0xff] %vm1302, %v2529
    %2594 = vst.msk [vmem:[#allocation2 + $0x1d0] sm:$0xff] %vm1302, %v2530
    %2595 = vst.msk [vmem:[#allocation2 + $0x1d8] sm:$0xff] %vm1302, %v2531
    %2596 = vst.msk [vmem:[#allocation2 + $0x1e0] sm:$0xff] %vm1302, %v2532
    %2597 = vst.msk [vmem:[#allocation2 + $0x1e8] sm:$0xff] %vm1302, %v2533
    %2598 = vst.msk [vmem:[#allocation2 + $0x1f0] sm:$0xff] %vm1302, %v2534
    %2599 = vst.msk [vmem:[#allocation2 + $0x1f8] sm:$0xff] %vm1302, %v2535
    // Predicated region
    $region22: #{_lambda_.9} parent=1 // pred_check
      _
    $region23: #{_lambda_.9} parent=1 // pred_check_branch
      %2601 = sbr.rel (0) target = $region25
    $region24: #{_lambda_.9} parent=1 // pred_region
      %s2603 = ssub.s32 8192, 8192
      %2604 = vsyncadd [#allocation3], %s2603
      %s2605 = sshll.u32 [#allocation2], 4
      %s2606 = int_to_ptr.vmem [resolvable:$true] %s2605
      %2611 = dma.vmem_to_hbm [thread:$0]  %s2606, 8192, %s5, [#allocation3], 128, 128, 8
    $region25: #{_lambda_.9} parent=1 // pred_fallthru
      _
    // Predicated region
    $region26: #{_lambda_.9} parent=1 // pred_check
      _
    $region27: #{_lambda_.9} parent=1 // pred_check_branch
      %2613 = sbr.rel (0) target = $region29
    $region28: #{_lambda_.9} parent=1 // pred_region
      %2614 = dma.done [#allocation3], 8192
    $region29: #{_lambda_.9} parent=1 // pred_fallthru
      _
    %2615 = vsyncpa [#allocation3], 1

</llo_original>
